<compile_context>
chip_gen: v6e
topology: v6e:2x2x1
jax: 0.10.0
libtpu: 0.0.40
codegen_flags: <defaults>
</compile_context>

<pallas_src>
import functools

import jax
import jax.numpy as jnp
from jax.experimental import pallas as pl
from jax.experimental.pallas import tpu as pltpu

EPS = 1e-5
VMEM_LIMIT = 32 * 1024 * 1024  # safe scoped-VMEM budget on v5e/v6e/v7x


# ----------------------------------------------------------------------------
# in-kernel helpers
# ----------------------------------------------------------------------------
def _bn_per_view(y, n_views, gamma=None, beta=None):
    """Training-mode BatchNorm1d (biased batch stats, eps=1e-5) with statistics
    computed SEPARATELY for each view.  y: (n_views * B, C); view v occupies
    rows [v*B, (v+1)*B).  Uses static per-view sublane slices (B should be a
    multiple of 8 for tile-aligned slices)."""
    r, _ = y.shape
    bv = r // n_views
    parts = []
    for v in range(n_views):
        yv = y[v * bv:(v + 1) * bv]                                  # (B, C)
        mean = jnp.mean(yv, axis=0, keepdims=True)                   # (1, C)
        centered = yv - mean
        var = jnp.mean(centered * centered, axis=0, keepdims=True)   # (1, C)
        parts.append(centered * jax.lax.rsqrt(var + EPS))            # rsqrt->EUP
    yhat = jnp.concatenate(parts, axis=0)
    if gamma is not None:
        yhat = yhat * gamma + beta
    return yhat


# ----------------------------------------------------------------------------
# fused Pallas kernel: backbone + projector (+ predictor for the online net)
# ----------------------------------------------------------------------------
def byol_kernel(patches_ref, convw_ref,
                w1_ref, g1_ref, b1_ref, w2_ref, g2_ref, b2_ref,
                w3_ref, bias3_ref,
                wp1_ref, gp_ref, bp_ref, wp2_ref, biasp_ref,
                z_ref, p_ref, *, n_views):
    """Grid axis 0 = network index (0 = online, 1 = target).

    patches_ref : (2B*H*W, Kpad)  bf16 im2col patches of both views (shared)
    convw_ref   : (1, Kpad, F)    bf16 im2col conv weights for this network
    w*/g*/b*    : (1, ...)        projector weights (bf16) / BN params (f32)
    wp*/gp/bp   : shared          predictor weights (bf16) / BN params (f32)
    z_ref       : (1, 2B, dim)    projector output z for this network
    p_ref       : (1, 2B, dim)    predictor output (only written for net 0)
    """
    net = pl.program_id(0)
    bf16 = jnp.bfloat16
    f32 = jnp.float32

    n_imgs = z_ref.shape[1]
    npix = patches_ref.shape[0]
    hw = npix // n_imgs
    feat = convw_ref.shape[-1]

    # --- 3x3 conv as a single im2col matmul -> ReLU (bf16 MXU, f32 acc) ------
    act = jnp.maximum(
        jnp.dot(patches_ref[...], convw_ref[0], preferred_element_type=f32),
        0.0)                                                   # (2B*H*W, F)

    # --- global average pool: sublane-split reshape + mean (no pool matmul) --
    feats = jnp.mean(act.reshape(n_imgs, hw, feat), axis=1)    # (2B, F)

    # --- projector: Linear->BN->ReLU, Linear->BN->ReLU, Linear+bias, BN ------
    y = jnp.dot(feats.astype(bf16), w1_ref[0], preferred_element_type=f32)
    y = jnp.maximum(_bn_per_view(y, n_views, g1_ref[0], b1_ref[0]), 0.0)

    y = jnp.dot(y.astype(bf16), w2_ref[0], preferred_element_type=f32)
    y = jnp.maximum(_bn_per_view(y, n_views, g2_ref[0], b2_ref[0]), 0.0)

    y = jnp.dot(y.astype(bf16), w3_ref[0], preferred_element_type=f32) + bias3_ref[0]
    z = _bn_per_view(y, n_views)          # final BatchNorm1d(dim, affine=False)
    z_ref[0] = z

    # --- predictor fused in, online net (grid index 0) only ------------------
    @pl.when(net == 0)
    def _():
        yp = jnp.dot(z.astype(bf16), wp1_ref[...], preferred_element_type=f32)
        yp = jnp.maximum(_bn_per_view(yp, n_views, gp_ref[...], bp_ref[...]), 0.0)
        p_ref[0] = (jnp.dot(yp.astype(bf16), wp2_ref[...],
                            preferred_element_type=f32) + biasp_ref[...])

    @pl.when(net != 0)
    def _():
        # deterministic padding for the unused (target-net) predictor block
        p_ref[0] = jnp.zeros_like(p_ref[0])


# ----------------------------------------------------------------------------
# wrapper-side layout plumbing (ordinary XLA ops under jit)
# ----------------------------------------------------------------------------
def _im2col_3x3(x_nhwc, k_pad):
    """NHWC image -> (N*H*W, k_pad) im2col patch matrix (K zero-padded).
    Input is already bf16 so HBM only carries half the bytes."""
    n, h, w, cin = x_nhwc.shape
    xp = jnp.pad(x_nhwc, ((0, 0), (1, 1), (1, 1), (0, 0)))
    cols = [xp[:, kh:kh + h, kw:kw + w, :] for kh in range(3) for kw in range(3)]
    patches = jnp.concatenate(cols, axis=-1).reshape(n * h * w, 9 * cin)
    return jnp.pad(patches, ((0, 0), (0, k_pad - 9 * cin)))


def _conv_w_mat(w, k_pad):
    """(3,3,Cin,F) conv weight -> (k_pad, F) bf16 im2col weight (zero-padded)."""
    kk = w.shape[0] * w.shape[1] * w.shape[2]
    wm = w.reshape(kk, w.shape[3])
    return jnp.pad(wm, ((0, k_pad - kk), (0, 0))).astype(jnp.bfloat16)


def _stack_encoder_args(online, target, k_pad):
    conv_w = jnp.stack([_conv_w_mat(online["conv_w"], k_pad),
                        _conv_w_mat(target["conv_w"], k_pad)], axis=0)

    def st(k, dtype=None):
        s = jnp.stack([online[k], target[k]], axis=0)
        return s.astype(dtype) if dtype is not None else s

    bf16 = jnp.bfloat16
    return (conv_w,
            st("w1", bf16), st("g1"), st("b1"),
            st("w2", bf16), st("g2"), st("b2"),
            st("w3", bf16), st("bias3"))


# ----------------------------------------------------------------------------
# pallas_call wrapper
# ----------------------------------------------------------------------------
def fused_byol(patches, enc_args, pred_args, n_views, n_imgs):
    """One pallas_call, grid=(2,) over {online, target}.  Returns (z_all, p_all)."""
    npix, k_pad = patches.shape
    n_nets = enc_args[0].shape[0]
    prev_dim = enc_args[1].shape[-1]
    dim = enc_args[7].shape[-1]
    pred_dim = pred_args[0].shape[-1]

    def _shared(a):
        nd = a.ndim
        return pl.BlockSpec(a.shape, lambda n, _nd=nd: (0,) * _nd)

    def _per_net(a):
        nd = a.ndim
        return pl.BlockSpec((1,) + a.shape[1:],
                            lambda n, _nd=nd: (n,) + (0,) * (_nd - 1))

    in_specs = ([_shared(patches)]
                + [_per_net(a) for a in enc_args]
                + [_shared(a) for a in pred_args])
    out_specs = [pl.BlockSpec((1, n_imgs, dim), lambda n: (n, 0, 0)),
                 pl.BlockSpec((1, n_imgs, dim), lambda n: (n, 0, 0))]
    out_shape = [jax.ShapeDtypeStruct((n_nets, n_imgs, dim), jnp.float32),
                 jax.ShapeDtypeStruct((n_nets, n_imgs, dim), jnp.float32)]

    flops = (n_nets * (2 * npix * k_pad * prev_dim           # im2col conv matmul
                       + 2 * n_imgs * prev_dim * prev_dim    # fc1
                       + 2 * n_imgs * prev_dim * prev_dim    # fc2
                       + 2 * n_imgs * prev_dim * dim)        # fc3
             + 2 * n_imgs * dim * pred_dim                   # predictor fc1
             + 2 * n_imgs * pred_dim * dim)                  # predictor fc2
    transcendentals = (n_nets * n_views * (2 * prev_dim + dim)
                       + n_views * pred_dim)
    bytes_accessed = (int(patches.size) * patches.dtype.itemsize
                      + sum(int(a.size) * a.dtype.itemsize for a in enc_args)
                      + sum(int(a.size) * a.dtype.itemsize for a in pred_args)
                      + 2 * n_nets * n_imgs * dim * 4)

    # TODO(synk): for realistic B/H/W, add a grid axis over npix (row tiles),
    # accumulate conv+pool partials in a VMEM scratch and build the im2col tile
    # in-kernel from the raw NHWC image so HBM only carries the original image.
    z_all, p_all = pl.pallas_call(
        functools.partial(byol_kernel, n_views=n_views),
        grid=(n_nets,),
        in_specs=in_specs,
        out_specs=out_specs,
        out_shape=out_shape,
        compiler_params=pltpu.CompilerParams(
            dimension_semantics=("parallel",),
            vmem_limit_bytes=VMEM_LIMIT),
        cost_estimate=pl.CostEstimate(flops=flops,
                                      transcendentals=transcendentals,
                                      bytes_accessed=bytes_accessed),
    )(patches, *enc_args, *pred_args)
    return z_all, p_all


# ----------------------------------------------------------------------------
# BYOL forward
# ----------------------------------------------------------------------------
def byol_forward(params, x1, x2):
    n_views = 2
    b = x1.shape[0]

    # both views in one batch; NCHW (PyTorch) -> NHWC; bf16 in HBM
    x = jnp.concatenate([x1, x2], axis=0)
    x = jnp.transpose(x, (0, 2, 3, 1)).astype(jnp.bfloat16)
    n_imgs, h, w, cin = x.shape

    k_pad = ((9 * cin + 127) // 128) * 128          # lane-dense im2col K
    patches = _im2col_3x3(x, k_pad)                 # (2B*H*W, Kpad) bf16

    enc_args = _stack_encoder_args(params["online"], params["target"], k_pad)
    pred = params["pred"]
    pred_args = (pred["wp1"].astype(jnp.bfloat16), pred["gp"], pred["bp"],
                 pred["wp2"].astype(jnp.bfloat16), pred["biasp"])

    # single fused kernel: conv + pool + projector (+ predictor on online net)
    z_all, p_all = fused_byol(patches, enc_args, pred_args, n_views, n_imgs)

    p = p_all[0]                                    # online predictor output (2B, dim)
    z_t = jax.lax.stop_gradient(z_all[1])           # target ran under torch.no_grad()

    return p[:b], p[b:], z_t[:b], z_t[b:]


def update_target(params, alpha=0.99):
    """EMA update (plain JAX glue, matches BYOL.update_target / ema)."""
    if alpha is None:
        return dict(params, target=params["online"])
    new_target = jax.tree_util.tree_map(
        lambda t, o: alpha * t + (1.0 - alpha) * o,
        params["target"], params["online"])
    return dict(params, target=new_target)


# ----------------------------------------------------------------------------
# deterministic parameter init
# ----------------------------------------------------------------------------
def init_encoder_params(key, cin, prev_dim, dim):
    ks = jax.random.split(key, 4)
    scale = 0.05
    return {
        "conv_w": scale * jax.random.normal(ks[0], (3, 3, cin, prev_dim), jnp.float32),
        "w1": scale * jax.random.normal(ks[1], (prev_dim, prev_dim), jnp.float32),
        "g1": jnp.ones((1, prev_dim), jnp.float32),
        "b1": jnp.zeros((1, prev_dim), jnp.float32),
        "w2": scale * jax.random.normal(ks[2], (prev_dim, prev_dim), jnp.float32),
        "g2": jnp.ones((1, prev_dim), jnp.float32),
        "b2": jnp.zeros((1, prev_dim), jnp.float32),
        "w3": scale * jax.random.normal(ks[3], (prev_dim, dim), jnp.float32),
        # encoder.fc[6].bias exists but has requires_grad=False (training-time
        # concept only; forward semantics unaffected)
        "bias3": jnp.zeros((1, dim), jnp.float32),
    }


def init_predictor_params(key, dim, pred_dim):
    ks = jax.random.split(key, 2)
    scale = 0.05
    return {
        "wp1": scale * jax.random.normal(ks[0], (dim, pred_dim), jnp.float32),
        "gp": jnp.ones((1, pred_dim), jnp.float32),
        "bp": jnp.zeros((1, pred_dim), jnp.float32),
        "wp2": scale * jax.random.normal(ks[1], (pred_dim, dim), jnp.float32),
        "biasp": jnp.zeros((1, dim), jnp.float32),
    }


def init_byol_params(key, cin, prev_dim, dim, pred_dim,
                     init_target_from_online=False):
    k_on, k_tg, k_pr = jax.random.split(key, 3)
    online = init_encoder_params(k_on, cin, prev_dim, dim)
    # default BYOL behaviour: target is *independently* randomly initialised
    target = online if init_target_from_online else \
        init_encoder_params(k_tg, cin, prev_dim, dim)
    pred = init_predictor_params(k_pr, dim, pred_dim)
    return {"online": online, "target": target, "pred": pred}


# ----------------------------------------------------------------------------
if __name__ == "__main__":
    # B chosen as a multiple of 8 so the per-view BN slices are tile-aligned.
    B, Cin, H, W = 8, 4, 16, 16
    prev_dim, dim, pred_dim = 128, 128, 128  # lane-dense scaled-down 512/2048/512

    key = jax.random.PRNGKey(0)
    kx1, kx2, kparams = jax.random.split(key, 3)
    x1 = jax.random.normal(kx1, (B, Cin, H, W), jnp.float32)   # NCHW (PyTorch)
    x2 = jax.random.normal(kx2, (B, Cin, H, W), jnp.float32)

    params = init_byol_params(kparams, Cin, prev_dim, dim, pred_dim)

    fwd = jax.jit(byol_forward)
    p1, p2, z1_t, z2_t = jax.block_until_ready(fwd(params, x1, x2))

    assert p1.shape == (B, dim) and p2.shape == (B, dim)
    assert z1_t.shape == (B, dim) and z2_t.shape == (B, dim)
    assert all(bool(jnp.isfinite(a).all()) for a in (p1, p2, z1_t, z2_t))

    # exercise the EMA target update path once (plain JAX)
    params = update_target(params, alpha=0.99)

    print("KERNEL_OK")
</pallas_src>

<mosaic_0001>
module attributes {stable_mosaic.version = 11 : i64} {
  func.func @byol_kernel(%arg0: i32, %arg1: memref<4096x128xbf16, #tpu.memory_space<vmem>>, %arg2: memref<1x128x128xbf16, #tpu.memory_space<vmem>>, %arg3: memref<1x128x128xbf16, #tpu.memory_space<vmem>>, %arg4: memref<1x1x128xf32, #tpu.memory_space<vmem>>, %arg5: memref<1x1x128xf32, #tpu.memory_space<vmem>>, %arg6: memref<1x128x128xbf16, #tpu.memory_space<vmem>>, %arg7: memref<1x1x128xf32, #tpu.memory_space<vmem>>, %arg8: memref<1x1x128xf32, #tpu.memory_space<vmem>>, %arg9: memref<1x128x128xbf16, #tpu.memory_space<vmem>>, %arg10: memref<1x1x128xf32, #tpu.memory_space<vmem>>, %arg11: memref<128x128xbf16, #tpu.memory_space<vmem>>, %arg12: memref<1x128xf32, #tpu.memory_space<vmem>>, %arg13: memref<1x128xf32, #tpu.memory_space<vmem>>, %arg14: memref<128x128xbf16, #tpu.memory_space<vmem>>, %arg15: memref<1x128xf32, #tpu.memory_space<vmem>>, %arg16: memref<1x16x128xf32, #tpu.memory_space<vmem>>, %arg17: memref<1x16x128xf32, #tpu.memory_space<vmem>>) attributes {dimension_semantics = [#tpu.dimension_semantics<parallel>], iteration_bounds = array<i64: 2>, scalar_prefetch = 0 : i64, scratch_operands = 0 : i64, tpu.core_type = #tpu.core_type<tc>, window_params = [{pipeline_mode = #tpu.pipeline_mode<synchronous>, transform_indices = @transform_0, window_bounds = array<i64: 4096, 128>}, {transform_indices = @transform_1, window_bounds = array<i64: 1, 128, 128>}, {transform_indices = @transform_2, window_bounds = array<i64: 1, 128, 128>}, {transform_indices = @transform_3, window_bounds = array<i64: 1, 1, 128>}, {transform_indices = @transform_4, window_bounds = array<i64: 1, 1, 128>}, {transform_indices = @transform_5, window_bounds = array<i64: 1, 128, 128>}, {transform_indices = @transform_6, window_bounds = array<i64: 1, 1, 128>}, {transform_indices = @transform_7, window_bounds = array<i64: 1, 1, 128>}, {transform_indices = @transform_8, window_bounds = array<i64: 1, 128, 128>}, {transform_indices = @transform_9, window_bounds = array<i64: 1, 1, 128>}, {pipeline_mode = #tpu.pipeline_mode<synchronous>, transform_indices = @transform_10, window_bounds = array<i64: 128, 128>}, {pipeline_mode = #tpu.pipeline_mode<synchronous>, transform_indices = @transform_11, window_bounds = array<i64: 1, 128>}, {pipeline_mode = #tpu.pipeline_mode<synchronous>, transform_indices = @transform_12, window_bounds = array<i64: 1, 128>}, {pipeline_mode = #tpu.pipeline_mode<synchronous>, transform_indices = @transform_13, window_bounds = array<i64: 128, 128>}, {pipeline_mode = #tpu.pipeline_mode<synchronous>, transform_indices = @transform_14, window_bounds = array<i64: 1, 128>}, {transform_indices = @transform_15, window_bounds = array<i64: 1, 16, 128>}, {transform_indices = @transform_16, window_bounds = array<i64: 1, 16, 128>}]} {
    %c0 = arith.constant 0 : index
    %c0_0 = arith.constant 0 : index
    %0 = vector.load %arg1[%c0, %c0_0] : memref<4096x128xbf16, #tpu.memory_space<vmem>>, vector<4096x128xbf16>
    %c0_1 = arith.constant 0 : index
    %c0_2 = arith.constant 0 : index
    %c0_3 = arith.constant 0 : index
    %1 = vector.load %arg2[%c0_1, %c0_2, %c0_3] : memref<1x128x128xbf16, #tpu.memory_space<vmem>>, vector<1x128x128xbf16>
    %2 = vector.shape_cast %1 : vector<1x128x128xbf16> to vector<128x128xbf16>
    %cst = arith.constant dense<0.000000e+00> : vector<4096x128xf32>
    %3 = tpu.matmul %0, %2, %cst {dimension_numbers = #tpu.dot_dimension_numbers<[1], [0], [0], [1], [0, 0, 1, 1], [], []>} : vector<4096x128xbf16>, vector<128x128xbf16>, vector<4096x128xf32> -> vector<4096x128xf32>
    %cst_4 = arith.constant 0.000000e+00 : f32
    %4 = vector.broadcast %cst_4 : f32 to vector<4096x128xf32>
    %5 = arith.maximumf %3, %4 : vector<4096x128xf32>
    %6 = vector.shape_cast %5 : vector<4096x128xf32> to vector<16x256x128xf32>
    %cst_5 = arith.constant dense<0.000000e+00> : vector<16x128xf32>
    %7 = vector.multi_reduction <add>, %6, %cst_5 [1] : vector<16x256x128xf32> to vector<16x128xf32>
    %cst_6 = arith.constant 2.560000e+02 : f32
    %8 = vector.broadcast %cst_6 : f32 to vector<16x128xf32>
    %9 = arith.divf %7, %8 : vector<16x128xf32>
    %10 = arith.truncf %9 : vector<16x128xf32> to vector<16x128xbf16>
    %c0_7 = arith.constant 0 : index
    %c0_8 = arith.constant 0 : index
    %c0_9 = arith.constant 0 : index
    %11 = vector.load %arg3[%c0_7, %c0_8, %c0_9] : memref<1x128x128xbf16, #tpu.memory_space<vmem>>, vector<1x128x128xbf16>
    %12 = vector.shape_cast %11 : vector<1x128x128xbf16> to vector<128x128xbf16>
    %cst_10 = arith.constant dense<0.000000e+00> : vector<16x128xf32>
    %13 = tpu.matmul %10, %12, %cst_10 {dimension_numbers = #tpu.dot_dimension_numbers<[1], [0], [0], [1], [0, 0, 1, 1], [], []>} : vector<16x128xbf16>, vector<128x128xbf16>, vector<16x128xf32> -> vector<16x128xf32>
    %c0_11 = arith.constant 0 : index
    %c0_12 = arith.constant 0 : index
    %c0_13 = arith.constant 0 : index
    %14 = vector.load %arg4[%c0_11, %c0_12, %c0_13] : memref<1x1x128xf32, #tpu.memory_space<vmem>>, vector<1x1x128xf32>
    %15 = vector.shape_cast %14 : vector<1x1x128xf32> to vector<1x128xf32>
    %c0_14 = arith.constant 0 : index
    %c0_15 = arith.constant 0 : index
    %c0_16 = arith.constant 0 : index
    %16 = vector.load %arg5[%c0_14, %c0_15, %c0_16] : memref<1x1x128xf32, #tpu.memory_space<vmem>>, vector<1x1x128xf32>
    %17 = vector.shape_cast %16 : vector<1x1x128xf32> to vector<1x128xf32>
    %18 = vector.extract_strided_slice %13 {offsets = [0, 0], sizes = [8, 128], strides = [1, 1]} : vector<16x128xf32> to vector<8x128xf32>
    %cst_17 = arith.constant dense<0.000000e+00> : vector<128xf32>
    %19 = vector.multi_reduction <add>, %18, %cst_17 [0] : vector<8x128xf32> to vector<128xf32>
    %20 = vector.shape_cast %19 : vector<128xf32> to vector<1x128xf32>
    %cst_18 = arith.constant 8.000000e+00 : f32
    %21 = vector.broadcast %cst_18 : f32 to vector<1x128xf32>
    %22 = arith.divf %20, %21 : vector<1x128xf32>
    %23 = vector.broadcast %22 : vector<1x128xf32> to vector<8x128xf32>
    %24 = arith.subf %18, %23 : vector<8x128xf32>
    %25 = arith.mulf %24, %24 : vector<8x128xf32>
    %cst_19 = arith.constant dense<0.000000e+00> : vector<128xf32>
    %26 = vector.multi_reduction <add>, %25, %cst_19 [0] : vector<8x128xf32> to vector<128xf32>
    %27 = vector.shape_cast %26 : vector<128xf32> to vector<1x128xf32>
    %cst_20 = arith.constant 8.000000e+00 : f32
    %28 = vector.broadcast %cst_20 : f32 to vector<1x128xf32>
    %29 = arith.divf %27, %28 : vector<1x128xf32>
    %cst_21 = arith.constant 9.99999974E-6 : f32
    %30 = vector.broadcast %cst_21 : f32 to vector<1x128xf32>
    %31 = arith.addf %29, %30 : vector<1x128xf32>
    %32 = math.rsqrt %31 : vector<1x128xf32>
    %33 = vector.broadcast %32 : vector<1x128xf32> to vector<8x128xf32>
    %34 = arith.mulf %24, %33 : vector<8x128xf32>
    %35 = vector.extract_strided_slice %13 {offsets = [8, 0], sizes = [8, 128], strides = [1, 1]} : vector<16x128xf32> to vector<8x128xf32>
    %cst_22 = arith.constant dense<0.000000e+00> : vector<128xf32>
    %36 = vector.multi_reduction <add>, %35, %cst_22 [0] : vector<8x128xf32> to vector<128xf32>
    %37 = vector.shape_cast %36 : vector<128xf32> to vector<1x128xf32>
    %cst_23 = arith.constant 8.000000e+00 : f32
    %38 = vector.broadcast %cst_23 : f32 to vector<1x128xf32>
    %39 = arith.divf %37, %38 : vector<1x128xf32>
    %40 = vector.broadcast %39 : vector<1x128xf32> to vector<8x128xf32>
    %41 = arith.subf %35, %40 : vector<8x128xf32>
    %42 = arith.mulf %41, %41 : vector<8x128xf32>
    %cst_24 = arith.constant dense<0.000000e+00> : vector<128xf32>
    %43 = vector.multi_reduction <add>, %42, %cst_24 [0] : vector<8x128xf32> to vector<128xf32>
    %44 = vector.shape_cast %43 : vector<128xf32> to vector<1x128xf32>
    %cst_25 = arith.constant 8.000000e+00 : f32
    %45 = vector.broadcast %cst_25 : f32 to vector<1x128xf32>
    %46 = arith.divf %44, %45 : vector<1x128xf32>
    %cst_26 = arith.constant 9.99999974E-6 : f32
    %47 = vector.broadcast %cst_26 : f32 to vector<1x128xf32>
    %48 = arith.addf %46, %47 : vector<1x128xf32>
    %49 = math.rsqrt %48 : vector<1x128xf32>
    %50 = vector.broadcast %49 : vector<1x128xf32> to vector<8x128xf32>
    %51 = arith.mulf %41, %50 : vector<8x128xf32>
    %52 = tpu.concatenate %34, %51 in 0 : vector<8x128xf32>, vector<8x128xf32> -> vector<16x128xf32>
    %53 = vector.broadcast %15 : vector<1x128xf32> to vector<16x128xf32>
    %54 = arith.mulf %52, %53 : vector<16x128xf32>
    %55 = vector.broadcast %17 : vector<1x128xf32> to vector<16x128xf32>
    %56 = arith.addf %54, %55 : vector<16x128xf32>
    %cst_27 = arith.constant 0.000000e+00 : f32
    %57 = vector.broadcast %cst_27 : f32 to vector<16x128xf32>
    %58 = arith.maximumf %56, %57 : vector<16x128xf32>
    %59 = arith.truncf %58 : vector<16x128xf32> to vector<16x128xbf16>
    %c0_28 = arith.constant 0 : index
    %c0_29 = arith.constant 0 : index
    %c0_30 = arith.constant 0 : index
    %60 = vector.load %arg6[%c0_28, %c0_29, %c0_30] : memref<1x128x128xbf16, #tpu.memory_space<vmem>>, vector<1x128x128xbf16>
    %61 = vector.shape_cast %60 : vector<1x128x128xbf16> to vector<128x128xbf16>
    %cst_31 = arith.constant dense<0.000000e+00> : vector<16x128xf32>
    %62 = tpu.matmul %59, %61, %cst_31 {dimension_numbers = #tpu.dot_dimension_numbers<[1], [0], [0], [1], [0, 0, 1, 1], [], []>} : vector<16x128xbf16>, vector<128x128xbf16>, vector<16x128xf32> -> vector<16x128xf32>
    %c0_32 = arith.constant 0 : index
    %c0_33 = arith.constant 0 : index
    %c0_34 = arith.constant 0 : index
    %63 = vector.load %arg7[%c0_32, %c0_33, %c0_34] : memref<1x1x128xf32, #tpu.memory_space<vmem>>, vector<1x1x128xf32>
    %64 = vector.shape_cast %63 : vector<1x1x128xf32> to vector<1x128xf32>
    %c0_35 = arith.constant 0 : index
    %c0_36 = arith.constant 0 : index
    %c0_37 = arith.constant 0 : index
    %65 = vector.load %arg8[%c0_35, %c0_36, %c0_37] : memref<1x1x128xf32, #tpu.memory_space<vmem>>, vector<1x1x128xf32>
    %66 = vector.shape_cast %65 : vector<1x1x128xf32> to vector<1x128xf32>
    %67 = vector.extract_strided_slice %62 {offsets = [0, 0], sizes = [8, 128], strides = [1, 1]} : vector<16x128xf32> to vector<8x128xf32>
    %cst_38 = arith.constant dense<0.000000e+00> : vector<128xf32>
    %68 = vector.multi_reduction <add>, %67, %cst_38 [0] : vector<8x128xf32> to vector<128xf32>
    %69 = vector.shape_cast %68 : vector<128xf32> to vector<1x128xf32>
    %cst_39 = arith.constant 8.000000e+00 : f32
    %70 = vector.broadcast %cst_39 : f32 to vector<1x128xf32>
    %71 = arith.divf %69, %70 : vector<1x128xf32>
    %72 = vector.broadcast %71 : vector<1x128xf32> to vector<8x128xf32>
    %73 = arith.subf %67, %72 : vector<8x128xf32>
    %74 = arith.mulf %73, %73 : vector<8x128xf32>
    %cst_40 = arith.constant dense<0.000000e+00> : vector<128xf32>
    %75 = vector.multi_reduction <add>, %74, %cst_40 [0] : vector<8x128xf32> to vector<128xf32>
    %76 = vector.shape_cast %75 : vector<128xf32> to vector<1x128xf32>
    %cst_41 = arith.constant 8.000000e+00 : f32
    %77 = vector.broadcast %cst_41 : f32 to vector<1x128xf32>
    %78 = arith.divf %76, %77 : vector<1x128xf32>
    %cst_42 = arith.constant 9.99999974E-6 : f32
    %79 = vector.broadcast %cst_42 : f32 to vector<1x128xf32>
    %80 = arith.addf %78, %79 : vector<1x128xf32>
    %81 = math.rsqrt %80 : vector<1x128xf32>
    %82 = vector.broadcast %81 : vector<1x128xf32> to vector<8x128xf32>
    %83 = arith.mulf %73, %82 : vector<8x128xf32>
    %84 = vector.extract_strided_slice %62 {offsets = [8, 0], sizes = [8, 128], strides = [1, 1]} : vector<16x128xf32> to vector<8x128xf32>
    %cst_43 = arith.constant dense<0.000000e+00> : vector<128xf32>
    %85 = vector.multi_reduction <add>, %84, %cst_43 [0] : vector<8x128xf32> to vector<128xf32>
    %86 = vector.shape_cast %85 : vector<128xf32> to vector<1x128xf32>
    %cst_44 = arith.constant 8.000000e+00 : f32
    %87 = vector.broadcast %cst_44 : f32 to vector<1x128xf32>
    %88 = arith.divf %86, %87 : vector<1x128xf32>
    %89 = vector.broadcast %88 : vector<1x128xf32> to vector<8x128xf32>
    %90 = arith.subf %84, %89 : vector<8x128xf32>
    %91 = arith.mulf %90, %90 : vector<8x128xf32>
    %cst_45 = arith.constant dense<0.000000e+00> : vector<128xf32>
    %92 = vector.multi_reduction <add>, %91, %cst_45 [0] : vector<8x128xf32> to vector<128xf32>
    %93 = vector.shape_cast %92 : vector<128xf32> to vector<1x128xf32>
    %cst_46 = arith.constant 8.000000e+00 : f32
    %94 = vector.broadcast %cst_46 : f32 to vector<1x128xf32>
    %95 = arith.divf %93, %94 : vector<1x128xf32>
    %cst_47 = arith.constant 9.99999974E-6 : f32
    %96 = vector.broadcast %cst_47 : f32 to vector<1x128xf32>
    %97 = arith.addf %95, %96 : vector<1x128xf32>
    %98 = math.rsqrt %97 : vector<1x128xf32>
    %99 = vector.broadcast %98 : vector<1x128xf32> to vector<8x128xf32>
    %100 = arith.mulf %90, %99 : vector<8x128xf32>
    %101 = tpu.concatenate %83, %100 in 0 : vector<8x128xf32>, vector<8x128xf32> -> vector<16x128xf32>
    %102 = vector.broadcast %64 : vector<1x128xf32> to vector<16x128xf32>
    %103 = arith.mulf %101, %102 : vector<16x128xf32>
    %104 = vector.broadcast %66 : vector<1x128xf32> to vector<16x128xf32>
    %105 = arith.addf %103, %104 : vector<16x128xf32>
    %cst_48 = arith.constant 0.000000e+00 : f32
    %106 = vector.broadcast %cst_48 : f32 to vector<16x128xf32>
    %107 = arith.maximumf %105, %106 : vector<16x128xf32>
    %108 = arith.truncf %107 : vector<16x128xf32> to vector<16x128xbf16>
    %c0_49 = arith.constant 0 : index
    %c0_50 = arith.constant 0 : index
    %c0_51 = arith.constant 0 : index
    %109 = vector.load %arg9[%c0_49, %c0_50, %c0_51] : memref<1x128x128xbf16, #tpu.memory_space<vmem>>, vector<1x128x128xbf16>
    %110 = vector.shape_cast %109 : vector<1x128x128xbf16> to vector<128x128xbf16>
    %cst_52 = arith.constant dense<0.000000e+00> : vector<16x128xf32>
    %111 = tpu.matmul %108, %110, %cst_52 {dimension_numbers = #tpu.dot_dimension_numbers<[1], [0], [0], [1], [0, 0, 1, 1], [], []>} : vector<16x128xbf16>, vector<128x128xbf16>, vector<16x128xf32> -> vector<16x128xf32>
    %c0_53 = arith.constant 0 : index
    %c0_54 = arith.constant 0 : index
    %c0_55 = arith.constant 0 : index
    %112 = vector.load %arg10[%c0_53, %c0_54, %c0_55] : memref<1x1x128xf32, #tpu.memory_space<vmem>>, vector<1x1x128xf32>
    %113 = vector.shape_cast %112 : vector<1x1x128xf32> to vector<1x128xf32>
    %114 = vector.broadcast %113 : vector<1x128xf32> to vector<16x128xf32>
    %115 = arith.addf %111, %114 : vector<16x128xf32>
    %116 = vector.extract_strided_slice %115 {offsets = [0, 0], sizes = [8, 128], strides = [1, 1]} : vector<16x128xf32> to vector<8x128xf32>
    %cst_56 = arith.constant dense<0.000000e+00> : vector<128xf32>
    %117 = vector.multi_reduction <add>, %116, %cst_56 [0] : vector<8x128xf32> to vector<128xf32>
    %118 = vector.shape_cast %117 : vector<128xf32> to vector<1x128xf32>
    %cst_57 = arith.constant 8.000000e+00 : f32
    %119 = vector.broadcast %cst_57 : f32 to vector<1x128xf32>
    %120 = arith.divf %118, %119 : vector<1x128xf32>
    %121 = vector.broadcast %120 : vector<1x128xf32> to vector<8x128xf32>
    %122 = arith.subf %116, %121 : vector<8x128xf32>
    %123 = arith.mulf %122, %122 : vector<8x128xf32>
    %cst_58 = arith.constant dense<0.000000e+00> : vector<128xf32>
    %124 = vector.multi_reduction <add>, %123, %cst_58 [0] : vector<8x128xf32> to vector<128xf32>
    %125 = vector.shape_cast %124 : vector<128xf32> to vector<1x128xf32>
    %cst_59 = arith.constant 8.000000e+00 : f32
    %126 = vector.broadcast %cst_59 : f32 to vector<1x128xf32>
    %127 = arith.divf %125, %126 : vector<1x128xf32>
    %cst_60 = arith.constant 9.99999974E-6 : f32
    %128 = vector.broadcast %cst_60 : f32 to vector<1x128xf32>
    %129 = arith.addf %127, %128 : vector<1x128xf32>
    %130 = math.rsqrt %129 : vector<1x128xf32>
    %131 = vector.broadcast %130 : vector<1x128xf32> to vector<8x128xf32>
    %132 = arith.mulf %122, %131 : vector<8x128xf32>
    %133 = vector.extract_strided_slice %115 {offsets = [8, 0], sizes = [8, 128], strides = [1, 1]} : vector<16x128xf32> to vector<8x128xf32>
    %cst_61 = arith.constant dense<0.000000e+00> : vector<128xf32>
    %134 = vector.multi_reduction <add>, %133, %cst_61 [0] : vector<8x128xf32> to vector<128xf32>
    %135 = vector.shape_cast %134 : vector<128xf32> to vector<1x128xf32>
    %cst_62 = arith.constant 8.000000e+00 : f32
    %136 = vector.broadcast %cst_62 : f32 to vector<1x128xf32>
    %137 = arith.divf %135, %136 : vector<1x128xf32>
    %138 = vector.broadcast %137 : vector<1x128xf32> to vector<8x128xf32>
    %139 = arith.subf %133, %138 : vector<8x128xf32>
    %140 = arith.mulf %139, %139 : vector<8x128xf32>
    %cst_63 = arith.constant dense<0.000000e+00> : vector<128xf32>
    %141 = vector.multi_reduction <add>, %140, %cst_63 [0] : vector<8x128xf32> to vector<128xf32>
    %142 = vector.shape_cast %141 : vector<128xf32> to vector<1x128xf32>
    %cst_64 = arith.constant 8.000000e+00 : f32
    %143 = vector.broadcast %cst_64 : f32 to vector<1x128xf32>
    %144 = arith.divf %142, %143 : vector<1x128xf32>
    %cst_65 = arith.constant 9.99999974E-6 : f32
    %145 = vector.broadcast %cst_65 : f32 to vector<1x128xf32>
    %146 = arith.addf %144, %145 : vector<1x128xf32>
    %147 = math.rsqrt %146 : vector<1x128xf32>
    %148 = vector.broadcast %147 : vector<1x128xf32> to vector<8x128xf32>
    %149 = arith.mulf %139, %148 : vector<8x128xf32>
    %150 = tpu.concatenate %132, %149 in 0 : vector<8x128xf32>, vector<8x128xf32> -> vector<16x128xf32>
    %c0_66 = arith.constant 0 : index
    %c0_67 = arith.constant 0 : index
    %c0_68 = arith.constant 0 : index
    %151 = vector.load %arg16[%c0_66, %c0_67, %c0_68] : memref<1x16x128xf32, #tpu.memory_space<vmem>>, vector<1x16x128xf32>
    %152 = vector.shape_cast %151 : vector<1x16x128xf32> to vector<16x128xf32>
    %153 = vector.shape_cast %150 : vector<16x128xf32> to vector<1x16x128xf32>
    tpu.vector_store %arg16[%c0_66, %c0_67, %c0_68], %153 {strides = array<i32>} : memref<1x16x128xf32, #tpu.memory_space<vmem>>, vector<1x16x128xf32>,
    %c0_i32 = arith.constant 0 : i32
    %154 = arith.cmpi eq, %arg0, %c0_i32 : i32
    %155 = arith.extui %154 : i1 to i32
    %c0_i32_69 = arith.constant 0 : i32
    %156 = arith.cmpi ne, %155, %c0_i32_69 : i32
    scf.if %156 {
      %160 = arith.truncf %150 : vector<16x128xf32> to vector<16x128xbf16>
      %c0_72 = arith.constant 0 : index
      %c0_73 = arith.constant 0 : index
      %161 = vector.load %arg11[%c0_72, %c0_73] : memref<128x128xbf16, #tpu.memory_space<vmem>>, vector<128x128xbf16>
      %cst_74 = arith.constant dense<0.000000e+00> : vector<16x128xf32>
      %162 = tpu.matmul %160, %161, %cst_74 {dimension_numbers = #tpu.dot_dimension_numbers<[1], [0], [0], [1], [0, 0, 1, 1], [], []>} : vector<16x128xbf16>, vector<128x128xbf16>, vector<16x128xf32> -> vector<16x128xf32>
      %c0_75 = arith.constant 0 : index
      %c0_76 = arith.constant 0 : index
      %163 = vector.load %arg12[%c0_75, %c0_76] : memref<1x128xf32, #tpu.memory_space<vmem>>, vector<1x128xf32>
      %c0_77 = arith.constant 0 : index
      %c0_78 = arith.constant 0 : index
      %164 = vector.load %arg13[%c0_77, %c0_78] : memref<1x128xf32, #tpu.memory_space<vmem>>, vector<1x128xf32>
      %165 = vector.extract_strided_slice %162 {offsets = [0, 0], sizes = [8, 128], strides = [1, 1]} : vector<16x128xf32> to vector<8x128xf32>
      %cst_79 = arith.constant dense<0.000000e+00> : vector<128xf32>
      %166 = vector.multi_reduction <add>, %165, %cst_79 [0] : vector<8x128xf32> to vector<128xf32>
      %167 = vector.shape_cast %166 : vector<128xf32> to vector<1x128xf32>
      %cst_80 = arith.constant 8.000000e+00 : f32
      %168 = vector.broadcast %cst_80 : f32 to vector<1x128xf32>
      %169 = arith.divf %167, %168 : vector<1x128xf32>
      %170 = vector.broadcast %169 : vector<1x128xf32> to vector<8x128xf32>
      %171 = arith.subf %165, %170 : vector<8x128xf32>
      %172 = arith.mulf %171, %171 : vector<8x128xf32>
      %cst_81 = arith.constant dense<0.000000e+00> : vector<128xf32>
      %173 = vector.multi_reduction <add>, %172, %cst_81 [0] : vector<8x128xf32> to vector<128xf32>
      %174 = vector.shape_cast %173 : vector<128xf32> to vector<1x128xf32>
      %cst_82 = arith.constant 8.000000e+00 : f32
      %175 = vector.broadcast %cst_82 : f32 to vector<1x128xf32>
      %176 = arith.divf %174, %175 : vector<1x128xf32>
      %cst_83 = arith.constant 9.99999974E-6 : f32
      %177 = vector.broadcast %cst_83 : f32 to vector<1x128xf32>
      %178 = arith.addf %176, %177 : vector<1x128xf32>
      %179 = math.rsqrt %178 : vector<1x128xf32>
      %180 = vector.broadcast %179 : vector<1x128xf32> to vector<8x128xf32>
      %181 = arith.mulf %171, %180 : vector<8x128xf32>
      %182 = vector.extract_strided_slice %162 {offsets = [8, 0], sizes = [8, 128], strides = [1, 1]} : vector<16x128xf32> to vector<8x128xf32>
      %cst_84 = arith.constant dense<0.000000e+00> : vector<128xf32>
      %183 = vector.multi_reduction <add>, %182, %cst_84 [0] : vector<8x128xf32> to vector<128xf32>
      %184 = vector.shape_cast %183 : vector<128xf32> to vector<1x128xf32>
      %cst_85 = arith.constant 8.000000e+00 : f32
      %185 = vector.broadcast %cst_85 : f32 to vector<1x128xf32>
      %186 = arith.divf %184, %185 : vector<1x128xf32>
      %187 = vector.broadcast %186 : vector<1x128xf32> to vector<8x128xf32>
      %188 = arith.subf %182, %187 : vector<8x128xf32>
      %189 = arith.mulf %188, %188 : vector<8x128xf32>
      %cst_86 = arith.constant dense<0.000000e+00> : vector<128xf32>
      %190 = vector.multi_reduction <add>, %189, %cst_86 [0] : vector<8x128xf32> to vector<128xf32>
      %191 = vector.shape_cast %190 : vector<128xf32> to vector<1x128xf32>
      %cst_87 = arith.constant 8.000000e+00 : f32
      %192 = vector.broadcast %cst_87 : f32 to vector<1x128xf32>
      %193 = arith.divf %191, %192 : vector<1x128xf32>
      %cst_88 = arith.constant 9.99999974E-6 : f32
      %194 = vector.broadcast %cst_88 : f32 to vector<1x128xf32>
      %195 = arith.addf %193, %194 : vector<1x128xf32>
      %196 = math.rsqrt %195 : vector<1x128xf32>
      %197 = vector.broadcast %196 : vector<1x128xf32> to vector<8x128xf32>
      %198 = arith.mulf %188, %197 : vector<8x128xf32>
      %199 = tpu.concatenate %181, %198 in 0 : vector<8x128xf32>, vector<8x128xf32> -> vector<16x128xf32>
      %200 = vector.broadcast %163 : vector<1x128xf32> to vector<16x128xf32>
      %201 = arith.mulf %199, %200 : vector<16x128xf32>
      %202 = vector.broadcast %164 : vector<1x128xf32> to vector<16x128xf32>
      %203 = arith.addf %201, %202 : vector<16x128xf32>
      %cst_89 = arith.constant 0.000000e+00 : f32
      %204 = vector.broadcast %cst_89 : f32 to vector<16x128xf32>
      %205 = arith.maximumf %203, %204 : vector<16x128xf32>
      %206 = arith.truncf %205 : vector<16x128xf32> to vector<16x128xbf16>
      %c0_90 = arith.constant 0 : index
      %c0_91 = arith.constant 0 : index
      %207 = vector.load %arg14[%c0_90, %c0_91] : memref<128x128xbf16, #tpu.memory_space<vmem>>, vector<128x128xbf16>
      %cst_92 = arith.constant dense<0.000000e+00> : vector<16x128xf32>
      %208 = tpu.matmul %206, %207, %cst_92 {dimension_numbers = #tpu.dot_dimension_numbers<[1], [0], [0], [1], [0, 0, 1, 1], [], []>} : vector<16x128xbf16>, vector<128x128xbf16>, vector<16x128xf32> -> vector<16x128xf32>
      %c0_93 = arith.constant 0 : index
      %c0_94 = arith.constant 0 : index
      %209 = vector.load %arg15[%c0_93, %c0_94] : memref<1x128xf32, #tpu.memory_space<vmem>>, vector<1x128xf32>
      %210 = vector.broadcast %209 : vector<1x128xf32> to vector<16x128xf32>
      %211 = arith.addf %208, %210 : vector<16x128xf32>
      %c0_95 = arith.constant 0 : index
      %c0_96 = arith.constant 0 : index
      %c0_97 = arith.constant 0 : index
      %212 = vector.load %arg17[%c0_95, %c0_96, %c0_97] : memref<1x16x128xf32, #tpu.memory_space<vmem>>, vector<1x16x128xf32>
      %213 = vector.shape_cast %212 : vector<1x16x128xf32> to vector<16x128xf32>
      %214 = vector.shape_cast %211 : vector<16x128xf32> to vector<1x16x128xf32>
      tpu.vector_store %arg17[%c0_95, %c0_96, %c0_97], %214 {strides = array<i32>} : memref<1x16x128xf32, #tpu.memory_space<vmem>>, vector<1x16x128xf32>,
    } else {
    }
    %c0_i32_70 = arith.constant 0 : i32
    %157 = arith.cmpi ne, %arg0, %c0_i32_70 : i32
    %158 = arith.extui %157 : i1 to i32
    %c0_i32_71 = arith.constant 0 : i32
    %159 = arith.cmpi ne, %158, %c0_i32_71 : i32
    scf.if %159 {
      %cst_72 = arith.constant 0.000000e+00 : f32
      %160 = vector.broadcast %cst_72 : f32 to vector<16x128xf32>
      %c0_73 = arith.constant 0 : index
      %c0_74 = arith.constant 0 : index
      %c0_75 = arith.constant 0 : index
      %161 = vector.load %arg17[%c0_73, %c0_74, %c0_75] : memref<1x16x128xf32, #tpu.memory_space<vmem>>, vector<1x16x128xf32>
      %162 = vector.shape_cast %161 : vector<1x16x128xf32> to vector<16x128xf32>
      %163 = vector.shape_cast %160 : vector<16x128xf32> to vector<1x16x128xf32>
      tpu.vector_store %arg17[%c0_73, %c0_74, %c0_75], %163 {strides = array<i32>} : memref<1x16x128xf32, #tpu.memory_space<vmem>>, vector<1x16x128xf32>,
    } else {
    }
    return
  }
  func.func @transform_0(%arg0: i32) -> (i32, i32) {
    %c0_i32 = arith.constant 0 : i32
    %c0_i32_0 = arith.constant 0 : i32
    %c0_i32_1 = arith.constant 0 : i32
    return %c0_i32, %c0_i32_0 : i32, i32
  }
  func.func @transform_1(%arg0: i32) -> (i32, i32, i32) {
    %c0_i32 = arith.constant 0 : i32
    %c0_i32_0 = arith.constant 0 : i32
    %c0_i32_1 = arith.constant 0 : i32
    return %arg0, %c0_i32, %c0_i32_0 : i32, i32, i32
  }
  func.func @transform_2(%arg0: i32) -> (i32, i32, i32) {
    %c0_i32 = arith.constant 0 : i32
    %c0_i32_0 = arith.constant 0 : i32
    %c0_i32_1 = arith.constant 0 : i32
    return %arg0, %c0_i32, %c0_i32_0 : i32, i32, i32
  }
  func.func @transform_3(%arg0: i32) -> (i32, i32, i32) {
    %c0_i32 = arith.constant 0 : i32
    %c0_i32_0 = arith.constant 0 : i32
    %c0_i32_1 = arith.constant 0 : i32
    return %arg0, %c0_i32, %c0_i32_0 : i32, i32, i32
  }
  func.func @transform_4(%arg0: i32) -> (i32, i32, i32) {
    %c0_i32 = arith.constant 0 : i32
    %c0_i32_0 = arith.constant 0 : i32
    %c0_i32_1 = arith.constant 0 : i32
    return %arg0, %c0_i32, %c0_i32_0 : i32, i32, i32
  }
  func.func @transform_5(%arg0: i32) -> (i32, i32, i32) {
    %c0_i32 = arith.constant 0 : i32
    %c0_i32_0 = arith.constant 0 : i32
    %c0_i32_1 = arith.constant 0 : i32
    return %arg0, %c0_i32, %c0_i32_0 : i32, i32, i32
  }
  func.func @transform_6(%arg0: i32) -> (i32, i32, i32) {
    %c0_i32 = arith.constant 0 : i32
    %c0_i32_0 = arith.constant 0 : i32
    %c0_i32_1 = arith.constant 0 : i32
    return %arg0, %c0_i32, %c0_i32_0 : i32, i32, i32
  }
  func.func @transform_7(%arg0: i32) -> (i32, i32, i32) {
    %c0_i32 = arith.constant 0 : i32
    %c0_i32_0 = arith.constant 0 : i32
    %c0_i32_1 = arith.constant 0 : i32
    return %arg0, %c0_i32, %c0_i32_0 : i32, i32, i32
  }
  func.func @transform_8(%arg0: i32) -> (i32, i32, i32) {
    %c0_i32 = arith.constant 0 : i32
    %c0_i32_0 = arith.constant 0 : i32
    %c0_i32_1 = arith.constant 0 : i32
    return %arg0, %c0_i32, %c0_i32_0 : i32, i32, i32
  }
  func.func @transform_9(%arg0: i32) -> (i32, i32, i32) {
    %c0_i32 = arith.constant 0 : i32
    %c0_i32_0 = arith.constant 0 : i32
    %c0_i32_1 = arith.constant 0 : i32
    return %arg0, %c0_i32, %c0_i32_0 : i32, i32, i32
  }
  func.func @transform_10(%arg0: i32) -> (i32, i32) {
    %c0_i32 = arith.constant 0 : i32
    %c0_i32_0 = arith.constant 0 : i32
    %c0_i32_1 = arith.constant 0 : i32
    return %c0_i32, %c0_i32_0 : i32, i32
  }
  func.func @transform_11(%arg0: i32) -> (i32, i32) {
    %c0_i32 = arith.constant 0 : i32
    %c0_i32_0 = arith.constant 0 : i32
    %c0_i32_1 = arith.constant 0 : i32
    return %c0_i32, %c0_i32_0 : i32, i32
  }
  func.func @transform_12(%arg0: i32) -> (i32, i32) {
    %c0_i32 = arith.constant 0 : i32
    %c0_i32_0 = arith.constant 0 : i32
    %c0_i32_1 = arith.constant 0 : i32
    return %c0_i32, %c0_i32_0 : i32, i32
  }
  func.func @transform_13(%arg0: i32) -> (i32, i32) {
    %c0_i32 = arith.constant 0 : i32
    %c0_i32_0 = arith.constant 0 : i32
    %c0_i32_1 = arith.constant 0 : i32
    return %c0_i32, %c0_i32_0 : i32, i32
  }
  func.func @transform_14(%arg0: i32) -> (i32, i32) {
    %c0_i32 = arith.constant 0 : i32
    %c0_i32_0 = arith.constant 0 : i32
    %c0_i32_1 = arith.constant 0 : i32
    return %c0_i32, %c0_i32_0 : i32, i32
  }
  func.func @transform_15(%arg0: i32) -> (i32, i32, i32) {
    %c0_i32 = arith.constant 0 : i32
    %c0_i32_0 = arith.constant 0 : i32
    %c0_i32_1 = arith.constant 0 : i32
    return %arg0, %c0_i32, %c0_i32_0 : i32, i32, i32
  }
  func.func @transform_16(%arg0: i32) -> (i32, i32, i32) {
    %c0_i32 = arith.constant 0 : i32
    %c0_i32_0 = arith.constant 0 : i32
    %c0_i32_1 = arith.constant 0 : i32
    return %arg0, %c0_i32, %c0_i32_0 : i32, i32, i32
  }
}

</mosaic_0001>

<llo_original>
// kernel: byol_forward.1
$region0: #{byol_forward.1}
  #allocation0 [shape = 'u32[]', space=smem, size = 0x4, offset = 0x4, fixed_abs, tag = 'smem constant byte address 0x4 - core index']
  #allocation1 [shape = 'u32[144,128]{1,0:T(1,128)}', space=vmem, size = 0x12000, scoped, tag = 'internal scratch']
  %s0 = inlined_call_operand.vmem [shape: bf16[4096,128], index: 0, kind: input, shape index: {}]
  %s1 = inlined_call_operand.vmem [shape: bf16[2,128,128], index: 1, kind: input, shape index: {}]
  %s2 = inlined_call_operand.vmem [shape: bf16[2,128,128], index: 2, kind: input, shape index: {}]
  %s3 = inlined_call_operand.vmem [shape: f32[2,1,128], index: 3, kind: input, shape index: {}]
  %s4 = inlined_call_operand.vmem [shape: f32[2,1,128], index: 4, kind: input, shape index: {}]
  %s5 = inlined_call_operand.vmem [shape: bf16[2,128,128], index: 5, kind: input, shape index: {}]
  %s6 = inlined_call_operand.vmem [shape: f32[2,1,128], index: 6, kind: input, shape index: {}]
  %s7 = inlined_call_operand.vmem [shape: f32[2,1,128], index: 7, kind: input, shape index: {}]
  %s8 = inlined_call_operand.vmem [shape: bf16[2,128,128], index: 8, kind: input, shape index: {}]
  %s9 = inlined_call_operand.vmem [shape: f32[2,1,128], index: 9, kind: input, shape index: {}]
  %s10 = inlined_call_operand.vmem [shape: bf16[128,128], index: 10, kind: input, shape index: {}]
  %s11 = inlined_call_operand.vmem [shape: f32[1,128], index: 11, kind: input, shape index: {}]
  %s12 = inlined_call_operand.vmem [shape: f32[1,128], index: 12, kind: input, shape index: {}]
  %s13 = inlined_call_operand.vmem [shape: bf16[128,128], index: 13, kind: input, shape index: {}]
  %s14 = inlined_call_operand.vmem [shape: f32[1,128], index: 14, kind: input, shape index: {}]
  %s15 = inlined_call_operand.vmem [shape: f32[2,16,128], index: 15, kind: output, shape index: {0}]
  %s16 = inlined_call_operand.vmem [shape: f32[2,16,128], index: 16, kind: output, shape index: {1}]
  %17 = xla_tuple %s15, %s16
  %s18 = sld [smem:[#allocation0]]
  $region109: #{byol_forward.1} parent=0
    _
  %s20 = ssub.s32 1, %s18
  %s21 = scalar_select 0, %s20, %s18
  loop: start=0, step=1, limit=4
  $region2: #{byol_forward.1} parent=0 // loop_pre_header
    _
  $region3: #{byol_forward.1} parent=0 // loop_header
    %s23 = sphi 0, %s27
    %p24 = scmp.ge.s32.totalorder %s23, 4
    %s31 = sphi 0, %s31
    %s33 = sphi 0, %s31
    %s34 = sphi 0, %s33
    %s48 = sphi 0, %s34
    %s54 = sphi 0, %s56
    %s57 = sphi 0, %s54
    %s58 = sphi 0, %s57
    %s74 = sphi 0, %s58
    %s80 = sphi 0, %s82
    %s83 = sphi 0, %s80
    %s84 = sphi 0, %s83
    %s100 = sphi 0, %s84
    %s106 = sphi 0, %s108
    %s109 = sphi 0, %s106
    %s110 = sphi 0, %s109
    %s126 = sphi 0, %s110
    %s132 = sphi 0, %s134
    %s135 = sphi 0, %s132
    %s136 = sphi 0, %s135
    %s152 = sphi 0, %s136
    %s158 = sphi 0, %s160
    %s161 = sphi 0, %s158
    %s162 = sphi 0, %s161
    %s178 = sphi 0, %s162
    %s184 = sphi 0, %s186
    %s187 = sphi 0, %s184
    %s188 = sphi 0, %s187
    %s204 = sphi 0, %s188
    %s210 = sphi 0, %s212
    %s213 = sphi 0, %s210
    %s214 = sphi 0, %s213
    %s230 = sphi 0, %s214
    %s236 = sphi 0, %s238
    %s239 = sphi 0, %s236
    %s240 = sphi 0, %s239
    %s256 = sphi 0, %s240
    %s262 = sphi 0, %s264
    %s265 = sphi 0, %s262
    %s266 = sphi 0, %s265
    %s282 = sphi 0, %s266
    %s286 = sphi 0, %s286
    %s288 = sphi 0, %s286
    %s289 = sphi 0, %s288
    %s303 = sphi 0, %s289
    %s307 = sphi 0, %s307
    %s309 = sphi 0, %s307
    %s310 = sphi 0, %s309
    %s324 = sphi 0, %s310
    %s328 = sphi 0, %s328
    %s330 = sphi 0, %s328
    %s331 = sphi 0, %s330
    %s345 = sphi 0, %s331
    %s349 = sphi 0, %s349
    %s351 = sphi 0, %s349
    %s352 = sphi 0, %s351
    %s366 = sphi 0, %s352
    %s370 = sphi 0, %s370
    %s372 = sphi 0, %s370
    %s373 = sphi 0, %s372
    %s387 = sphi 0, %s373
    %s393 = sphi 0, %s395
    %s396 = sphi 0, %s393
    %s397 = sphi 0, %s396
    %s413 = sphi 0, %s397
    %s419 = sphi 0, %s421
    %s422 = sphi 0, %s419
    %s423 = sphi 0, %s422
    %s439 = sphi 0, %s423
  $region4: #{byol_forward.1} parent=0 // loop_header_branch
    %26 = sbr.rel (%p24) target = $region8
  $region5: #{byol_forward.1} parent=0 // loop_body
    %s28 = ssub.s32 %s23, 1
    %s29 = ssub.s32 %s23, 2
    %s30 = sadd.s32 %s23, 1
    %s32 = sadd.s32 %s31, 1
    %p35 = scmp.eq.s32.totalorder %s23, 1
    %p36 = scmp.ne.s32.totalorder %s31, %s33
    %p37 = scmp.eq.s32.totalorder %s23, 0
    %p38 = por %p36, %p37
    %p39 = scmp.ne.s32.totalorder %s31, %s33
    %p40 = scmp.eq.s32.totalorder %s28, 1
    %p41 = por %p39, %p40
    %p42 = scmp.ne.s32.totalorder %s33, %s34
    %p43 = scmp.eq.s32.totalorder %s28, 0
    %p44 = por %p42, %p43
    %p45 = scmp.ne.s32.totalorder %s33, %s34
    %p46 = scmp.eq.s32.totalorder %s29, 1
    %p47 = por %p45, %p46
    %p49 = scmp.ne.s32.totalorder %s34, %s48
    %p50 = scmp.eq.s32.totalorder %s29, 0
    %p51 = por %p49, %p50
    %s52 = ssub.s32 %s23, %s30
    %p53 = scmp.eq.s32.totalorder %s52, 0
    %s55 = sadd.s32 %s54, 1
    %s56 = scalar_select %p53, %s54, %s55
    %p59 = pneg %p53
    %p60 = scmp.eq.s32.totalorder %s23, 1
    %p61 = por %p59, %p60
    %p62 = scmp.ne.s32.totalorder %s54, %s57
    %p63 = scmp.eq.s32.totalorder %s23, 0
    %p64 = por %p62, %p63
    %p65 = scmp.ne.s32.totalorder %s54, %s57
    %p66 = scmp.eq.s32.totalorder %s28, 1
    %p67 = por %p65, %p66
    %p68 = scmp.ne.s32.totalorder %s57, %s58
    %p69 = scmp.eq.s32.totalorder %s28, 0
    %p70 = por %p68, %p69
    %p71 = scmp.ne.s32.totalorder %s57, %s58
    %p72 = scmp.eq.s32.totalorder %s29, 1
    %p73 = por %p71, %p72
    %p75 = scmp.ne.s32.totalorder %s58, %s74
    %p76 = scmp.eq.s32.totalorder %s29, 0
    %p77 = por %p75, %p76
    %s78 = ssub.s32 %s23, %s30
    %p79 = scmp.eq.s32.totalorder %s78, 0
    %s81 = sadd.s32 %s80, 1
    %s82 = scalar_select %p79, %s80, %s81
    %p85 = pneg %p79
    %p86 = scmp.eq.s32.totalorder %s23, 1
    %p87 = por %p85, %p86
    %p88 = scmp.ne.s32.totalorder %s80, %s83
    %p89 = scmp.eq.s32.totalorder %s23, 0
    %p90 = por %p88, %p89
    %p91 = scmp.ne.s32.totalorder %s80, %s83
    %p92 = scmp.eq.s32.totalorder %s28, 1
    %p93 = por %p91, %p92
    %p94 = scmp.ne.s32.totalorder %s83, %s84
    %p95 = scmp.eq.s32.totalorder %s28, 0
    %p96 = por %p94, %p95
    %p97 = scmp.ne.s32.totalorder %s83, %s84
    %p98 = scmp.eq.s32.totalorder %s29, 1
    %p99 = por %p97, %p98
    %p101 = scmp.ne.s32.totalorder %s84, %s100
    %p102 = scmp.eq.s32.totalorder %s29, 0
    %p103 = por %p101, %p102
    %s104 = ssub.s32 %s23, %s30
    %p105 = scmp.eq.s32.totalorder %s104, 0
    %s107 = sadd.s32 %s106, 1
    %s108 = scalar_select %p105, %s106, %s107
    %p111 = pneg %p105
    %p112 = scmp.eq.s32.totalorder %s23, 1
    %p113 = por %p111, %p112
    %p114 = scmp.ne.s32.totalorder %s106, %s109
    %p115 = scmp.eq.s32.totalorder %s23, 0
    %p116 = por %p114, %p115
    %p117 = scmp.ne.s32.totalorder %s106, %s109
    %p118 = scmp.eq.s32.totalorder %s28, 1
    %p119 = por %p117, %p118
    %p120 = scmp.ne.s32.totalorder %s109, %s110
    %p121 = scmp.eq.s32.totalorder %s28, 0
    %p122 = por %p120, %p121
    %p123 = scmp.ne.s32.totalorder %s109, %s110
    %p124 = scmp.eq.s32.totalorder %s29, 1
    %p125 = por %p123, %p124
    %p127 = scmp.ne.s32.totalorder %s110, %s126
    %p128 = scmp.eq.s32.totalorder %s29, 0
    %p129 = por %p127, %p128
    %s130 = ssub.s32 %s23, %s30
    %p131 = scmp.eq.s32.totalorder %s130, 0
    %s133 = sadd.s32 %s132, 1
    %s134 = scalar_select %p131, %s132, %s133
    %p137 = pneg %p131
    %p138 = scmp.eq.s32.totalorder %s23, 1
    %p139 = por %p137, %p138
    %p140 = scmp.ne.s32.totalorder %s132, %s135
    %p141 = scmp.eq.s32.totalorder %s23, 0
    %p142 = por %p140, %p141
    %p143 = scmp.ne.s32.totalorder %s132, %s135
    %p144 = scmp.eq.s32.totalorder %s28, 1
    %p145 = por %p143, %p144
    %p146 = scmp.ne.s32.totalorder %s135, %s136
    %p147 = scmp.eq.s32.totalorder %s28, 0
    %p148 = por %p146, %p147
    %p149 = scmp.ne.s32.totalorder %s135, %s136
    %p150 = scmp.eq.s32.totalorder %s29, 1
    %p151 = por %p149, %p150
    %p153 = scmp.ne.s32.totalorder %s136, %s152
    %p154 = scmp.eq.s32.totalorder %s29, 0
    %p155 = por %p153, %p154
    %s156 = ssub.s32 %s23, %s30
    %p157 = scmp.eq.s32.totalorder %s156, 0
    %s159 = sadd.s32 %s158, 1
    %s160 = scalar_select %p157, %s158, %s159
    %p163 = pneg %p157
    %p164 = scmp.eq.s32.totalorder %s23, 1
    %p165 = por %p163, %p164
    %p166 = scmp.ne.s32.totalorder %s158, %s161
    %p167 = scmp.eq.s32.totalorder %s23, 0
    %p168 = por %p166, %p167
    %p169 = scmp.ne.s32.totalorder %s158, %s161
    %p170 = scmp.eq.s32.totalorder %s28, 1
    %p171 = por %p169, %p170
    %p172 = scmp.ne.s32.totalorder %s161, %s162
    %p173 = scmp.eq.s32.totalorder %s28, 0
    %p174 = por %p172, %p173
    %p175 = scmp.ne.s32.totalorder %s161, %s162
    %p176 = scmp.eq.s32.totalorder %s29, 1
    %p177 = por %p175, %p176
    %p179 = scmp.ne.s32.totalorder %s162, %s178
    %p180 = scmp.eq.s32.totalorder %s29, 0
    %p181 = por %p179, %p180
    %s182 = ssub.s32 %s23, %s30
    %p183 = scmp.eq.s32.totalorder %s182, 0
    %s185 = sadd.s32 %s184, 1
    %s186 = scalar_select %p183, %s184, %s185
    %p189 = pneg %p183
    %p190 = scmp.eq.s32.totalorder %s23, 1
    %p191 = por %p189, %p190
    %p192 = scmp.ne.s32.totalorder %s184, %s187
    %p193 = scmp.eq.s32.totalorder %s23, 0
    %p194 = por %p192, %p193
    %p195 = scmp.ne.s32.totalorder %s184, %s187
    %p196 = scmp.eq.s32.totalorder %s28, 1
    %p197 = por %p195, %p196
    %p198 = scmp.ne.s32.totalorder %s187, %s188
    %p199 = scmp.eq.s32.totalorder %s28, 0
    %p200 = por %p198, %p199
    %p201 = scmp.ne.s32.totalorder %s187, %s188
    %p202 = scmp.eq.s32.totalorder %s29, 1
    %p203 = por %p201, %p202
    %p205 = scmp.ne.s32.totalorder %s188, %s204
    %p206 = scmp.eq.s32.totalorder %s29, 0
    %p207 = por %p205, %p206
    %s208 = ssub.s32 %s23, %s30
    %p209 = scmp.eq.s32.totalorder %s208, 0
    %s211 = sadd.s32 %s210, 1
    %s212 = scalar_select %p209, %s210, %s211
    %p215 = pneg %p209
    %p216 = scmp.eq.s32.totalorder %s23, 1
    %p217 = por %p215, %p216
    %p218 = scmp.ne.s32.totalorder %s210, %s213
    %p219 = scmp.eq.s32.totalorder %s23, 0
    %p220 = por %p218, %p219
    %p221 = scmp.ne.s32.totalorder %s210, %s213
    %p222 = scmp.eq.s32.totalorder %s28, 1
    %p223 = por %p221, %p222
    %p224 = scmp.ne.s32.totalorder %s213, %s214
    %p225 = scmp.eq.s32.totalorder %s28, 0
    %p226 = por %p224, %p225
    %p227 = scmp.ne.s32.totalorder %s213, %s214
    %p228 = scmp.eq.s32.totalorder %s29, 1
    %p229 = por %p227, %p228
    %p231 = scmp.ne.s32.totalorder %s214, %s230
    %p232 = scmp.eq.s32.totalorder %s29, 0
    %p233 = por %p231, %p232
    %s234 = ssub.s32 %s23, %s30
    %p235 = scmp.eq.s32.totalorder %s234, 0
    %s237 = sadd.s32 %s236, 1
    %s238 = scalar_select %p235, %s236, %s237
    %p241 = pneg %p235
    %p242 = scmp.eq.s32.totalorder %s23, 1
    %p243 = por %p241, %p242
    %p244 = scmp.ne.s32.totalorder %s236, %s239
    %p245 = scmp.eq.s32.totalorder %s23, 0
    %p246 = por %p244, %p245
    %p247 = scmp.ne.s32.totalorder %s236, %s239
    %p248 = scmp.eq.s32.totalorder %s28, 1
    %p249 = por %p247, %p248
    %p250 = scmp.ne.s32.totalorder %s239, %s240
    %p251 = scmp.eq.s32.totalorder %s28, 0
    %p252 = por %p250, %p251
    %p253 = scmp.ne.s32.totalorder %s239, %s240
    %p254 = scmp.eq.s32.totalorder %s29, 1
    %p255 = por %p253, %p254
    %p257 = scmp.ne.s32.totalorder %s240, %s256
    %p258 = scmp.eq.s32.totalorder %s29, 0
    %p259 = por %p257, %p258
    %s260 = ssub.s32 %s23, %s30
    %p261 = scmp.eq.s32.totalorder %s260, 0
    %s263 = sadd.s32 %s262, 1
    %s264 = scalar_select %p261, %s262, %s263
    %p267 = pneg %p261
    %p268 = scmp.eq.s32.totalorder %s23, 1
    %p269 = por %p267, %p268
    %p270 = scmp.ne.s32.totalorder %s262, %s265
    %p271 = scmp.eq.s32.totalorder %s23, 0
    %p272 = por %p270, %p271
    %p273 = scmp.ne.s32.totalorder %s262, %s265
    %p274 = scmp.eq.s32.totalorder %s28, 1
    %p275 = por %p273, %p274
    %p276 = scmp.ne.s32.totalorder %s265, %s266
    %p277 = scmp.eq.s32.totalorder %s28, 0
    %p278 = por %p276, %p277
    %p279 = scmp.ne.s32.totalorder %s265, %s266
    %p280 = scmp.eq.s32.totalorder %s29, 1
    %p281 = por %p279, %p280
    %p283 = scmp.ne.s32.totalorder %s266, %s282
    %p284 = scmp.eq.s32.totalorder %s29, 0
    %p285 = por %p283, %p284
    %s287 = sadd.s32 %s286, 1
    %p290 = scmp.eq.s32.totalorder %s23, 1
    %p291 = scmp.ne.s32.totalorder %s286, %s288
    %p292 = scmp.eq.s32.totalorder %s23, 0
    %p293 = por %p291, %p292
    %p294 = scmp.ne.s32.totalorder %s286, %s288
    %p295 = scmp.eq.s32.totalorder %s28, 1
    %p296 = por %p294, %p295
    %p297 = scmp.ne.s32.totalorder %s288, %s289
    %p298 = scmp.eq.s32.totalorder %s28, 0
    %p299 = por %p297, %p298
    %p300 = scmp.ne.s32.totalorder %s288, %s289
    %p301 = scmp.eq.s32.totalorder %s29, 1
    %p302 = por %p300, %p301
    %p304 = scmp.ne.s32.totalorder %s289, %s303
    %p305 = scmp.eq.s32.totalorder %s29, 0
    %p306 = por %p304, %p305
    %s308 = sadd.s32 %s307, 1
    %p311 = scmp.eq.s32.totalorder %s23, 1
    %p312 = scmp.ne.s32.totalorder %s307, %s309
    %p313 = scmp.eq.s32.totalorder %s23, 0
    %p314 = por %p312, %p313
    %p315 = scmp.ne.s32.totalorder %s307, %s309
    %p316 = scmp.eq.s32.totalorder %s28, 1
    %p317 = por %p315, %p316
    %p318 = scmp.ne.s32.totalorder %s309, %s310
    %p319 = scmp.eq.s32.totalorder %s28, 0
    %p320 = por %p318, %p319
    %p321 = scmp.ne.s32.totalorder %s309, %s310
    %p322 = scmp.eq.s32.totalorder %s29, 1
    %p323 = por %p321, %p322
    %p325 = scmp.ne.s32.totalorder %s310, %s324
    %p326 = scmp.eq.s32.totalorder %s29, 0
    %p327 = por %p325, %p326
    %s329 = sadd.s32 %s328, 1
    %p332 = scmp.eq.s32.totalorder %s23, 1
    %p333 = scmp.ne.s32.totalorder %s328, %s330
    %p334 = scmp.eq.s32.totalorder %s23, 0
    %p335 = por %p333, %p334
    %p336 = scmp.ne.s32.totalorder %s328, %s330
    %p337 = scmp.eq.s32.totalorder %s28, 1
    %p338 = por %p336, %p337
    %p339 = scmp.ne.s32.totalorder %s330, %s331
    %p340 = scmp.eq.s32.totalorder %s28, 0
    %p341 = por %p339, %p340
    %p342 = scmp.ne.s32.totalorder %s330, %s331
    %p343 = scmp.eq.s32.totalorder %s29, 1
    %p344 = por %p342, %p343
    %p346 = scmp.ne.s32.totalorder %s331, %s345
    %p347 = scmp.eq.s32.totalorder %s29, 0
    %p348 = por %p346, %p347
    %s350 = sadd.s32 %s349, 1
    %p353 = scmp.eq.s32.totalorder %s23, 1
    %p354 = scmp.ne.s32.totalorder %s349, %s351
    %p355 = scmp.eq.s32.totalorder %s23, 0
    %p356 = por %p354, %p355
    %p357 = scmp.ne.s32.totalorder %s349, %s351
    %p358 = scmp.eq.s32.totalorder %s28, 1
    %p359 = por %p357, %p358
    %p360 = scmp.ne.s32.totalorder %s351, %s352
    %p361 = scmp.eq.s32.totalorder %s28, 0
    %p362 = por %p360, %p361
    %p363 = scmp.ne.s32.totalorder %s351, %s352
    %p364 = scmp.eq.s32.totalorder %s29, 1
    %p365 = por %p363, %p364
    %p367 = scmp.ne.s32.totalorder %s352, %s366
    %p368 = scmp.eq.s32.totalorder %s29, 0
    %p369 = por %p367, %p368
    %s371 = sadd.s32 %s370, 1
    %p374 = scmp.eq.s32.totalorder %s23, 1
    %p375 = scmp.ne.s32.totalorder %s370, %s372
    %p376 = scmp.eq.s32.totalorder %s23, 0
    %p377 = por %p375, %p376
    %p378 = scmp.ne.s32.totalorder %s370, %s372
    %p379 = scmp.eq.s32.totalorder %s28, 1
    %p380 = por %p378, %p379
    %p381 = scmp.ne.s32.totalorder %s372, %s373
    %p382 = scmp.eq.s32.totalorder %s28, 0
    %p383 = por %p381, %p382
    %p384 = scmp.ne.s32.totalorder %s372, %s373
    %p385 = scmp.eq.s32.totalorder %s29, 1
    %p386 = por %p384, %p385
    %p388 = scmp.ne.s32.totalorder %s373, %s387
    %p389 = scmp.eq.s32.totalorder %s29, 0
    %p390 = por %p388, %p389
    %s391 = ssub.s32 %s23, %s30
    %p392 = scmp.eq.s32.totalorder %s391, 0
    %s394 = sadd.s32 %s393, 1
    %s395 = scalar_select %p392, %s393, %s394
    %p398 = pneg %p392
    %p399 = scmp.eq.s32.totalorder %s23, 1
    %p400 = por %p398, %p399
    %p401 = scmp.ne.s32.totalorder %s393, %s396
    %p402 = scmp.eq.s32.totalorder %s23, 0
    %p403 = por %p401, %p402
    %p404 = scmp.ne.s32.totalorder %s393, %s396
    %p405 = scmp.eq.s32.totalorder %s28, 1
    %p406 = por %p404, %p405
    %p407 = scmp.ne.s32.totalorder %s396, %s397
    %p408 = scmp.eq.s32.totalorder %s28, 0
    %p409 = por %p407, %p408
    %p410 = scmp.ne.s32.totalorder %s396, %s397
    %p411 = scmp.eq.s32.totalorder %s29, 1
    %p412 = por %p410, %p411
    %p414 = scmp.ne.s32.totalorder %s397, %s413
    %p415 = scmp.eq.s32.totalorder %s29, 0
    %p416 = por %p414, %p415
    %s417 = ssub.s32 %s23, %s30
    %p418 = scmp.eq.s32.totalorder %s417, 0
    %s420 = sadd.s32 %s419, 1
    %s421 = scalar_select %p418, %s419, %s420
    %p424 = pneg %p418
    %p425 = scmp.eq.s32.totalorder %s23, 1
    %p426 = por %p424, %p425
    %p427 = scmp.ne.s32.totalorder %s419, %s422
    %p428 = scmp.eq.s32.totalorder %s23, 0
    %p429 = por %p427, %p428
    %p430 = scmp.ne.s32.totalorder %s419, %s422
    %p431 = scmp.eq.s32.totalorder %s28, 1
    %p432 = por %p430, %p431
    %p433 = scmp.ne.s32.totalorder %s422, %s423
    %p434 = scmp.eq.s32.totalorder %s28, 0
    %p435 = por %p433, %p434
    %p436 = scmp.ne.s32.totalorder %s422, %s423
    %p437 = scmp.eq.s32.totalorder %s29, 1
    %p438 = por %p436, %p437
    %p440 = scmp.ne.s32.totalorder %s423, %s439
    %p441 = scmp.eq.s32.totalorder %s29, 0
    %p442 = por %p440, %p441
    %p443 = scmp.le.s32.totalorder 1, %s23
    %p444 = scmp.lt.s32.totalorder %s23, 3
    %p445 = pnand %p443, %p444
    %p446 = pneg %p445
    // Predicated region
    $region9: #{byol_forward.1} parent=5 // pred_check
      _
    $region10: #{byol_forward.1} parent=5 // pred_check_branch
      %448 = sbr.rel (%p445) target = $region12
    $region11: #{byol_forward.1} parent=5 // pred_region
      %s449 = ssub.s32 %s23, 1
      // Predicated region
      $region13: #{byol_forward.1} parent=11 // pred_check
        %p450 = pneg %p44
      $region14: #{byol_forward.1} parent=11 // pred_check_branch
        %452 = sbr.rel (%p450) target = $region16
      $region15: #{byol_forward.1} parent=11 // pred_region
        _
      $region16: #{byol_forward.1} parent=11 // pred_fallthru
        _
      // Predicated region
      $region17: #{byol_forward.1} parent=11 // pred_check
        %p453 = pneg %p299
      $region18: #{byol_forward.1} parent=11 // pred_check_branch
        %455 = sbr.rel (%p453) target = $region20
      $region19: #{byol_forward.1} parent=11 // pred_region
        _
      $region20: #{byol_forward.1} parent=11 // pred_fallthru
        _
      // Predicated region
      $region21: #{byol_forward.1} parent=11 // pred_check
        %p456 = pneg %p320
      $region22: #{byol_forward.1} parent=11 // pred_check_branch
        %458 = sbr.rel (%p456) target = $region24
      $region23: #{byol_forward.1} parent=11 // pred_region
        _
      $region24: #{byol_forward.1} parent=11 // pred_fallthru
        _
      // Predicated region
      $region25: #{byol_forward.1} parent=11 // pred_check
        %p459 = pneg %p341
      $region26: #{byol_forward.1} parent=11 // pred_check_branch
        %461 = sbr.rel (%p459) target = $region28
      $region27: #{byol_forward.1} parent=11 // pred_region
        _
      $region28: #{byol_forward.1} parent=11 // pred_fallthru
        _
      // Predicated region
      $region29: #{byol_forward.1} parent=11 // pred_check
        %p462 = pneg %p362
      $region30: #{byol_forward.1} parent=11 // pred_check_branch
        %464 = sbr.rel (%p462) target = $region32
      $region31: #{byol_forward.1} parent=11 // pred_region
        _
      $region32: #{byol_forward.1} parent=11 // pred_fallthru
        _
      // Predicated region
      $region33: #{byol_forward.1} parent=11 // pred_check
        %p465 = pneg %p383
      $region34: #{byol_forward.1} parent=11 // pred_check_branch
        %467 = sbr.rel (%p465) target = $region36
      $region35: #{byol_forward.1} parent=11 // pred_region
        _
      $region36: #{byol_forward.1} parent=11 // pred_fallthru
        _
    $region12: #{byol_forward.1} parent=5 // pred_fallthru
      _
    %p468 = scmp.lt.s32.totalorder %s23, 2
    // Predicated region
    $region37: #{byol_forward.1} parent=5 // pred_check
      %p469 = pneg %p468
    $region38: #{byol_forward.1} parent=5 // pred_check_branch
      %471 = sbr.rel (%p469) target = $region40
    $region39: #{byol_forward.1} parent=5 // pred_region
      // Predicated region
      $region41: #{byol_forward.1} parent=39 // pred_check
        %p472 = pneg %p64
      $region42: #{byol_forward.1} parent=39 // pred_check_branch
        %474 = sbr.rel (%p472) target = $region44
      $region43: #{byol_forward.1} parent=39 // pred_region
        %p475 = scmp.lt.s32.totalorder %s23, 1
        %s476 = scalar_select %p475, %s23, 1
        %s477 = smul.addr %s476, 16
        %s478 = smul.addr %s477, 4
        %s479 = scalar_lea.vmem %s1, %s478
      $region44: #{byol_forward.1} parent=39 // pred_fallthru
        _
      // Predicated region
      $region45: #{byol_forward.1} parent=39 // pred_check
        %p480 = pneg %p90
      $region46: #{byol_forward.1} parent=39 // pred_check_branch
        %482 = sbr.rel (%p480) target = $region48
      $region47: #{byol_forward.1} parent=39 // pred_region
        %p483 = scmp.lt.s32.totalorder %s23, 1
        %s484 = scalar_select %p483, %s23, 1
        %s485 = smul.addr %s484, 16
        %s486 = smul.addr %s485, 4
        %s487 = scalar_lea.vmem %s2, %s486
      $region48: #{byol_forward.1} parent=39 // pred_fallthru
        _
      // Predicated region
      $region49: #{byol_forward.1} parent=39 // pred_check
        %p488 = pneg %p116
      $region50: #{byol_forward.1} parent=39 // pred_check_branch
        %490 = sbr.rel (%p488) target = $region52
      $region51: #{byol_forward.1} parent=39 // pred_region
        %p491 = scmp.lt.s32.totalorder %s23, 1
        %s492 = scalar_select %p491, %s23, 1
        %s493 = scalar_lea.vmem %s3, %s492
      $region52: #{byol_forward.1} parent=39 // pred_fallthru
        _
      // Predicated region
      $region53: #{byol_forward.1} parent=39 // pred_check
        %p494 = pneg %p142
      $region54: #{byol_forward.1} parent=39 // pred_check_branch
        %496 = sbr.rel (%p494) target = $region56
      $region55: #{byol_forward.1} parent=39 // pred_region
        %p497 = scmp.lt.s32.totalorder %s23, 1
        %s498 = scalar_select %p497, %s23, 1
        %s499 = scalar_lea.vmem %s4, %s498
      $region56: #{byol_forward.1} parent=39 // pred_fallthru
        _
      // Predicated region
      $region57: #{byol_forward.1} parent=39 // pred_check
        %p500 = pneg %p168
      $region58: #{byol_forward.1} parent=39 // pred_check_branch
        %502 = sbr.rel (%p500) target = $region60
      $region59: #{byol_forward.1} parent=39 // pred_region
        %p503 = scmp.lt.s32.totalorder %s23, 1
        %s504 = scalar_select %p503, %s23, 1
        %s505 = smul.addr %s504, 16
        %s506 = smul.addr %s505, 4
        %s507 = scalar_lea.vmem %s5, %s506
      $region60: #{byol_forward.1} parent=39 // pred_fallthru
        _
      // Predicated region
      $region61: #{byol_forward.1} parent=39 // pred_check
        %p508 = pneg %p194
      $region62: #{byol_forward.1} parent=39 // pred_check_branch
        %510 = sbr.rel (%p508) target = $region64
      $region63: #{byol_forward.1} parent=39 // pred_region
        %p511 = scmp.lt.s32.totalorder %s23, 1
        %s512 = scalar_select %p511, %s23, 1
        %s513 = scalar_lea.vmem %s6, %s512
      $region64: #{byol_forward.1} parent=39 // pred_fallthru
        _
      // Predicated region
      $region65: #{byol_forward.1} parent=39 // pred_check
        %p514 = pneg %p220
      $region66: #{byol_forward.1} parent=39 // pred_check_branch
        %516 = sbr.rel (%p514) target = $region68
      $region67: #{byol_forward.1} parent=39 // pred_region
        %p517 = scmp.lt.s32.totalorder %s23, 1
        %s518 = scalar_select %p517, %s23, 1
        %s519 = scalar_lea.vmem %s7, %s518
      $region68: #{byol_forward.1} parent=39 // pred_fallthru
        _
      // Predicated region
      $region69: #{byol_forward.1} parent=39 // pred_check
        %p520 = pneg %p246
      $region70: #{byol_forward.1} parent=39 // pred_check_branch
        %522 = sbr.rel (%p520) target = $region72
      $region71: #{byol_forward.1} parent=39 // pred_region
        %p523 = scmp.lt.s32.totalorder %s23, 1
        %s524 = scalar_select %p523, %s23, 1
        %s525 = smul.addr %s524, 16
        %s526 = smul.addr %s525, 4
        %s527 = scalar_lea.vmem %s8, %s526
      $region72: #{byol_forward.1} parent=39 // pred_fallthru
        _
      // Predicated region
      $region73: #{byol_forward.1} parent=39 // pred_check
        %p528 = pneg %p272
      $region74: #{byol_forward.1} parent=39 // pred_check_branch
        %530 = sbr.rel (%p528) target = $region76
      $region75: #{byol_forward.1} parent=39 // pred_region
        %p531 = scmp.lt.s32.totalorder %s23, 1
        %s532 = scalar_select %p531, %s23, 1
        %s533 = scalar_lea.vmem %s9, %s532
      $region76: #{byol_forward.1} parent=39 // pred_fallthru
        _
    $region40: #{byol_forward.1} parent=5 // pred_fallthru
      _
    %p534 = scmp.le.s32.totalorder 1, %s23
    %p535 = scmp.lt.s32.totalorder %s23, 3
    %p536 = pnand %p534, %p535
    %p537 = pneg %p536
    // Predicated region
    $region77: #{byol_forward.1} parent=5 // pred_check
      _
    $region78: #{byol_forward.1} parent=5 // pred_check_branch
      %539 = sbr.rel (%p536) target = $region80
    $region79: #{byol_forward.1} parent=5 // pred_region
      %s540 = ssub.s32 %s23, 1
      %p541 = pneg %p44
      %p542 = pneg %p41
      %p543 = scmp.lt.s32.totalorder %s28, 1
      %s544 = scalar_select %p543, %s28, 1
      %s545 = smul.addr %s544, 16
      %s546 = smul.addr %s545, 4
      %s547 = scalar_lea.vmem %s1, %s546
      %p548 = pneg %p70
      %p549 = pneg %p67
      %p550 = scmp.lt.s32.totalorder %s28, 1
      %s551 = scalar_select %p550, %s28, 1
      %s552 = smul.addr %s551, 16
      %s553 = smul.addr %s552, 4
      %s554 = scalar_lea.vmem %s2, %s553
      %p555 = pneg %p96
      %p556 = pneg %p93
      %p557 = scmp.lt.s32.totalorder %s28, 1
      %s558 = scalar_select %p557, %s28, 1
      %s559 = scalar_lea.vmem %s3, %s558
      %p560 = pneg %p122
      %p561 = pneg %p119
      %p562 = scmp.lt.s32.totalorder %s28, 1
      %s563 = scalar_select %p562, %s28, 1
      %s564 = scalar_lea.vmem %s4, %s563
      %p565 = pneg %p148
      %p566 = pneg %p145
      %p567 = scmp.lt.s32.totalorder %s28, 1
      %s568 = scalar_select %p567, %s28, 1
      %s569 = smul.addr %s568, 16
      %s570 = smul.addr %s569, 4
      %s571 = scalar_lea.vmem %s5, %s570
      %p572 = pneg %p174
      %p573 = pneg %p171
      %p574 = scmp.lt.s32.totalorder %s28, 1
      %s575 = scalar_select %p574, %s28, 1
      %s576 = scalar_lea.vmem %s6, %s575
      %p577 = pneg %p200
      %p578 = pneg %p197
      %p579 = scmp.lt.s32.totalorder %s28, 1
      %s580 = scalar_select %p579, %s28, 1
      %s581 = scalar_lea.vmem %s7, %s580
      %p582 = pneg %p226
      %p583 = pneg %p223
      %p584 = scmp.lt.s32.totalorder %s28, 1
      %s585 = scalar_select %p584, %s28, 1
      %s586 = smul.addr %s585, 16
      %s587 = smul.addr %s586, 4
      %s588 = scalar_lea.vmem %s8, %s587
      %p589 = pneg %p252
      %p590 = pneg %p249
      %p591 = scmp.lt.s32.totalorder %s28, 1
      %s592 = scalar_select %p591, %s28, 1
      %s593 = scalar_lea.vmem %s9, %s592
      %p594 = pneg %p278
      %p595 = pneg %p275
      %p596 = pneg %p299
      %p597 = pneg %p296
      %p598 = pneg %p320
      %p599 = pneg %p317
      %p600 = pneg %p341
      %p601 = pneg %p338
      %p602 = pneg %p362
      %p603 = pneg %p359
      %p604 = pneg %p383
      %p605 = pneg %p380
      %p606 = pneg %p409
      %p607 = pneg %p406
      %p608 = scmp.lt.s32.totalorder %s28, 1
      %s609 = scalar_select %p608, %s28, 1
      %s610 = smul.addr %s609, 2
      %s611 = smul.addr %s610, 8
      %s612 = scalar_lea.vmem %s15, %s611
      %p613 = pneg %p435
      %p614 = pneg %p432
      %p615 = scmp.lt.s32.totalorder %s28, 1
      %s616 = scalar_select %p615, %s28, 1
      %s617 = smul.addr %s616, 2
      %s618 = smul.addr %s617, 8
      %s619 = scalar_lea.vmem %s16, %s618
      %p620 = scmp.lt.s32.totalorder %s28, 1
      %s621 = scalar_select %p620, %s28, 1
      %s622 = smul.addr %s621, 16
      %s623 = smul.addr %s622, 4
      %s624 = scalar_lea.vmem %s1, %s623
      %p625 = scmp.lt.s32.totalorder %s28, 1
      %s626 = scalar_select %p625, %s28, 1
      %s627 = smul.addr %s626, 16
      %s628 = smul.addr %s627, 4
      %s629 = scalar_lea.vmem %s2, %s628
      %p630 = scmp.lt.s32.totalorder %s28, 1
      %s631 = scalar_select %p630, %s28, 1
      %s632 = scalar_lea.vmem %s3, %s631
      %p633 = scmp.lt.s32.totalorder %s28, 1
      %s634 = scalar_select %p633, %s28, 1
      %s635 = scalar_lea.vmem %s4, %s634
      %p636 = scmp.lt.s32.totalorder %s28, 1
      %s637 = scalar_select %p636, %s28, 1
      %s638 = smul.addr %s637, 16
      %s639 = smul.addr %s638, 4
      %s640 = scalar_lea.vmem %s5, %s639
      %p641 = scmp.lt.s32.totalorder %s28, 1
      %s642 = scalar_select %p641, %s28, 1
      %s643 = scalar_lea.vmem %s6, %s642
      %p644 = scmp.lt.s32.totalorder %s28, 1
      %s645 = scalar_select %p644, %s28, 1
      %s646 = scalar_lea.vmem %s7, %s645
      %p647 = scmp.lt.s32.totalorder %s28, 1
      %s648 = scalar_select %p647, %s28, 1
      %s649 = smul.addr %s648, 16
      %s650 = smul.addr %s649, 4
      %s651 = scalar_lea.vmem %s8, %s650
      %p652 = scmp.lt.s32.totalorder %s28, 1
      %s653 = scalar_select %p652, %s28, 1
      %s654 = scalar_lea.vmem %s9, %s653
      %p655 = scmp.lt.s32.totalorder %s28, 1
      %s656 = scalar_select %p655, %s28, 1
      %s657 = smul.addr %s656, 2
      %s658 = smul.addr %s657, 8
      %s659 = scalar_lea.vmem %s15, %s658
      %p660 = scmp.lt.s32.totalorder %s28, 1
      %s661 = scalar_select %p660, %s28, 1
      %s662 = smul.addr %s661, 2
      %s663 = smul.addr %s662, 8
      %s664 = scalar_lea.vmem %s16, %s663
      %v666 = vld [vmem:[%s0] sm:$0xf]
      %v667 = vld [vmem:[%s0 + $0x4] sm:$0xf]
      %v668 = vld [vmem:[%s0 + $0x8] sm:$0xf]
      %v669 = vld [vmem:[%s0 + $0xc] sm:$0xf]
      %v670 = vld [vmem:[%s0 + $0x10] sm:$0xf]
      %v671 = vld [vmem:[%s0 + $0x14] sm:$0xf]
      %v672 = vld [vmem:[%s0 + $0x18] sm:$0xf]
      %v673 = vld [vmem:[%s0 + $0x1c] sm:$0xf]
      %v674 = vld [vmem:[%s0 + $0x20] sm:$0xf]
      %v675 = vld [vmem:[%s0 + $0x24] sm:$0xf]
      %v676 = vld [vmem:[%s0 + $0x28] sm:$0xf]
      %v677 = vld [vmem:[%s0 + $0x2c] sm:$0xf]
      %v678 = vld [vmem:[%s0 + $0x30] sm:$0xf]
      %v679 = vld [vmem:[%s0 + $0x34] sm:$0xf]
      %v680 = vld [vmem:[%s0 + $0x38] sm:$0xf]
      %v681 = vld [vmem:[%s0 + $0x3c] sm:$0xf]
      %v682 = vld [vmem:[%s0 + $0x40] sm:$0xf]
      %v683 = vld [vmem:[%s0 + $0x44] sm:$0xf]
      %v684 = vld [vmem:[%s0 + $0x48] sm:$0xf]
      %v685 = vld [vmem:[%s0 + $0x4c] sm:$0xf]
      %v686 = vld [vmem:[%s0 + $0x50] sm:$0xf]
      %v687 = vld [vmem:[%s0 + $0x54] sm:$0xf]
      %v688 = vld [vmem:[%s0 + $0x58] sm:$0xf]
      %v689 = vld [vmem:[%s0 + $0x5c] sm:$0xf]
      %v690 = vld [vmem:[%s0 + $0x60] sm:$0xf]
      %v691 = vld [vmem:[%s0 + $0x64] sm:$0xf]
      %v692 = vld [vmem:[%s0 + $0x68] sm:$0xf]
      %v693 = vld [vmem:[%s0 + $0x6c] sm:$0xf]
      %v694 = vld [vmem:[%s0 + $0x70] sm:$0xf]
      %v695 = vld [vmem:[%s0 + $0x74] sm:$0xf]
      %v696 = vld [vmem:[%s0 + $0x78] sm:$0xf]
      %v697 = vld [vmem:[%s0 + $0x7c] sm:$0xf]
      %v698 = vld [vmem:[%s0 + $0x80] sm:$0xf]
      %v699 = vld [vmem:[%s0 + $0x84] sm:$0xf]
      %v700 = vld [vmem:[%s0 + $0x88] sm:$0xf]
      %v701 = vld [vmem:[%s0 + $0x8c] sm:$0xf]
      %v702 = vld [vmem:[%s0 + $0x90] sm:$0xf]
      %v703 = vld [vmem:[%s0 + $0x94] sm:$0xf]
      %v704 = vld [vmem:[%s0 + $0x98] sm:$0xf]
      %v705 = vld [vmem:[%s0 + $0x9c] sm:$0xf]
      %v706 = vld [vmem:[%s0 + $0xa0] sm:$0xf]
      %v707 = vld [vmem:[%s0 + $0xa4] sm:$0xf]
      %v708 = vld [vmem:[%s0 + $0xa8] sm:$0xf]
      %v709 = vld [vmem:[%s0 + $0xac] sm:$0xf]
      %v710 = vld [vmem:[%s0 + $0xb0] sm:$0xf]
      %v711 = vld [vmem:[%s0 + $0xb4] sm:$0xf]
      %v712 = vld [vmem:[%s0 + $0xb8] sm:$0xf]
      %v713 = vld [vmem:[%s0 + $0xbc] sm:$0xf]
      %v714 = vld [vmem:[%s0 + $0xc0] sm:$0xf]
      %v715 = vld [vmem:[%s0 + $0xc4] sm:$0xf]
      %v716 = vld [vmem:[%s0 + $0xc8] sm:$0xf]
      %v717 = vld [vmem:[%s0 + $0xcc] sm:$0xf]
      %v718 = vld [vmem:[%s0 + $0xd0] sm:$0xf]
      %v719 = vld [vmem:[%s0 + $0xd4] sm:$0xf]
      %v720 = vld [vmem:[%s0 + $0xd8] sm:$0xf]
      %v721 = vld [vmem:[%s0 + $0xdc] sm:$0xf]
      %v722 = vld [vmem:[%s0 + $0xe0] sm:$0xf]
      %v723 = vld [vmem:[%s0 + $0xe4] sm:$0xf]
      %v724 = vld [vmem:[%s0 + $0xe8] sm:$0xf]
      %v725 = vld [vmem:[%s0 + $0xec] sm:$0xf]
      %v726 = vld [vmem:[%s0 + $0xf0] sm:$0xf]
      %v727 = vld [vmem:[%s0 + $0xf4] sm:$0xf]
      %v728 = vld [vmem:[%s0 + $0xf8] sm:$0xf]
      %v729 = vld [vmem:[%s0 + $0xfc] sm:$0xf]
      %v730 = vld [vmem:[%s0 + $0x100] sm:$0xf]
      %v731 = vld [vmem:[%s0 + $0x104] sm:$0xf]
      %v732 = vld [vmem:[%s0 + $0x108] sm:$0xf]
      %v733 = vld [vmem:[%s0 + $0x10c] sm:$0xf]
      %v734 = vld [vmem:[%s0 + $0x110] sm:$0xf]
      %v735 = vld [vmem:[%s0 + $0x114] sm:$0xf]
      %v736 = vld [vmem:[%s0 + $0x118] sm:$0xf]
      %v737 = vld [vmem:[%s0 + $0x11c] sm:$0xf]
      %v738 = vld [vmem:[%s0 + $0x120] sm:$0xf]
      %v739 = vld [vmem:[%s0 + $0x124] sm:$0xf]
      %v740 = vld [vmem:[%s0 + $0x128] sm:$0xf]
      %v741 = vld [vmem:[%s0 + $0x12c] sm:$0xf]
      %v742 = vld [vmem:[%s0 + $0x130] sm:$0xf]
      %v743 = vld [vmem:[%s0 + $0x134] sm:$0xf]
      %v744 = vld [vmem:[%s0 + $0x138] sm:$0xf]
      %v745 = vld [vmem:[%s0 + $0x13c] sm:$0xf]
      %v746 = vld [vmem:[%s0 + $0x140] sm:$0xf]
      %v747 = vld [vmem:[%s0 + $0x144] sm:$0xf]
      %v748 = vld [vmem:[%s0 + $0x148] sm:$0xf]
      %v749 = vld [vmem:[%s0 + $0x14c] sm:$0xf]
      %v750 = vld [vmem:[%s0 + $0x150] sm:$0xf]
      %v751 = vld [vmem:[%s0 + $0x154] sm:$0xf]
      %v752 = vld [vmem:[%s0 + $0x158] sm:$0xf]
      %v753 = vld [vmem:[%s0 + $0x15c] sm:$0xf]
      %v754 = vld [vmem:[%s0 + $0x160] sm:$0xf]
      %v755 = vld [vmem:[%s0 + $0x164] sm:$0xf]
      %v756 = vld [vmem:[%s0 + $0x168] sm:$0xf]
      %v757 = vld [vmem:[%s0 + $0x16c] sm:$0xf]
      %v758 = vld [vmem:[%s0 + $0x170] sm:$0xf]
      %v759 = vld [vmem:[%s0 + $0x174] sm:$0xf]
      %v760 = vld [vmem:[%s0 + $0x178] sm:$0xf]
      %v761 = vld [vmem:[%s0 + $0x17c] sm:$0xf]
      %v762 = vld [vmem:[%s0 + $0x180] sm:$0xf]
      %v763 = vld [vmem:[%s0 + $0x184] sm:$0xf]
      %v764 = vld [vmem:[%s0 + $0x188] sm:$0xf]
      %v765 = vld [vmem:[%s0 + $0x18c] sm:$0xf]
      %v766 = vld [vmem:[%s0 + $0x190] sm:$0xf]
      %v767 = vld [vmem:[%s0 + $0x194] sm:$0xf]
      %v768 = vld [vmem:[%s0 + $0x198] sm:$0xf]
      %v769 = vld [vmem:[%s0 + $0x19c] sm:$0xf]
      %v770 = vld [vmem:[%s0 + $0x1a0] sm:$0xf]
      %v771 = vld [vmem:[%s0 + $0x1a4] sm:$0xf]
      %v772 = vld [vmem:[%s0 + $0x1a8] sm:$0xf]
      %v773 = vld [vmem:[%s0 + $0x1ac] sm:$0xf]
      %v774 = vld [vmem:[%s0 + $0x1b0] sm:$0xf]
      %v775 = vld [vmem:[%s0 + $0x1b4] sm:$0xf]
      %v776 = vld [vmem:[%s0 + $0x1b8] sm:$0xf]
      %v777 = vld [vmem:[%s0 + $0x1bc] sm:$0xf]
      %v778 = vld [vmem:[%s0 + $0x1c0] sm:$0xf]
      %v779 = vld [vmem:[%s0 + $0x1c4] sm:$0xf]
      %v780 = vld [vmem:[%s0 + $0x1c8] sm:$0xf]
      %v781 = vld [vmem:[%s0 + $0x1cc] sm:$0xf]
      %v782 = vld [vmem:[%s0 + $0x1d0] sm:$0xf]
      %v783 = vld [vmem:[%s0 + $0x1d4] sm:$0xf]
      %v784 = vld [vmem:[%s0 + $0x1d8] sm:$0xf]
      %v785 = vld [vmem:[%s0 + $0x1dc] sm:$0xf]
      %v786 = vld [vmem:[%s0 + $0x1e0] sm:$0xf]
      %v787 = vld [vmem:[%s0 + $0x1e4] sm:$0xf]
      %v788 = vld [vmem:[%s0 + $0x1e8] sm:$0xf]
      %v789 = vld [vmem:[%s0 + $0x1ec] sm:$0xf]
      %v790 = vld [vmem:[%s0 + $0x1f0] sm:$0xf]
      %v791 = vld [vmem:[%s0 + $0x1f4] sm:$0xf]
      %v792 = vld [vmem:[%s0 + $0x1f8] sm:$0xf]
      %v793 = vld [vmem:[%s0 + $0x1fc] sm:$0xf]
      %v794 = vld [vmem:[%s0 + $0x200] sm:$0xf]
      %v795 = vld [vmem:[%s0 + $0x204] sm:$0xf]
      %v796 = vld [vmem:[%s0 + $0x208] sm:$0xf]
      %v797 = vld [vmem:[%s0 + $0x20c] sm:$0xf]
      %v798 = vld [vmem:[%s0 + $0x210] sm:$0xf]
      %v799 = vld [vmem:[%s0 + $0x214] sm:$0xf]
      %v800 = vld [vmem:[%s0 + $0x218] sm:$0xf]
      %v801 = vld [vmem:[%s0 + $0x21c] sm:$0xf]
      %v802 = vld [vmem:[%s0 + $0x220] sm:$0xf]
      %v803 = vld [vmem:[%s0 + $0x224] sm:$0xf]
      %v804 = vld [vmem:[%s0 + $0x228] sm:$0xf]
      %v805 = vld [vmem:[%s0 + $0x22c] sm:$0xf]
      %v806 = vld [vmem:[%s0 + $0x230] sm:$0xf]
      %v807 = vld [vmem:[%s0 + $0x234] sm:$0xf]
      %v808 = vld [vmem:[%s0 + $0x238] sm:$0xf]
      %v809 = vld [vmem:[%s0 + $0x23c] sm:$0xf]
      %v810 = vld [vmem:[%s0 + $0x240] sm:$0xf]
      %v811 = vld [vmem:[%s0 + $0x244] sm:$0xf]
      %v812 = vld [vmem:[%s0 + $0x248] sm:$0xf]
      %v813 = vld [vmem:[%s0 + $0x24c] sm:$0xf]
      %v814 = vld [vmem:[%s0 + $0x250] sm:$0xf]
      %v815 = vld [vmem:[%s0 + $0x254] sm:$0xf]
      %v816 = vld [vmem:[%s0 + $0x258] sm:$0xf]
      %v817 = vld [vmem:[%s0 + $0x25c] sm:$0xf]
      %v818 = vld [vmem:[%s0 + $0x260] sm:$0xf]
      %v819 = vld [vmem:[%s0 + $0x264] sm:$0xf]
      %v820 = vld [vmem:[%s0 + $0x268] sm:$0xf]
      %v821 = vld [vmem:[%s0 + $0x26c] sm:$0xf]
      %v822 = vld [vmem:[%s0 + $0x270] sm:$0xf]
      %v823 = vld [vmem:[%s0 + $0x274] sm:$0xf]
      %v824 = vld [vmem:[%s0 + $0x278] sm:$0xf]
      %v825 = vld [vmem:[%s0 + $0x27c] sm:$0xf]
      %v826 = vld [vmem:[%s0 + $0x280] sm:$0xf]
      %v827 = vld [vmem:[%s0 + $0x284] sm:$0xf]
      %v828 = vld [vmem:[%s0 + $0x288] sm:$0xf]
      %v829 = vld [vmem:[%s0 + $0x28c] sm:$0xf]
      %v830 = vld [vmem:[%s0 + $0x290] sm:$0xf]
      %v831 = vld [vmem:[%s0 + $0x294] sm:$0xf]
      %v832 = vld [vmem:[%s0 + $0x298] sm:$0xf]
      %v833 = vld [vmem:[%s0 + $0x29c] sm:$0xf]
      %v834 = vld [vmem:[%s0 + $0x2a0] sm:$0xf]
      %v835 = vld [vmem:[%s0 + $0x2a4] sm:$0xf]
      %v836 = vld [vmem:[%s0 + $0x2a8] sm:$0xf]
      %v837 = vld [vmem:[%s0 + $0x2ac] sm:$0xf]
      %v838 = vld [vmem:[%s0 + $0x2b0] sm:$0xf]
      %v839 = vld [vmem:[%s0 + $0x2b4] sm:$0xf]
      %v840 = vld [vmem:[%s0 + $0x2b8] sm:$0xf]
      %v841 = vld [vmem:[%s0 + $0x2bc] sm:$0xf]
      %v842 = vld [vmem:[%s0 + $0x2c0] sm:$0xf]
      %v843 = vld [vmem:[%s0 + $0x2c4] sm:$0xf]
      %v844 = vld [vmem:[%s0 + $0x2c8] sm:$0xf]
      %v845 = vld [vmem:[%s0 + $0x2cc] sm:$0xf]
      %v846 = vld [vmem:[%s0 + $0x2d0] sm:$0xf]
      %v847 = vld [vmem:[%s0 + $0x2d4] sm:$0xf]
      %v848 = vld [vmem:[%s0 + $0x2d8] sm:$0xf]
      %v849 = vld [vmem:[%s0 + $0x2dc] sm:$0xf]
      %v850 = vld [vmem:[%s0 + $0x2e0] sm:$0xf]
      %v851 = vld [vmem:[%s0 + $0x2e4] sm:$0xf]
      %v852 = vld [vmem:[%s0 + $0x2e8] sm:$0xf]
      %v853 = vld [vmem:[%s0 + $0x2ec] sm:$0xf]
      %v854 = vld [vmem:[%s0 + $0x2f0] sm:$0xf]
      %v855 = vld [vmem:[%s0 + $0x2f4] sm:$0xf]
      %v856 = vld [vmem:[%s0 + $0x2f8] sm:$0xf]
      %v857 = vld [vmem:[%s0 + $0x2fc] sm:$0xf]
      %v858 = vld [vmem:[%s0 + $0x300] sm:$0xf]
      %v859 = vld [vmem:[%s0 + $0x304] sm:$0xf]
      %v860 = vld [vmem:[%s0 + $0x308] sm:$0xf]
      %v861 = vld [vmem:[%s0 + $0x30c] sm:$0xf]
      %v862 = vld [vmem:[%s0 + $0x310] sm:$0xf]
      %v863 = vld [vmem:[%s0 + $0x314] sm:$0xf]
      %v864 = vld [vmem:[%s0 + $0x318] sm:$0xf]
      %v865 = vld [vmem:[%s0 + $0x31c] sm:$0xf]
      %v866 = vld [vmem:[%s0 + $0x320] sm:$0xf]
      %v867 = vld [vmem:[%s0 + $0x324] sm:$0xf]
      %v868 = vld [vmem:[%s0 + $0x328] sm:$0xf]
      %v869 = vld [vmem:[%s0 + $0x32c] sm:$0xf]
      %v870 = vld [vmem:[%s0 + $0x330] sm:$0xf]
      %v871 = vld [vmem:[%s0 + $0x334] sm:$0xf]
      %v872 = vld [vmem:[%s0 + $0x338] sm:$0xf]
      %v873 = vld [vmem:[%s0 + $0x33c] sm:$0xf]
      %v874 = vld [vmem:[%s0 + $0x340] sm:$0xf]
      %v875 = vld [vmem:[%s0 + $0x344] sm:$0xf]
      %v876 = vld [vmem:[%s0 + $0x348] sm:$0xf]
      %v877 = vld [vmem:[%s0 + $0x34c] sm:$0xf]
      %v878 = vld [vmem:[%s0 + $0x350] sm:$0xf]
      %v879 = vld [vmem:[%s0 + $0x354] sm:$0xf]
      %v880 = vld [vmem:[%s0 + $0x358] sm:$0xf]
      %v881 = vld [vmem:[%s0 + $0x35c] sm:$0xf]
      %v882 = vld [vmem:[%s0 + $0x360] sm:$0xf]
      %v883 = vld [vmem:[%s0 + $0x364] sm:$0xf]
      %v884 = vld [vmem:[%s0 + $0x368] sm:$0xf]
      %v885 = vld [vmem:[%s0 + $0x36c] sm:$0xf]
      %v886 = vld [vmem:[%s0 + $0x370] sm:$0xf]
      %v887 = vld [vmem:[%s0 + $0x374] sm:$0xf]
      %v888 = vld [vmem:[%s0 + $0x378] sm:$0xf]
      %v889 = vld [vmem:[%s0 + $0x37c] sm:$0xf]
      %v890 = vld [vmem:[%s0 + $0x380] sm:$0xf]
      %v891 = vld [vmem:[%s0 + $0x384] sm:$0xf]
      %v892 = vld [vmem:[%s0 + $0x388] sm:$0xf]
      %v893 = vld [vmem:[%s0 + $0x38c] sm:$0xf]
      %v894 = vld [vmem:[%s0 + $0x390] sm:$0xf]
      %v895 = vld [vmem:[%s0 + $0x394] sm:$0xf]
      %v896 = vld [vmem:[%s0 + $0x398] sm:$0xf]
      %v897 = vld [vmem:[%s0 + $0x39c] sm:$0xf]
      %v898 = vld [vmem:[%s0 + $0x3a0] sm:$0xf]
      %v899 = vld [vmem:[%s0 + $0x3a4] sm:$0xf]
      %v900 = vld [vmem:[%s0 + $0x3a8] sm:$0xf]
      %v901 = vld [vmem:[%s0 + $0x3ac] sm:$0xf]
      %v902 = vld [vmem:[%s0 + $0x3b0] sm:$0xf]
      %v903 = vld [vmem:[%s0 + $0x3b4] sm:$0xf]
      %v904 = vld [vmem:[%s0 + $0x3b8] sm:$0xf]
      %v905 = vld [vmem:[%s0 + $0x3bc] sm:$0xf]
      %v906 = vld [vmem:[%s0 + $0x3c0] sm:$0xf]
      %v907 = vld [vmem:[%s0 + $0x3c4] sm:$0xf]
      %v908 = vld [vmem:[%s0 + $0x3c8] sm:$0xf]
      %v909 = vld [vmem:[%s0 + $0x3cc] sm:$0xf]
      %v910 = vld [vmem:[%s0 + $0x3d0] sm:$0xf]
      %v911 = vld [vmem:[%s0 + $0x3d4] sm:$0xf]
      %v912 = vld [vmem:[%s0 + $0x3d8] sm:$0xf]
      %v913 = vld [vmem:[%s0 + $0x3dc] sm:$0xf]
      %v914 = vld [vmem:[%s0 + $0x3e0] sm:$0xf]
      %v915 = vld [vmem:[%s0 + $0x3e4] sm:$0xf]
      %v916 = vld [vmem:[%s0 + $0x3e8] sm:$0xf]
      %v917 = vld [vmem:[%s0 + $0x3ec] sm:$0xf]
      %v918 = vld [vmem:[%s0 + $0x3f0] sm:$0xf]
      %v919 = vld [vmem:[%s0 + $0x3f4] sm:$0xf]
      %v920 = vld [vmem:[%s0 + $0x3f8] sm:$0xf]
      %v921 = vld [vmem:[%s0 + $0x3fc] sm:$0xf]
      %v922 = vld [vmem:[%s0 + $0x400] sm:$0xf]
      %v923 = vld [vmem:[%s0 + $0x404] sm:$0xf]
      %v924 = vld [vmem:[%s0 + $0x408] sm:$0xf]
      %v925 = vld [vmem:[%s0 + $0x40c] sm:$0xf]
      %v926 = vld [vmem:[%s0 + $0x410] sm:$0xf]
      %v927 = vld [vmem:[%s0 + $0x414] sm:$0xf]
      %v928 = vld [vmem:[%s0 + $0x418] sm:$0xf]
      %v929 = vld [vmem:[%s0 + $0x41c] sm:$0xf]
      %v930 = vld [vmem:[%s0 + $0x420] sm:$0xf]
      %v931 = vld [vmem:[%s0 + $0x424] sm:$0xf]
      %v932 = vld [vmem:[%s0 + $0x428] sm:$0xf]
      %v933 = vld [vmem:[%s0 + $0x42c] sm:$0xf]
      %v934 = vld [vmem:[%s0 + $0x430] sm:$0xf]
      %v935 = vld [vmem:[%s0 + $0x434] sm:$0xf]
      %v936 = vld [vmem:[%s0 + $0x438] sm:$0xf]
      %v937 = vld [vmem:[%s0 + $0x43c] sm:$0xf]
      %v938 = vld [vmem:[%s0 + $0x440] sm:$0xf]
      %v939 = vld [vmem:[%s0 + $0x444] sm:$0xf]
      %v940 = vld [vmem:[%s0 + $0x448] sm:$0xf]
      %v941 = vld [vmem:[%s0 + $0x44c] sm:$0xf]
      %v942 = vld [vmem:[%s0 + $0x450] sm:$0xf]
      %v943 = vld [vmem:[%s0 + $0x454] sm:$0xf]
      %v944 = vld [vmem:[%s0 + $0x458] sm:$0xf]
      %v945 = vld [vmem:[%s0 + $0x45c] sm:$0xf]
      %v946 = vld [vmem:[%s0 + $0x460] sm:$0xf]
      %v947 = vld [vmem:[%s0 + $0x464] sm:$0xf]
      %v948 = vld [vmem:[%s0 + $0x468] sm:$0xf]
      %v949 = vld [vmem:[%s0 + $0x46c] sm:$0xf]
      %v950 = vld [vmem:[%s0 + $0x470] sm:$0xf]
      %v951 = vld [vmem:[%s0 + $0x474] sm:$0xf]
      %v952 = vld [vmem:[%s0 + $0x478] sm:$0xf]
      %v953 = vld [vmem:[%s0 + $0x47c] sm:$0xf]
      %v954 = vld [vmem:[%s0 + $0x480] sm:$0xf]
      %v955 = vld [vmem:[%s0 + $0x484] sm:$0xf]
      %v956 = vld [vmem:[%s0 + $0x488] sm:$0xf]
      %v957 = vld [vmem:[%s0 + $0x48c] sm:$0xf]
      %v958 = vld [vmem:[%s0 + $0x490] sm:$0xf]
      %v959 = vld [vmem:[%s0 + $0x494] sm:$0xf]
      %v960 = vld [vmem:[%s0 + $0x498] sm:$0xf]
      %v961 = vld [vmem:[%s0 + $0x49c] sm:$0xf]
      %v962 = vld [vmem:[%s0 + $0x4a0] sm:$0xf]
      %v963 = vld [vmem:[%s0 + $0x4a4] sm:$0xf]
      %v964 = vld [vmem:[%s0 + $0x4a8] sm:$0xf]
      %v965 = vld [vmem:[%s0 + $0x4ac] sm:$0xf]
      %v966 = vld [vmem:[%s0 + $0x4b0] sm:$0xf]
      %v967 = vld [vmem:[%s0 + $0x4b4] sm:$0xf]
      %v968 = vld [vmem:[%s0 + $0x4b8] sm:$0xf]
      %v969 = vld [vmem:[%s0 + $0x4bc] sm:$0xf]
      %v970 = vld [vmem:[%s0 + $0x4c0] sm:$0xf]
      %v971 = vld [vmem:[%s0 + $0x4c4] sm:$0xf]
      %v972 = vld [vmem:[%s0 + $0x4c8] sm:$0xf]
      %v973 = vld [vmem:[%s0 + $0x4cc] sm:$0xf]
      %v974 = vld [vmem:[%s0 + $0x4d0] sm:$0xf]
      %v975 = vld [vmem:[%s0 + $0x4d4] sm:$0xf]
      %v976 = vld [vmem:[%s0 + $0x4d8] sm:$0xf]
      %v977 = vld [vmem:[%s0 + $0x4dc] sm:$0xf]
      %v978 = vld [vmem:[%s0 + $0x4e0] sm:$0xf]
      %v979 = vld [vmem:[%s0 + $0x4e4] sm:$0xf]
      %v980 = vld [vmem:[%s0 + $0x4e8] sm:$0xf]
      %v981 = vld [vmem:[%s0 + $0x4ec] sm:$0xf]
      %v982 = vld [vmem:[%s0 + $0x4f0] sm:$0xf]
      %v983 = vld [vmem:[%s0 + $0x4f4] sm:$0xf]
      %v984 = vld [vmem:[%s0 + $0x4f8] sm:$0xf]
      %v985 = vld [vmem:[%s0 + $0x4fc] sm:$0xf]
      %v986 = vld [vmem:[%s0 + $0x500] sm:$0xf]
      %v987 = vld [vmem:[%s0 + $0x504] sm:$0xf]
      %v988 = vld [vmem:[%s0 + $0x508] sm:$0xf]
      %v989 = vld [vmem:[%s0 + $0x50c] sm:$0xf]
      %v990 = vld [vmem:[%s0 + $0x510] sm:$0xf]
      %v991 = vld [vmem:[%s0 + $0x514] sm:$0xf]
      %v992 = vld [vmem:[%s0 + $0x518] sm:$0xf]
      %v993 = vld [vmem:[%s0 + $0x51c] sm:$0xf]
      %v994 = vld [vmem:[%s0 + $0x520] sm:$0xf]
      %v995 = vld [vmem:[%s0 + $0x524] sm:$0xf]
      %v996 = vld [vmem:[%s0 + $0x528] sm:$0xf]
      %v997 = vld [vmem:[%s0 + $0x52c] sm:$0xf]
      %v998 = vld [vmem:[%s0 + $0x530] sm:$0xf]
      %v999 = vld [vmem:[%s0 + $0x534] sm:$0xf]
      %v1000 = vld [vmem:[%s0 + $0x538] sm:$0xf]
      %v1001 = vld [vmem:[%s0 + $0x53c] sm:$0xf]
      %v1002 = vld [vmem:[%s0 + $0x540] sm:$0xf]
      %v1003 = vld [vmem:[%s0 + $0x544] sm:$0xf]
      %v1004 = vld [vmem:[%s0 + $0x548] sm:$0xf]
      %v1005 = vld [vmem:[%s0 + $0x54c] sm:$0xf]
      %v1006 = vld [vmem:[%s0 + $0x550] sm:$0xf]
      %v1007 = vld [vmem:[%s0 + $0x554] sm:$0xf]
      %v1008 = vld [vmem:[%s0 + $0x558] sm:$0xf]
      %v1009 = vld [vmem:[%s0 + $0x55c] sm:$0xf]
      %v1010 = vld [vmem:[%s0 + $0x560] sm:$0xf]
      %v1011 = vld [vmem:[%s0 + $0x564] sm:$0xf]
      %v1012 = vld [vmem:[%s0 + $0x568] sm:$0xf]
      %v1013 = vld [vmem:[%s0 + $0x56c] sm:$0xf]
      %v1014 = vld [vmem:[%s0 + $0x570] sm:$0xf]
      %v1015 = vld [vmem:[%s0 + $0x574] sm:$0xf]
      %v1016 = vld [vmem:[%s0 + $0x578] sm:$0xf]
      %v1017 = vld [vmem:[%s0 + $0x57c] sm:$0xf]
      %v1018 = vld [vmem:[%s0 + $0x580] sm:$0xf]
      %v1019 = vld [vmem:[%s0 + $0x584] sm:$0xf]
      %v1020 = vld [vmem:[%s0 + $0x588] sm:$0xf]
      %v1021 = vld [vmem:[%s0 + $0x58c] sm:$0xf]
      %v1022 = vld [vmem:[%s0 + $0x590] sm:$0xf]
      %v1023 = vld [vmem:[%s0 + $0x594] sm:$0xf]
      %v1024 = vld [vmem:[%s0 + $0x598] sm:$0xf]
      %v1025 = vld [vmem:[%s0 + $0x59c] sm:$0xf]
      %v1026 = vld [vmem:[%s0 + $0x5a0] sm:$0xf]
      %v1027 = vld [vmem:[%s0 + $0x5a4] sm:$0xf]
      %v1028 = vld [vmem:[%s0 + $0x5a8] sm:$0xf]
      %v1029 = vld [vmem:[%s0 + $0x5ac] sm:$0xf]
      %v1030 = vld [vmem:[%s0 + $0x5b0] sm:$0xf]
      %v1031 = vld [vmem:[%s0 + $0x5b4] sm:$0xf]
      %v1032 = vld [vmem:[%s0 + $0x5b8] sm:$0xf]
      %v1033 = vld [vmem:[%s0 + $0x5bc] sm:$0xf]
      %v1034 = vld [vmem:[%s0 + $0x5c0] sm:$0xf]
      %v1035 = vld [vmem:[%s0 + $0x5c4] sm:$0xf]
      %v1036 = vld [vmem:[%s0 + $0x5c8] sm:$0xf]
      %v1037 = vld [vmem:[%s0 + $0x5cc] sm:$0xf]
      %v1038 = vld [vmem:[%s0 + $0x5d0] sm:$0xf]
      %v1039 = vld [vmem:[%s0 + $0x5d4] sm:$0xf]
      %v1040 = vld [vmem:[%s0 + $0x5d8] sm:$0xf]
      %v1041 = vld [vmem:[%s0 + $0x5dc] sm:$0xf]
      %v1042 = vld [vmem:[%s0 + $0x5e0] sm:$0xf]
      %v1043 = vld [vmem:[%s0 + $0x5e4] sm:$0xf]
      %v1044 = vld [vmem:[%s0 + $0x5e8] sm:$0xf]
      %v1045 = vld [vmem:[%s0 + $0x5ec] sm:$0xf]
      %v1046 = vld [vmem:[%s0 + $0x5f0] sm:$0xf]
      %v1047 = vld [vmem:[%s0 + $0x5f4] sm:$0xf]
      %v1048 = vld [vmem:[%s0 + $0x5f8] sm:$0xf]
      %v1049 = vld [vmem:[%s0 + $0x5fc] sm:$0xf]
      %v1050 = vld [vmem:[%s0 + $0x600] sm:$0xf]
      %v1051 = vld [vmem:[%s0 + $0x604] sm:$0xf]
      %v1052 = vld [vmem:[%s0 + $0x608] sm:$0xf]
      %v1053 = vld [vmem:[%s0 + $0x60c] sm:$0xf]
      %v1054 = vld [vmem:[%s0 + $0x610] sm:$0xf]
      %v1055 = vld [vmem:[%s0 + $0x614] sm:$0xf]
      %v1056 = vld [vmem:[%s0 + $0x618] sm:$0xf]
      %v1057 = vld [vmem:[%s0 + $0x61c] sm:$0xf]
      %v1058 = vld [vmem:[%s0 + $0x620] sm:$0xf]
      %v1059 = vld [vmem:[%s0 + $0x624] sm:$0xf]
      %v1060 = vld [vmem:[%s0 + $0x628] sm:$0xf]
      %v1061 = vld [vmem:[%s0 + $0x62c] sm:$0xf]
      %v1062 = vld [vmem:[%s0 + $0x630] sm:$0xf]
      %v1063 = vld [vmem:[%s0 + $0x634] sm:$0xf]
      %v1064 = vld [vmem:[%s0 + $0x638] sm:$0xf]
      %v1065 = vld [vmem:[%s0 + $0x63c] sm:$0xf]
      %v1066 = vld [vmem:[%s0 + $0x640] sm:$0xf]
      %v1067 = vld [vmem:[%s0 + $0x644] sm:$0xf]
      %v1068 = vld [vmem:[%s0 + $0x648] sm:$0xf]
      %v1069 = vld [vmem:[%s0 + $0x64c] sm:$0xf]
      %v1070 = vld [vmem:[%s0 + $0x650] sm:$0xf]
      %v1071 = vld [vmem:[%s0 + $0x654] sm:$0xf]
      %v1072 = vld [vmem:[%s0 + $0x658] sm:$0xf]
      %v1073 = vld [vmem:[%s0 + $0x65c] sm:$0xf]
      %v1074 = vld [vmem:[%s0 + $0x660] sm:$0xf]
      %v1075 = vld [vmem:[%s0 + $0x664] sm:$0xf]
      %v1076 = vld [vmem:[%s0 + $0x668] sm:$0xf]
      %v1077 = vld [vmem:[%s0 + $0x66c] sm:$0xf]
      %v1078 = vld [vmem:[%s0 + $0x670] sm:$0xf]
      %v1079 = vld [vmem:[%s0 + $0x674] sm:$0xf]
      %v1080 = vld [vmem:[%s0 + $0x678] sm:$0xf]
      %v1081 = vld [vmem:[%s0 + $0x67c] sm:$0xf]
      %v1082 = vld [vmem:[%s0 + $0x680] sm:$0xf]
      %v1083 = vld [vmem:[%s0 + $0x684] sm:$0xf]
      %v1084 = vld [vmem:[%s0 + $0x688] sm:$0xf]
      %v1085 = vld [vmem:[%s0 + $0x68c] sm:$0xf]
      %v1086 = vld [vmem:[%s0 + $0x690] sm:$0xf]
      %v1087 = vld [vmem:[%s0 + $0x694] sm:$0xf]
      %v1088 = vld [vmem:[%s0 + $0x698] sm:$0xf]
      %v1089 = vld [vmem:[%s0 + $0x69c] sm:$0xf]
      %v1090 = vld [vmem:[%s0 + $0x6a0] sm:$0xf]
      %v1091 = vld [vmem:[%s0 + $0x6a4] sm:$0xf]
      %v1092 = vld [vmem:[%s0 + $0x6a8] sm:$0xf]
      %v1093 = vld [vmem:[%s0 + $0x6ac] sm:$0xf]
      %v1094 = vld [vmem:[%s0 + $0x6b0] sm:$0xf]
      %v1095 = vld [vmem:[%s0 + $0x6b4] sm:$0xf]
      %v1096 = vld [vmem:[%s0 + $0x6b8] sm:$0xf]
      %v1097 = vld [vmem:[%s0 + $0x6bc] sm:$0xf]
      %v1098 = vld [vmem:[%s0 + $0x6c0] sm:$0xf]
      %v1099 = vld [vmem:[%s0 + $0x6c4] sm:$0xf]
      %v1100 = vld [vmem:[%s0 + $0x6c8] sm:$0xf]
      %v1101 = vld [vmem:[%s0 + $0x6cc] sm:$0xf]
      %v1102 = vld [vmem:[%s0 + $0x6d0] sm:$0xf]
      %v1103 = vld [vmem:[%s0 + $0x6d4] sm:$0xf]
      %v1104 = vld [vmem:[%s0 + $0x6d8] sm:$0xf]
      %v1105 = vld [vmem:[%s0 + $0x6dc] sm:$0xf]
      %v1106 = vld [vmem:[%s0 + $0x6e0] sm:$0xf]
      %v1107 = vld [vmem:[%s0 + $0x6e4] sm:$0xf]
      %v1108 = vld [vmem:[%s0 + $0x6e8] sm:$0xf]
      %v1109 = vld [vmem:[%s0 + $0x6ec] sm:$0xf]
      %v1110 = vld [vmem:[%s0 + $0x6f0] sm:$0xf]
      %v1111 = vld [vmem:[%s0 + $0x6f4] sm:$0xf]
      %v1112 = vld [vmem:[%s0 + $0x6f8] sm:$0xf]
      %v1113 = vld [vmem:[%s0 + $0x6fc] sm:$0xf]
      %v1114 = vld [vmem:[%s0 + $0x700] sm:$0xf]
      %v1115 = vld [vmem:[%s0 + $0x704] sm:$0xf]
      %v1116 = vld [vmem:[%s0 + $0x708] sm:$0xf]
      %v1117 = vld [vmem:[%s0 + $0x70c] sm:$0xf]
      %v1118 = vld [vmem:[%s0 + $0x710] sm:$0xf]
      %v1119 = vld [vmem:[%s0 + $0x714] sm:$0xf]
      %v1120 = vld [vmem:[%s0 + $0x718] sm:$0xf]
      %v1121 = vld [vmem:[%s0 + $0x71c] sm:$0xf]
      %v1122 = vld [vmem:[%s0 + $0x720] sm:$0xf]
      %v1123 = vld [vmem:[%s0 + $0x724] sm:$0xf]
      %v1124 = vld [vmem:[%s0 + $0x728] sm:$0xf]
      %v1125 = vld [vmem:[%s0 + $0x72c] sm:$0xf]
      %v1126 = vld [vmem:[%s0 + $0x730] sm:$0xf]
      %v1127 = vld [vmem:[%s0 + $0x734] sm:$0xf]
      %v1128 = vld [vmem:[%s0 + $0x738] sm:$0xf]
      %v1129 = vld [vmem:[%s0 + $0x73c] sm:$0xf]
      %v1130 = vld [vmem:[%s0 + $0x740] sm:$0xf]
      %v1131 = vld [vmem:[%s0 + $0x744] sm:$0xf]
      %v1132 = vld [vmem:[%s0 + $0x748] sm:$0xf]
      %v1133 = vld [vmem:[%s0 + $0x74c] sm:$0xf]
      %v1134 = vld [vmem:[%s0 + $0x750] sm:$0xf]
      %v1135 = vld [vmem:[%s0 + $0x754] sm:$0xf]
      %v1136 = vld [vmem:[%s0 + $0x758] sm:$0xf]
      %v1137 = vld [vmem:[%s0 + $0x75c] sm:$0xf]
      %v1138 = vld [vmem:[%s0 + $0x760] sm:$0xf]
      %v1139 = vld [vmem:[%s0 + $0x764] sm:$0xf]
      %v1140 = vld [vmem:[%s0 + $0x768] sm:$0xf]
      %v1141 = vld [vmem:[%s0 + $0x76c] sm:$0xf]
      %v1142 = vld [vmem:[%s0 + $0x770] sm:$0xf]
      %v1143 = vld [vmem:[%s0 + $0x774] sm:$0xf]
      %v1144 = vld [vmem:[%s0 + $0x778] sm:$0xf]
      %v1145 = vld [vmem:[%s0 + $0x77c] sm:$0xf]
      %v1146 = vld [vmem:[%s0 + $0x780] sm:$0xf]
      %v1147 = vld [vmem:[%s0 + $0x784] sm:$0xf]
      %v1148 = vld [vmem:[%s0 + $0x788] sm:$0xf]
      %v1149 = vld [vmem:[%s0 + $0x78c] sm:$0xf]
      %v1150 = vld [vmem:[%s0 + $0x790] sm:$0xf]
      %v1151 = vld [vmem:[%s0 + $0x794] sm:$0xf]
      %v1152 = vld [vmem:[%s0 + $0x798] sm:$0xf]
      %v1153 = vld [vmem:[%s0 + $0x79c] sm:$0xf]
      %v1154 = vld [vmem:[%s0 + $0x7a0] sm:$0xf]
      %v1155 = vld [vmem:[%s0 + $0x7a4] sm:$0xf]
      %v1156 = vld [vmem:[%s0 + $0x7a8] sm:$0xf]
      %v1157 = vld [vmem:[%s0 + $0x7ac] sm:$0xf]
      %v1158 = vld [vmem:[%s0 + $0x7b0] sm:$0xf]
      %v1159 = vld [vmem:[%s0 + $0x7b4] sm:$0xf]
      %v1160 = vld [vmem:[%s0 + $0x7b8] sm:$0xf]
      %v1161 = vld [vmem:[%s0 + $0x7bc] sm:$0xf]
      %v1162 = vld [vmem:[%s0 + $0x7c0] sm:$0xf]
      %v1163 = vld [vmem:[%s0 + $0x7c4] sm:$0xf]
      %v1164 = vld [vmem:[%s0 + $0x7c8] sm:$0xf]
      %v1165 = vld [vmem:[%s0 + $0x7cc] sm:$0xf]
      %v1166 = vld [vmem:[%s0 + $0x7d0] sm:$0xf]
      %v1167 = vld [vmem:[%s0 + $0x7d4] sm:$0xf]
      %v1168 = vld [vmem:[%s0 + $0x7d8] sm:$0xf]
      %v1169 = vld [vmem:[%s0 + $0x7dc] sm:$0xf]
      %v1170 = vld [vmem:[%s0 + $0x7e0] sm:$0xf]
      %v1171 = vld [vmem:[%s0 + $0x7e4] sm:$0xf]
      %v1172 = vld [vmem:[%s0 + $0x7e8] sm:$0xf]
      %v1173 = vld [vmem:[%s0 + $0x7ec] sm:$0xf]
      %v1174 = vld [vmem:[%s0 + $0x7f0] sm:$0xf]
      %v1175 = vld [vmem:[%s0 + $0x7f4] sm:$0xf]
      %v1176 = vld [vmem:[%s0 + $0x7f8] sm:$0xf]
      %v1177 = vld [vmem:[%s0 + $0x7fc] sm:$0xf]
      %v1178 = vld [vmem:[%s624] sm:$0xf]
      %v1179 = vld [vmem:[%s624 + $0x4] sm:$0xf]
      %v1180 = vld [vmem:[%s624 + $0x8] sm:$0xf]
      %v1181 = vld [vmem:[%s624 + $0xc] sm:$0xf]
      %v1182 = vld [vmem:[%s624 + $0x10] sm:$0xf]
      %v1183 = vld [vmem:[%s624 + $0x14] sm:$0xf]
      %v1184 = vld [vmem:[%s624 + $0x18] sm:$0xf]
      %v1185 = vld [vmem:[%s624 + $0x1c] sm:$0xf]
      %v1186 = vld [vmem:[%s624 + $0x20] sm:$0xf]
      %v1187 = vld [vmem:[%s624 + $0x24] sm:$0xf]
      %v1188 = vld [vmem:[%s624 + $0x28] sm:$0xf]
      %v1189 = vld [vmem:[%s624 + $0x2c] sm:$0xf]
      %v1190 = vld [vmem:[%s624 + $0x30] sm:$0xf]
      %v1191 = vld [vmem:[%s624 + $0x34] sm:$0xf]
      %v1192 = vld [vmem:[%s624 + $0x38] sm:$0xf]
      %v1193 = vld [vmem:[%s624 + $0x3c] sm:$0xf]
      %v1706 = vunpack.c.l.b16 %v666
      %v1707 = vunpack.c.l.b16 %v667
      %v1708 = vunpack.c.l.b16 %v668
      %v1709 = vunpack.c.l.b16 %v669
      %v1710 = vunpack.c.l.b16 %v670
      %v1711 = vunpack.c.l.b16 %v671
      %v1712 = vunpack.c.l.b16 %v672
      %v1713 = vunpack.c.l.b16 %v673
      %v1714 = vunpack.c.l.b16 %v674
      %v1715 = vunpack.c.l.b16 %v675
      %v1716 = vunpack.c.l.b16 %v676
      %v1717 = vunpack.c.l.b16 %v677
      %v1718 = vunpack.c.l.b16 %v678
      %v1719 = vunpack.c.l.b16 %v679
      %v1720 = vunpack.c.l.b16 %v680
      %v1721 = vunpack.c.l.b16 %v681
      %v1722 = vunpack.c.l.b16 %v682
      %v1723 = vunpack.c.l.b16 %v683
      %v1724 = vunpack.c.l.b16 %v684
      %v1725 = vunpack.c.l.b16 %v685
      %v1726 = vunpack.c.l.b16 %v686
      %v1727 = vunpack.c.l.b16 %v687
      %v1728 = vunpack.c.l.b16 %v688
      %v1729 = vunpack.c.l.b16 %v689
      %v1730 = vunpack.c.l.b16 %v690
      %v1731 = vunpack.c.l.b16 %v691
      %v1732 = vunpack.c.l.b16 %v692
      %v1733 = vunpack.c.l.b16 %v693
      %v1734 = vunpack.c.l.b16 %v694
      %v1735 = vunpack.c.l.b16 %v695
      %v1736 = vunpack.c.l.b16 %v696
      %v1737 = vunpack.c.l.b16 %v697
      %v1738 = vunpack.c.l.b16 %v698
      %v1739 = vunpack.c.l.b16 %v699
      %v1740 = vunpack.c.l.b16 %v700
      %v1741 = vunpack.c.l.b16 %v701
      %v1742 = vunpack.c.l.b16 %v702
      %v1743 = vunpack.c.l.b16 %v703
      %v1744 = vunpack.c.l.b16 %v704
      %v1745 = vunpack.c.l.b16 %v705
      %v1746 = vunpack.c.l.b16 %v706
      %v1747 = vunpack.c.l.b16 %v707
      %v1748 = vunpack.c.l.b16 %v708
      %v1749 = vunpack.c.l.b16 %v709
      %v1750 = vunpack.c.l.b16 %v710
      %v1751 = vunpack.c.l.b16 %v711
      %v1752 = vunpack.c.l.b16 %v712
      %v1753 = vunpack.c.l.b16 %v713
      %v1754 = vunpack.c.l.b16 %v714
      %v1755 = vunpack.c.l.b16 %v715
      %v1756 = vunpack.c.l.b16 %v716
      %v1757 = vunpack.c.l.b16 %v717
      %v1758 = vunpack.c.l.b16 %v718
      %v1759 = vunpack.c.l.b16 %v719
      %v1760 = vunpack.c.l.b16 %v720
      %v1761 = vunpack.c.l.b16 %v721
      %v1762 = vunpack.c.l.b16 %v722
      %v1763 = vunpack.c.l.b16 %v723
      %v1764 = vunpack.c.l.b16 %v724
      %v1765 = vunpack.c.l.b16 %v725
      %v1766 = vunpack.c.l.b16 %v726
      %v1767 = vunpack.c.l.b16 %v727
      %v1768 = vunpack.c.l.b16 %v728
      %v1769 = vunpack.c.l.b16 %v729
      %v1770 = vunpack.c.l.b16 %v730
      %v1771 = vunpack.c.l.b16 %v731
      %v1772 = vunpack.c.l.b16 %v732
      %v1773 = vunpack.c.l.b16 %v733
      %v1774 = vunpack.c.l.b16 %v734
      %v1775 = vunpack.c.l.b16 %v735
      %v1776 = vunpack.c.l.b16 %v736
      %v1777 = vunpack.c.l.b16 %v737
      %v1778 = vunpack.c.l.b16 %v738
      %v1779 = vunpack.c.l.b16 %v739
      %v1780 = vunpack.c.l.b16 %v740
      %v1781 = vunpack.c.l.b16 %v741
      %v1782 = vunpack.c.l.b16 %v742
      %v1783 = vunpack.c.l.b16 %v743
      %v1784 = vunpack.c.l.b16 %v744
      %v1785 = vunpack.c.l.b16 %v745
      %v1786 = vunpack.c.l.b16 %v746
      %v1787 = vunpack.c.l.b16 %v747
      %v1788 = vunpack.c.l.b16 %v748
      %v1789 = vunpack.c.l.b16 %v749
      %v1790 = vunpack.c.l.b16 %v750
      %v1791 = vunpack.c.l.b16 %v751
      %v1792 = vunpack.c.l.b16 %v752
      %v1793 = vunpack.c.l.b16 %v753
      %v1794 = vunpack.c.l.b16 %v754
      %v1795 = vunpack.c.l.b16 %v755
      %v1796 = vunpack.c.l.b16 %v756
      %v1797 = vunpack.c.l.b16 %v757
      %v1798 = vunpack.c.l.b16 %v758
      %v1799 = vunpack.c.l.b16 %v759
      %v1800 = vunpack.c.l.b16 %v760
      %v1801 = vunpack.c.l.b16 %v761
      %v1802 = vunpack.c.l.b16 %v762
      %v1803 = vunpack.c.l.b16 %v763
      %v1804 = vunpack.c.l.b16 %v764
      %v1805 = vunpack.c.l.b16 %v765
      %v1806 = vunpack.c.l.b16 %v766
      %v1807 = vunpack.c.l.b16 %v767
      %v1808 = vunpack.c.l.b16 %v768
      %v1809 = vunpack.c.l.b16 %v769
      %v1810 = vunpack.c.l.b16 %v770
      %v1811 = vunpack.c.l.b16 %v771
      %v1812 = vunpack.c.l.b16 %v772
      %v1813 = vunpack.c.l.b16 %v773
      %v1814 = vunpack.c.l.b16 %v774
      %v1815 = vunpack.c.l.b16 %v775
      %v1816 = vunpack.c.l.b16 %v776
      %v1817 = vunpack.c.l.b16 %v777
      %v1818 = vunpack.c.l.b16 %v778
      %v1819 = vunpack.c.l.b16 %v779
      %v1820 = vunpack.c.l.b16 %v780
      %v1821 = vunpack.c.l.b16 %v781
      %v1822 = vunpack.c.l.b16 %v782
      %v1823 = vunpack.c.l.b16 %v783
      %v1824 = vunpack.c.l.b16 %v784
      %v1825 = vunpack.c.l.b16 %v785
      %v1826 = vunpack.c.l.b16 %v786
      %v1827 = vunpack.c.l.b16 %v787
      %v1828 = vunpack.c.l.b16 %v788
      %v1829 = vunpack.c.l.b16 %v789
      %v1830 = vunpack.c.l.b16 %v790
      %v1831 = vunpack.c.l.b16 %v791
      %v1832 = vunpack.c.l.b16 %v792
      %v1833 = vunpack.c.l.b16 %v793
      %v1834 = vunpack.c.l.b16 %v794
      %v1835 = vunpack.c.l.b16 %v795
      %v1836 = vunpack.c.l.b16 %v796
      %v1837 = vunpack.c.l.b16 %v797
      %v1838 = vunpack.c.l.b16 %v798
      %v1839 = vunpack.c.l.b16 %v799
      %v1840 = vunpack.c.l.b16 %v800
      %v1841 = vunpack.c.l.b16 %v801
      %v1842 = vunpack.c.l.b16 %v802
      %v1843 = vunpack.c.l.b16 %v803
      %v1844 = vunpack.c.l.b16 %v804
      %v1845 = vunpack.c.l.b16 %v805
      %v1846 = vunpack.c.l.b16 %v806
      %v1847 = vunpack.c.l.b16 %v807
      %v1848 = vunpack.c.l.b16 %v808
      %v1849 = vunpack.c.l.b16 %v809
      %v1850 = vunpack.c.l.b16 %v810
      %v1851 = vunpack.c.l.b16 %v811
      %v1852 = vunpack.c.l.b16 %v812
      %v1853 = vunpack.c.l.b16 %v813
      %v1854 = vunpack.c.l.b16 %v814
      %v1855 = vunpack.c.l.b16 %v815
      %v1856 = vunpack.c.l.b16 %v816
      %v1857 = vunpack.c.l.b16 %v817
      %v1858 = vunpack.c.l.b16 %v818
      %v1859 = vunpack.c.l.b16 %v819
      %v1860 = vunpack.c.l.b16 %v820
      %v1861 = vunpack.c.l.b16 %v821
      %v1862 = vunpack.c.l.b16 %v822
      %v1863 = vunpack.c.l.b16 %v823
      %v1864 = vunpack.c.l.b16 %v824
      %v1865 = vunpack.c.l.b16 %v825
      %v1866 = vunpack.c.l.b16 %v826
      %v1867 = vunpack.c.l.b16 %v827
      %v1868 = vunpack.c.l.b16 %v828
      %v1869 = vunpack.c.l.b16 %v829
      %v1870 = vunpack.c.l.b16 %v830
      %v1871 = vunpack.c.l.b16 %v831
      %v1872 = vunpack.c.l.b16 %v832
      %v1873 = vunpack.c.l.b16 %v833
      %v1874 = vunpack.c.l.b16 %v834
      %v1875 = vunpack.c.l.b16 %v835
      %v1876 = vunpack.c.l.b16 %v836
      %v1877 = vunpack.c.l.b16 %v837
      %v1878 = vunpack.c.l.b16 %v838
      %v1879 = vunpack.c.l.b16 %v839
      %v1880 = vunpack.c.l.b16 %v840
      %v1881 = vunpack.c.l.b16 %v841
      %v1882 = vunpack.c.l.b16 %v842
      %v1883 = vunpack.c.l.b16 %v843
      %v1884 = vunpack.c.l.b16 %v844
      %v1885 = vunpack.c.l.b16 %v845
      %v1886 = vunpack.c.l.b16 %v846
      %v1887 = vunpack.c.l.b16 %v847
      %v1888 = vunpack.c.l.b16 %v848
      %v1889 = vunpack.c.l.b16 %v849
      %v1890 = vunpack.c.l.b16 %v850
      %v1891 = vunpack.c.l.b16 %v851
      %v1892 = vunpack.c.l.b16 %v852
      %v1893 = vunpack.c.l.b16 %v853
      %v1894 = vunpack.c.l.b16 %v854
      %v1895 = vunpack.c.l.b16 %v855
      %v1896 = vunpack.c.l.b16 %v856
      %v1897 = vunpack.c.l.b16 %v857
      %v1898 = vunpack.c.l.b16 %v858
      %v1899 = vunpack.c.l.b16 %v859
      %v1900 = vunpack.c.l.b16 %v860
      %v1901 = vunpack.c.l.b16 %v861
      %v1902 = vunpack.c.l.b16 %v862
      %v1903 = vunpack.c.l.b16 %v863
      %v1904 = vunpack.c.l.b16 %v864
      %v1905 = vunpack.c.l.b16 %v865
      %v1906 = vunpack.c.l.b16 %v866
      %v1907 = vunpack.c.l.b16 %v867
      %v1908 = vunpack.c.l.b16 %v868
      %v1909 = vunpack.c.l.b16 %v869
      %v1910 = vunpack.c.l.b16 %v870
      %v1911 = vunpack.c.l.b16 %v871
      %v1912 = vunpack.c.l.b16 %v872
      %v1913 = vunpack.c.l.b16 %v873
      %v1914 = vunpack.c.l.b16 %v874
      %v1915 = vunpack.c.l.b16 %v875
      %v1916 = vunpack.c.l.b16 %v876
      %v1917 = vunpack.c.l.b16 %v877
      %v1918 = vunpack.c.l.b16 %v878
      %v1919 = vunpack.c.l.b16 %v879
      %v1920 = vunpack.c.l.b16 %v880
      %v1921 = vunpack.c.l.b16 %v881
      %v1922 = vunpack.c.l.b16 %v882
      %v1923 = vunpack.c.l.b16 %v883
      %v1924 = vunpack.c.l.b16 %v884
      %v1925 = vunpack.c.l.b16 %v885
      %v1926 = vunpack.c.l.b16 %v886
      %v1927 = vunpack.c.l.b16 %v887
      %v1928 = vunpack.c.l.b16 %v888
      %v1929 = vunpack.c.l.b16 %v889
      %v1930 = vunpack.c.l.b16 %v890
      %v1931 = vunpack.c.l.b16 %v891
      %v1932 = vunpack.c.l.b16 %v892
      %v1933 = vunpack.c.l.b16 %v893
      %v1934 = vunpack.c.l.b16 %v894
      %v1935 = vunpack.c.l.b16 %v895
      %v1936 = vunpack.c.l.b16 %v896
      %v1937 = vunpack.c.l.b16 %v897
      %v1938 = vunpack.c.l.b16 %v898
      %v1939 = vunpack.c.l.b16 %v899
      %v1940 = vunpack.c.l.b16 %v900
      %v1941 = vunpack.c.l.b16 %v901
      %v1942 = vunpack.c.l.b16 %v902
      %v1943 = vunpack.c.l.b16 %v903
      %v1944 = vunpack.c.l.b16 %v904
      %v1945 = vunpack.c.l.b16 %v905
      %v1946 = vunpack.c.l.b16 %v906
      %v1947 = vunpack.c.l.b16 %v907
      %v1948 = vunpack.c.l.b16 %v908
      %v1949 = vunpack.c.l.b16 %v909
      %v1950 = vunpack.c.l.b16 %v910
      %v1951 = vunpack.c.l.b16 %v911
      %v1952 = vunpack.c.l.b16 %v912
      %v1953 = vunpack.c.l.b16 %v913
      %v1954 = vunpack.c.l.b16 %v914
      %v1955 = vunpack.c.l.b16 %v915
      %v1956 = vunpack.c.l.b16 %v916
      %v1957 = vunpack.c.l.b16 %v917
      %v1958 = vunpack.c.l.b16 %v918
      %v1959 = vunpack.c.l.b16 %v919
      %v1960 = vunpack.c.l.b16 %v920
      %v1961 = vunpack.c.l.b16 %v921
      %v1962 = vunpack.c.l.b16 %v922
      %v1963 = vunpack.c.l.b16 %v923
      %v1964 = vunpack.c.l.b16 %v924
      %v1965 = vunpack.c.l.b16 %v925
      %v1966 = vunpack.c.l.b16 %v926
      %v1967 = vunpack.c.l.b16 %v927
      %v1968 = vunpack.c.l.b16 %v928
      %v1969 = vunpack.c.l.b16 %v929
      %v1970 = vunpack.c.l.b16 %v930
      %v1971 = vunpack.c.l.b16 %v931
      %v1972 = vunpack.c.l.b16 %v932
      %v1973 = vunpack.c.l.b16 %v933
      %v1974 = vunpack.c.l.b16 %v934
      %v1975 = vunpack.c.l.b16 %v935
      %v1976 = vunpack.c.l.b16 %v936
      %v1977 = vunpack.c.l.b16 %v937
      %v1978 = vunpack.c.l.b16 %v938
      %v1979 = vunpack.c.l.b16 %v939
      %v1980 = vunpack.c.l.b16 %v940
      %v1981 = vunpack.c.l.b16 %v941
      %v1982 = vunpack.c.l.b16 %v942
      %v1983 = vunpack.c.l.b16 %v943
      %v1984 = vunpack.c.l.b16 %v944
      %v1985 = vunpack.c.l.b16 %v945
      %v1986 = vunpack.c.l.b16 %v946
      %v1987 = vunpack.c.l.b16 %v947
      %v1988 = vunpack.c.l.b16 %v948
      %v1989 = vunpack.c.l.b16 %v949
      %v1990 = vunpack.c.l.b16 %v950
      %v1991 = vunpack.c.l.b16 %v951
      %v1992 = vunpack.c.l.b16 %v952
      %v1993 = vunpack.c.l.b16 %v953
      %v1994 = vunpack.c.l.b16 %v954
      %v1995 = vunpack.c.l.b16 %v955
      %v1996 = vunpack.c.l.b16 %v956
      %v1997 = vunpack.c.l.b16 %v957
      %v1998 = vunpack.c.l.b16 %v958
      %v1999 = vunpack.c.l.b16 %v959
      %v2000 = vunpack.c.l.b16 %v960
      %v2001 = vunpack.c.l.b16 %v961
      %v2002 = vunpack.c.l.b16 %v962
      %v2003 = vunpack.c.l.b16 %v963
      %v2004 = vunpack.c.l.b16 %v964
      %v2005 = vunpack.c.l.b16 %v965
      %v2006 = vunpack.c.l.b16 %v966
      %v2007 = vunpack.c.l.b16 %v967
      %v2008 = vunpack.c.l.b16 %v968
      %v2009 = vunpack.c.l.b16 %v969
      %v2010 = vunpack.c.l.b16 %v970
      %v2011 = vunpack.c.l.b16 %v971
      %v2012 = vunpack.c.l.b16 %v972
      %v2013 = vunpack.c.l.b16 %v973
      %v2014 = vunpack.c.l.b16 %v974
      %v2015 = vunpack.c.l.b16 %v975
      %v2016 = vunpack.c.l.b16 %v976
      %v2017 = vunpack.c.l.b16 %v977
      %v2018 = vunpack.c.l.b16 %v978
      %v2019 = vunpack.c.l.b16 %v979
      %v2020 = vunpack.c.l.b16 %v980
      %v2021 = vunpack.c.l.b16 %v981
      %v2022 = vunpack.c.l.b16 %v982
      %v2023 = vunpack.c.l.b16 %v983
      %v2024 = vunpack.c.l.b16 %v984
      %v2025 = vunpack.c.l.b16 %v985
      %v2026 = vunpack.c.l.b16 %v986
      %v2027 = vunpack.c.l.b16 %v987
      %v2028 = vunpack.c.l.b16 %v988
      %v2029 = vunpack.c.l.b16 %v989
      %v2030 = vunpack.c.l.b16 %v990
      %v2031 = vunpack.c.l.b16 %v991
      %v2032 = vunpack.c.l.b16 %v992
      %v2033 = vunpack.c.l.b16 %v993
      %v2034 = vunpack.c.l.b16 %v994
      %v2035 = vunpack.c.l.b16 %v995
      %v2036 = vunpack.c.l.b16 %v996
      %v2037 = vunpack.c.l.b16 %v997
      %v2038 = vunpack.c.l.b16 %v998
      %v2039 = vunpack.c.l.b16 %v999
      %v2040 = vunpack.c.l.b16 %v1000
      %v2041 = vunpack.c.l.b16 %v1001
      %v2042 = vunpack.c.l.b16 %v1002
      %v2043 = vunpack.c.l.b16 %v1003
      %v2044 = vunpack.c.l.b16 %v1004
      %v2045 = vunpack.c.l.b16 %v1005
      %v2046 = vunpack.c.l.b16 %v1006
      %v2047 = vunpack.c.l.b16 %v1007
      %v2048 = vunpack.c.l.b16 %v1008
      %v2049 = vunpack.c.l.b16 %v1009
      %v2050 = vunpack.c.l.b16 %v1010
      %v2051 = vunpack.c.l.b16 %v1011
      %v2052 = vunpack.c.l.b16 %v1012
      %v2053 = vunpack.c.l.b16 %v1013
      %v2054 = vunpack.c.l.b16 %v1014
      %v2055 = vunpack.c.l.b16 %v1015
      %v2056 = vunpack.c.l.b16 %v1016
      %v2057 = vunpack.c.l.b16 %v1017
      %v2058 = vunpack.c.l.b16 %v1018
      %v2059 = vunpack.c.l.b16 %v1019
      %v2060 = vunpack.c.l.b16 %v1020
      %v2061 = vunpack.c.l.b16 %v1021
      %v2062 = vunpack.c.l.b16 %v1022
      %v2063 = vunpack.c.l.b16 %v1023
      %v2064 = vunpack.c.l.b16 %v1024
      %v2065 = vunpack.c.l.b16 %v1025
      %v2066 = vunpack.c.l.b16 %v1026
      %v2067 = vunpack.c.l.b16 %v1027
      %v2068 = vunpack.c.l.b16 %v1028
      %v2069 = vunpack.c.l.b16 %v1029
      %v2070 = vunpack.c.l.b16 %v1030
      %v2071 = vunpack.c.l.b16 %v1031
      %v2072 = vunpack.c.l.b16 %v1032
      %v2073 = vunpack.c.l.b16 %v1033
      %v2074 = vunpack.c.l.b16 %v1034
      %v2075 = vunpack.c.l.b16 %v1035
      %v2076 = vunpack.c.l.b16 %v1036
      %v2077 = vunpack.c.l.b16 %v1037
      %v2078 = vunpack.c.l.b16 %v1038
      %v2079 = vunpack.c.l.b16 %v1039
      %v2080 = vunpack.c.l.b16 %v1040
      %v2081 = vunpack.c.l.b16 %v1041
      %v2082 = vunpack.c.l.b16 %v1042
      %v2083 = vunpack.c.l.b16 %v1043
      %v2084 = vunpack.c.l.b16 %v1044
      %v2085 = vunpack.c.l.b16 %v1045
      %v2086 = vunpack.c.l.b16 %v1046
      %v2087 = vunpack.c.l.b16 %v1047
      %v2088 = vunpack.c.l.b16 %v1048
      %v2089 = vunpack.c.l.b16 %v1049
      %v2090 = vunpack.c.l.b16 %v1050
      %v2091 = vunpack.c.l.b16 %v1051
      %v2092 = vunpack.c.l.b16 %v1052
      %v2093 = vunpack.c.l.b16 %v1053
      %v2094 = vunpack.c.l.b16 %v1054
      %v2095 = vunpack.c.l.b16 %v1055
      %v2096 = vunpack.c.l.b16 %v1056
      %v2097 = vunpack.c.l.b16 %v1057
      %v2098 = vunpack.c.l.b16 %v1058
      %v2099 = vunpack.c.l.b16 %v1059
      %v2100 = vunpack.c.l.b16 %v1060
      %v2101 = vunpack.c.l.b16 %v1061
      %v2102 = vunpack.c.l.b16 %v1062
      %v2103 = vunpack.c.l.b16 %v1063
      %v2104 = vunpack.c.l.b16 %v1064
      %v2105 = vunpack.c.l.b16 %v1065
      %v2106 = vunpack.c.l.b16 %v1066
      %v2107 = vunpack.c.l.b16 %v1067
      %v2108 = vunpack.c.l.b16 %v1068
      %v2109 = vunpack.c.l.b16 %v1069
      %v2110 = vunpack.c.l.b16 %v1070
      %v2111 = vunpack.c.l.b16 %v1071
      %v2112 = vunpack.c.l.b16 %v1072
      %v2113 = vunpack.c.l.b16 %v1073
      %v2114 = vunpack.c.l.b16 %v1074
      %v2115 = vunpack.c.l.b16 %v1075
      %v2116 = vunpack.c.l.b16 %v1076
      %v2117 = vunpack.c.l.b16 %v1077
      %v2118 = vunpack.c.l.b16 %v1078
      %v2119 = vunpack.c.l.b16 %v1079
      %v2120 = vunpack.c.l.b16 %v1080
      %v2121 = vunpack.c.l.b16 %v1081
      %v2122 = vunpack.c.l.b16 %v1082
      %v2123 = vunpack.c.l.b16 %v1083
      %v2124 = vunpack.c.l.b16 %v1084
      %v2125 = vunpack.c.l.b16 %v1085
      %v2126 = vunpack.c.l.b16 %v1086
      %v2127 = vunpack.c.l.b16 %v1087
      %v2128 = vunpack.c.l.b16 %v1088
      %v2129 = vunpack.c.l.b16 %v1089
      %v2130 = vunpack.c.l.b16 %v1090
      %v2131 = vunpack.c.l.b16 %v1091
      %v2132 = vunpack.c.l.b16 %v1092
      %v2133 = vunpack.c.l.b16 %v1093
      %v2134 = vunpack.c.l.b16 %v1094
      %v2135 = vunpack.c.l.b16 %v1095
      %v2136 = vunpack.c.l.b16 %v1096
      %v2137 = vunpack.c.l.b16 %v1097
      %v2138 = vunpack.c.l.b16 %v1098
      %v2139 = vunpack.c.l.b16 %v1099
      %v2140 = vunpack.c.l.b16 %v1100
      %v2141 = vunpack.c.l.b16 %v1101
      %v2142 = vunpack.c.l.b16 %v1102
      %v2143 = vunpack.c.l.b16 %v1103
      %v2144 = vunpack.c.l.b16 %v1104
      %v2145 = vunpack.c.l.b16 %v1105
      %v2146 = vunpack.c.l.b16 %v1106
      %v2147 = vunpack.c.l.b16 %v1107
      %v2148 = vunpack.c.l.b16 %v1108
      %v2149 = vunpack.c.l.b16 %v1109
      %v2150 = vunpack.c.l.b16 %v1110
      %v2151 = vunpack.c.l.b16 %v1111
      %v2152 = vunpack.c.l.b16 %v1112
      %v2153 = vunpack.c.l.b16 %v1113
      %v2154 = vunpack.c.l.b16 %v1114
      %v2155 = vunpack.c.l.b16 %v1115
      %v2156 = vunpack.c.l.b16 %v1116
      %v2157 = vunpack.c.l.b16 %v1117
      %v2158 = vunpack.c.l.b16 %v1118
      %v2159 = vunpack.c.l.b16 %v1119
      %v2160 = vunpack.c.l.b16 %v1120
      %v2161 = vunpack.c.l.b16 %v1121
      %v2162 = vunpack.c.l.b16 %v1122
      %v2163 = vunpack.c.l.b16 %v1123
      %v2164 = vunpack.c.l.b16 %v1124
      %v2165 = vunpack.c.l.b16 %v1125
      %v2166 = vunpack.c.l.b16 %v1126
      %v2167 = vunpack.c.l.b16 %v1127
      %v2168 = vunpack.c.l.b16 %v1128
      %v2169 = vunpack.c.l.b16 %v1129
      %v2170 = vunpack.c.l.b16 %v1130
      %v2171 = vunpack.c.l.b16 %v1131
      %v2172 = vunpack.c.l.b16 %v1132
      %v2173 = vunpack.c.l.b16 %v1133
      %v2174 = vunpack.c.l.b16 %v1134
      %v2175 = vunpack.c.l.b16 %v1135
      %v2176 = vunpack.c.l.b16 %v1136
      %v2177 = vunpack.c.l.b16 %v1137
      %v2178 = vunpack.c.l.b16 %v1138
      %v2179 = vunpack.c.l.b16 %v1139
      %v2180 = vunpack.c.l.b16 %v1140
      %v2181 = vunpack.c.l.b16 %v1141
      %v2182 = vunpack.c.l.b16 %v1142
      %v2183 = vunpack.c.l.b16 %v1143
      %v2184 = vunpack.c.l.b16 %v1144
      %v2185 = vunpack.c.l.b16 %v1145
      %v2186 = vunpack.c.l.b16 %v1146
      %v2187 = vunpack.c.l.b16 %v1147
      %v2188 = vunpack.c.l.b16 %v1148
      %v2189 = vunpack.c.l.b16 %v1149
      %v2190 = vunpack.c.l.b16 %v1150
      %v2191 = vunpack.c.l.b16 %v1151
      %v2192 = vunpack.c.l.b16 %v1152
      %v2193 = vunpack.c.l.b16 %v1153
      %v2194 = vunpack.c.l.b16 %v1154
      %v2195 = vunpack.c.l.b16 %v1155
      %v2196 = vunpack.c.l.b16 %v1156
      %v2197 = vunpack.c.l.b16 %v1157
      %v2198 = vunpack.c.l.b16 %v1158
      %v2199 = vunpack.c.l.b16 %v1159
      %v2200 = vunpack.c.l.b16 %v1160
      %v2201 = vunpack.c.l.b16 %v1161
      %v2202 = vunpack.c.l.b16 %v1162
      %v2203 = vunpack.c.l.b16 %v1163
      %v2204 = vunpack.c.l.b16 %v1164
      %v2205 = vunpack.c.l.b16 %v1165
      %v2206 = vunpack.c.l.b16 %v1166
      %v2207 = vunpack.c.l.b16 %v1167
      %v2208 = vunpack.c.l.b16 %v1168
      %v2209 = vunpack.c.l.b16 %v1169
      %v2210 = vunpack.c.l.b16 %v1170
      %v2211 = vunpack.c.l.b16 %v1171
      %v2212 = vunpack.c.l.b16 %v1172
      %v2213 = vunpack.c.l.b16 %v1173
      %v2214 = vunpack.c.l.b16 %v1174
      %v2215 = vunpack.c.l.b16 %v1175
      %v2216 = vunpack.c.l.b16 %v1176
      %v2217 = vunpack.c.l.b16 %v1177
      %v2218 = vpack.c.b16 %v1707, %v1706
      %v2219 = vpack.c.b16 %v1709, %v1708
      %v2220 = vpack.c.b16 %v1711, %v1710
      %v2221 = vpack.c.b16 %v1713, %v1712
      %v2222 = vpack.c.b16 %v1715, %v1714
      %v2223 = vpack.c.b16 %v1717, %v1716
      %v2224 = vpack.c.b16 %v1719, %v1718
      %v2225 = vpack.c.b16 %v1721, %v1720
      %v2226 = vpack.c.b16 %v1723, %v1722
      %v2227 = vpack.c.b16 %v1725, %v1724
      %v2228 = vpack.c.b16 %v1727, %v1726
      %v2229 = vpack.c.b16 %v1729, %v1728
      %v2230 = vpack.c.b16 %v1731, %v1730
      %v2231 = vpack.c.b16 %v1733, %v1732
      %v2232 = vpack.c.b16 %v1735, %v1734
      %v2233 = vpack.c.b16 %v1737, %v1736
      %v2234 = vpack.c.b16 %v1739, %v1738
      %v2235 = vpack.c.b16 %v1741, %v1740
      %v2236 = vpack.c.b16 %v1743, %v1742
      %v2237 = vpack.c.b16 %v1745, %v1744
      %v2238 = vpack.c.b16 %v1747, %v1746
      %v2239 = vpack.c.b16 %v1749, %v1748
      %v2240 = vpack.c.b16 %v1751, %v1750
      %v2241 = vpack.c.b16 %v1753, %v1752
      %v2242 = vpack.c.b16 %v1755, %v1754
      %v2243 = vpack.c.b16 %v1757, %v1756
      %v2244 = vpack.c.b16 %v1759, %v1758
      %v2245 = vpack.c.b16 %v1761, %v1760
      %v2246 = vpack.c.b16 %v1763, %v1762
      %v2247 = vpack.c.b16 %v1765, %v1764
      %v2248 = vpack.c.b16 %v1767, %v1766
      %v2249 = vpack.c.b16 %v1769, %v1768
      %v2250 = vpack.c.b16 %v1771, %v1770
      %v2251 = vpack.c.b16 %v1773, %v1772
      %v2252 = vpack.c.b16 %v1775, %v1774
      %v2253 = vpack.c.b16 %v1777, %v1776
      %v2254 = vpack.c.b16 %v1779, %v1778
      %v2255 = vpack.c.b16 %v1781, %v1780
      %v2256 = vpack.c.b16 %v1783, %v1782
      %v2257 = vpack.c.b16 %v1785, %v1784
      %v2258 = vpack.c.b16 %v1787, %v1786
      %v2259 = vpack.c.b16 %v1789, %v1788
      %v2260 = vpack.c.b16 %v1791, %v1790
      %v2261 = vpack.c.b16 %v1793, %v1792
      %v2262 = vpack.c.b16 %v1795, %v1794
      %v2263 = vpack.c.b16 %v1797, %v1796
      %v2264 = vpack.c.b16 %v1799, %v1798
      %v2265 = vpack.c.b16 %v1801, %v1800
      %v2266 = vpack.c.b16 %v1803, %v1802
      %v2267 = vpack.c.b16 %v1805, %v1804
      %v2268 = vpack.c.b16 %v1807, %v1806
      %v2269 = vpack.c.b16 %v1809, %v1808
      %v2270 = vpack.c.b16 %v1811, %v1810
      %v2271 = vpack.c.b16 %v1813, %v1812
      %v2272 = vpack.c.b16 %v1815, %v1814
      %v2273 = vpack.c.b16 %v1817, %v1816
      %v2274 = vpack.c.b16 %v1819, %v1818
      %v2275 = vpack.c.b16 %v1821, %v1820
      %v2276 = vpack.c.b16 %v1823, %v1822
      %v2277 = vpack.c.b16 %v1825, %v1824
      %v2278 = vpack.c.b16 %v1827, %v1826
      %v2279 = vpack.c.b16 %v1829, %v1828
      %v2280 = vpack.c.b16 %v1831, %v1830
      %v2281 = vpack.c.b16 %v1833, %v1832
      %v2282 = vpack.c.b16 %v1835, %v1834
      %v2283 = vpack.c.b16 %v1837, %v1836
      %v2284 = vpack.c.b16 %v1839, %v1838
      %v2285 = vpack.c.b16 %v1841, %v1840
      %v2286 = vpack.c.b16 %v1843, %v1842
      %v2287 = vpack.c.b16 %v1845, %v1844
      %v2288 = vpack.c.b16 %v1847, %v1846
      %v2289 = vpack.c.b16 %v1849, %v1848
      %v2290 = vpack.c.b16 %v1851, %v1850
      %v2291 = vpack.c.b16 %v1853, %v1852
      %v2292 = vpack.c.b16 %v1855, %v1854
      %v2293 = vpack.c.b16 %v1857, %v1856
      %v2294 = vpack.c.b16 %v1859, %v1858
      %v2295 = vpack.c.b16 %v1861, %v1860
      %v2296 = vpack.c.b16 %v1863, %v1862
      %v2297 = vpack.c.b16 %v1865, %v1864
      %v2298 = vpack.c.b16 %v1867, %v1866
      %v2299 = vpack.c.b16 %v1869, %v1868
      %v2300 = vpack.c.b16 %v1871, %v1870
      %v2301 = vpack.c.b16 %v1873, %v1872
      %v2302 = vpack.c.b16 %v1875, %v1874
      %v2303 = vpack.c.b16 %v1877, %v1876
      %v2304 = vpack.c.b16 %v1879, %v1878
      %v2305 = vpack.c.b16 %v1881, %v1880
      %v2306 = vpack.c.b16 %v1883, %v1882
      %v2307 = vpack.c.b16 %v1885, %v1884
      %v2308 = vpack.c.b16 %v1887, %v1886
      %v2309 = vpack.c.b16 %v1889, %v1888
      %v2310 = vpack.c.b16 %v1891, %v1890
      %v2311 = vpack.c.b16 %v1893, %v1892
      %v2312 = vpack.c.b16 %v1895, %v1894
      %v2313 = vpack.c.b16 %v1897, %v1896
      %v2314 = vpack.c.b16 %v1899, %v1898
      %v2315 = vpack.c.b16 %v1901, %v1900
      %v2316 = vpack.c.b16 %v1903, %v1902
      %v2317 = vpack.c.b16 %v1905, %v1904
      %v2318 = vpack.c.b16 %v1907, %v1906
      %v2319 = vpack.c.b16 %v1909, %v1908
      %v2320 = vpack.c.b16 %v1911, %v1910
      %v2321 = vpack.c.b16 %v1913, %v1912
      %v2322 = vpack.c.b16 %v1915, %v1914
      %v2323 = vpack.c.b16 %v1917, %v1916
      %v2324 = vpack.c.b16 %v1919, %v1918
      %v2325 = vpack.c.b16 %v1921, %v1920
      %v2326 = vpack.c.b16 %v1923, %v1922
      %v2327 = vpack.c.b16 %v1925, %v1924
      %v2328 = vpack.c.b16 %v1927, %v1926
      %v2329 = vpack.c.b16 %v1929, %v1928
      %v2330 = vpack.c.b16 %v1931, %v1930
      %v2331 = vpack.c.b16 %v1933, %v1932
      %v2332 = vpack.c.b16 %v1935, %v1934
      %v2333 = vpack.c.b16 %v1937, %v1936
      %v2334 = vpack.c.b16 %v1939, %v1938
      %v2335 = vpack.c.b16 %v1941, %v1940
      %v2336 = vpack.c.b16 %v1943, %v1942
      %v2337 = vpack.c.b16 %v1945, %v1944
      %v2338 = vpack.c.b16 %v1947, %v1946
      %v2339 = vpack.c.b16 %v1949, %v1948
      %v2340 = vpack.c.b16 %v1951, %v1950
      %v2341 = vpack.c.b16 %v1953, %v1952
      %v2342 = vpack.c.b16 %v1955, %v1954
      %v2343 = vpack.c.b16 %v1957, %v1956
      %v2344 = vpack.c.b16 %v1959, %v1958
      %v2345 = vpack.c.b16 %v1961, %v1960
      %v2346 = vpack.c.b16 %v1963, %v1962
      %v2347 = vpack.c.b16 %v1965, %v1964
      %v2348 = vpack.c.b16 %v1967, %v1966
      %v2349 = vpack.c.b16 %v1969, %v1968
      %v2350 = vpack.c.b16 %v1971, %v1970
      %v2351 = vpack.c.b16 %v1973, %v1972
      %v2352 = vpack.c.b16 %v1975, %v1974
      %v2353 = vpack.c.b16 %v1977, %v1976
      %v2354 = vpack.c.b16 %v1979, %v1978
      %v2355 = vpack.c.b16 %v1981, %v1980
      %v2356 = vpack.c.b16 %v1983, %v1982
      %v2357 = vpack.c.b16 %v1985, %v1984
      %v2358 = vpack.c.b16 %v1987, %v1986
      %v2359 = vpack.c.b16 %v1989, %v1988
      %v2360 = vpack.c.b16 %v1991, %v1990
      %v2361 = vpack.c.b16 %v1993, %v1992
      %v2362 = vpack.c.b16 %v1995, %v1994
      %v2363 = vpack.c.b16 %v1997, %v1996
      %v2364 = vpack.c.b16 %v1999, %v1998
      %v2365 = vpack.c.b16 %v2001, %v2000
      %v2366 = vpack.c.b16 %v2003, %v2002
      %v2367 = vpack.c.b16 %v2005, %v2004
      %v2368 = vpack.c.b16 %v2007, %v2006
      %v2369 = vpack.c.b16 %v2009, %v2008
      %v2370 = vpack.c.b16 %v2011, %v2010
      %v2371 = vpack.c.b16 %v2013, %v2012
      %v2372 = vpack.c.b16 %v2015, %v2014
      %v2373 = vpack.c.b16 %v2017, %v2016
      %v2374 = vpack.c.b16 %v2019, %v2018
      %v2375 = vpack.c.b16 %v2021, %v2020
      %v2376 = vpack.c.b16 %v2023, %v2022
      %v2377 = vpack.c.b16 %v2025, %v2024
      %v2378 = vpack.c.b16 %v2027, %v2026
      %v2379 = vpack.c.b16 %v2029, %v2028
      %v2380 = vpack.c.b16 %v2031, %v2030
      %v2381 = vpack.c.b16 %v2033, %v2032
      %v2382 = vpack.c.b16 %v2035, %v2034
      %v2383 = vpack.c.b16 %v2037, %v2036
      %v2384 = vpack.c.b16 %v2039, %v2038
      %v2385 = vpack.c.b16 %v2041, %v2040
      %v2386 = vpack.c.b16 %v2043, %v2042
      %v2387 = vpack.c.b16 %v2045, %v2044
      %v2388 = vpack.c.b16 %v2047, %v2046
      %v2389 = vpack.c.b16 %v2049, %v2048
      %v2390 = vpack.c.b16 %v2051, %v2050
      %v2391 = vpack.c.b16 %v2053, %v2052
      %v2392 = vpack.c.b16 %v2055, %v2054
      %v2393 = vpack.c.b16 %v2057, %v2056
      %v2394 = vpack.c.b16 %v2059, %v2058
      %v2395 = vpack.c.b16 %v2061, %v2060
      %v2396 = vpack.c.b16 %v2063, %v2062
      %v2397 = vpack.c.b16 %v2065, %v2064
      %v2398 = vpack.c.b16 %v2067, %v2066
      %v2399 = vpack.c.b16 %v2069, %v2068
      %v2400 = vpack.c.b16 %v2071, %v2070
      %v2401 = vpack.c.b16 %v2073, %v2072
      %v2402 = vpack.c.b16 %v2075, %v2074
      %v2403 = vpack.c.b16 %v2077, %v2076
      %v2404 = vpack.c.b16 %v2079, %v2078
      %v2405 = vpack.c.b16 %v2081, %v2080
      %v2406 = vpack.c.b16 %v2083, %v2082
      %v2407 = vpack.c.b16 %v2085, %v2084
      %v2408 = vpack.c.b16 %v2087, %v2086
      %v2409 = vpack.c.b16 %v2089, %v2088
      %v2410 = vpack.c.b16 %v2091, %v2090
      %v2411 = vpack.c.b16 %v2093, %v2092
      %v2412 = vpack.c.b16 %v2095, %v2094
      %v2413 = vpack.c.b16 %v2097, %v2096
      %v2414 = vpack.c.b16 %v2099, %v2098
      %v2415 = vpack.c.b16 %v2101, %v2100
      %v2416 = vpack.c.b16 %v2103, %v2102
      %v2417 = vpack.c.b16 %v2105, %v2104
      %v2418 = vpack.c.b16 %v2107, %v2106
      %v2419 = vpack.c.b16 %v2109, %v2108
      %v2420 = vpack.c.b16 %v2111, %v2110
      %v2421 = vpack.c.b16 %v2113, %v2112
      %v2422 = vpack.c.b16 %v2115, %v2114
      %v2423 = vpack.c.b16 %v2117, %v2116
      %v2424 = vpack.c.b16 %v2119, %v2118
      %v2425 = vpack.c.b16 %v2121, %v2120
      %v2426 = vpack.c.b16 %v2123, %v2122
      %v2427 = vpack.c.b16 %v2125, %v2124
      %v2428 = vpack.c.b16 %v2127, %v2126
      %v2429 = vpack.c.b16 %v2129, %v2128
      %v2430 = vpack.c.b16 %v2131, %v2130
      %v2431 = vpack.c.b16 %v2133, %v2132
      %v2432 = vpack.c.b16 %v2135, %v2134
      %v2433 = vpack.c.b16 %v2137, %v2136
      %v2434 = vpack.c.b16 %v2139, %v2138
      %v2435 = vpack.c.b16 %v2141, %v2140
      %v2436 = vpack.c.b16 %v2143, %v2142
      %v2437 = vpack.c.b16 %v2145, %v2144
      %v2438 = vpack.c.b16 %v2147, %v2146
      %v2439 = vpack.c.b16 %v2149, %v2148
      %v2440 = vpack.c.b16 %v2151, %v2150
      %v2441 = vpack.c.b16 %v2153, %v2152
      %v2442 = vpack.c.b16 %v2155, %v2154
      %v2443 = vpack.c.b16 %v2157, %v2156
      %v2444 = vpack.c.b16 %v2159, %v2158
      %v2445 = vpack.c.b16 %v2161, %v2160
      %v2446 = vpack.c.b16 %v2163, %v2162
      %v2447 = vpack.c.b16 %v2165, %v2164
      %v2448 = vpack.c.b16 %v2167, %v2166
      %v2449 = vpack.c.b16 %v2169, %v2168
      %v2450 = vpack.c.b16 %v2171, %v2170
      %v2451 = vpack.c.b16 %v2173, %v2172
      %v2452 = vpack.c.b16 %v2175, %v2174
      %v2453 = vpack.c.b16 %v2177, %v2176
      %v2454 = vpack.c.b16 %v2179, %v2178
      %v2455 = vpack.c.b16 %v2181, %v2180
      %v2456 = vpack.c.b16 %v2183, %v2182
      %v2457 = vpack.c.b16 %v2185, %v2184
      %v2458 = vpack.c.b16 %v2187, %v2186
      %v2459 = vpack.c.b16 %v2189, %v2188
      %v2460 = vpack.c.b16 %v2191, %v2190
      %v2461 = vpack.c.b16 %v2193, %v2192
      %v2462 = vpack.c.b16 %v2195, %v2194
      %v2463 = vpack.c.b16 %v2197, %v2196
      %v2464 = vpack.c.b16 %v2199, %v2198
      %v2465 = vpack.c.b16 %v2201, %v2200
      %v2466 = vpack.c.b16 %v2203, %v2202
      %v2467 = vpack.c.b16 %v2205, %v2204
      %v2468 = vpack.c.b16 %v2207, %v2206
      %v2469 = vpack.c.b16 %v2209, %v2208
      %v2470 = vpack.c.b16 %v2211, %v2210
      %v2471 = vpack.c.b16 %v2213, %v2212
      %v2472 = vpack.c.b16 %v2215, %v2214
      %v2473 = vpack.c.b16 %v2217, %v2216
      %v2746 = vunpack.c.l.b16 %v1178
      %v2747 = vunpack.c.l.b16 %v1179
      %v2748 = vunpack.c.l.b16 %v1180
      %v2749 = vunpack.c.l.b16 %v1181
      %v2750 = vunpack.c.l.b16 %v1182
      %v2751 = vunpack.c.l.b16 %v1183
      %v2752 = vunpack.c.l.b16 %v1184
      %v2753 = vunpack.c.l.b16 %v1185
      %v2754 = vunpack.c.l.b16 %v1186
      %v2755 = vunpack.c.l.b16 %v1187
      %v2756 = vunpack.c.l.b16 %v1188
      %v2757 = vunpack.c.l.b16 %v1189
      %v2758 = vunpack.c.l.b16 %v1190
      %v2759 = vunpack.c.l.b16 %v1191
      %v2760 = vunpack.c.l.b16 %v1192
      %v2761 = vunpack.c.l.b16 %v1193
      %v2762 = vpack.c.b16 %v2747, %v2746
      %v2763 = vpack.c.b16 %v2749, %v2748
      %v2764 = vpack.c.b16 %v2751, %v2750
      %v2765 = vpack.c.b16 %v2753, %v2752
      %v2766 = vpack.c.b16 %v2755, %v2754
      %v2767 = vpack.c.b16 %v2757, %v2756
      %v2768 = vpack.c.b16 %v2759, %v2758
      %v2769 = vpack.c.b16 %v2761, %v2760
      %2778 = vmatprep.subr.bf16.mxu0 0
      %2779 = vmatpush1.bf16.msra.mxu0 %v2769
      %2780 = vmatprep.subr.bf16.mxu0 0
      %2781 = vmatpush1.bf16.msra.mxu0 %v2768
      %2782 = vmatprep.subr.bf16.mxu0 0
      %2783 = vmatpush1.bf16.msra.mxu0 %v2767
      %2784 = vmatprep.subr.bf16.mxu0 0
      %2785 = vmatpush1.bf16.msra.mxu0 %v2766
      %2786 = vmatprep.subr.bf16.mxu0 0
      %2787 = vmatpush1.bf16.msra.mxu0 %v2765
      %2788 = vmatprep.subr.bf16.mxu0 0
      %2789 = vmatpush1.bf16.msra.mxu0 %v2764
      %2790 = vmatprep.subr.bf16.mxu0 0
      %2791 = vmatpush1.bf16.msra.mxu0 %v2763
      %2792 = vmatprep.subr.bf16.mxu0 0
      %2793 = vmatpush1.bf16.msra.mxu0 %v2762
      %2794 = vmatprep.subr.bf16.mxu0 0
      %2795 = vmatpush2.bf16.msra.mxu0 0
      %2796 = vmatprep.subr.bf16.mxu0 0
      %2797 = vmatpush2.bf16.msra.mxu0 0
      %2798 = vmatprep.subr.bf16.mxu0 0
      %2799 = vmatpush2.bf16.msra.mxu0 0
      %2800 = vmatprep.subr.bf16.mxu0 0
      %2801 = vmatpush2.bf16.msra.mxu0 0
      %2802 = vmatprep.subr.bf16.mxu0 0
      %2803 = vmatpush2.bf16.msra.mxu0 0
      %2804 = vmatprep.subr.bf16.mxu0 0
      %2805 = vmatpush2.bf16.msra.mxu0 0
      %2806 = vmatprep.subr.bf16.mxu0 0
      %2807 = vmatpush2.bf16.msra.mxu0 0
      %2808 = vmatprep.subr.bf16.mxu0 0
      %2809 = vmatpush2.bf16.msra.mxu0 0
      %2810 = vmatprep.mubr.bf16.mxu0 0
      %2811 = vmatmul.mubr.bf16.gmra.mxu0 %v2218
      %v2812 = vpop.f32.mrf.mxu0
      %v2813 = vadd.f32 0.0, %v2812
      %v2814 = vpop.f32.mrf.mxu0
      %v2815 = vpop.f32.mrf.mxu0
      %v2816 = vadd.f32 0.0, %v2815
      %v2817 = vpop.f32.mrf.mxu0
      %2818 = vmatprep.mubr.bf16.mxu0 0
      %2819 = vmatmul.mubr.bf16.gmra.mxu0 %v2219
      %v2820 = vpop.f32.mrf.mxu0
      %v2821 = vadd.f32 0.0, %v2820
      %v2822 = vpop.f32.mrf.mxu0
      %v2823 = vpop.f32.mrf.mxu0
      %v2824 = vadd.f32 0.0, %v2823
      %v2825 = vpop.f32.mrf.mxu0
      %2826 = vmatprep.mubr.bf16.mxu0 0
      %2827 = vmatmul.mubr.bf16.gmra.mxu0 %v2220
      %v2828 = vpop.f32.mrf.mxu0
      %v2829 = vadd.f32 0.0, %v2828
      %v2830 = vpop.f32.mrf.mxu0
      %v2831 = vpop.f32.mrf.mxu0
      %v2832 = vadd.f32 0.0, %v2831
      %v2833 = vpop.f32.mrf.mxu0
      %2834 = vmatprep.mubr.bf16.mxu0 0
      %2835 = vmatmul.mubr.bf16.gmra.mxu0 %v2221
      %v2836 = vpop.f32.mrf.mxu0
      %v2837 = vadd.f32 0.0, %v2836
      %v2838 = vpop.f32.mrf.mxu0
      %v2839 = vpop.f32.mrf.mxu0
      %v2840 = vadd.f32 0.0, %v2839
      %v2841 = vpop.f32.mrf.mxu0
      %2842 = vmatprep.mubr.bf16.mxu0 0
      %2843 = vmatmul.mubr.bf16.gmra.mxu0 %v2222
      %v2844 = vpop.f32.mrf.mxu0
      %v2845 = vadd.f32 0.0, %v2844
      %v2846 = vpop.f32.mrf.mxu0
      %v2847 = vpop.f32.mrf.mxu0
      %v2848 = vadd.f32 0.0, %v2847
      %v2849 = vpop.f32.mrf.mxu0
      %2850 = vmatprep.mubr.bf16.mxu0 0
      %2851 = vmatmul.mubr.bf16.gmra.mxu0 %v2223
      %v2852 = vpop.f32.mrf.mxu0
      %v2853 = vadd.f32 0.0, %v2852
      %v2854 = vpop.f32.mrf.mxu0
      %v2855 = vpop.f32.mrf.mxu0
      %v2856 = vadd.f32 0.0, %v2855
      %v2857 = vpop.f32.mrf.mxu0
      %2858 = vmatprep.mubr.bf16.mxu0 0
      %2859 = vmatmul.mubr.bf16.gmra.mxu0 %v2224
      %v2860 = vpop.f32.mrf.mxu0
      %v2861 = vadd.f32 0.0, %v2860
      %v2862 = vpop.f32.mrf.mxu0
      %v2863 = vpop.f32.mrf.mxu0
      %v2864 = vadd.f32 0.0, %v2863
      %v2865 = vpop.f32.mrf.mxu0
      %2866 = vmatprep.mubr.bf16.mxu0 0
      %2867 = vmatmul.mubr.bf16.gmra.mxu0 %v2225
      %v2868 = vpop.f32.mrf.mxu0
      %v2869 = vadd.f32 0.0, %v2868
      %v2870 = vpop.f32.mrf.mxu0
      %v2871 = vpop.f32.mrf.mxu0
      %v2872 = vadd.f32 0.0, %v2871
      %v2873 = vpop.f32.mrf.mxu0
      %2874 = vmatprep.mubr.bf16.mxu0 0
      %2875 = vmatmul.mubr.bf16.gmra.mxu0 %v2226
      %v2876 = vpop.f32.mrf.mxu0
      %v2877 = vadd.f32 0.0, %v2876
      %v2878 = vpop.f32.mrf.mxu0
      %v2879 = vpop.f32.mrf.mxu0
      %v2880 = vadd.f32 0.0, %v2879
      %v2881 = vpop.f32.mrf.mxu0
      %2882 = vmatprep.mubr.bf16.mxu0 0
      %2883 = vmatmul.mubr.bf16.gmra.mxu0 %v2227
      %v2884 = vpop.f32.mrf.mxu0
      %v2885 = vadd.f32 0.0, %v2884
      %v2886 = vpop.f32.mrf.mxu0
      %v2887 = vpop.f32.mrf.mxu0
      %v2888 = vadd.f32 0.0, %v2887
      %v2889 = vpop.f32.mrf.mxu0
      %2890 = vmatprep.mubr.bf16.mxu0 0
      %2891 = vmatmul.mubr.bf16.gmra.mxu0 %v2228
      %v2892 = vpop.f32.mrf.mxu0
      %v2893 = vadd.f32 0.0, %v2892
      %v2894 = vpop.f32.mrf.mxu0
      %v2895 = vpop.f32.mrf.mxu0
      %v2896 = vadd.f32 0.0, %v2895
      %v2897 = vpop.f32.mrf.mxu0
      %2898 = vmatprep.mubr.bf16.mxu0 0
      %2899 = vmatmul.mubr.bf16.gmra.mxu0 %v2229
      %v2900 = vpop.f32.mrf.mxu0
      %v2901 = vadd.f32 0.0, %v2900
      %v2902 = vpop.f32.mrf.mxu0
      %v2903 = vpop.f32.mrf.mxu0
      %v2904 = vadd.f32 0.0, %v2903
      %v2905 = vpop.f32.mrf.mxu0
      %2906 = vmatprep.mubr.bf16.mxu0 0
      %2907 = vmatmul.mubr.bf16.gmra.mxu0 %v2230
      %v2908 = vpop.f32.mrf.mxu0
      %v2909 = vadd.f32 0.0, %v2908
      %v2910 = vpop.f32.mrf.mxu0
      %v2911 = vpop.f32.mrf.mxu0
      %v2912 = vadd.f32 0.0, %v2911
      %v2913 = vpop.f32.mrf.mxu0
      %2914 = vmatprep.mubr.bf16.mxu0 0
      %2915 = vmatmul.mubr.bf16.gmra.mxu0 %v2231
      %v2916 = vpop.f32.mrf.mxu0
      %v2917 = vadd.f32 0.0, %v2916
      %v2918 = vpop.f32.mrf.mxu0
      %v2919 = vpop.f32.mrf.mxu0
      %v2920 = vadd.f32 0.0, %v2919
      %v2921 = vpop.f32.mrf.mxu0
      %2922 = vmatprep.mubr.bf16.mxu0 0
      %2923 = vmatmul.mubr.bf16.gmra.mxu0 %v2232
      %v2924 = vpop.f32.mrf.mxu0
      %v2925 = vadd.f32 0.0, %v2924
      %v2926 = vpop.f32.mrf.mxu0
      %v2927 = vpop.f32.mrf.mxu0
      %v2928 = vadd.f32 0.0, %v2927
      %v2929 = vpop.f32.mrf.mxu0
      %2930 = vmatprep.mubr.bf16.mxu0 0
      %2931 = vmatmul.mubr.bf16.gmra.mxu0 %v2233
      %v2932 = vpop.f32.mrf.mxu0
      %v2933 = vadd.f32 0.0, %v2932
      %v2934 = vpop.f32.mrf.mxu0
      %v2935 = vpop.f32.mrf.mxu0
      %v2936 = vadd.f32 0.0, %v2935
      %v2937 = vpop.f32.mrf.mxu0
      %2938 = vmatprep.mubr.bf16.mxu0 0
      %2939 = vmatmul.mubr.bf16.gmra.mxu0 %v2234
      %v2940 = vpop.f32.mrf.mxu0
      %v2941 = vadd.f32 0.0, %v2940
      %v2942 = vpop.f32.mrf.mxu0
      %v2943 = vpop.f32.mrf.mxu0
      %v2944 = vadd.f32 0.0, %v2943
      %v2945 = vpop.f32.mrf.mxu0
      %2946 = vmatprep.mubr.bf16.mxu0 0
      %2947 = vmatmul.mubr.bf16.gmra.mxu0 %v2235
      %v2948 = vpop.f32.mrf.mxu0
      %v2949 = vadd.f32 0.0, %v2948
      %v2950 = vpop.f32.mrf.mxu0
      %v2951 = vpop.f32.mrf.mxu0
      %v2952 = vadd.f32 0.0, %v2951
      %v2953 = vpop.f32.mrf.mxu0
      %2954 = vmatprep.mubr.bf16.mxu0 0
      %2955 = vmatmul.mubr.bf16.gmra.mxu0 %v2236
      %v2956 = vpop.f32.mrf.mxu0
      %v2957 = vadd.f32 0.0, %v2956
      %v2958 = vpop.f32.mrf.mxu0
      %v2959 = vpop.f32.mrf.mxu0
      %v2960 = vadd.f32 0.0, %v2959
      %v2961 = vpop.f32.mrf.mxu0
      %2962 = vmatprep.mubr.bf16.mxu0 0
      %2963 = vmatmul.mubr.bf16.gmra.mxu0 %v2237
      %v2964 = vpop.f32.mrf.mxu0
      %v2965 = vadd.f32 0.0, %v2964
      %v2966 = vpop.f32.mrf.mxu0
      %v2967 = vpop.f32.mrf.mxu0
      %v2968 = vadd.f32 0.0, %v2967
      %v2969 = vpop.f32.mrf.mxu0
      %2970 = vmatprep.mubr.bf16.mxu0 0
      %2971 = vmatmul.mubr.bf16.gmra.mxu0 %v2238
      %v2972 = vpop.f32.mrf.mxu0
      %v2973 = vadd.f32 0.0, %v2972
      %v2974 = vpop.f32.mrf.mxu0
      %v2975 = vpop.f32.mrf.mxu0
      %v2976 = vadd.f32 0.0, %v2975
      %v2977 = vpop.f32.mrf.mxu0
      %2978 = vmatprep.mubr.bf16.mxu0 0
      %2979 = vmatmul.mubr.bf16.gmra.mxu0 %v2239
      %v2980 = vpop.f32.mrf.mxu0
      %v2981 = vadd.f32 0.0, %v2980
      %v2982 = vpop.f32.mrf.mxu0
      %v2983 = vpop.f32.mrf.mxu0
      %v2984 = vadd.f32 0.0, %v2983
      %v2985 = vpop.f32.mrf.mxu0
      %2986 = vmatprep.mubr.bf16.mxu0 0
      %2987 = vmatmul.mubr.bf16.gmra.mxu0 %v2240
      %v2988 = vpop.f32.mrf.mxu0
      %v2989 = vadd.f32 0.0, %v2988
      %v2990 = vpop.f32.mrf.mxu0
      %v2991 = vpop.f32.mrf.mxu0
      %v2992 = vadd.f32 0.0, %v2991
      %v2993 = vpop.f32.mrf.mxu0
      %2994 = vmatprep.mubr.bf16.mxu0 0
      %2995 = vmatmul.mubr.bf16.gmra.mxu0 %v2241
      %v2996 = vpop.f32.mrf.mxu0
      %v2997 = vadd.f32 0.0, %v2996
      %v2998 = vpop.f32.mrf.mxu0
      %v2999 = vpop.f32.mrf.mxu0
      %v3000 = vadd.f32 0.0, %v2999
      %v3001 = vpop.f32.mrf.mxu0
      %3002 = vmatprep.mubr.bf16.mxu0 0
      %3003 = vmatmul.mubr.bf16.gmra.mxu0 %v2242
      %v3004 = vpop.f32.mrf.mxu0
      %v3005 = vadd.f32 0.0, %v3004
      %v3006 = vpop.f32.mrf.mxu0
      %v3007 = vpop.f32.mrf.mxu0
      %v3008 = vadd.f32 0.0, %v3007
      %v3009 = vpop.f32.mrf.mxu0
      %3010 = vmatprep.mubr.bf16.mxu0 0
      %3011 = vmatmul.mubr.bf16.gmra.mxu0 %v2243
      %v3012 = vpop.f32.mrf.mxu0
      %v3013 = vadd.f32 0.0, %v3012
      %v3014 = vpop.f32.mrf.mxu0
      %v3015 = vpop.f32.mrf.mxu0
      %v3016 = vadd.f32 0.0, %v3015
      %v3017 = vpop.f32.mrf.mxu0
      %3018 = vmatprep.mubr.bf16.mxu0 0
      %3019 = vmatmul.mubr.bf16.gmra.mxu0 %v2244
      %v3020 = vpop.f32.mrf.mxu0
      %v3021 = vadd.f32 0.0, %v3020
      %v3022 = vpop.f32.mrf.mxu0
      %v3023 = vpop.f32.mrf.mxu0
      %v3024 = vadd.f32 0.0, %v3023
      %v3025 = vpop.f32.mrf.mxu0
      %3026 = vmatprep.mubr.bf16.mxu0 0
      %3027 = vmatmul.mubr.bf16.gmra.mxu0 %v2245
      %v3028 = vpop.f32.mrf.mxu0
      %v3029 = vadd.f32 0.0, %v3028
      %v3030 = vpop.f32.mrf.mxu0
      %v3031 = vpop.f32.mrf.mxu0
      %v3032 = vadd.f32 0.0, %v3031
      %v3033 = vpop.f32.mrf.mxu0
      %3034 = vmatprep.mubr.bf16.mxu0 0
      %3035 = vmatmul.mubr.bf16.gmra.mxu0 %v2246
      %v3036 = vpop.f32.mrf.mxu0
      %v3037 = vadd.f32 0.0, %v3036
      %v3038 = vpop.f32.mrf.mxu0
      %v3039 = vpop.f32.mrf.mxu0
      %v3040 = vadd.f32 0.0, %v3039
      %v3041 = vpop.f32.mrf.mxu0
      %3042 = vmatprep.mubr.bf16.mxu0 0
      %3043 = vmatmul.mubr.bf16.gmra.mxu0 %v2247
      %v3044 = vpop.f32.mrf.mxu0
      %v3045 = vadd.f32 0.0, %v3044
      %v3046 = vpop.f32.mrf.mxu0
      %v3047 = vpop.f32.mrf.mxu0
      %v3048 = vadd.f32 0.0, %v3047
      %v3049 = vpop.f32.mrf.mxu0
      %3050 = vmatprep.mubr.bf16.mxu0 0
      %3051 = vmatmul.mubr.bf16.gmra.mxu0 %v2248
      %v3052 = vpop.f32.mrf.mxu0
      %v3053 = vadd.f32 0.0, %v3052
      %v3054 = vpop.f32.mrf.mxu0
      %v3055 = vpop.f32.mrf.mxu0
      %v3056 = vadd.f32 0.0, %v3055
      %v3057 = vpop.f32.mrf.mxu0
      %3058 = vmatprep.mubr.bf16.mxu0 0
      %3059 = vmatmul.mubr.bf16.gmra.mxu0 %v2249
      %v3060 = vpop.f32.mrf.mxu0
      %v3061 = vadd.f32 0.0, %v3060
      %v3062 = vpop.f32.mrf.mxu0
      %v3063 = vpop.f32.mrf.mxu0
      %v3064 = vadd.f32 0.0, %v3063
      %v3065 = vpop.f32.mrf.mxu0
      %3066 = vmatprep.mubr.bf16.mxu0 0
      %3067 = vmatmul.mubr.bf16.gmra.mxu0 %v2250
      %v3068 = vpop.f32.mrf.mxu0
      %v3069 = vadd.f32 0.0, %v3068
      %v3070 = vpop.f32.mrf.mxu0
      %v3071 = vpop.f32.mrf.mxu0
      %v3072 = vadd.f32 0.0, %v3071
      %v3073 = vpop.f32.mrf.mxu0
      %3074 = vmatprep.mubr.bf16.mxu0 0
      %3075 = vmatmul.mubr.bf16.gmra.mxu0 %v2251
      %v3076 = vpop.f32.mrf.mxu0
      %v3077 = vadd.f32 0.0, %v3076
      %v3078 = vpop.f32.mrf.mxu0
      %v3079 = vpop.f32.mrf.mxu0
      %v3080 = vadd.f32 0.0, %v3079
      %v3081 = vpop.f32.mrf.mxu0
      %3082 = vmatprep.mubr.bf16.mxu0 0
      %3083 = vmatmul.mubr.bf16.gmra.mxu0 %v2252
      %v3084 = vpop.f32.mrf.mxu0
      %v3085 = vadd.f32 0.0, %v3084
      %v3086 = vpop.f32.mrf.mxu0
      %v3087 = vpop.f32.mrf.mxu0
      %v3088 = vadd.f32 0.0, %v3087
      %v3089 = vpop.f32.mrf.mxu0
      %3090 = vmatprep.mubr.bf16.mxu0 0
      %3091 = vmatmul.mubr.bf16.gmra.mxu0 %v2253
      %v3092 = vpop.f32.mrf.mxu0
      %v3093 = vadd.f32 0.0, %v3092
      %v3094 = vpop.f32.mrf.mxu0
      %v3095 = vpop.f32.mrf.mxu0
      %v3096 = vadd.f32 0.0, %v3095
      %v3097 = vpop.f32.mrf.mxu0
      %3098 = vmatprep.mubr.bf16.mxu0 0
      %3099 = vmatmul.mubr.bf16.gmra.mxu0 %v2254
      %v3100 = vpop.f32.mrf.mxu0
      %v3101 = vadd.f32 0.0, %v3100
      %v3102 = vpop.f32.mrf.mxu0
      %v3103 = vpop.f32.mrf.mxu0
      %v3104 = vadd.f32 0.0, %v3103
      %v3105 = vpop.f32.mrf.mxu0
      %3106 = vmatprep.mubr.bf16.mxu0 0
      %3107 = vmatmul.mubr.bf16.gmra.mxu0 %v2255
      %v3108 = vpop.f32.mrf.mxu0
      %v3109 = vadd.f32 0.0, %v3108
      %v3110 = vpop.f32.mrf.mxu0
      %v3111 = vpop.f32.mrf.mxu0
      %v3112 = vadd.f32 0.0, %v3111
      %v3113 = vpop.f32.mrf.mxu0
      %3114 = vmatprep.mubr.bf16.mxu0 0
      %3115 = vmatmul.mubr.bf16.gmra.mxu0 %v2256
      %v3116 = vpop.f32.mrf.mxu0
      %v3117 = vadd.f32 0.0, %v3116
      %v3118 = vpop.f32.mrf.mxu0
      %v3119 = vpop.f32.mrf.mxu0
      %v3120 = vadd.f32 0.0, %v3119
      %v3121 = vpop.f32.mrf.mxu0
      %3122 = vmatprep.mubr.bf16.mxu0 0
      %3123 = vmatmul.mubr.bf16.gmra.mxu0 %v2257
      %v3124 = vpop.f32.mrf.mxu0
      %v3125 = vadd.f32 0.0, %v3124
      %v3126 = vpop.f32.mrf.mxu0
      %v3127 = vpop.f32.mrf.mxu0
      %v3128 = vadd.f32 0.0, %v3127
      %v3129 = vpop.f32.mrf.mxu0
      %3130 = vmatprep.mubr.bf16.mxu0 0
      %3131 = vmatmul.mubr.bf16.gmra.mxu0 %v2258
      %v3132 = vpop.f32.mrf.mxu0
      %v3133 = vadd.f32 0.0, %v3132
      %v3134 = vpop.f32.mrf.mxu0
      %v3135 = vpop.f32.mrf.mxu0
      %v3136 = vadd.f32 0.0, %v3135
      %v3137 = vpop.f32.mrf.mxu0
      %3138 = vmatprep.mubr.bf16.mxu0 0
      %3139 = vmatmul.mubr.bf16.gmra.mxu0 %v2259
      %v3140 = vpop.f32.mrf.mxu0
      %v3141 = vadd.f32 0.0, %v3140
      %v3142 = vpop.f32.mrf.mxu0
      %v3143 = vpop.f32.mrf.mxu0
      %v3144 = vadd.f32 0.0, %v3143
      %v3145 = vpop.f32.mrf.mxu0
      %3146 = vmatprep.mubr.bf16.mxu0 0
      %3147 = vmatmul.mubr.bf16.gmra.mxu0 %v2260
      %v3148 = vpop.f32.mrf.mxu0
      %v3149 = vadd.f32 0.0, %v3148
      %v3150 = vpop.f32.mrf.mxu0
      %v3151 = vpop.f32.mrf.mxu0
      %v3152 = vadd.f32 0.0, %v3151
      %v3153 = vpop.f32.mrf.mxu0
      %3154 = vmatprep.mubr.bf16.mxu0 0
      %3155 = vmatmul.mubr.bf16.gmra.mxu0 %v2261
      %v3156 = vpop.f32.mrf.mxu0
      %v3157 = vadd.f32 0.0, %v3156
      %v3158 = vpop.f32.mrf.mxu0
      %v3159 = vpop.f32.mrf.mxu0
      %v3160 = vadd.f32 0.0, %v3159
      %v3161 = vpop.f32.mrf.mxu0
      %3162 = vmatprep.mubr.bf16.mxu0 0
      %3163 = vmatmul.mubr.bf16.gmra.mxu0 %v2262
      %v3164 = vpop.f32.mrf.mxu0
      %v3165 = vadd.f32 0.0, %v3164
      %v3166 = vpop.f32.mrf.mxu0
      %v3167 = vpop.f32.mrf.mxu0
      %v3168 = vadd.f32 0.0, %v3167
      %v3169 = vpop.f32.mrf.mxu0
      %3170 = vmatprep.mubr.bf16.mxu0 0
      %3171 = vmatmul.mubr.bf16.gmra.mxu0 %v2263
      %v3172 = vpop.f32.mrf.mxu0
      %v3173 = vadd.f32 0.0, %v3172
      %v3174 = vpop.f32.mrf.mxu0
      %v3175 = vpop.f32.mrf.mxu0
      %v3176 = vadd.f32 0.0, %v3175
      %v3177 = vpop.f32.mrf.mxu0
      %3178 = vmatprep.mubr.bf16.mxu0 0
      %3179 = vmatmul.mubr.bf16.gmra.mxu0 %v2264
      %v3180 = vpop.f32.mrf.mxu0
      %v3181 = vadd.f32 0.0, %v3180
      %v3182 = vpop.f32.mrf.mxu0
      %v3183 = vpop.f32.mrf.mxu0
      %v3184 = vadd.f32 0.0, %v3183
      %v3185 = vpop.f32.mrf.mxu0
      %3186 = vmatprep.mubr.bf16.mxu0 0
      %3187 = vmatmul.mubr.bf16.gmra.mxu0 %v2265
      %v3188 = vpop.f32.mrf.mxu0
      %v3189 = vadd.f32 0.0, %v3188
      %v3190 = vpop.f32.mrf.mxu0
      %v3191 = vpop.f32.mrf.mxu0
      %v3192 = vadd.f32 0.0, %v3191
      %v3193 = vpop.f32.mrf.mxu0
      %3194 = vmatprep.mubr.bf16.mxu0 0
      %3195 = vmatmul.mubr.bf16.gmra.mxu0 %v2266
      %v3196 = vpop.f32.mrf.mxu0
      %v3197 = vadd.f32 0.0, %v3196
      %v3198 = vpop.f32.mrf.mxu0
      %v3199 = vpop.f32.mrf.mxu0
      %v3200 = vadd.f32 0.0, %v3199
      %v3201 = vpop.f32.mrf.mxu0
      %3202 = vmatprep.mubr.bf16.mxu0 0
      %3203 = vmatmul.mubr.bf16.gmra.mxu0 %v2267
      %v3204 = vpop.f32.mrf.mxu0
      %v3205 = vadd.f32 0.0, %v3204
      %v3206 = vpop.f32.mrf.mxu0
      %v3207 = vpop.f32.mrf.mxu0
      %v3208 = vadd.f32 0.0, %v3207
      %v3209 = vpop.f32.mrf.mxu0
      %3210 = vmatprep.mubr.bf16.mxu0 0
      %3211 = vmatmul.mubr.bf16.gmra.mxu0 %v2268
      %v3212 = vpop.f32.mrf.mxu0
      %v3213 = vadd.f32 0.0, %v3212
      %v3214 = vpop.f32.mrf.mxu0
      %v3215 = vpop.f32.mrf.mxu0
      %v3216 = vadd.f32 0.0, %v3215
      %v3217 = vpop.f32.mrf.mxu0
      %3218 = vmatprep.mubr.bf16.mxu0 0
      %3219 = vmatmul.mubr.bf16.gmra.mxu0 %v2269
      %v3220 = vpop.f32.mrf.mxu0
      %v3221 = vadd.f32 0.0, %v3220
      %v3222 = vpop.f32.mrf.mxu0
      %v3223 = vpop.f32.mrf.mxu0
      %v3224 = vadd.f32 0.0, %v3223
      %v3225 = vpop.f32.mrf.mxu0
      %3226 = vmatprep.mubr.bf16.mxu0 0
      %3227 = vmatmul.mubr.bf16.gmra.mxu0 %v2270
      %v3228 = vpop.f32.mrf.mxu0
      %v3229 = vadd.f32 0.0, %v3228
      %v3230 = vpop.f32.mrf.mxu0
      %v3231 = vpop.f32.mrf.mxu0
      %v3232 = vadd.f32 0.0, %v3231
      %v3233 = vpop.f32.mrf.mxu0
      %3234 = vmatprep.mubr.bf16.mxu0 0
      %3235 = vmatmul.mubr.bf16.gmra.mxu0 %v2271
      %v3236 = vpop.f32.mrf.mxu0
      %v3237 = vadd.f32 0.0, %v3236
      %v3238 = vpop.f32.mrf.mxu0
      %v3239 = vpop.f32.mrf.mxu0
      %v3240 = vadd.f32 0.0, %v3239
      %v3241 = vpop.f32.mrf.mxu0
      %3242 = vmatprep.mubr.bf16.mxu0 0
      %3243 = vmatmul.mubr.bf16.gmra.mxu0 %v2272
      %v3244 = vpop.f32.mrf.mxu0
      %v3245 = vadd.f32 0.0, %v3244
      %v3246 = vpop.f32.mrf.mxu0
      %v3247 = vpop.f32.mrf.mxu0
      %v3248 = vadd.f32 0.0, %v3247
      %v3249 = vpop.f32.mrf.mxu0
      %3250 = vmatprep.mubr.bf16.mxu0 0
      %3251 = vmatmul.mubr.bf16.gmra.mxu0 %v2273
      %v3252 = vpop.f32.mrf.mxu0
      %v3253 = vadd.f32 0.0, %v3252
      %v3254 = vpop.f32.mrf.mxu0
      %v3255 = vpop.f32.mrf.mxu0
      %v3256 = vadd.f32 0.0, %v3255
      %v3257 = vpop.f32.mrf.mxu0
      %3258 = vmatprep.mubr.bf16.mxu0 0
      %3259 = vmatmul.mubr.bf16.gmra.mxu0 %v2274
      %v3260 = vpop.f32.mrf.mxu0
      %v3261 = vadd.f32 0.0, %v3260
      %v3262 = vpop.f32.mrf.mxu0
      %v3263 = vpop.f32.mrf.mxu0
      %v3264 = vadd.f32 0.0, %v3263
      %v3265 = vpop.f32.mrf.mxu0
      %3266 = vmatprep.mubr.bf16.mxu0 0
      %3267 = vmatmul.mubr.bf16.gmra.mxu0 %v2275
      %v3268 = vpop.f32.mrf.mxu0
      %v3269 = vadd.f32 0.0, %v3268
      %v3270 = vpop.f32.mrf.mxu0
      %v3271 = vpop.f32.mrf.mxu0
      %v3272 = vadd.f32 0.0, %v3271
      %v3273 = vpop.f32.mrf.mxu0
      %3274 = vmatprep.mubr.bf16.mxu0 0
      %3275 = vmatmul.mubr.bf16.gmra.mxu0 %v2276
      %v3276 = vpop.f32.mrf.mxu0
      %v3277 = vadd.f32 0.0, %v3276
      %v3278 = vpop.f32.mrf.mxu0
      %v3279 = vpop.f32.mrf.mxu0
      %v3280 = vadd.f32 0.0, %v3279
      %v3281 = vpop.f32.mrf.mxu0
      %3282 = vmatprep.mubr.bf16.mxu0 0
      %3283 = vmatmul.mubr.bf16.gmra.mxu0 %v2277
      %v3284 = vpop.f32.mrf.mxu0
      %v3285 = vadd.f32 0.0, %v3284
      %v3286 = vpop.f32.mrf.mxu0
      %v3287 = vpop.f32.mrf.mxu0
      %v3288 = vadd.f32 0.0, %v3287
      %v3289 = vpop.f32.mrf.mxu0
      %3290 = vmatprep.mubr.bf16.mxu0 0
      %3291 = vmatmul.mubr.bf16.gmra.mxu0 %v2278
      %v3292 = vpop.f32.mrf.mxu0
      %v3293 = vadd.f32 0.0, %v3292
      %v3294 = vpop.f32.mrf.mxu0
      %v3295 = vpop.f32.mrf.mxu0
      %v3296 = vadd.f32 0.0, %v3295
      %v3297 = vpop.f32.mrf.mxu0
      %3298 = vmatprep.mubr.bf16.mxu0 0
      %3299 = vmatmul.mubr.bf16.gmra.mxu0 %v2279
      %v3300 = vpop.f32.mrf.mxu0
      %v3301 = vadd.f32 0.0, %v3300
      %v3302 = vpop.f32.mrf.mxu0
      %v3303 = vpop.f32.mrf.mxu0
      %v3304 = vadd.f32 0.0, %v3303
      %v3305 = vpop.f32.mrf.mxu0
      %3306 = vmatprep.mubr.bf16.mxu0 0
      %3307 = vmatmul.mubr.bf16.gmra.mxu0 %v2280
      %v3308 = vpop.f32.mrf.mxu0
      %v3309 = vadd.f32 0.0, %v3308
      %v3310 = vpop.f32.mrf.mxu0
      %v3311 = vpop.f32.mrf.mxu0
      %v3312 = vadd.f32 0.0, %v3311
      %v3313 = vpop.f32.mrf.mxu0
      %3314 = vmatprep.mubr.bf16.mxu0 0
      %3315 = vmatmul.mubr.bf16.gmra.mxu0 %v2281
      %v3316 = vpop.f32.mrf.mxu0
      %v3317 = vadd.f32 0.0, %v3316
      %v3318 = vpop.f32.mrf.mxu0
      %v3319 = vpop.f32.mrf.mxu0
      %v3320 = vadd.f32 0.0, %v3319
      %v3321 = vpop.f32.mrf.mxu0
      %3322 = vmatprep.mubr.bf16.mxu0 0
      %3323 = vmatmul.mubr.bf16.gmra.mxu0 %v2282
      %v3324 = vpop.f32.mrf.mxu0
      %v3325 = vadd.f32 0.0, %v3324
      %v3326 = vpop.f32.mrf.mxu0
      %v3327 = vpop.f32.mrf.mxu0
      %v3328 = vadd.f32 0.0, %v3327
      %v3329 = vpop.f32.mrf.mxu0
      %3330 = vmatprep.mubr.bf16.mxu0 0
      %3331 = vmatmul.mubr.bf16.gmra.mxu0 %v2283
      %v3332 = vpop.f32.mrf.mxu0
      %v3333 = vadd.f32 0.0, %v3332
      %v3334 = vpop.f32.mrf.mxu0
      %v3335 = vpop.f32.mrf.mxu0
      %v3336 = vadd.f32 0.0, %v3335
      %v3337 = vpop.f32.mrf.mxu0
      %3338 = vmatprep.mubr.bf16.mxu0 0
      %3339 = vmatmul.mubr.bf16.gmra.mxu0 %v2284
      %v3340 = vpop.f32.mrf.mxu0
      %v3341 = vadd.f32 0.0, %v3340
      %v3342 = vpop.f32.mrf.mxu0
      %v3343 = vpop.f32.mrf.mxu0
      %v3344 = vadd.f32 0.0, %v3343
      %v3345 = vpop.f32.mrf.mxu0
      %3346 = vmatprep.mubr.bf16.mxu0 0
      %3347 = vmatmul.mubr.bf16.gmra.mxu0 %v2285
      %v3348 = vpop.f32.mrf.mxu0
      %v3349 = vadd.f32 0.0, %v3348
      %v3350 = vpop.f32.mrf.mxu0
      %v3351 = vpop.f32.mrf.mxu0
      %v3352 = vadd.f32 0.0, %v3351
      %v3353 = vpop.f32.mrf.mxu0
      %3354 = vmatprep.mubr.bf16.mxu0 0
      %3355 = vmatmul.mubr.bf16.gmra.mxu0 %v2286
      %v3356 = vpop.f32.mrf.mxu0
      %v3357 = vadd.f32 0.0, %v3356
      %v3358 = vpop.f32.mrf.mxu0
      %v3359 = vpop.f32.mrf.mxu0
      %v3360 = vadd.f32 0.0, %v3359
      %v3361 = vpop.f32.mrf.mxu0
      %3362 = vmatprep.mubr.bf16.mxu0 0
      %3363 = vmatmul.mubr.bf16.gmra.mxu0 %v2287
      %v3364 = vpop.f32.mrf.mxu0
      %v3365 = vadd.f32 0.0, %v3364
      %v3366 = vpop.f32.mrf.mxu0
      %v3367 = vpop.f32.mrf.mxu0
      %v3368 = vadd.f32 0.0, %v3367
      %v3369 = vpop.f32.mrf.mxu0
      %3370 = vmatprep.mubr.bf16.mxu0 0
      %3371 = vmatmul.mubr.bf16.gmra.mxu0 %v2288
      %v3372 = vpop.f32.mrf.mxu0
      %v3373 = vadd.f32 0.0, %v3372
      %v3374 = vpop.f32.mrf.mxu0
      %v3375 = vpop.f32.mrf.mxu0
      %v3376 = vadd.f32 0.0, %v3375
      %v3377 = vpop.f32.mrf.mxu0
      %3378 = vmatprep.mubr.bf16.mxu0 0
      %3379 = vmatmul.mubr.bf16.gmra.mxu0 %v2289
      %v3380 = vpop.f32.mrf.mxu0
      %v3381 = vadd.f32 0.0, %v3380
      %v3382 = vpop.f32.mrf.mxu0
      %v3383 = vpop.f32.mrf.mxu0
      %v3384 = vadd.f32 0.0, %v3383
      %v3385 = vpop.f32.mrf.mxu0
      %3386 = vmatprep.mubr.bf16.mxu0 0
      %3387 = vmatmul.mubr.bf16.gmra.mxu0 %v2290
      %v3388 = vpop.f32.mrf.mxu0
      %v3389 = vadd.f32 0.0, %v3388
      %v3390 = vpop.f32.mrf.mxu0
      %v3391 = vpop.f32.mrf.mxu0
      %v3392 = vadd.f32 0.0, %v3391
      %v3393 = vpop.f32.mrf.mxu0
      %3394 = vmatprep.mubr.bf16.mxu0 0
      %3395 = vmatmul.mubr.bf16.gmra.mxu0 %v2291
      %v3396 = vpop.f32.mrf.mxu0
      %v3397 = vadd.f32 0.0, %v3396
      %v3398 = vpop.f32.mrf.mxu0
      %v3399 = vpop.f32.mrf.mxu0
      %v3400 = vadd.f32 0.0, %v3399
      %v3401 = vpop.f32.mrf.mxu0
      %3402 = vmatprep.mubr.bf16.mxu0 0
      %3403 = vmatmul.mubr.bf16.gmra.mxu0 %v2292
      %v3404 = vpop.f32.mrf.mxu0
      %v3405 = vadd.f32 0.0, %v3404
      %v3406 = vpop.f32.mrf.mxu0
      %v3407 = vpop.f32.mrf.mxu0
      %v3408 = vadd.f32 0.0, %v3407
      %v3409 = vpop.f32.mrf.mxu0
      %3410 = vmatprep.mubr.bf16.mxu0 0
      %3411 = vmatmul.mubr.bf16.gmra.mxu0 %v2293
      %v3412 = vpop.f32.mrf.mxu0
      %v3413 = vadd.f32 0.0, %v3412
      %v3414 = vpop.f32.mrf.mxu0
      %v3415 = vpop.f32.mrf.mxu0
      %v3416 = vadd.f32 0.0, %v3415
      %v3417 = vpop.f32.mrf.mxu0
      %3418 = vmatprep.mubr.bf16.mxu0 0
      %3419 = vmatmul.mubr.bf16.gmra.mxu0 %v2294
      %v3420 = vpop.f32.mrf.mxu0
      %v3421 = vadd.f32 0.0, %v3420
      %v3422 = vpop.f32.mrf.mxu0
      %v3423 = vpop.f32.mrf.mxu0
      %v3424 = vadd.f32 0.0, %v3423
      %v3425 = vpop.f32.mrf.mxu0
      %3426 = vmatprep.mubr.bf16.mxu0 0
      %3427 = vmatmul.mubr.bf16.gmra.mxu0 %v2295
      %v3428 = vpop.f32.mrf.mxu0
      %v3429 = vadd.f32 0.0, %v3428
      %v3430 = vpop.f32.mrf.mxu0
      %v3431 = vpop.f32.mrf.mxu0
      %v3432 = vadd.f32 0.0, %v3431
      %v3433 = vpop.f32.mrf.mxu0
      %3434 = vmatprep.mubr.bf16.mxu0 0
      %3435 = vmatmul.mubr.bf16.gmra.mxu0 %v2296
      %v3436 = vpop.f32.mrf.mxu0
      %v3437 = vadd.f32 0.0, %v3436
      %v3438 = vpop.f32.mrf.mxu0
      %v3439 = vpop.f32.mrf.mxu0
      %v3440 = vadd.f32 0.0, %v3439
      %v3441 = vpop.f32.mrf.mxu0
      %3442 = vmatprep.mubr.bf16.mxu0 0
      %3443 = vmatmul.mubr.bf16.gmra.mxu0 %v2297
      %v3444 = vpop.f32.mrf.mxu0
      %v3445 = vadd.f32 0.0, %v3444
      %v3446 = vpop.f32.mrf.mxu0
      %v3447 = vpop.f32.mrf.mxu0
      %v3448 = vadd.f32 0.0, %v3447
      %v3449 = vpop.f32.mrf.mxu0
      %3450 = vmatprep.mubr.bf16.mxu0 0
      %3451 = vmatmul.mubr.bf16.gmra.mxu0 %v2298
      %v3452 = vpop.f32.mrf.mxu0
      %v3453 = vadd.f32 0.0, %v3452
      %v3454 = vpop.f32.mrf.mxu0
      %v3455 = vpop.f32.mrf.mxu0
      %v3456 = vadd.f32 0.0, %v3455
      %v3457 = vpop.f32.mrf.mxu0
      %3458 = vmatprep.mubr.bf16.mxu0 0
      %3459 = vmatmul.mubr.bf16.gmra.mxu0 %v2299
      %v3460 = vpop.f32.mrf.mxu0
      %v3461 = vadd.f32 0.0, %v3460
      %v3462 = vpop.f32.mrf.mxu0
      %v3463 = vpop.f32.mrf.mxu0
      %v3464 = vadd.f32 0.0, %v3463
      %v3465 = vpop.f32.mrf.mxu0
      %3466 = vmatprep.mubr.bf16.mxu0 0
      %3467 = vmatmul.mubr.bf16.gmra.mxu0 %v2300
      %v3468 = vpop.f32.mrf.mxu0
      %v3469 = vadd.f32 0.0, %v3468
      %v3470 = vpop.f32.mrf.mxu0
      %v3471 = vpop.f32.mrf.mxu0
      %v3472 = vadd.f32 0.0, %v3471
      %v3473 = vpop.f32.mrf.mxu0
      %3474 = vmatprep.mubr.bf16.mxu0 0
      %3475 = vmatmul.mubr.bf16.gmra.mxu0 %v2301
      %v3476 = vpop.f32.mrf.mxu0
      %v3477 = vadd.f32 0.0, %v3476
      %v3478 = vpop.f32.mrf.mxu0
      %v3479 = vpop.f32.mrf.mxu0
      %v3480 = vadd.f32 0.0, %v3479
      %v3481 = vpop.f32.mrf.mxu0
      %3482 = vmatprep.mubr.bf16.mxu0 0
      %3483 = vmatmul.mubr.bf16.gmra.mxu0 %v2302
      %v3484 = vpop.f32.mrf.mxu0
      %v3485 = vadd.f32 0.0, %v3484
      %v3486 = vpop.f32.mrf.mxu0
      %v3487 = vpop.f32.mrf.mxu0
      %v3488 = vadd.f32 0.0, %v3487
      %v3489 = vpop.f32.mrf.mxu0
      %3490 = vmatprep.mubr.bf16.mxu0 0
      %3491 = vmatmul.mubr.bf16.gmra.mxu0 %v2303
      %v3492 = vpop.f32.mrf.mxu0
      %v3493 = vadd.f32 0.0, %v3492
      %v3494 = vpop.f32.mrf.mxu0
      %v3495 = vpop.f32.mrf.mxu0
      %v3496 = vadd.f32 0.0, %v3495
      %v3497 = vpop.f32.mrf.mxu0
      %3498 = vmatprep.mubr.bf16.mxu0 0
      %3499 = vmatmul.mubr.bf16.gmra.mxu0 %v2304
      %v3500 = vpop.f32.mrf.mxu0
      %v3501 = vadd.f32 0.0, %v3500
      %v3502 = vpop.f32.mrf.mxu0
      %v3503 = vpop.f32.mrf.mxu0
      %v3504 = vadd.f32 0.0, %v3503
      %v3505 = vpop.f32.mrf.mxu0
      %3506 = vmatprep.mubr.bf16.mxu0 0
      %3507 = vmatmul.mubr.bf16.gmra.mxu0 %v2305
      %v3508 = vpop.f32.mrf.mxu0
      %v3509 = vadd.f32 0.0, %v3508
      %v3510 = vpop.f32.mrf.mxu0
      %v3511 = vpop.f32.mrf.mxu0
      %v3512 = vadd.f32 0.0, %v3511
      %v3513 = vpop.f32.mrf.mxu0
      %3514 = vmatprep.mubr.bf16.mxu0 0
      %3515 = vmatmul.mubr.bf16.gmra.mxu0 %v2306
      %v3516 = vpop.f32.mrf.mxu0
      %v3517 = vadd.f32 0.0, %v3516
      %v3518 = vpop.f32.mrf.mxu0
      %v3519 = vpop.f32.mrf.mxu0
      %v3520 = vadd.f32 0.0, %v3519
      %v3521 = vpop.f32.mrf.mxu0
      %3522 = vmatprep.mubr.bf16.mxu0 0
      %3523 = vmatmul.mubr.bf16.gmra.mxu0 %v2307
      %v3524 = vpop.f32.mrf.mxu0
      %v3525 = vadd.f32 0.0, %v3524
      %v3526 = vpop.f32.mrf.mxu0
      %v3527 = vpop.f32.mrf.mxu0
      %v3528 = vadd.f32 0.0, %v3527
      %v3529 = vpop.f32.mrf.mxu0
      %3530 = vmatprep.mubr.bf16.mxu0 0
      %3531 = vmatmul.mubr.bf16.gmra.mxu0 %v2308
      %v3532 = vpop.f32.mrf.mxu0
      %v3533 = vadd.f32 0.0, %v3532
      %v3534 = vpop.f32.mrf.mxu0
      %v3535 = vpop.f32.mrf.mxu0
      %v3536 = vadd.f32 0.0, %v3535
      %v3537 = vpop.f32.mrf.mxu0
      %3538 = vmatprep.mubr.bf16.mxu0 0
      %3539 = vmatmul.mubr.bf16.gmra.mxu0 %v2309
      %v3540 = vpop.f32.mrf.mxu0
      %v3541 = vadd.f32 0.0, %v3540
      %v3542 = vpop.f32.mrf.mxu0
      %v3543 = vpop.f32.mrf.mxu0
      %v3544 = vadd.f32 0.0, %v3543
      %v3545 = vpop.f32.mrf.mxu0
      %3546 = vmatprep.mubr.bf16.mxu0 0
      %3547 = vmatmul.mubr.bf16.gmra.mxu0 %v2310
      %v3548 = vpop.f32.mrf.mxu0
      %v3549 = vadd.f32 0.0, %v3548
      %v3550 = vpop.f32.mrf.mxu0
      %v3551 = vpop.f32.mrf.mxu0
      %v3552 = vadd.f32 0.0, %v3551
      %v3553 = vpop.f32.mrf.mxu0
      %3554 = vmatprep.mubr.bf16.mxu0 0
      %3555 = vmatmul.mubr.bf16.gmra.mxu0 %v2311
      %v3556 = vpop.f32.mrf.mxu0
      %v3557 = vadd.f32 0.0, %v3556
      %v3558 = vpop.f32.mrf.mxu0
      %v3559 = vpop.f32.mrf.mxu0
      %v3560 = vadd.f32 0.0, %v3559
      %v3561 = vpop.f32.mrf.mxu0
      %3562 = vmatprep.mubr.bf16.mxu0 0
      %3563 = vmatmul.mubr.bf16.gmra.mxu0 %v2312
      %v3564 = vpop.f32.mrf.mxu0
      %v3565 = vadd.f32 0.0, %v3564
      %v3566 = vpop.f32.mrf.mxu0
      %v3567 = vpop.f32.mrf.mxu0
      %v3568 = vadd.f32 0.0, %v3567
      %v3569 = vpop.f32.mrf.mxu0
      %3570 = vmatprep.mubr.bf16.mxu0 0
      %3571 = vmatmul.mubr.bf16.gmra.mxu0 %v2313
      %v3572 = vpop.f32.mrf.mxu0
      %v3573 = vadd.f32 0.0, %v3572
      %v3574 = vpop.f32.mrf.mxu0
      %v3575 = vpop.f32.mrf.mxu0
      %v3576 = vadd.f32 0.0, %v3575
      %v3577 = vpop.f32.mrf.mxu0
      %3578 = vmatprep.mubr.bf16.mxu0 0
      %3579 = vmatmul.mubr.bf16.gmra.mxu0 %v2314
      %v3580 = vpop.f32.mrf.mxu0
      %v3581 = vadd.f32 0.0, %v3580
      %v3582 = vpop.f32.mrf.mxu0
      %v3583 = vpop.f32.mrf.mxu0
      %v3584 = vadd.f32 0.0, %v3583
      %v3585 = vpop.f32.mrf.mxu0
      %3586 = vmatprep.mubr.bf16.mxu0 0
      %3587 = vmatmul.mubr.bf16.gmra.mxu0 %v2315
      %v3588 = vpop.f32.mrf.mxu0
      %v3589 = vadd.f32 0.0, %v3588
      %v3590 = vpop.f32.mrf.mxu0
      %v3591 = vpop.f32.mrf.mxu0
      %v3592 = vadd.f32 0.0, %v3591
      %v3593 = vpop.f32.mrf.mxu0
      %3594 = vmatprep.mubr.bf16.mxu0 0
      %3595 = vmatmul.mubr.bf16.gmra.mxu0 %v2316
      %v3596 = vpop.f32.mrf.mxu0
      %v3597 = vadd.f32 0.0, %v3596
      %v3598 = vpop.f32.mrf.mxu0
      %v3599 = vpop.f32.mrf.mxu0
      %v3600 = vadd.f32 0.0, %v3599
      %v3601 = vpop.f32.mrf.mxu0
      %3602 = vmatprep.mubr.bf16.mxu0 0
      %3603 = vmatmul.mubr.bf16.gmra.mxu0 %v2317
      %v3604 = vpop.f32.mrf.mxu0
      %v3605 = vadd.f32 0.0, %v3604
      %v3606 = vpop.f32.mrf.mxu0
      %v3607 = vpop.f32.mrf.mxu0
      %v3608 = vadd.f32 0.0, %v3607
      %v3609 = vpop.f32.mrf.mxu0
      %3610 = vmatprep.mubr.bf16.mxu0 0
      %3611 = vmatmul.mubr.bf16.gmra.mxu0 %v2318
      %v3612 = vpop.f32.mrf.mxu0
      %v3613 = vadd.f32 0.0, %v3612
      %v3614 = vpop.f32.mrf.mxu0
      %v3615 = vpop.f32.mrf.mxu0
      %v3616 = vadd.f32 0.0, %v3615
      %v3617 = vpop.f32.mrf.mxu0
      %3618 = vmatprep.mubr.bf16.mxu0 0
      %3619 = vmatmul.mubr.bf16.gmra.mxu0 %v2319
      %v3620 = vpop.f32.mrf.mxu0
      %v3621 = vadd.f32 0.0, %v3620
      %v3622 = vpop.f32.mrf.mxu0
      %v3623 = vpop.f32.mrf.mxu0
      %v3624 = vadd.f32 0.0, %v3623
      %v3625 = vpop.f32.mrf.mxu0
      %3626 = vmatprep.mubr.bf16.mxu0 0
      %3627 = vmatmul.mubr.bf16.gmra.mxu0 %v2320
      %v3628 = vpop.f32.mrf.mxu0
      %v3629 = vadd.f32 0.0, %v3628
      %v3630 = vpop.f32.mrf.mxu0
      %v3631 = vpop.f32.mrf.mxu0
      %v3632 = vadd.f32 0.0, %v3631
      %v3633 = vpop.f32.mrf.mxu0
      %3634 = vmatprep.mubr.bf16.mxu0 0
      %3635 = vmatmul.mubr.bf16.gmra.mxu0 %v2321
      %v3636 = vpop.f32.mrf.mxu0
      %v3637 = vadd.f32 0.0, %v3636
      %v3638 = vpop.f32.mrf.mxu0
      %v3639 = vpop.f32.mrf.mxu0
      %v3640 = vadd.f32 0.0, %v3639
      %v3641 = vpop.f32.mrf.mxu0
      %3642 = vmatprep.mubr.bf16.mxu0 0
      %3643 = vmatmul.mubr.bf16.gmra.mxu0 %v2322
      %v3644 = vpop.f32.mrf.mxu0
      %v3645 = vadd.f32 0.0, %v3644
      %v3646 = vpop.f32.mrf.mxu0
      %v3647 = vpop.f32.mrf.mxu0
      %v3648 = vadd.f32 0.0, %v3647
      %v3649 = vpop.f32.mrf.mxu0
      %3650 = vmatprep.mubr.bf16.mxu0 0
      %3651 = vmatmul.mubr.bf16.gmra.mxu0 %v2323
      %v3652 = vpop.f32.mrf.mxu0
      %v3653 = vadd.f32 0.0, %v3652
      %v3654 = vpop.f32.mrf.mxu0
      %v3655 = vpop.f32.mrf.mxu0
      %v3656 = vadd.f32 0.0, %v3655
      %v3657 = vpop.f32.mrf.mxu0
      %3658 = vmatprep.mubr.bf16.mxu0 0
      %3659 = vmatmul.mubr.bf16.gmra.mxu0 %v2324
      %v3660 = vpop.f32.mrf.mxu0
      %v3661 = vadd.f32 0.0, %v3660
      %v3662 = vpop.f32.mrf.mxu0
      %v3663 = vpop.f32.mrf.mxu0
      %v3664 = vadd.f32 0.0, %v3663
      %v3665 = vpop.f32.mrf.mxu0
      %3666 = vmatprep.mubr.bf16.mxu0 0
      %3667 = vmatmul.mubr.bf16.gmra.mxu0 %v2325
      %v3668 = vpop.f32.mrf.mxu0
      %v3669 = vadd.f32 0.0, %v3668
      %v3670 = vpop.f32.mrf.mxu0
      %v3671 = vpop.f32.mrf.mxu0
      %v3672 = vadd.f32 0.0, %v3671
      %v3673 = vpop.f32.mrf.mxu0
      %3674 = vmatprep.mubr.bf16.mxu0 0
      %3675 = vmatmul.mubr.bf16.gmra.mxu0 %v2326
      %v3676 = vpop.f32.mrf.mxu0
      %v3677 = vadd.f32 0.0, %v3676
      %v3678 = vpop.f32.mrf.mxu0
      %v3679 = vpop.f32.mrf.mxu0
      %v3680 = vadd.f32 0.0, %v3679
      %v3681 = vpop.f32.mrf.mxu0
      %3682 = vmatprep.mubr.bf16.mxu0 0
      %3683 = vmatmul.mubr.bf16.gmra.mxu0 %v2327
      %v3684 = vpop.f32.mrf.mxu0
      %v3685 = vadd.f32 0.0, %v3684
      %v3686 = vpop.f32.mrf.mxu0
      %v3687 = vpop.f32.mrf.mxu0
      %v3688 = vadd.f32 0.0, %v3687
      %v3689 = vpop.f32.mrf.mxu0
      %3690 = vmatprep.mubr.bf16.mxu0 0
      %3691 = vmatmul.mubr.bf16.gmra.mxu0 %v2328
      %v3692 = vpop.f32.mrf.mxu0
      %v3693 = vadd.f32 0.0, %v3692
      %v3694 = vpop.f32.mrf.mxu0
      %v3695 = vpop.f32.mrf.mxu0
      %v3696 = vadd.f32 0.0, %v3695
      %v3697 = vpop.f32.mrf.mxu0
      %3698 = vmatprep.mubr.bf16.mxu0 0
      %3699 = vmatmul.mubr.bf16.gmra.mxu0 %v2329
      %v3700 = vpop.f32.mrf.mxu0
      %v3701 = vadd.f32 0.0, %v3700
      %v3702 = vpop.f32.mrf.mxu0
      %v3703 = vpop.f32.mrf.mxu0
      %v3704 = vadd.f32 0.0, %v3703
      %v3705 = vpop.f32.mrf.mxu0
      %3706 = vmatprep.mubr.bf16.mxu0 0
      %3707 = vmatmul.mubr.bf16.gmra.mxu0 %v2330
      %v3708 = vpop.f32.mrf.mxu0
      %v3709 = vadd.f32 0.0, %v3708
      %v3710 = vpop.f32.mrf.mxu0
      %v3711 = vpop.f32.mrf.mxu0
      %v3712 = vadd.f32 0.0, %v3711
      %v3713 = vpop.f32.mrf.mxu0
      %3714 = vmatprep.mubr.bf16.mxu0 0
      %3715 = vmatmul.mubr.bf16.gmra.mxu0 %v2331
      %v3716 = vpop.f32.mrf.mxu0
      %v3717 = vadd.f32 0.0, %v3716
      %v3718 = vpop.f32.mrf.mxu0
      %v3719 = vpop.f32.mrf.mxu0
      %v3720 = vadd.f32 0.0, %v3719
      %v3721 = vpop.f32.mrf.mxu0
      %3722 = vmatprep.mubr.bf16.mxu0 0
      %3723 = vmatmul.mubr.bf16.gmra.mxu0 %v2332
      %v3724 = vpop.f32.mrf.mxu0
      %v3725 = vadd.f32 0.0, %v3724
      %v3726 = vpop.f32.mrf.mxu0
      %v3727 = vpop.f32.mrf.mxu0
      %v3728 = vadd.f32 0.0, %v3727
      %v3729 = vpop.f32.mrf.mxu0
      %3730 = vmatprep.mubr.bf16.mxu0 0
      %3731 = vmatmul.mubr.bf16.gmra.mxu0 %v2333
      %v3732 = vpop.f32.mrf.mxu0
      %v3733 = vadd.f32 0.0, %v3732
      %v3734 = vpop.f32.mrf.mxu0
      %v3735 = vpop.f32.mrf.mxu0
      %v3736 = vadd.f32 0.0, %v3735
      %v3737 = vpop.f32.mrf.mxu0
      %3738 = vmatprep.mubr.bf16.mxu0 0
      %3739 = vmatmul.mubr.bf16.gmra.mxu0 %v2334
      %v3740 = vpop.f32.mrf.mxu0
      %v3741 = vadd.f32 0.0, %v3740
      %v3742 = vpop.f32.mrf.mxu0
      %v3743 = vpop.f32.mrf.mxu0
      %v3744 = vadd.f32 0.0, %v3743
      %v3745 = vpop.f32.mrf.mxu0
      %3746 = vmatprep.mubr.bf16.mxu0 0
      %3747 = vmatmul.mubr.bf16.gmra.mxu0 %v2335
      %v3748 = vpop.f32.mrf.mxu0
      %v3749 = vadd.f32 0.0, %v3748
      %v3750 = vpop.f32.mrf.mxu0
      %v3751 = vpop.f32.mrf.mxu0
      %v3752 = vadd.f32 0.0, %v3751
      %v3753 = vpop.f32.mrf.mxu0
      %3754 = vmatprep.mubr.bf16.mxu0 0
      %3755 = vmatmul.mubr.bf16.gmra.mxu0 %v2336
      %v3756 = vpop.f32.mrf.mxu0
      %v3757 = vadd.f32 0.0, %v3756
      %v3758 = vpop.f32.mrf.mxu0
      %v3759 = vpop.f32.mrf.mxu0
      %v3760 = vadd.f32 0.0, %v3759
      %v3761 = vpop.f32.mrf.mxu0
      %3762 = vmatprep.mubr.bf16.mxu0 0
      %3763 = vmatmul.mubr.bf16.gmra.mxu0 %v2337
      %v3764 = vpop.f32.mrf.mxu0
      %v3765 = vadd.f32 0.0, %v3764
      %v3766 = vpop.f32.mrf.mxu0
      %v3767 = vpop.f32.mrf.mxu0
      %v3768 = vadd.f32 0.0, %v3767
      %v3769 = vpop.f32.mrf.mxu0
      %3770 = vmatprep.mubr.bf16.mxu0 0
      %3771 = vmatmul.mubr.bf16.gmra.mxu0 %v2338
      %v3772 = vpop.f32.mrf.mxu0
      %v3773 = vadd.f32 0.0, %v3772
      %v3774 = vpop.f32.mrf.mxu0
      %v3775 = vpop.f32.mrf.mxu0
      %v3776 = vadd.f32 0.0, %v3775
      %v3777 = vpop.f32.mrf.mxu0
      %3778 = vmatprep.mubr.bf16.mxu0 0
      %3779 = vmatmul.mubr.bf16.gmra.mxu0 %v2339
      %v3780 = vpop.f32.mrf.mxu0
      %v3781 = vadd.f32 0.0, %v3780
      %v3782 = vpop.f32.mrf.mxu0
      %v3783 = vpop.f32.mrf.mxu0
      %v3784 = vadd.f32 0.0, %v3783
      %v3785 = vpop.f32.mrf.mxu0
      %3786 = vmatprep.mubr.bf16.mxu0 0
      %3787 = vmatmul.mubr.bf16.gmra.mxu0 %v2340
      %v3788 = vpop.f32.mrf.mxu0
      %v3789 = vadd.f32 0.0, %v3788
      %v3790 = vpop.f32.mrf.mxu0
      %v3791 = vpop.f32.mrf.mxu0
      %v3792 = vadd.f32 0.0, %v3791
      %v3793 = vpop.f32.mrf.mxu0
      %3794 = vmatprep.mubr.bf16.mxu0 0
      %3795 = vmatmul.mubr.bf16.gmra.mxu0 %v2341
      %v3796 = vpop.f32.mrf.mxu0
      %v3797 = vadd.f32 0.0, %v3796
      %v3798 = vpop.f32.mrf.mxu0
      %v3799 = vpop.f32.mrf.mxu0
      %v3800 = vadd.f32 0.0, %v3799
      %v3801 = vpop.f32.mrf.mxu0
      %3802 = vmatprep.mubr.bf16.mxu0 0
      %3803 = vmatmul.mubr.bf16.gmra.mxu0 %v2342
      %v3804 = vpop.f32.mrf.mxu0
      %v3805 = vadd.f32 0.0, %v3804
      %v3806 = vpop.f32.mrf.mxu0
      %v3807 = vpop.f32.mrf.mxu0
      %v3808 = vadd.f32 0.0, %v3807
      %v3809 = vpop.f32.mrf.mxu0
      %3810 = vmatprep.mubr.bf16.mxu0 0
      %3811 = vmatmul.mubr.bf16.gmra.mxu0 %v2343
      %v3812 = vpop.f32.mrf.mxu0
      %v3813 = vadd.f32 0.0, %v3812
      %v3814 = vpop.f32.mrf.mxu0
      %v3815 = vpop.f32.mrf.mxu0
      %v3816 = vadd.f32 0.0, %v3815
      %v3817 = vpop.f32.mrf.mxu0
      %3818 = vmatprep.mubr.bf16.mxu0 0
      %3819 = vmatmul.mubr.bf16.gmra.mxu0 %v2344
      %v3820 = vpop.f32.mrf.mxu0
      %v3821 = vadd.f32 0.0, %v3820
      %v3822 = vpop.f32.mrf.mxu0
      %v3823 = vpop.f32.mrf.mxu0
      %v3824 = vadd.f32 0.0, %v3823
      %v3825 = vpop.f32.mrf.mxu0
      %3826 = vmatprep.mubr.bf16.mxu0 0
      %3827 = vmatmul.mubr.bf16.gmra.mxu0 %v2345
      %v3828 = vpop.f32.mrf.mxu0
      %v3829 = vadd.f32 0.0, %v3828
      %v3830 = vpop.f32.mrf.mxu0
      %v3831 = vpop.f32.mrf.mxu0
      %v3832 = vadd.f32 0.0, %v3831
      %v3833 = vpop.f32.mrf.mxu0
      %3834 = vmatprep.mubr.bf16.mxu0 0
      %3835 = vmatmul.mubr.bf16.gmra.mxu0 %v2346
      %v3836 = vpop.f32.mrf.mxu0
      %v3837 = vadd.f32 0.0, %v3836
      %v3838 = vpop.f32.mrf.mxu0
      %v3839 = vpop.f32.mrf.mxu0
      %v3840 = vadd.f32 0.0, %v3839
      %v3841 = vpop.f32.mrf.mxu0
      %3842 = vmatprep.mubr.bf16.mxu0 0
      %3843 = vmatmul.mubr.bf16.gmra.mxu0 %v2347
      %v3844 = vpop.f32.mrf.mxu0
      %v3845 = vadd.f32 0.0, %v3844
      %v3846 = vpop.f32.mrf.mxu0
      %v3847 = vpop.f32.mrf.mxu0
      %v3848 = vadd.f32 0.0, %v3847
      %v3849 = vpop.f32.mrf.mxu0
      %3850 = vmatprep.mubr.bf16.mxu0 0
      %3851 = vmatmul.mubr.bf16.gmra.mxu0 %v2348
      %v3852 = vpop.f32.mrf.mxu0
      %v3853 = vadd.f32 0.0, %v3852
      %v3854 = vpop.f32.mrf.mxu0
      %v3855 = vpop.f32.mrf.mxu0
      %v3856 = vadd.f32 0.0, %v3855
      %v3857 = vpop.f32.mrf.mxu0
      %3858 = vmatprep.mubr.bf16.mxu0 0
      %3859 = vmatmul.mubr.bf16.gmra.mxu0 %v2349
      %v3860 = vpop.f32.mrf.mxu0
      %v3861 = vadd.f32 0.0, %v3860
      %v3862 = vpop.f32.mrf.mxu0
      %v3863 = vpop.f32.mrf.mxu0
      %v3864 = vadd.f32 0.0, %v3863
      %v3865 = vpop.f32.mrf.mxu0
      %3866 = vmatprep.mubr.bf16.mxu0 0
      %3867 = vmatmul.mubr.bf16.gmra.mxu0 %v2350
      %v3868 = vpop.f32.mrf.mxu0
      %v3869 = vadd.f32 0.0, %v3868
      %v3870 = vpop.f32.mrf.mxu0
      %v3871 = vpop.f32.mrf.mxu0
      %v3872 = vadd.f32 0.0, %v3871
      %v3873 = vpop.f32.mrf.mxu0
      %3874 = vmatprep.mubr.bf16.mxu0 0
      %3875 = vmatmul.mubr.bf16.gmra.mxu0 %v2351
      %v3876 = vpop.f32.mrf.mxu0
      %v3877 = vadd.f32 0.0, %v3876
      %v3878 = vpop.f32.mrf.mxu0
      %v3879 = vpop.f32.mrf.mxu0
      %v3880 = vadd.f32 0.0, %v3879
      %v3881 = vpop.f32.mrf.mxu0
      %3882 = vmatprep.mubr.bf16.mxu0 0
      %3883 = vmatmul.mubr.bf16.gmra.mxu0 %v2352
      %v3884 = vpop.f32.mrf.mxu0
      %v3885 = vadd.f32 0.0, %v3884
      %v3886 = vpop.f32.mrf.mxu0
      %v3887 = vpop.f32.mrf.mxu0
      %v3888 = vadd.f32 0.0, %v3887
      %v3889 = vpop.f32.mrf.mxu0
      %3890 = vmatprep.mubr.bf16.mxu0 0
      %3891 = vmatmul.mubr.bf16.gmra.mxu0 %v2353
      %v3892 = vpop.f32.mrf.mxu0
      %v3893 = vadd.f32 0.0, %v3892
      %v3894 = vpop.f32.mrf.mxu0
      %v3895 = vpop.f32.mrf.mxu0
      %v3896 = vadd.f32 0.0, %v3895
      %v3897 = vpop.f32.mrf.mxu0
      %3898 = vmatprep.mubr.bf16.mxu0 0
      %3899 = vmatmul.mubr.bf16.gmra.mxu0 %v2354
      %v3900 = vpop.f32.mrf.mxu0
      %v3901 = vadd.f32 0.0, %v3900
      %v3902 = vpop.f32.mrf.mxu0
      %v3903 = vpop.f32.mrf.mxu0
      %v3904 = vadd.f32 0.0, %v3903
      %v3905 = vpop.f32.mrf.mxu0
      %3906 = vmatprep.mubr.bf16.mxu0 0
      %3907 = vmatmul.mubr.bf16.gmra.mxu0 %v2355
      %v3908 = vpop.f32.mrf.mxu0
      %v3909 = vadd.f32 0.0, %v3908
      %v3910 = vpop.f32.mrf.mxu0
      %v3911 = vpop.f32.mrf.mxu0
      %v3912 = vadd.f32 0.0, %v3911
      %v3913 = vpop.f32.mrf.mxu0
      %3914 = vmatprep.mubr.bf16.mxu0 0
      %3915 = vmatmul.mubr.bf16.gmra.mxu0 %v2356
      %v3916 = vpop.f32.mrf.mxu0
      %v3917 = vadd.f32 0.0, %v3916
      %v3918 = vpop.f32.mrf.mxu0
      %v3919 = vpop.f32.mrf.mxu0
      %v3920 = vadd.f32 0.0, %v3919
      %v3921 = vpop.f32.mrf.mxu0
      %3922 = vmatprep.mubr.bf16.mxu0 0
      %3923 = vmatmul.mubr.bf16.gmra.mxu0 %v2357
      %v3924 = vpop.f32.mrf.mxu0
      %v3925 = vadd.f32 0.0, %v3924
      %v3926 = vpop.f32.mrf.mxu0
      %v3927 = vpop.f32.mrf.mxu0
      %v3928 = vadd.f32 0.0, %v3927
      %v3929 = vpop.f32.mrf.mxu0
      %3930 = vmatprep.mubr.bf16.mxu0 0
      %3931 = vmatmul.mubr.bf16.gmra.mxu0 %v2358
      %v3932 = vpop.f32.mrf.mxu0
      %v3933 = vadd.f32 0.0, %v3932
      %v3934 = vpop.f32.mrf.mxu0
      %v3935 = vpop.f32.mrf.mxu0
      %v3936 = vadd.f32 0.0, %v3935
      %v3937 = vpop.f32.mrf.mxu0
      %3938 = vmatprep.mubr.bf16.mxu0 0
      %3939 = vmatmul.mubr.bf16.gmra.mxu0 %v2359
      %v3940 = vpop.f32.mrf.mxu0
      %v3941 = vadd.f32 0.0, %v3940
      %v3942 = vpop.f32.mrf.mxu0
      %v3943 = vpop.f32.mrf.mxu0
      %v3944 = vadd.f32 0.0, %v3943
      %v3945 = vpop.f32.mrf.mxu0
      %3946 = vmatprep.mubr.bf16.mxu0 0
      %3947 = vmatmul.mubr.bf16.gmra.mxu0 %v2360
      %v3948 = vpop.f32.mrf.mxu0
      %v3949 = vadd.f32 0.0, %v3948
      %v3950 = vpop.f32.mrf.mxu0
      %v3951 = vpop.f32.mrf.mxu0
      %v3952 = vadd.f32 0.0, %v3951
      %v3953 = vpop.f32.mrf.mxu0
      %3954 = vmatprep.mubr.bf16.mxu0 0
      %3955 = vmatmul.mubr.bf16.gmra.mxu0 %v2361
      %v3956 = vpop.f32.mrf.mxu0
      %v3957 = vadd.f32 0.0, %v3956
      %v3958 = vpop.f32.mrf.mxu0
      %v3959 = vpop.f32.mrf.mxu0
      %v3960 = vadd.f32 0.0, %v3959
      %v3961 = vpop.f32.mrf.mxu0
      %3962 = vmatprep.mubr.bf16.mxu0 0
      %3963 = vmatmul.mubr.bf16.gmra.mxu0 %v2362
      %v3964 = vpop.f32.mrf.mxu0
      %v3965 = vadd.f32 0.0, %v3964
      %v3966 = vpop.f32.mrf.mxu0
      %v3967 = vpop.f32.mrf.mxu0
      %v3968 = vadd.f32 0.0, %v3967
      %v3969 = vpop.f32.mrf.mxu0
      %3970 = vmatprep.mubr.bf16.mxu0 0
      %3971 = vmatmul.mubr.bf16.gmra.mxu0 %v2363
      %v3972 = vpop.f32.mrf.mxu0
      %v3973 = vadd.f32 0.0, %v3972
      %v3974 = vpop.f32.mrf.mxu0
      %v3975 = vpop.f32.mrf.mxu0
      %v3976 = vadd.f32 0.0, %v3975
      %v3977 = vpop.f32.mrf.mxu0
      %3978 = vmatprep.mubr.bf16.mxu0 0
      %3979 = vmatmul.mubr.bf16.gmra.mxu0 %v2364
      %v3980 = vpop.f32.mrf.mxu0
      %v3981 = vadd.f32 0.0, %v3980
      %v3982 = vpop.f32.mrf.mxu0
      %v3983 = vpop.f32.mrf.mxu0
      %v3984 = vadd.f32 0.0, %v3983
      %v3985 = vpop.f32.mrf.mxu0
      %3986 = vmatprep.mubr.bf16.mxu0 0
      %3987 = vmatmul.mubr.bf16.gmra.mxu0 %v2365
      %v3988 = vpop.f32.mrf.mxu0
      %v3989 = vadd.f32 0.0, %v3988
      %v3990 = vpop.f32.mrf.mxu0
      %v3991 = vpop.f32.mrf.mxu0
      %v3992 = vadd.f32 0.0, %v3991
      %v3993 = vpop.f32.mrf.mxu0
      %3994 = vmatprep.mubr.bf16.mxu0 0
      %3995 = vmatmul.mubr.bf16.gmra.mxu0 %v2366
      %v3996 = vpop.f32.mrf.mxu0
      %v3997 = vadd.f32 0.0, %v3996
      %v3998 = vpop.f32.mrf.mxu0
      %v3999 = vpop.f32.mrf.mxu0
      %v4000 = vadd.f32 0.0, %v3999
      %v4001 = vpop.f32.mrf.mxu0
      %4002 = vmatprep.mubr.bf16.mxu0 0
      %4003 = vmatmul.mubr.bf16.gmra.mxu0 %v2367
      %v4004 = vpop.f32.mrf.mxu0
      %v4005 = vadd.f32 0.0, %v4004
      %v4006 = vpop.f32.mrf.mxu0
      %v4007 = vpop.f32.mrf.mxu0
      %v4008 = vadd.f32 0.0, %v4007
      %v4009 = vpop.f32.mrf.mxu0
      %4010 = vmatprep.mubr.bf16.mxu0 0
      %4011 = vmatmul.mubr.bf16.gmra.mxu0 %v2368
      %v4012 = vpop.f32.mrf.mxu0
      %v4013 = vadd.f32 0.0, %v4012
      %v4014 = vpop.f32.mrf.mxu0
      %v4015 = vpop.f32.mrf.mxu0
      %v4016 = vadd.f32 0.0, %v4015
      %v4017 = vpop.f32.mrf.mxu0
      %4018 = vmatprep.mubr.bf16.mxu0 0
      %4019 = vmatmul.mubr.bf16.gmra.mxu0 %v2369
      %v4020 = vpop.f32.mrf.mxu0
      %v4021 = vadd.f32 0.0, %v4020
      %v4022 = vpop.f32.mrf.mxu0
      %v4023 = vpop.f32.mrf.mxu0
      %v4024 = vadd.f32 0.0, %v4023
      %v4025 = vpop.f32.mrf.mxu0
      %4026 = vmatprep.mubr.bf16.mxu0 0
      %4027 = vmatmul.mubr.bf16.gmra.mxu0 %v2370
      %v4028 = vpop.f32.mrf.mxu0
      %v4029 = vadd.f32 0.0, %v4028
      %v4030 = vpop.f32.mrf.mxu0
      %v4031 = vpop.f32.mrf.mxu0
      %v4032 = vadd.f32 0.0, %v4031
      %v4033 = vpop.f32.mrf.mxu0
      %4034 = vmatprep.mubr.bf16.mxu0 0
      %4035 = vmatmul.mubr.bf16.gmra.mxu0 %v2371
      %v4036 = vpop.f32.mrf.mxu0
      %v4037 = vadd.f32 0.0, %v4036
      %v4038 = vpop.f32.mrf.mxu0
      %v4039 = vpop.f32.mrf.mxu0
      %v4040 = vadd.f32 0.0, %v4039
      %v4041 = vpop.f32.mrf.mxu0
      %4042 = vmatprep.mubr.bf16.mxu0 0
      %4043 = vmatmul.mubr.bf16.gmra.mxu0 %v2372
      %v4044 = vpop.f32.mrf.mxu0
      %v4045 = vadd.f32 0.0, %v4044
      %v4046 = vpop.f32.mrf.mxu0
      %v4047 = vpop.f32.mrf.mxu0
      %v4048 = vadd.f32 0.0, %v4047
      %v4049 = vpop.f32.mrf.mxu0
      %4050 = vmatprep.mubr.bf16.mxu0 0
      %4051 = vmatmul.mubr.bf16.gmra.mxu0 %v2373
      %v4052 = vpop.f32.mrf.mxu0
      %v4053 = vadd.f32 0.0, %v4052
      %v4054 = vpop.f32.mrf.mxu0
      %v4055 = vpop.f32.mrf.mxu0
      %v4056 = vadd.f32 0.0, %v4055
      %v4057 = vpop.f32.mrf.mxu0
      %4058 = vmatprep.mubr.bf16.mxu0 0
      %4059 = vmatmul.mubr.bf16.gmra.mxu0 %v2374
      %v4060 = vpop.f32.mrf.mxu0
      %v4061 = vadd.f32 0.0, %v4060
      %v4062 = vpop.f32.mrf.mxu0
      %v4063 = vpop.f32.mrf.mxu0
      %v4064 = vadd.f32 0.0, %v4063
      %v4065 = vpop.f32.mrf.mxu0
      %4066 = vmatprep.mubr.bf16.mxu0 0
      %4067 = vmatmul.mubr.bf16.gmra.mxu0 %v2375
      %v4068 = vpop.f32.mrf.mxu0
      %v4069 = vadd.f32 0.0, %v4068
      %v4070 = vpop.f32.mrf.mxu0
      %v4071 = vpop.f32.mrf.mxu0
      %v4072 = vadd.f32 0.0, %v4071
      %v4073 = vpop.f32.mrf.mxu0
      %4074 = vmatprep.mubr.bf16.mxu0 0
      %4075 = vmatmul.mubr.bf16.gmra.mxu0 %v2376
      %v4076 = vpop.f32.mrf.mxu0
      %v4077 = vadd.f32 0.0, %v4076
      %v4078 = vpop.f32.mrf.mxu0
      %v4079 = vpop.f32.mrf.mxu0
      %v4080 = vadd.f32 0.0, %v4079
      %v4081 = vpop.f32.mrf.mxu0
      %4082 = vmatprep.mubr.bf16.mxu0 0
      %4083 = vmatmul.mubr.bf16.gmra.mxu0 %v2377
      %v4084 = vpop.f32.mrf.mxu0
      %v4085 = vadd.f32 0.0, %v4084
      %v4086 = vpop.f32.mrf.mxu0
      %v4087 = vpop.f32.mrf.mxu0
      %v4088 = vadd.f32 0.0, %v4087
      %v4089 = vpop.f32.mrf.mxu0
      %4090 = vmatprep.mubr.bf16.mxu0 0
      %4091 = vmatmul.mubr.bf16.gmra.mxu0 %v2378
      %v4092 = vpop.f32.mrf.mxu0
      %v4093 = vadd.f32 0.0, %v4092
      %v4094 = vpop.f32.mrf.mxu0
      %v4095 = vpop.f32.mrf.mxu0
      %v4096 = vadd.f32 0.0, %v4095
      %v4097 = vpop.f32.mrf.mxu0
      %4098 = vmatprep.mubr.bf16.mxu0 0
      %4099 = vmatmul.mubr.bf16.gmra.mxu0 %v2379
      %v4100 = vpop.f32.mrf.mxu0
      %v4101 = vadd.f32 0.0, %v4100
      %v4102 = vpop.f32.mrf.mxu0
      %v4103 = vpop.f32.mrf.mxu0
      %v4104 = vadd.f32 0.0, %v4103
      %v4105 = vpop.f32.mrf.mxu0
      %4106 = vmatprep.mubr.bf16.mxu0 0
      %4107 = vmatmul.mubr.bf16.gmra.mxu0 %v2380
      %v4108 = vpop.f32.mrf.mxu0
      %v4109 = vadd.f32 0.0, %v4108
      %v4110 = vpop.f32.mrf.mxu0
      %v4111 = vpop.f32.mrf.mxu0
      %v4112 = vadd.f32 0.0, %v4111
      %v4113 = vpop.f32.mrf.mxu0
      %4114 = vmatprep.mubr.bf16.mxu0 0
      %4115 = vmatmul.mubr.bf16.gmra.mxu0 %v2381
      %v4116 = vpop.f32.mrf.mxu0
      %v4117 = vadd.f32 0.0, %v4116
      %v4118 = vpop.f32.mrf.mxu0
      %v4119 = vpop.f32.mrf.mxu0
      %v4120 = vadd.f32 0.0, %v4119
      %v4121 = vpop.f32.mrf.mxu0
      %4122 = vmatprep.mubr.bf16.mxu0 0
      %4123 = vmatmul.mubr.bf16.gmra.mxu0 %v2382
      %v4124 = vpop.f32.mrf.mxu0
      %v4125 = vadd.f32 0.0, %v4124
      %v4126 = vpop.f32.mrf.mxu0
      %v4127 = vpop.f32.mrf.mxu0
      %v4128 = vadd.f32 0.0, %v4127
      %v4129 = vpop.f32.mrf.mxu0
      %4130 = vmatprep.mubr.bf16.mxu0 0
      %4131 = vmatmul.mubr.bf16.gmra.mxu0 %v2383
      %v4132 = vpop.f32.mrf.mxu0
      %v4133 = vadd.f32 0.0, %v4132
      %v4134 = vpop.f32.mrf.mxu0
      %v4135 = vpop.f32.mrf.mxu0
      %v4136 = vadd.f32 0.0, %v4135
      %v4137 = vpop.f32.mrf.mxu0
      %4138 = vmatprep.mubr.bf16.mxu0 0
      %4139 = vmatmul.mubr.bf16.gmra.mxu0 %v2384
      %v4140 = vpop.f32.mrf.mxu0
      %v4141 = vadd.f32 0.0, %v4140
      %v4142 = vpop.f32.mrf.mxu0
      %v4143 = vpop.f32.mrf.mxu0
      %v4144 = vadd.f32 0.0, %v4143
      %v4145 = vpop.f32.mrf.mxu0
      %4146 = vmatprep.mubr.bf16.mxu0 0
      %4147 = vmatmul.mubr.bf16.gmra.mxu0 %v2385
      %v4148 = vpop.f32.mrf.mxu0
      %v4149 = vadd.f32 0.0, %v4148
      %v4150 = vpop.f32.mrf.mxu0
      %v4151 = vpop.f32.mrf.mxu0
      %v4152 = vadd.f32 0.0, %v4151
      %v4153 = vpop.f32.mrf.mxu0
      %4154 = vmatprep.mubr.bf16.mxu0 0
      %4155 = vmatmul.mubr.bf16.gmra.mxu0 %v2386
      %v4156 = vpop.f32.mrf.mxu0
      %v4157 = vadd.f32 0.0, %v4156
      %v4158 = vpop.f32.mrf.mxu0
      %v4159 = vpop.f32.mrf.mxu0
      %v4160 = vadd.f32 0.0, %v4159
      %v4161 = vpop.f32.mrf.mxu0
      %4162 = vmatprep.mubr.bf16.mxu0 0
      %4163 = vmatmul.mubr.bf16.gmra.mxu0 %v2387
      %v4164 = vpop.f32.mrf.mxu0
      %v4165 = vadd.f32 0.0, %v4164
      %v4166 = vpop.f32.mrf.mxu0
      %v4167 = vpop.f32.mrf.mxu0
      %v4168 = vadd.f32 0.0, %v4167
      %v4169 = vpop.f32.mrf.mxu0
      %4170 = vmatprep.mubr.bf16.mxu0 0
      %4171 = vmatmul.mubr.bf16.gmra.mxu0 %v2388
      %v4172 = vpop.f32.mrf.mxu0
      %v4173 = vadd.f32 0.0, %v4172
      %v4174 = vpop.f32.mrf.mxu0
      %v4175 = vpop.f32.mrf.mxu0
      %v4176 = vadd.f32 0.0, %v4175
      %v4177 = vpop.f32.mrf.mxu0
      %4178 = vmatprep.mubr.bf16.mxu0 0
      %4179 = vmatmul.mubr.bf16.gmra.mxu0 %v2389
      %v4180 = vpop.f32.mrf.mxu0
      %v4181 = vadd.f32 0.0, %v4180
      %v4182 = vpop.f32.mrf.mxu0
      %v4183 = vpop.f32.mrf.mxu0
      %v4184 = vadd.f32 0.0, %v4183
      %v4185 = vpop.f32.mrf.mxu0
      %4186 = vmatprep.mubr.bf16.mxu0 0
      %4187 = vmatmul.mubr.bf16.gmra.mxu0 %v2390
      %v4188 = vpop.f32.mrf.mxu0
      %v4189 = vadd.f32 0.0, %v4188
      %v4190 = vpop.f32.mrf.mxu0
      %v4191 = vpop.f32.mrf.mxu0
      %v4192 = vadd.f32 0.0, %v4191
      %v4193 = vpop.f32.mrf.mxu0
      %4194 = vmatprep.mubr.bf16.mxu0 0
      %4195 = vmatmul.mubr.bf16.gmra.mxu0 %v2391
      %v4196 = vpop.f32.mrf.mxu0
      %v4197 = vadd.f32 0.0, %v4196
      %v4198 = vpop.f32.mrf.mxu0
      %v4199 = vpop.f32.mrf.mxu0
      %v4200 = vadd.f32 0.0, %v4199
      %v4201 = vpop.f32.mrf.mxu0
      %4202 = vmatprep.mubr.bf16.mxu0 0
      %4203 = vmatmul.mubr.bf16.gmra.mxu0 %v2392
      %v4204 = vpop.f32.mrf.mxu0
      %v4205 = vadd.f32 0.0, %v4204
      %v4206 = vpop.f32.mrf.mxu0
      %v4207 = vpop.f32.mrf.mxu0
      %v4208 = vadd.f32 0.0, %v4207
      %v4209 = vpop.f32.mrf.mxu0
      %4210 = vmatprep.mubr.bf16.mxu0 0
      %4211 = vmatmul.mubr.bf16.gmra.mxu0 %v2393
      %v4212 = vpop.f32.mrf.mxu0
      %v4213 = vadd.f32 0.0, %v4212
      %v4214 = vpop.f32.mrf.mxu0
      %v4215 = vpop.f32.mrf.mxu0
      %v4216 = vadd.f32 0.0, %v4215
      %v4217 = vpop.f32.mrf.mxu0
      %4218 = vmatprep.mubr.bf16.mxu0 0
      %4219 = vmatmul.mubr.bf16.gmra.mxu0 %v2394
      %v4220 = vpop.f32.mrf.mxu0
      %v4221 = vadd.f32 0.0, %v4220
      %v4222 = vpop.f32.mrf.mxu0
      %v4223 = vpop.f32.mrf.mxu0
      %v4224 = vadd.f32 0.0, %v4223
      %v4225 = vpop.f32.mrf.mxu0
      %4226 = vmatprep.mubr.bf16.mxu0 0
      %4227 = vmatmul.mubr.bf16.gmra.mxu0 %v2395
      %v4228 = vpop.f32.mrf.mxu0
      %v4229 = vadd.f32 0.0, %v4228
      %v4230 = vpop.f32.mrf.mxu0
      %v4231 = vpop.f32.mrf.mxu0
      %v4232 = vadd.f32 0.0, %v4231
      %v4233 = vpop.f32.mrf.mxu0
      %4234 = vmatprep.mubr.bf16.mxu0 0
      %4235 = vmatmul.mubr.bf16.gmra.mxu0 %v2396
      %v4236 = vpop.f32.mrf.mxu0
      %v4237 = vadd.f32 0.0, %v4236
      %v4238 = vpop.f32.mrf.mxu0
      %v4239 = vpop.f32.mrf.mxu0
      %v4240 = vadd.f32 0.0, %v4239
      %v4241 = vpop.f32.mrf.mxu0
      %4242 = vmatprep.mubr.bf16.mxu0 0
      %4243 = vmatmul.mubr.bf16.gmra.mxu0 %v2397
      %v4244 = vpop.f32.mrf.mxu0
      %v4245 = vadd.f32 0.0, %v4244
      %v4246 = vpop.f32.mrf.mxu0
      %v4247 = vpop.f32.mrf.mxu0
      %v4248 = vadd.f32 0.0, %v4247
      %v4249 = vpop.f32.mrf.mxu0
      %4250 = vmatprep.mubr.bf16.mxu0 0
      %4251 = vmatmul.mubr.bf16.gmra.mxu0 %v2398
      %v4252 = vpop.f32.mrf.mxu0
      %v4253 = vadd.f32 0.0, %v4252
      %v4254 = vpop.f32.mrf.mxu0
      %v4255 = vpop.f32.mrf.mxu0
      %v4256 = vadd.f32 0.0, %v4255
      %v4257 = vpop.f32.mrf.mxu0
      %4258 = vmatprep.mubr.bf16.mxu0 0
      %4259 = vmatmul.mubr.bf16.gmra.mxu0 %v2399
      %v4260 = vpop.f32.mrf.mxu0
      %v4261 = vadd.f32 0.0, %v4260
      %v4262 = vpop.f32.mrf.mxu0
      %v4263 = vpop.f32.mrf.mxu0
      %v4264 = vadd.f32 0.0, %v4263
      %v4265 = vpop.f32.mrf.mxu0
      %4266 = vmatprep.mubr.bf16.mxu0 0
      %4267 = vmatmul.mubr.bf16.gmra.mxu0 %v2400
      %v4268 = vpop.f32.mrf.mxu0
      %v4269 = vadd.f32 0.0, %v4268
      %v4270 = vpop.f32.mrf.mxu0
      %v4271 = vpop.f32.mrf.mxu0
      %v4272 = vadd.f32 0.0, %v4271
      %v4273 = vpop.f32.mrf.mxu0
      %4274 = vmatprep.mubr.bf16.mxu0 0
      %4275 = vmatmul.mubr.bf16.gmra.mxu0 %v2401
      %v4276 = vpop.f32.mrf.mxu0
      %v4277 = vadd.f32 0.0, %v4276
      %v4278 = vpop.f32.mrf.mxu0
      %v4279 = vpop.f32.mrf.mxu0
      %v4280 = vadd.f32 0.0, %v4279
      %v4281 = vpop.f32.mrf.mxu0
      %4282 = vmatprep.mubr.bf16.mxu0 0
      %4283 = vmatmul.mubr.bf16.gmra.mxu0 %v2402
      %v4284 = vpop.f32.mrf.mxu0
      %v4285 = vadd.f32 0.0, %v4284
      %v4286 = vpop.f32.mrf.mxu0
      %v4287 = vpop.f32.mrf.mxu0
      %v4288 = vadd.f32 0.0, %v4287
      %v4289 = vpop.f32.mrf.mxu0
      %4290 = vmatprep.mubr.bf16.mxu0 0
      %4291 = vmatmul.mubr.bf16.gmra.mxu0 %v2403
      %v4292 = vpop.f32.mrf.mxu0
      %v4293 = vadd.f32 0.0, %v4292
      %v4294 = vpop.f32.mrf.mxu0
      %v4295 = vpop.f32.mrf.mxu0
      %v4296 = vadd.f32 0.0, %v4295
      %v4297 = vpop.f32.mrf.mxu0
      %4298 = vmatprep.mubr.bf16.mxu0 0
      %4299 = vmatmul.mubr.bf16.gmra.mxu0 %v2404
      %v4300 = vpop.f32.mrf.mxu0
      %v4301 = vadd.f32 0.0, %v4300
      %v4302 = vpop.f32.mrf.mxu0
      %v4303 = vpop.f32.mrf.mxu0
      %v4304 = vadd.f32 0.0, %v4303
      %v4305 = vpop.f32.mrf.mxu0
      %4306 = vmatprep.mubr.bf16.mxu0 0
      %4307 = vmatmul.mubr.bf16.gmra.mxu0 %v2405
      %v4308 = vpop.f32.mrf.mxu0
      %v4309 = vadd.f32 0.0, %v4308
      %v4310 = vpop.f32.mrf.mxu0
      %v4311 = vpop.f32.mrf.mxu0
      %v4312 = vadd.f32 0.0, %v4311
      %v4313 = vpop.f32.mrf.mxu0
      %4314 = vmatprep.mubr.bf16.mxu0 0
      %4315 = vmatmul.mubr.bf16.gmra.mxu0 %v2406
      %v4316 = vpop.f32.mrf.mxu0
      %v4317 = vadd.f32 0.0, %v4316
      %v4318 = vpop.f32.mrf.mxu0
      %v4319 = vpop.f32.mrf.mxu0
      %v4320 = vadd.f32 0.0, %v4319
      %v4321 = vpop.f32.mrf.mxu0
      %4322 = vmatprep.mubr.bf16.mxu0 0
      %4323 = vmatmul.mubr.bf16.gmra.mxu0 %v2407
      %v4324 = vpop.f32.mrf.mxu0
      %v4325 = vadd.f32 0.0, %v4324
      %v4326 = vpop.f32.mrf.mxu0
      %v4327 = vpop.f32.mrf.mxu0
      %v4328 = vadd.f32 0.0, %v4327
      %v4329 = vpop.f32.mrf.mxu0
      %4330 = vmatprep.mubr.bf16.mxu0 0
      %4331 = vmatmul.mubr.bf16.gmra.mxu0 %v2408
      %v4332 = vpop.f32.mrf.mxu0
      %v4333 = vadd.f32 0.0, %v4332
      %v4334 = vpop.f32.mrf.mxu0
      %v4335 = vpop.f32.mrf.mxu0
      %v4336 = vadd.f32 0.0, %v4335
      %v4337 = vpop.f32.mrf.mxu0
      %4338 = vmatprep.mubr.bf16.mxu0 0
      %4339 = vmatmul.mubr.bf16.gmra.mxu0 %v2409
      %v4340 = vpop.f32.mrf.mxu0
      %v4341 = vadd.f32 0.0, %v4340
      %v4342 = vpop.f32.mrf.mxu0
      %v4343 = vpop.f32.mrf.mxu0
      %v4344 = vadd.f32 0.0, %v4343
      %v4345 = vpop.f32.mrf.mxu0
      %4346 = vmatprep.mubr.bf16.mxu0 0
      %4347 = vmatmul.mubr.bf16.gmra.mxu0 %v2410
      %v4348 = vpop.f32.mrf.mxu0
      %v4349 = vadd.f32 0.0, %v4348
      %v4350 = vpop.f32.mrf.mxu0
      %v4351 = vpop.f32.mrf.mxu0
      %v4352 = vadd.f32 0.0, %v4351
      %v4353 = vpop.f32.mrf.mxu0
      %4354 = vmatprep.mubr.bf16.mxu0 0
      %4355 = vmatmul.mubr.bf16.gmra.mxu0 %v2411
      %v4356 = vpop.f32.mrf.mxu0
      %v4357 = vadd.f32 0.0, %v4356
      %v4358 = vpop.f32.mrf.mxu0
      %v4359 = vpop.f32.mrf.mxu0
      %v4360 = vadd.f32 0.0, %v4359
      %v4361 = vpop.f32.mrf.mxu0
      %4362 = vmatprep.mubr.bf16.mxu0 0
      %4363 = vmatmul.mubr.bf16.gmra.mxu0 %v2412
      %v4364 = vpop.f32.mrf.mxu0
      %v4365 = vadd.f32 0.0, %v4364
      %v4366 = vpop.f32.mrf.mxu0
      %v4367 = vpop.f32.mrf.mxu0
      %v4368 = vadd.f32 0.0, %v4367
      %v4369 = vpop.f32.mrf.mxu0
      %4370 = vmatprep.mubr.bf16.mxu0 0
      %4371 = vmatmul.mubr.bf16.gmra.mxu0 %v2413
      %v4372 = vpop.f32.mrf.mxu0
      %v4373 = vadd.f32 0.0, %v4372
      %v4374 = vpop.f32.mrf.mxu0
      %v4375 = vpop.f32.mrf.mxu0
      %v4376 = vadd.f32 0.0, %v4375
      %v4377 = vpop.f32.mrf.mxu0
      %4378 = vmatprep.mubr.bf16.mxu0 0
      %4379 = vmatmul.mubr.bf16.gmra.mxu0 %v2414
      %v4380 = vpop.f32.mrf.mxu0
      %v4381 = vadd.f32 0.0, %v4380
      %v4382 = vpop.f32.mrf.mxu0
      %v4383 = vpop.f32.mrf.mxu0
      %v4384 = vadd.f32 0.0, %v4383
      %v4385 = vpop.f32.mrf.mxu0
      %4386 = vmatprep.mubr.bf16.mxu0 0
      %4387 = vmatmul.mubr.bf16.gmra.mxu0 %v2415
      %v4388 = vpop.f32.mrf.mxu0
      %v4389 = vadd.f32 0.0, %v4388
      %v4390 = vpop.f32.mrf.mxu0
      %v4391 = vpop.f32.mrf.mxu0
      %v4392 = vadd.f32 0.0, %v4391
      %v4393 = vpop.f32.mrf.mxu0
      %4394 = vmatprep.mubr.bf16.mxu0 0
      %4395 = vmatmul.mubr.bf16.gmra.mxu0 %v2416
      %v4396 = vpop.f32.mrf.mxu0
      %v4397 = vadd.f32 0.0, %v4396
      %v4398 = vpop.f32.mrf.mxu0
      %v4399 = vpop.f32.mrf.mxu0
      %v4400 = vadd.f32 0.0, %v4399
      %v4401 = vpop.f32.mrf.mxu0
      %4402 = vmatprep.mubr.bf16.mxu0 0
      %4403 = vmatmul.mubr.bf16.gmra.mxu0 %v2417
      %v4404 = vpop.f32.mrf.mxu0
      %v4405 = vadd.f32 0.0, %v4404
      %v4406 = vpop.f32.mrf.mxu0
      %v4407 = vpop.f32.mrf.mxu0
      %v4408 = vadd.f32 0.0, %v4407
      %v4409 = vpop.f32.mrf.mxu0
      %4410 = vmatprep.mubr.bf16.mxu0 0
      %4411 = vmatmul.mubr.bf16.gmra.mxu0 %v2418
      %v4412 = vpop.f32.mrf.mxu0
      %v4413 = vadd.f32 0.0, %v4412
      %v4414 = vpop.f32.mrf.mxu0
      %v4415 = vpop.f32.mrf.mxu0
      %v4416 = vadd.f32 0.0, %v4415
      %v4417 = vpop.f32.mrf.mxu0
      %4418 = vmatprep.mubr.bf16.mxu0 0
      %4419 = vmatmul.mubr.bf16.gmra.mxu0 %v2419
      %v4420 = vpop.f32.mrf.mxu0
      %v4421 = vadd.f32 0.0, %v4420
      %v4422 = vpop.f32.mrf.mxu0
      %v4423 = vpop.f32.mrf.mxu0
      %v4424 = vadd.f32 0.0, %v4423
      %v4425 = vpop.f32.mrf.mxu0
      %4426 = vmatprep.mubr.bf16.mxu0 0
      %4427 = vmatmul.mubr.bf16.gmra.mxu0 %v2420
      %v4428 = vpop.f32.mrf.mxu0
      %v4429 = vadd.f32 0.0, %v4428
      %v4430 = vpop.f32.mrf.mxu0
      %v4431 = vpop.f32.mrf.mxu0
      %v4432 = vadd.f32 0.0, %v4431
      %v4433 = vpop.f32.mrf.mxu0
      %4434 = vmatprep.mubr.bf16.mxu0 0
      %4435 = vmatmul.mubr.bf16.gmra.mxu0 %v2421
      %v4436 = vpop.f32.mrf.mxu0
      %v4437 = vadd.f32 0.0, %v4436
      %v4438 = vpop.f32.mrf.mxu0
      %v4439 = vpop.f32.mrf.mxu0
      %v4440 = vadd.f32 0.0, %v4439
      %v4441 = vpop.f32.mrf.mxu0
      %4442 = vmatprep.mubr.bf16.mxu0 0
      %4443 = vmatmul.mubr.bf16.gmra.mxu0 %v2422
      %v4444 = vpop.f32.mrf.mxu0
      %v4445 = vadd.f32 0.0, %v4444
      %v4446 = vpop.f32.mrf.mxu0
      %v4447 = vpop.f32.mrf.mxu0
      %v4448 = vadd.f32 0.0, %v4447
      %v4449 = vpop.f32.mrf.mxu0
      %4450 = vmatprep.mubr.bf16.mxu0 0
      %4451 = vmatmul.mubr.bf16.gmra.mxu0 %v2423
      %v4452 = vpop.f32.mrf.mxu0
      %v4453 = vadd.f32 0.0, %v4452
      %v4454 = vpop.f32.mrf.mxu0
      %v4455 = vpop.f32.mrf.mxu0
      %v4456 = vadd.f32 0.0, %v4455
      %v4457 = vpop.f32.mrf.mxu0
      %4458 = vmatprep.mubr.bf16.mxu0 0
      %4459 = vmatmul.mubr.bf16.gmra.mxu0 %v2424
      %v4460 = vpop.f32.mrf.mxu0
      %v4461 = vadd.f32 0.0, %v4460
      %v4462 = vpop.f32.mrf.mxu0
      %v4463 = vpop.f32.mrf.mxu0
      %v4464 = vadd.f32 0.0, %v4463
      %v4465 = vpop.f32.mrf.mxu0
      %4466 = vmatprep.mubr.bf16.mxu0 0
      %4467 = vmatmul.mubr.bf16.gmra.mxu0 %v2425
      %v4468 = vpop.f32.mrf.mxu0
      %v4469 = vadd.f32 0.0, %v4468
      %v4470 = vpop.f32.mrf.mxu0
      %v4471 = vpop.f32.mrf.mxu0
      %v4472 = vadd.f32 0.0, %v4471
      %v4473 = vpop.f32.mrf.mxu0
      %4474 = vmatprep.mubr.bf16.mxu0 0
      %4475 = vmatmul.mubr.bf16.gmra.mxu0 %v2426
      %v4476 = vpop.f32.mrf.mxu0
      %v4477 = vadd.f32 0.0, %v4476
      %v4478 = vpop.f32.mrf.mxu0
      %v4479 = vpop.f32.mrf.mxu0
      %v4480 = vadd.f32 0.0, %v4479
      %v4481 = vpop.f32.mrf.mxu0
      %4482 = vmatprep.mubr.bf16.mxu0 0
      %4483 = vmatmul.mubr.bf16.gmra.mxu0 %v2427
      %v4484 = vpop.f32.mrf.mxu0
      %v4485 = vadd.f32 0.0, %v4484
      %v4486 = vpop.f32.mrf.mxu0
      %v4487 = vpop.f32.mrf.mxu0
      %v4488 = vadd.f32 0.0, %v4487
      %v4489 = vpop.f32.mrf.mxu0
      %4490 = vmatprep.mubr.bf16.mxu0 0
      %4491 = vmatmul.mubr.bf16.gmra.mxu0 %v2428
      %v4492 = vpop.f32.mrf.mxu0
      %v4493 = vadd.f32 0.0, %v4492
      %v4494 = vpop.f32.mrf.mxu0
      %v4495 = vpop.f32.mrf.mxu0
      %v4496 = vadd.f32 0.0, %v4495
      %v4497 = vpop.f32.mrf.mxu0
      %4498 = vmatprep.mubr.bf16.mxu0 0
      %4499 = vmatmul.mubr.bf16.gmra.mxu0 %v2429
      %v4500 = vpop.f32.mrf.mxu0
      %v4501 = vadd.f32 0.0, %v4500
      %v4502 = vpop.f32.mrf.mxu0
      %v4503 = vpop.f32.mrf.mxu0
      %v4504 = vadd.f32 0.0, %v4503
      %v4505 = vpop.f32.mrf.mxu0
      %4506 = vmatprep.mubr.bf16.mxu0 0
      %4507 = vmatmul.mubr.bf16.gmra.mxu0 %v2430
      %v4508 = vpop.f32.mrf.mxu0
      %v4509 = vadd.f32 0.0, %v4508
      %v4510 = vpop.f32.mrf.mxu0
      %v4511 = vpop.f32.mrf.mxu0
      %v4512 = vadd.f32 0.0, %v4511
      %v4513 = vpop.f32.mrf.mxu0
      %4514 = vmatprep.mubr.bf16.mxu0 0
      %4515 = vmatmul.mubr.bf16.gmra.mxu0 %v2431
      %v4516 = vpop.f32.mrf.mxu0
      %v4517 = vadd.f32 0.0, %v4516
      %v4518 = vpop.f32.mrf.mxu0
      %v4519 = vpop.f32.mrf.mxu0
      %v4520 = vadd.f32 0.0, %v4519
      %v4521 = vpop.f32.mrf.mxu0
      %4522 = vmatprep.mubr.bf16.mxu0 0
      %4523 = vmatmul.mubr.bf16.gmra.mxu0 %v2432
      %v4524 = vpop.f32.mrf.mxu0
      %v4525 = vadd.f32 0.0, %v4524
      %v4526 = vpop.f32.mrf.mxu0
      %v4527 = vpop.f32.mrf.mxu0
      %v4528 = vadd.f32 0.0, %v4527
      %v4529 = vpop.f32.mrf.mxu0
      %4530 = vmatprep.mubr.bf16.mxu0 0
      %4531 = vmatmul.mubr.bf16.gmra.mxu0 %v2433
      %v4532 = vpop.f32.mrf.mxu0
      %v4533 = vadd.f32 0.0, %v4532
      %v4534 = vpop.f32.mrf.mxu0
      %v4535 = vpop.f32.mrf.mxu0
      %v4536 = vadd.f32 0.0, %v4535
      %v4537 = vpop.f32.mrf.mxu0
      %4538 = vmatprep.mubr.bf16.mxu0 0
      %4539 = vmatmul.mubr.bf16.gmra.mxu0 %v2434
      %v4540 = vpop.f32.mrf.mxu0
      %v4541 = vadd.f32 0.0, %v4540
      %v4542 = vpop.f32.mrf.mxu0
      %v4543 = vpop.f32.mrf.mxu0
      %v4544 = vadd.f32 0.0, %v4543
      %v4545 = vpop.f32.mrf.mxu0
      %4546 = vmatprep.mubr.bf16.mxu0 0
      %4547 = vmatmul.mubr.bf16.gmra.mxu0 %v2435
      %v4548 = vpop.f32.mrf.mxu0
      %v4549 = vadd.f32 0.0, %v4548
      %v4550 = vpop.f32.mrf.mxu0
      %v4551 = vpop.f32.mrf.mxu0
      %v4552 = vadd.f32 0.0, %v4551
      %v4553 = vpop.f32.mrf.mxu0
      %4554 = vmatprep.mubr.bf16.mxu0 0
      %4555 = vmatmul.mubr.bf16.gmra.mxu0 %v2436
      %v4556 = vpop.f32.mrf.mxu0
      %v4557 = vadd.f32 0.0, %v4556
      %v4558 = vpop.f32.mrf.mxu0
      %v4559 = vpop.f32.mrf.mxu0
      %v4560 = vadd.f32 0.0, %v4559
      %v4561 = vpop.f32.mrf.mxu0
      %4562 = vmatprep.mubr.bf16.mxu0 0
      %4563 = vmatmul.mubr.bf16.gmra.mxu0 %v2437
      %v4564 = vpop.f32.mrf.mxu0
      %v4565 = vadd.f32 0.0, %v4564
      %v4566 = vpop.f32.mrf.mxu0
      %v4567 = vpop.f32.mrf.mxu0
      %v4568 = vadd.f32 0.0, %v4567
      %v4569 = vpop.f32.mrf.mxu0
      %4570 = vmatprep.mubr.bf16.mxu0 0
      %4571 = vmatmul.mubr.bf16.gmra.mxu0 %v2438
      %v4572 = vpop.f32.mrf.mxu0
      %v4573 = vadd.f32 0.0, %v4572
      %v4574 = vpop.f32.mrf.mxu0
      %v4575 = vpop.f32.mrf.mxu0
      %v4576 = vadd.f32 0.0, %v4575
      %v4577 = vpop.f32.mrf.mxu0
      %4578 = vmatprep.mubr.bf16.mxu0 0
      %4579 = vmatmul.mubr.bf16.gmra.mxu0 %v2439
      %v4580 = vpop.f32.mrf.mxu0
      %v4581 = vadd.f32 0.0, %v4580
      %v4582 = vpop.f32.mrf.mxu0
      %v4583 = vpop.f32.mrf.mxu0
      %v4584 = vadd.f32 0.0, %v4583
      %v4585 = vpop.f32.mrf.mxu0
      %4586 = vmatprep.mubr.bf16.mxu0 0
      %4587 = vmatmul.mubr.bf16.gmra.mxu0 %v2440
      %v4588 = vpop.f32.mrf.mxu0
      %v4589 = vadd.f32 0.0, %v4588
      %v4590 = vpop.f32.mrf.mxu0
      %v4591 = vpop.f32.mrf.mxu0
      %v4592 = vadd.f32 0.0, %v4591
      %v4593 = vpop.f32.mrf.mxu0
      %4594 = vmatprep.mubr.bf16.mxu0 0
      %4595 = vmatmul.mubr.bf16.gmra.mxu0 %v2441
      %v4596 = vpop.f32.mrf.mxu0
      %v4597 = vadd.f32 0.0, %v4596
      %v4598 = vpop.f32.mrf.mxu0
      %v4599 = vpop.f32.mrf.mxu0
      %v4600 = vadd.f32 0.0, %v4599
      %v4601 = vpop.f32.mrf.mxu0
      %4602 = vmatprep.mubr.bf16.mxu0 0
      %4603 = vmatmul.mubr.bf16.gmra.mxu0 %v2442
      %v4604 = vpop.f32.mrf.mxu0
      %v4605 = vadd.f32 0.0, %v4604
      %v4606 = vpop.f32.mrf.mxu0
      %v4607 = vpop.f32.mrf.mxu0
      %v4608 = vadd.f32 0.0, %v4607
      %v4609 = vpop.f32.mrf.mxu0
      %4610 = vmatprep.mubr.bf16.mxu0 0
      %4611 = vmatmul.mubr.bf16.gmra.mxu0 %v2443
      %v4612 = vpop.f32.mrf.mxu0
      %v4613 = vadd.f32 0.0, %v4612
      %v4614 = vpop.f32.mrf.mxu0
      %v4615 = vpop.f32.mrf.mxu0
      %v4616 = vadd.f32 0.0, %v4615
      %v4617 = vpop.f32.mrf.mxu0
      %4618 = vmatprep.mubr.bf16.mxu0 0
      %4619 = vmatmul.mubr.bf16.gmra.mxu0 %v2444
      %v4620 = vpop.f32.mrf.mxu0
      %v4621 = vadd.f32 0.0, %v4620
      %v4622 = vpop.f32.mrf.mxu0
      %v4623 = vpop.f32.mrf.mxu0
      %v4624 = vadd.f32 0.0, %v4623
      %v4625 = vpop.f32.mrf.mxu0
      %4626 = vmatprep.mubr.bf16.mxu0 0
      %4627 = vmatmul.mubr.bf16.gmra.mxu0 %v2445
      %v4628 = vpop.f32.mrf.mxu0
      %v4629 = vadd.f32 0.0, %v4628
      %v4630 = vpop.f32.mrf.mxu0
      %v4631 = vpop.f32.mrf.mxu0
      %v4632 = vadd.f32 0.0, %v4631
      %v4633 = vpop.f32.mrf.mxu0
      %4634 = vmatprep.mubr.bf16.mxu0 0
      %4635 = vmatmul.mubr.bf16.gmra.mxu0 %v2446
      %v4636 = vpop.f32.mrf.mxu0
      %v4637 = vadd.f32 0.0, %v4636
      %v4638 = vpop.f32.mrf.mxu0
      %v4639 = vpop.f32.mrf.mxu0
      %v4640 = vadd.f32 0.0, %v4639
      %v4641 = vpop.f32.mrf.mxu0
      %4642 = vmatprep.mubr.bf16.mxu0 0
      %4643 = vmatmul.mubr.bf16.gmra.mxu0 %v2447
      %v4644 = vpop.f32.mrf.mxu0
      %v4645 = vadd.f32 0.0, %v4644
      %v4646 = vpop.f32.mrf.mxu0
      %v4647 = vpop.f32.mrf.mxu0
      %v4648 = vadd.f32 0.0, %v4647
      %v4649 = vpop.f32.mrf.mxu0
      %4650 = vmatprep.mubr.bf16.mxu0 0
      %4651 = vmatmul.mubr.bf16.gmra.mxu0 %v2448
      %v4652 = vpop.f32.mrf.mxu0
      %v4653 = vadd.f32 0.0, %v4652
      %v4654 = vpop.f32.mrf.mxu0
      %v4655 = vpop.f32.mrf.mxu0
      %v4656 = vadd.f32 0.0, %v4655
      %v4657 = vpop.f32.mrf.mxu0
      %4658 = vmatprep.mubr.bf16.mxu0 0
      %4659 = vmatmul.mubr.bf16.gmra.mxu0 %v2449
      %v4660 = vpop.f32.mrf.mxu0
      %v4661 = vadd.f32 0.0, %v4660
      %v4662 = vpop.f32.mrf.mxu0
      %v4663 = vpop.f32.mrf.mxu0
      %v4664 = vadd.f32 0.0, %v4663
      %v4665 = vpop.f32.mrf.mxu0
      %4666 = vmatprep.mubr.bf16.mxu0 0
      %4667 = vmatmul.mubr.bf16.gmra.mxu0 %v2450
      %v4668 = vpop.f32.mrf.mxu0
      %v4669 = vadd.f32 0.0, %v4668
      %v4670 = vpop.f32.mrf.mxu0
      %v4671 = vpop.f32.mrf.mxu0
      %v4672 = vadd.f32 0.0, %v4671
      %v4673 = vpop.f32.mrf.mxu0
      %4674 = vmatprep.mubr.bf16.mxu0 0
      %4675 = vmatmul.mubr.bf16.gmra.mxu0 %v2451
      %v4676 = vpop.f32.mrf.mxu0
      %v4677 = vadd.f32 0.0, %v4676
      %v4678 = vpop.f32.mrf.mxu0
      %v4679 = vpop.f32.mrf.mxu0
      %v4680 = vadd.f32 0.0, %v4679
      %v4681 = vpop.f32.mrf.mxu0
      %4682 = vmatprep.mubr.bf16.mxu0 0
      %4683 = vmatmul.mubr.bf16.gmra.mxu0 %v2452
      %v4684 = vpop.f32.mrf.mxu0
      %v4685 = vadd.f32 0.0, %v4684
      %v4686 = vpop.f32.mrf.mxu0
      %v4687 = vpop.f32.mrf.mxu0
      %v4688 = vadd.f32 0.0, %v4687
      %v4689 = vpop.f32.mrf.mxu0
      %4690 = vmatprep.mubr.bf16.mxu0 0
      %4691 = vmatmul.mubr.bf16.gmra.mxu0 %v2453
      %v4692 = vpop.f32.mrf.mxu0
      %v4693 = vadd.f32 0.0, %v4692
      %v4694 = vpop.f32.mrf.mxu0
      %v4695 = vpop.f32.mrf.mxu0
      %v4696 = vadd.f32 0.0, %v4695
      %v4697 = vpop.f32.mrf.mxu0
      %4698 = vmatprep.mubr.bf16.mxu0 0
      %4699 = vmatmul.mubr.bf16.gmra.mxu0 %v2454
      %v4700 = vpop.f32.mrf.mxu0
      %v4701 = vadd.f32 0.0, %v4700
      %v4702 = vpop.f32.mrf.mxu0
      %v4703 = vpop.f32.mrf.mxu0
      %v4704 = vadd.f32 0.0, %v4703
      %v4705 = vpop.f32.mrf.mxu0
      %4706 = vmatprep.mubr.bf16.mxu0 0
      %4707 = vmatmul.mubr.bf16.gmra.mxu0 %v2455
      %v4708 = vpop.f32.mrf.mxu0
      %v4709 = vadd.f32 0.0, %v4708
      %v4710 = vpop.f32.mrf.mxu0
      %v4711 = vpop.f32.mrf.mxu0
      %v4712 = vadd.f32 0.0, %v4711
      %v4713 = vpop.f32.mrf.mxu0
      %4714 = vmatprep.mubr.bf16.mxu0 0
      %4715 = vmatmul.mubr.bf16.gmra.mxu0 %v2456
      %v4716 = vpop.f32.mrf.mxu0
      %v4717 = vadd.f32 0.0, %v4716
      %v4718 = vpop.f32.mrf.mxu0
      %v4719 = vpop.f32.mrf.mxu0
      %v4720 = vadd.f32 0.0, %v4719
      %v4721 = vpop.f32.mrf.mxu0
      %4722 = vmatprep.mubr.bf16.mxu0 0
      %4723 = vmatmul.mubr.bf16.gmra.mxu0 %v2457
      %v4724 = vpop.f32.mrf.mxu0
      %v4725 = vadd.f32 0.0, %v4724
      %v4726 = vpop.f32.mrf.mxu0
      %v4727 = vpop.f32.mrf.mxu0
      %v4728 = vadd.f32 0.0, %v4727
      %v4729 = vpop.f32.mrf.mxu0
      %4730 = vmatprep.mubr.bf16.mxu0 0
      %4731 = vmatmul.mubr.bf16.gmra.mxu0 %v2458
      %v4732 = vpop.f32.mrf.mxu0
      %v4733 = vadd.f32 0.0, %v4732
      %v4734 = vpop.f32.mrf.mxu0
      %v4735 = vpop.f32.mrf.mxu0
      %v4736 = vadd.f32 0.0, %v4735
      %v4737 = vpop.f32.mrf.mxu0
      %4738 = vmatprep.mubr.bf16.mxu0 0
      %4739 = vmatmul.mubr.bf16.gmra.mxu0 %v2459
      %v4740 = vpop.f32.mrf.mxu0
      %v4741 = vadd.f32 0.0, %v4740
      %v4742 = vpop.f32.mrf.mxu0
      %v4743 = vpop.f32.mrf.mxu0
      %v4744 = vadd.f32 0.0, %v4743
      %v4745 = vpop.f32.mrf.mxu0
      %4746 = vmatprep.mubr.bf16.mxu0 0
      %4747 = vmatmul.mubr.bf16.gmra.mxu0 %v2460
      %v4748 = vpop.f32.mrf.mxu0
      %v4749 = vadd.f32 0.0, %v4748
      %v4750 = vpop.f32.mrf.mxu0
      %v4751 = vpop.f32.mrf.mxu0
      %v4752 = vadd.f32 0.0, %v4751
      %v4753 = vpop.f32.mrf.mxu0
      %4754 = vmatprep.mubr.bf16.mxu0 0
      %4755 = vmatmul.mubr.bf16.gmra.mxu0 %v2461
      %v4756 = vpop.f32.mrf.mxu0
      %v4757 = vadd.f32 0.0, %v4756
      %v4758 = vpop.f32.mrf.mxu0
      %v4759 = vpop.f32.mrf.mxu0
      %v4760 = vadd.f32 0.0, %v4759
      %v4761 = vpop.f32.mrf.mxu0
      %4762 = vmatprep.mubr.bf16.mxu0 0
      %4763 = vmatmul.mubr.bf16.gmra.mxu0 %v2462
      %v4764 = vpop.f32.mrf.mxu0
      %v4765 = vadd.f32 0.0, %v4764
      %v4766 = vpop.f32.mrf.mxu0
      %v4767 = vpop.f32.mrf.mxu0
      %v4768 = vadd.f32 0.0, %v4767
      %v4769 = vpop.f32.mrf.mxu0
      %4770 = vmatprep.mubr.bf16.mxu0 0
      %4771 = vmatmul.mubr.bf16.gmra.mxu0 %v2463
      %v4772 = vpop.f32.mrf.mxu0
      %v4773 = vadd.f32 0.0, %v4772
      %v4774 = vpop.f32.mrf.mxu0
      %v4775 = vpop.f32.mrf.mxu0
      %v4776 = vadd.f32 0.0, %v4775
      %v4777 = vpop.f32.mrf.mxu0
      %4778 = vmatprep.mubr.bf16.mxu0 0
      %4779 = vmatmul.mubr.bf16.gmra.mxu0 %v2464
      %v4780 = vpop.f32.mrf.mxu0
      %v4781 = vadd.f32 0.0, %v4780
      %v4782 = vpop.f32.mrf.mxu0
      %v4783 = vpop.f32.mrf.mxu0
      %v4784 = vadd.f32 0.0, %v4783
      %v4785 = vpop.f32.mrf.mxu0
      %4786 = vmatprep.mubr.bf16.mxu0 0
      %4787 = vmatmul.mubr.bf16.gmra.mxu0 %v2465
      %v4788 = vpop.f32.mrf.mxu0
      %v4789 = vadd.f32 0.0, %v4788
      %v4790 = vpop.f32.mrf.mxu0
      %v4791 = vpop.f32.mrf.mxu0
      %v4792 = vadd.f32 0.0, %v4791
      %v4793 = vpop.f32.mrf.mxu0
      %4794 = vmatprep.mubr.bf16.mxu0 0
      %4795 = vmatmul.mubr.bf16.gmra.mxu0 %v2466
      %v4796 = vpop.f32.mrf.mxu0
      %v4797 = vadd.f32 0.0, %v4796
      %v4798 = vpop.f32.mrf.mxu0
      %v4799 = vpop.f32.mrf.mxu0
      %v4800 = vadd.f32 0.0, %v4799
      %v4801 = vpop.f32.mrf.mxu0
      %4802 = vmatprep.mubr.bf16.mxu0 0
      %4803 = vmatmul.mubr.bf16.gmra.mxu0 %v2467
      %v4804 = vpop.f32.mrf.mxu0
      %v4805 = vadd.f32 0.0, %v4804
      %v4806 = vpop.f32.mrf.mxu0
      %v4807 = vpop.f32.mrf.mxu0
      %v4808 = vadd.f32 0.0, %v4807
      %v4809 = vpop.f32.mrf.mxu0
      %4810 = vmatprep.mubr.bf16.mxu0 0
      %4811 = vmatmul.mubr.bf16.gmra.mxu0 %v2468
      %v4812 = vpop.f32.mrf.mxu0
      %v4813 = vadd.f32 0.0, %v4812
      %v4814 = vpop.f32.mrf.mxu0
      %v4815 = vpop.f32.mrf.mxu0
      %v4816 = vadd.f32 0.0, %v4815
      %v4817 = vpop.f32.mrf.mxu0
      %4818 = vmatprep.mubr.bf16.mxu0 0
      %4819 = vmatmul.mubr.bf16.gmra.mxu0 %v2469
      %v4820 = vpop.f32.mrf.mxu0
      %v4821 = vadd.f32 0.0, %v4820
      %v4822 = vpop.f32.mrf.mxu0
      %v4823 = vpop.f32.mrf.mxu0
      %v4824 = vadd.f32 0.0, %v4823
      %v4825 = vpop.f32.mrf.mxu0
      %4826 = vmatprep.mubr.bf16.mxu0 0
      %4827 = vmatmul.mubr.bf16.gmra.mxu0 %v2470
      %v4828 = vpop.f32.mrf.mxu0
      %v4829 = vadd.f32 0.0, %v4828
      %v4830 = vpop.f32.mrf.mxu0
      %v4831 = vpop.f32.mrf.mxu0
      %v4832 = vadd.f32 0.0, %v4831
      %v4833 = vpop.f32.mrf.mxu0
      %4834 = vmatprep.mubr.bf16.mxu0 0
      %4835 = vmatmul.mubr.bf16.gmra.mxu0 %v2471
      %v4836 = vpop.f32.mrf.mxu0
      %v4837 = vadd.f32 0.0, %v4836
      %v4838 = vpop.f32.mrf.mxu0
      %v4839 = vpop.f32.mrf.mxu0
      %v4840 = vadd.f32 0.0, %v4839
      %v4841 = vpop.f32.mrf.mxu0
      %4842 = vmatprep.mubr.bf16.mxu0 0
      %4843 = vmatmul.mubr.bf16.gmra.mxu0 %v2472
      %v4844 = vpop.f32.mrf.mxu0
      %v4845 = vadd.f32 0.0, %v4844
      %v4846 = vpop.f32.mrf.mxu0
      %v4847 = vpop.f32.mrf.mxu0
      %v4848 = vadd.f32 0.0, %v4847
      %v4849 = vpop.f32.mrf.mxu0
      %4850 = vmatprep.mubr.bf16.mxu0 0
      %4851 = vmatmul.mubr.bf16.gmra.mxu0 %v2473
      %v4852 = vpop.f32.mrf.mxu0
      %v4853 = vadd.f32 0.0, %v4852
      %v4854 = vpop.f32.mrf.mxu0
      %v4855 = vpop.f32.mrf.mxu0
      %v4856 = vadd.f32 0.0, %v4855
      %v4857 = vpop.f32.mrf.mxu0
      %4858 = vdwg.mxu0
      %v4859 = vmax.f32 %v2813, 0.0
      %v4860 = vmax.f32 %v2816, 0.0
      %v4861 = vmax.f32 %v2821, 0.0
      %v4862 = vmax.f32 %v2824, 0.0
      %v4863 = vmax.f32 %v2829, 0.0
      %v4864 = vmax.f32 %v2832, 0.0
      %v4865 = vmax.f32 %v2837, 0.0
      %v4866 = vmax.f32 %v2840, 0.0
      %v4867 = vmax.f32 %v2845, 0.0
      %v4868 = vmax.f32 %v2848, 0.0
      %v4869 = vmax.f32 %v2853, 0.0
      %v4870 = vmax.f32 %v2856, 0.0
      %v4871 = vmax.f32 %v2861, 0.0
      %v4872 = vmax.f32 %v2864, 0.0
      %v4873 = vmax.f32 %v2869, 0.0
      %v4874 = vmax.f32 %v2872, 0.0
      %v4875 = vmax.f32 %v2877, 0.0
      %v4876 = vmax.f32 %v2880, 0.0
      %v4877 = vmax.f32 %v2885, 0.0
      %v4878 = vmax.f32 %v2888, 0.0
      %v4879 = vmax.f32 %v2893, 0.0
      %v4880 = vmax.f32 %v2896, 0.0
      %v4881 = vmax.f32 %v2901, 0.0
      %v4882 = vmax.f32 %v2904, 0.0
      %v4883 = vmax.f32 %v2909, 0.0
      %v4884 = vmax.f32 %v2912, 0.0
      %v4885 = vmax.f32 %v2917, 0.0
      %v4886 = vmax.f32 %v2920, 0.0
      %v4887 = vmax.f32 %v2925, 0.0
      %v4888 = vmax.f32 %v2928, 0.0
      %v4889 = vmax.f32 %v2933, 0.0
      %v4890 = vmax.f32 %v2936, 0.0
      %v4891 = vmax.f32 %v2941, 0.0
      %v4892 = vmax.f32 %v2944, 0.0
      %v4893 = vmax.f32 %v2949, 0.0
      %v4894 = vmax.f32 %v2952, 0.0
      %v4895 = vmax.f32 %v2957, 0.0
      %v4896 = vmax.f32 %v2960, 0.0
      %v4897 = vmax.f32 %v2965, 0.0
      %v4898 = vmax.f32 %v2968, 0.0
      %v4899 = vmax.f32 %v2973, 0.0
      %v4900 = vmax.f32 %v2976, 0.0
      %v4901 = vmax.f32 %v2981, 0.0
      %v4902 = vmax.f32 %v2984, 0.0
      %v4903 = vmax.f32 %v2989, 0.0
      %v4904 = vmax.f32 %v2992, 0.0
      %v4905 = vmax.f32 %v2997, 0.0
      %v4906 = vmax.f32 %v3000, 0.0
      %v4907 = vmax.f32 %v3005, 0.0
      %v4908 = vmax.f32 %v3008, 0.0
      %v4909 = vmax.f32 %v3013, 0.0
      %v4910 = vmax.f32 %v3016, 0.0
      %v4911 = vmax.f32 %v3021, 0.0
      %v4912 = vmax.f32 %v3024, 0.0
      %v4913 = vmax.f32 %v3029, 0.0
      %v4914 = vmax.f32 %v3032, 0.0
      %v4915 = vmax.f32 %v3037, 0.0
      %v4916 = vmax.f32 %v3040, 0.0
      %v4917 = vmax.f32 %v3045, 0.0
      %v4918 = vmax.f32 %v3048, 0.0
      %v4919 = vmax.f32 %v3053, 0.0
      %v4920 = vmax.f32 %v3056, 0.0
      %v4921 = vmax.f32 %v3061, 0.0
      %v4922 = vmax.f32 %v3064, 0.0
      %v4923 = vmax.f32 %v3069, 0.0
      %v4924 = vmax.f32 %v3072, 0.0
      %v4925 = vmax.f32 %v3077, 0.0
      %v4926 = vmax.f32 %v3080, 0.0
      %v4927 = vmax.f32 %v3085, 0.0
      %v4928 = vmax.f32 %v3088, 0.0
      %v4929 = vmax.f32 %v3093, 0.0
      %v4930 = vmax.f32 %v3096, 0.0
      %v4931 = vmax.f32 %v3101, 0.0
      %v4932 = vmax.f32 %v3104, 0.0
      %v4933 = vmax.f32 %v3109, 0.0
      %v4934 = vmax.f32 %v3112, 0.0
      %v4935 = vmax.f32 %v3117, 0.0
      %v4936 = vmax.f32 %v3120, 0.0
      %v4937 = vmax.f32 %v3125, 0.0
      %v4938 = vmax.f32 %v3128, 0.0
      %v4939 = vmax.f32 %v3133, 0.0
      %v4940 = vmax.f32 %v3136, 0.0
      %v4941 = vmax.f32 %v3141, 0.0
      %v4942 = vmax.f32 %v3144, 0.0
      %v4943 = vmax.f32 %v3149, 0.0
      %v4944 = vmax.f32 %v3152, 0.0
      %v4945 = vmax.f32 %v3157, 0.0
      %v4946 = vmax.f32 %v3160, 0.0
      %v4947 = vmax.f32 %v3165, 0.0
      %v4948 = vmax.f32 %v3168, 0.0
      %v4949 = vmax.f32 %v3173, 0.0
      %v4950 = vmax.f32 %v3176, 0.0
      %v4951 = vmax.f32 %v3181, 0.0
      %v4952 = vmax.f32 %v3184, 0.0
      %v4953 = vmax.f32 %v3189, 0.0
      %v4954 = vmax.f32 %v3192, 0.0
      %v4955 = vmax.f32 %v3197, 0.0
      %v4956 = vmax.f32 %v3200, 0.0
      %v4957 = vmax.f32 %v3205, 0.0
      %v4958 = vmax.f32 %v3208, 0.0
      %v4959 = vmax.f32 %v3213, 0.0
      %v4960 = vmax.f32 %v3216, 0.0
      %v4961 = vmax.f32 %v3221, 0.0
      %v4962 = vmax.f32 %v3224, 0.0
      %v4963 = vmax.f32 %v3229, 0.0
      %v4964 = vmax.f32 %v3232, 0.0
      %v4965 = vmax.f32 %v3237, 0.0
      %v4966 = vmax.f32 %v3240, 0.0
      %v4967 = vmax.f32 %v3245, 0.0
      %v4968 = vmax.f32 %v3248, 0.0
      %v4969 = vmax.f32 %v3253, 0.0
      %v4970 = vmax.f32 %v3256, 0.0
      %v4971 = vmax.f32 %v3261, 0.0
      %v4972 = vmax.f32 %v3264, 0.0
      %v4973 = vmax.f32 %v3269, 0.0
      %v4974 = vmax.f32 %v3272, 0.0
      %v4975 = vmax.f32 %v3277, 0.0
      %v4976 = vmax.f32 %v3280, 0.0
      %v4977 = vmax.f32 %v3285, 0.0
      %v4978 = vmax.f32 %v3288, 0.0
      %v4979 = vmax.f32 %v3293, 0.0
      %v4980 = vmax.f32 %v3296, 0.0
      %v4981 = vmax.f32 %v3301, 0.0
      %v4982 = vmax.f32 %v3304, 0.0
      %v4983 = vmax.f32 %v3309, 0.0
      %v4984 = vmax.f32 %v3312, 0.0
      %v4985 = vmax.f32 %v3317, 0.0
      %v4986 = vmax.f32 %v3320, 0.0
      %v4987 = vmax.f32 %v3325, 0.0
      %v4988 = vmax.f32 %v3328, 0.0
      %v4989 = vmax.f32 %v3333, 0.0
      %v4990 = vmax.f32 %v3336, 0.0
      %v4991 = vmax.f32 %v3341, 0.0
      %v4992 = vmax.f32 %v3344, 0.0
      %v4993 = vmax.f32 %v3349, 0.0
      %v4994 = vmax.f32 %v3352, 0.0
      %v4995 = vmax.f32 %v3357, 0.0
      %v4996 = vmax.f32 %v3360, 0.0
      %v4997 = vmax.f32 %v3365, 0.0
      %v4998 = vmax.f32 %v3368, 0.0
      %v4999 = vmax.f32 %v3373, 0.0
      %v5000 = vmax.f32 %v3376, 0.0
      %v5001 = vmax.f32 %v3381, 0.0
      %v5002 = vmax.f32 %v3384, 0.0
      %v5003 = vmax.f32 %v3389, 0.0
      %v5004 = vmax.f32 %v3392, 0.0
      %v5005 = vmax.f32 %v3397, 0.0
      %v5006 = vmax.f32 %v3400, 0.0
      %v5007 = vmax.f32 %v3405, 0.0
      %v5008 = vmax.f32 %v3408, 0.0
      %v5009 = vmax.f32 %v3413, 0.0
      %v5010 = vmax.f32 %v3416, 0.0
      %v5011 = vmax.f32 %v3421, 0.0
      %v5012 = vmax.f32 %v3424, 0.0
      %v5013 = vmax.f32 %v3429, 0.0
      %v5014 = vmax.f32 %v3432, 0.0
      %v5015 = vmax.f32 %v3437, 0.0
      %v5016 = vmax.f32 %v3440, 0.0
      %v5017 = vmax.f32 %v3445, 0.0
      %v5018 = vmax.f32 %v3448, 0.0
      %v5019 = vmax.f32 %v3453, 0.0
      %v5020 = vmax.f32 %v3456, 0.0
      %v5021 = vmax.f32 %v3461, 0.0
      %v5022 = vmax.f32 %v3464, 0.0
      %v5023 = vmax.f32 %v3469, 0.0
      %v5024 = vmax.f32 %v3472, 0.0
      %v5025 = vmax.f32 %v3477, 0.0
      %v5026 = vmax.f32 %v3480, 0.0
      %v5027 = vmax.f32 %v3485, 0.0
      %v5028 = vmax.f32 %v3488, 0.0
      %v5029 = vmax.f32 %v3493, 0.0
      %v5030 = vmax.f32 %v3496, 0.0
      %v5031 = vmax.f32 %v3501, 0.0
      %v5032 = vmax.f32 %v3504, 0.0
      %v5033 = vmax.f32 %v3509, 0.0
      %v5034 = vmax.f32 %v3512, 0.0
      %v5035 = vmax.f32 %v3517, 0.0
      %v5036 = vmax.f32 %v3520, 0.0
      %v5037 = vmax.f32 %v3525, 0.0
      %v5038 = vmax.f32 %v3528, 0.0
      %v5039 = vmax.f32 %v3533, 0.0
      %v5040 = vmax.f32 %v3536, 0.0
      %v5041 = vmax.f32 %v3541, 0.0
      %v5042 = vmax.f32 %v3544, 0.0
      %v5043 = vmax.f32 %v3549, 0.0
      %v5044 = vmax.f32 %v3552, 0.0
      %v5045 = vmax.f32 %v3557, 0.0
      %v5046 = vmax.f32 %v3560, 0.0
      %v5047 = vmax.f32 %v3565, 0.0
      %v5048 = vmax.f32 %v3568, 0.0
      %v5049 = vmax.f32 %v3573, 0.0
      %v5050 = vmax.f32 %v3576, 0.0
      %v5051 = vmax.f32 %v3581, 0.0
      %v5052 = vmax.f32 %v3584, 0.0
      %v5053 = vmax.f32 %v3589, 0.0
      %v5054 = vmax.f32 %v3592, 0.0
      %v5055 = vmax.f32 %v3597, 0.0
      %v5056 = vmax.f32 %v3600, 0.0
      %v5057 = vmax.f32 %v3605, 0.0
      %v5058 = vmax.f32 %v3608, 0.0
      %v5059 = vmax.f32 %v3613, 0.0
      %v5060 = vmax.f32 %v3616, 0.0
      %v5061 = vmax.f32 %v3621, 0.0
      %v5062 = vmax.f32 %v3624, 0.0
      %v5063 = vmax.f32 %v3629, 0.0
      %v5064 = vmax.f32 %v3632, 0.0
      %v5065 = vmax.f32 %v3637, 0.0
      %v5066 = vmax.f32 %v3640, 0.0
      %v5067 = vmax.f32 %v3645, 0.0
      %v5068 = vmax.f32 %v3648, 0.0
      %v5069 = vmax.f32 %v3653, 0.0
      %v5070 = vmax.f32 %v3656, 0.0
      %v5071 = vmax.f32 %v3661, 0.0
      %v5072 = vmax.f32 %v3664, 0.0
      %v5073 = vmax.f32 %v3669, 0.0
      %v5074 = vmax.f32 %v3672, 0.0
      %v5075 = vmax.f32 %v3677, 0.0
      %v5076 = vmax.f32 %v3680, 0.0
      %v5077 = vmax.f32 %v3685, 0.0
      %v5078 = vmax.f32 %v3688, 0.0
      %v5079 = vmax.f32 %v3693, 0.0
      %v5080 = vmax.f32 %v3696, 0.0
      %v5081 = vmax.f32 %v3701, 0.0
      %v5082 = vmax.f32 %v3704, 0.0
      %v5083 = vmax.f32 %v3709, 0.0
      %v5084 = vmax.f32 %v3712, 0.0
      %v5085 = vmax.f32 %v3717, 0.0
      %v5086 = vmax.f32 %v3720, 0.0
      %v5087 = vmax.f32 %v3725, 0.0
      %v5088 = vmax.f32 %v3728, 0.0
      %v5089 = vmax.f32 %v3733, 0.0
      %v5090 = vmax.f32 %v3736, 0.0
      %v5091 = vmax.f32 %v3741, 0.0
      %v5092 = vmax.f32 %v3744, 0.0
      %v5093 = vmax.f32 %v3749, 0.0
      %v5094 = vmax.f32 %v3752, 0.0
      %v5095 = vmax.f32 %v3757, 0.0
      %v5096 = vmax.f32 %v3760, 0.0
      %v5097 = vmax.f32 %v3765, 0.0
      %v5098 = vmax.f32 %v3768, 0.0
      %v5099 = vmax.f32 %v3773, 0.0
      %v5100 = vmax.f32 %v3776, 0.0
      %v5101 = vmax.f32 %v3781, 0.0
      %v5102 = vmax.f32 %v3784, 0.0
      %v5103 = vmax.f32 %v3789, 0.0
      %v5104 = vmax.f32 %v3792, 0.0
      %v5105 = vmax.f32 %v3797, 0.0
      %v5106 = vmax.f32 %v3800, 0.0
      %v5107 = vmax.f32 %v3805, 0.0
      %v5108 = vmax.f32 %v3808, 0.0
      %v5109 = vmax.f32 %v3813, 0.0
      %v5110 = vmax.f32 %v3816, 0.0
      %v5111 = vmax.f32 %v3821, 0.0
      %v5112 = vmax.f32 %v3824, 0.0
      %v5113 = vmax.f32 %v3829, 0.0
      %v5114 = vmax.f32 %v3832, 0.0
      %v5115 = vmax.f32 %v3837, 0.0
      %v5116 = vmax.f32 %v3840, 0.0
      %v5117 = vmax.f32 %v3845, 0.0
      %v5118 = vmax.f32 %v3848, 0.0
      %v5119 = vmax.f32 %v3853, 0.0
      %v5120 = vmax.f32 %v3856, 0.0
      %v5121 = vmax.f32 %v3861, 0.0
      %v5122 = vmax.f32 %v3864, 0.0
      %v5123 = vmax.f32 %v3869, 0.0
      %v5124 = vmax.f32 %v3872, 0.0
      %v5125 = vmax.f32 %v3877, 0.0
      %v5126 = vmax.f32 %v3880, 0.0
      %v5127 = vmax.f32 %v3885, 0.0
      %v5128 = vmax.f32 %v3888, 0.0
      %v5129 = vmax.f32 %v3893, 0.0
      %v5130 = vmax.f32 %v3896, 0.0
      %v5131 = vmax.f32 %v3901, 0.0
      %v5132 = vmax.f32 %v3904, 0.0
      %v5133 = vmax.f32 %v3909, 0.0
      %v5134 = vmax.f32 %v3912, 0.0
      %v5135 = vmax.f32 %v3917, 0.0
      %v5136 = vmax.f32 %v3920, 0.0
      %v5137 = vmax.f32 %v3925, 0.0
      %v5138 = vmax.f32 %v3928, 0.0
      %v5139 = vmax.f32 %v3933, 0.0
      %v5140 = vmax.f32 %v3936, 0.0
      %v5141 = vmax.f32 %v3941, 0.0
      %v5142 = vmax.f32 %v3944, 0.0
      %v5143 = vmax.f32 %v3949, 0.0
      %v5144 = vmax.f32 %v3952, 0.0
      %v5145 = vmax.f32 %v3957, 0.0
      %v5146 = vmax.f32 %v3960, 0.0
      %v5147 = vmax.f32 %v3965, 0.0
      %v5148 = vmax.f32 %v3968, 0.0
      %v5149 = vmax.f32 %v3973, 0.0
      %v5150 = vmax.f32 %v3976, 0.0
      %v5151 = vmax.f32 %v3981, 0.0
      %v5152 = vmax.f32 %v3984, 0.0
      %v5153 = vmax.f32 %v3989, 0.0
      %v5154 = vmax.f32 %v3992, 0.0
      %v5155 = vmax.f32 %v3997, 0.0
      %v5156 = vmax.f32 %v4000, 0.0
      %v5157 = vmax.f32 %v4005, 0.0
      %v5158 = vmax.f32 %v4008, 0.0
      %v5159 = vmax.f32 %v4013, 0.0
      %v5160 = vmax.f32 %v4016, 0.0
      %v5161 = vmax.f32 %v4021, 0.0
      %v5162 = vmax.f32 %v4024, 0.0
      %v5163 = vmax.f32 %v4029, 0.0
      %v5164 = vmax.f32 %v4032, 0.0
      %v5165 = vmax.f32 %v4037, 0.0
      %v5166 = vmax.f32 %v4040, 0.0
      %v5167 = vmax.f32 %v4045, 0.0
      %v5168 = vmax.f32 %v4048, 0.0
      %v5169 = vmax.f32 %v4053, 0.0
      %v5170 = vmax.f32 %v4056, 0.0
      %v5171 = vmax.f32 %v4061, 0.0
      %v5172 = vmax.f32 %v4064, 0.0
      %v5173 = vmax.f32 %v4069, 0.0
      %v5174 = vmax.f32 %v4072, 0.0
      %v5175 = vmax.f32 %v4077, 0.0
      %v5176 = vmax.f32 %v4080, 0.0
      %v5177 = vmax.f32 %v4085, 0.0
      %v5178 = vmax.f32 %v4088, 0.0
      %v5179 = vmax.f32 %v4093, 0.0
      %v5180 = vmax.f32 %v4096, 0.0
      %v5181 = vmax.f32 %v4101, 0.0
      %v5182 = vmax.f32 %v4104, 0.0
      %v5183 = vmax.f32 %v4109, 0.0
      %v5184 = vmax.f32 %v4112, 0.0
      %v5185 = vmax.f32 %v4117, 0.0
      %v5186 = vmax.f32 %v4120, 0.0
      %v5187 = vmax.f32 %v4125, 0.0
      %v5188 = vmax.f32 %v4128, 0.0
      %v5189 = vmax.f32 %v4133, 0.0
      %v5190 = vmax.f32 %v4136, 0.0
      %v5191 = vmax.f32 %v4141, 0.0
      %v5192 = vmax.f32 %v4144, 0.0
      %v5193 = vmax.f32 %v4149, 0.0
      %v5194 = vmax.f32 %v4152, 0.0
      %v5195 = vmax.f32 %v4157, 0.0
      %v5196 = vmax.f32 %v4160, 0.0
      %v5197 = vmax.f32 %v4165, 0.0
      %v5198 = vmax.f32 %v4168, 0.0
      %v5199 = vmax.f32 %v4173, 0.0
      %v5200 = vmax.f32 %v4176, 0.0
      %v5201 = vmax.f32 %v4181, 0.0
      %v5202 = vmax.f32 %v4184, 0.0
      %v5203 = vmax.f32 %v4189, 0.0
      %v5204 = vmax.f32 %v4192, 0.0
      %v5205 = vmax.f32 %v4197, 0.0
      %v5206 = vmax.f32 %v4200, 0.0
      %v5207 = vmax.f32 %v4205, 0.0
      %v5208 = vmax.f32 %v4208, 0.0
      %v5209 = vmax.f32 %v4213, 0.0
      %v5210 = vmax.f32 %v4216, 0.0
      %v5211 = vmax.f32 %v4221, 0.0
      %v5212 = vmax.f32 %v4224, 0.0
      %v5213 = vmax.f32 %v4229, 0.0
      %v5214 = vmax.f32 %v4232, 0.0
      %v5215 = vmax.f32 %v4237, 0.0
      %v5216 = vmax.f32 %v4240, 0.0
      %v5217 = vmax.f32 %v4245, 0.0
      %v5218 = vmax.f32 %v4248, 0.0
      %v5219 = vmax.f32 %v4253, 0.0
      %v5220 = vmax.f32 %v4256, 0.0
      %v5221 = vmax.f32 %v4261, 0.0
      %v5222 = vmax.f32 %v4264, 0.0
      %v5223 = vmax.f32 %v4269, 0.0
      %v5224 = vmax.f32 %v4272, 0.0
      %v5225 = vmax.f32 %v4277, 0.0
      %v5226 = vmax.f32 %v4280, 0.0
      %v5227 = vmax.f32 %v4285, 0.0
      %v5228 = vmax.f32 %v4288, 0.0
      %v5229 = vmax.f32 %v4293, 0.0
      %v5230 = vmax.f32 %v4296, 0.0
      %v5231 = vmax.f32 %v4301, 0.0
      %v5232 = vmax.f32 %v4304, 0.0
      %v5233 = vmax.f32 %v4309, 0.0
      %v5234 = vmax.f32 %v4312, 0.0
      %v5235 = vmax.f32 %v4317, 0.0
      %v5236 = vmax.f32 %v4320, 0.0
      %v5237 = vmax.f32 %v4325, 0.0
      %v5238 = vmax.f32 %v4328, 0.0
      %v5239 = vmax.f32 %v4333, 0.0
      %v5240 = vmax.f32 %v4336, 0.0
      %v5241 = vmax.f32 %v4341, 0.0
      %v5242 = vmax.f32 %v4344, 0.0
      %v5243 = vmax.f32 %v4349, 0.0
      %v5244 = vmax.f32 %v4352, 0.0
      %v5245 = vmax.f32 %v4357, 0.0
      %v5246 = vmax.f32 %v4360, 0.0
      %v5247 = vmax.f32 %v4365, 0.0
      %v5248 = vmax.f32 %v4368, 0.0
      %v5249 = vmax.f32 %v4373, 0.0
      %v5250 = vmax.f32 %v4376, 0.0
      %v5251 = vmax.f32 %v4381, 0.0
      %v5252 = vmax.f32 %v4384, 0.0
      %v5253 = vmax.f32 %v4389, 0.0
      %v5254 = vmax.f32 %v4392, 0.0
      %v5255 = vmax.f32 %v4397, 0.0
      %v5256 = vmax.f32 %v4400, 0.0
      %v5257 = vmax.f32 %v4405, 0.0
      %v5258 = vmax.f32 %v4408, 0.0
      %v5259 = vmax.f32 %v4413, 0.0
      %v5260 = vmax.f32 %v4416, 0.0
      %v5261 = vmax.f32 %v4421, 0.0
      %v5262 = vmax.f32 %v4424, 0.0
      %v5263 = vmax.f32 %v4429, 0.0
      %v5264 = vmax.f32 %v4432, 0.0
      %v5265 = vmax.f32 %v4437, 0.0
      %v5266 = vmax.f32 %v4440, 0.0
      %v5267 = vmax.f32 %v4445, 0.0
      %v5268 = vmax.f32 %v4448, 0.0
      %v5269 = vmax.f32 %v4453, 0.0
      %v5270 = vmax.f32 %v4456, 0.0
      %v5271 = vmax.f32 %v4461, 0.0
      %v5272 = vmax.f32 %v4464, 0.0
      %v5273 = vmax.f32 %v4469, 0.0
      %v5274 = vmax.f32 %v4472, 0.0
      %v5275 = vmax.f32 %v4477, 0.0
      %v5276 = vmax.f32 %v4480, 0.0
      %v5277 = vmax.f32 %v4485, 0.0
      %v5278 = vmax.f32 %v4488, 0.0
      %v5279 = vmax.f32 %v4493, 0.0
      %v5280 = vmax.f32 %v4496, 0.0
      %v5281 = vmax.f32 %v4501, 0.0
      %v5282 = vmax.f32 %v4504, 0.0
      %v5283 = vmax.f32 %v4509, 0.0
      %v5284 = vmax.f32 %v4512, 0.0
      %v5285 = vmax.f32 %v4517, 0.0
      %v5286 = vmax.f32 %v4520, 0.0
      %v5287 = vmax.f32 %v4525, 0.0
      %v5288 = vmax.f32 %v4528, 0.0
      %v5289 = vmax.f32 %v4533, 0.0
      %v5290 = vmax.f32 %v4536, 0.0
      %v5291 = vmax.f32 %v4541, 0.0
      %v5292 = vmax.f32 %v4544, 0.0
      %v5293 = vmax.f32 %v4549, 0.0
      %v5294 = vmax.f32 %v4552, 0.0
      %v5295 = vmax.f32 %v4557, 0.0
      %v5296 = vmax.f32 %v4560, 0.0
      %v5297 = vmax.f32 %v4565, 0.0
      %v5298 = vmax.f32 %v4568, 0.0
      %v5299 = vmax.f32 %v4573, 0.0
      %v5300 = vmax.f32 %v4576, 0.0
      %v5301 = vmax.f32 %v4581, 0.0
      %v5302 = vmax.f32 %v4584, 0.0
      %v5303 = vmax.f32 %v4589, 0.0
      %v5304 = vmax.f32 %v4592, 0.0
      %v5305 = vmax.f32 %v4597, 0.0
      %v5306 = vmax.f32 %v4600, 0.0
      %v5307 = vmax.f32 %v4605, 0.0
      %v5308 = vmax.f32 %v4608, 0.0
      %v5309 = vmax.f32 %v4613, 0.0
      %v5310 = vmax.f32 %v4616, 0.0
      %v5311 = vmax.f32 %v4621, 0.0
      %v5312 = vmax.f32 %v4624, 0.0
      %v5313 = vmax.f32 %v4629, 0.0
      %v5314 = vmax.f32 %v4632, 0.0
      %v5315 = vmax.f32 %v4637, 0.0
      %v5316 = vmax.f32 %v4640, 0.0
      %v5317 = vmax.f32 %v4645, 0.0
      %v5318 = vmax.f32 %v4648, 0.0
      %v5319 = vmax.f32 %v4653, 0.0
      %v5320 = vmax.f32 %v4656, 0.0
      %v5321 = vmax.f32 %v4661, 0.0
      %v5322 = vmax.f32 %v4664, 0.0
      %v5323 = vmax.f32 %v4669, 0.0
      %v5324 = vmax.f32 %v4672, 0.0
      %v5325 = vmax.f32 %v4677, 0.0
      %v5326 = vmax.f32 %v4680, 0.0
      %v5327 = vmax.f32 %v4685, 0.0
      %v5328 = vmax.f32 %v4688, 0.0
      %v5329 = vmax.f32 %v4693, 0.0
      %v5330 = vmax.f32 %v4696, 0.0
      %v5331 = vmax.f32 %v4701, 0.0
      %v5332 = vmax.f32 %v4704, 0.0
      %v5333 = vmax.f32 %v4709, 0.0
      %v5334 = vmax.f32 %v4712, 0.0
      %v5335 = vmax.f32 %v4717, 0.0
      %v5336 = vmax.f32 %v4720, 0.0
      %v5337 = vmax.f32 %v4725, 0.0
      %v5338 = vmax.f32 %v4728, 0.0
      %v5339 = vmax.f32 %v4733, 0.0
      %v5340 = vmax.f32 %v4736, 0.0
      %v5341 = vmax.f32 %v4741, 0.0
      %v5342 = vmax.f32 %v4744, 0.0
      %v5343 = vmax.f32 %v4749, 0.0
      %v5344 = vmax.f32 %v4752, 0.0
      %v5345 = vmax.f32 %v4757, 0.0
      %v5346 = vmax.f32 %v4760, 0.0
      %v5347 = vmax.f32 %v4765, 0.0
      %v5348 = vmax.f32 %v4768, 0.0
      %v5349 = vmax.f32 %v4773, 0.0
      %v5350 = vmax.f32 %v4776, 0.0
      %v5351 = vmax.f32 %v4781, 0.0
      %v5352 = vmax.f32 %v4784, 0.0
      %v5353 = vmax.f32 %v4789, 0.0
      %v5354 = vmax.f32 %v4792, 0.0
      %v5355 = vmax.f32 %v4797, 0.0
      %v5356 = vmax.f32 %v4800, 0.0
      %v5357 = vmax.f32 %v4805, 0.0
      %v5358 = vmax.f32 %v4808, 0.0
      %v5359 = vmax.f32 %v4813, 0.0
      %v5360 = vmax.f32 %v4816, 0.0
      %v5361 = vmax.f32 %v4821, 0.0
      %v5362 = vmax.f32 %v4824, 0.0
      %v5363 = vmax.f32 %v4829, 0.0
      %v5364 = vmax.f32 %v4832, 0.0
      %v5365 = vmax.f32 %v4837, 0.0
      %v5366 = vmax.f32 %v4840, 0.0
      %v5367 = vmax.f32 %v4845, 0.0
      %v5368 = vmax.f32 %v4848, 0.0
      %v5369 = vmax.f32 %v4853, 0.0
      %v5370 = vmax.f32 %v4856, 0.0
      %v5371 = vadd.f32 %v4859, %v4860
      %v5372 = vadd.f32 %v5371, %v4861
      %v5373 = vadd.f32 %v5372, %v4862
      %v5374 = vadd.f32 %v5373, %v4863
      %v5375 = vadd.f32 %v5374, %v4864
      %v5376 = vadd.f32 %v5375, %v4865
      %v5377 = vadd.f32 %v5376, %v4866
      %v5378 = vadd.f32 %v5377, %v4867
      %v5379 = vadd.f32 %v5378, %v4868
      %v5380 = vadd.f32 %v5379, %v4869
      %v5381 = vadd.f32 %v5380, %v4870
      %v5382 = vadd.f32 %v5381, %v4871
      %v5383 = vadd.f32 %v5382, %v4872
      %v5384 = vadd.f32 %v5383, %v4873
      %v5385 = vadd.f32 %v5384, %v4874
      %v5386 = vadd.f32 %v5385, %v4875
      %v5387 = vadd.f32 %v5386, %v4876
      %v5388 = vadd.f32 %v5387, %v4877
      %v5389 = vadd.f32 %v5388, %v4878
      %v5390 = vadd.f32 %v5389, %v4879
      %v5391 = vadd.f32 %v5390, %v4880
      %v5392 = vadd.f32 %v5391, %v4881
      %v5393 = vadd.f32 %v5392, %v4882
      %v5394 = vadd.f32 %v5393, %v4883
      %v5395 = vadd.f32 %v5394, %v4884
      %v5396 = vadd.f32 %v5395, %v4885
      %v5397 = vadd.f32 %v5396, %v4886
      %v5398 = vadd.f32 %v5397, %v4887
      %v5399 = vadd.f32 %v5398, %v4888
      %v5400 = vadd.f32 %v5399, %v4889
      %v5401 = vadd.f32 %v5400, %v4890
      %v5402 = vrot.slane %v5401, 4
      %v5403 = vadd.f32 %v5401, %v5402
      %v5404 = vrot.slane %v5403, 2
      %v5405 = vadd.f32 %v5403, %v5404
      %v5406 = vrot.slane %v5405, 1
      %v5407 = vadd.f32 %v5405, %v5406
      %v5408 = vadd.f32 %v4891, %v4892
      %v5409 = vadd.f32 %v5408, %v4893
      %v5410 = vadd.f32 %v5409, %v4894
      %v5411 = vadd.f32 %v5410, %v4895
      %v5412 = vadd.f32 %v5411, %v4896
      %v5413 = vadd.f32 %v5412, %v4897
      %v5414 = vadd.f32 %v5413, %v4898
      %v5415 = vadd.f32 %v5414, %v4899
      %v5416 = vadd.f32 %v5415, %v4900
      %v5417 = vadd.f32 %v5416, %v4901
      %v5418 = vadd.f32 %v5417, %v4902
      %v5419 = vadd.f32 %v5418, %v4903
      %v5420 = vadd.f32 %v5419, %v4904
      %v5421 = vadd.f32 %v5420, %v4905
      %v5422 = vadd.f32 %v5421, %v4906
      %v5423 = vadd.f32 %v5422, %v4907
      %v5424 = vadd.f32 %v5423, %v4908
      %v5425 = vadd.f32 %v5424, %v4909
      %v5426 = vadd.f32 %v5425, %v4910
      %v5427 = vadd.f32 %v5426, %v4911
      %v5428 = vadd.f32 %v5427, %v4912
      %v5429 = vadd.f32 %v5428, %v4913
      %v5430 = vadd.f32 %v5429, %v4914
      %v5431 = vadd.f32 %v5430, %v4915
      %v5432 = vadd.f32 %v5431, %v4916
      %v5433 = vadd.f32 %v5432, %v4917
      %v5434 = vadd.f32 %v5433, %v4918
      %v5435 = vadd.f32 %v5434, %v4919
      %v5436 = vadd.f32 %v5435, %v4920
      %v5437 = vadd.f32 %v5436, %v4921
      %v5438 = vadd.f32 %v5437, %v4922
      %v5439 = vrot.slane %v5438, 4
      %v5440 = vadd.f32 %v5438, %v5439
      %v5441 = vrot.slane %v5440, 2
      %v5442 = vadd.f32 %v5440, %v5441
      %v5443 = vrot.slane %v5442, 1
      %v5444 = vadd.f32 %v5442, %v5443
      %v5445 = vadd.f32 %v4923, %v4924
      %v5446 = vadd.f32 %v5445, %v4925
      %v5447 = vadd.f32 %v5446, %v4926
      %v5448 = vadd.f32 %v5447, %v4927
      %v5449 = vadd.f32 %v5448, %v4928
      %v5450 = vadd.f32 %v5449, %v4929
      %v5451 = vadd.f32 %v5450, %v4930
      %v5452 = vadd.f32 %v5451, %v4931
      %v5453 = vadd.f32 %v5452, %v4932
      %v5454 = vadd.f32 %v5453, %v4933
      %v5455 = vadd.f32 %v5454, %v4934
      %v5456 = vadd.f32 %v5455, %v4935
      %v5457 = vadd.f32 %v5456, %v4936
      %v5458 = vadd.f32 %v5457, %v4937
      %v5459 = vadd.f32 %v5458, %v4938
      %v5460 = vadd.f32 %v5459, %v4939
      %v5461 = vadd.f32 %v5460, %v4940
      %v5462 = vadd.f32 %v5461, %v4941
      %v5463 = vadd.f32 %v5462, %v4942
      %v5464 = vadd.f32 %v5463, %v4943
      %v5465 = vadd.f32 %v5464, %v4944
      %v5466 = vadd.f32 %v5465, %v4945
      %v5467 = vadd.f32 %v5466, %v4946
      %v5468 = vadd.f32 %v5467, %v4947
      %v5469 = vadd.f32 %v5468, %v4948
      %v5470 = vadd.f32 %v5469, %v4949
      %v5471 = vadd.f32 %v5470, %v4950
      %v5472 = vadd.f32 %v5471, %v4951
      %v5473 = vadd.f32 %v5472, %v4952
      %v5474 = vadd.f32 %v5473, %v4953
      %v5475 = vadd.f32 %v5474, %v4954
      %v5476 = vrot.slane %v5475, 4
      %v5477 = vadd.f32 %v5475, %v5476
      %v5478 = vrot.slane %v5477, 2
      %v5479 = vadd.f32 %v5477, %v5478
      %v5480 = vrot.slane %v5479, 1
      %v5481 = vadd.f32 %v5479, %v5480
      %v5482 = vadd.f32 %v4955, %v4956
      %v5483 = vadd.f32 %v5482, %v4957
      %v5484 = vadd.f32 %v5483, %v4958
      %v5485 = vadd.f32 %v5484, %v4959
      %v5486 = vadd.f32 %v5485, %v4960
      %v5487 = vadd.f32 %v5486, %v4961
      %v5488 = vadd.f32 %v5487, %v4962
      %v5489 = vadd.f32 %v5488, %v4963
      %v5490 = vadd.f32 %v5489, %v4964
      %v5491 = vadd.f32 %v5490, %v4965
      %v5492 = vadd.f32 %v5491, %v4966
      %v5493 = vadd.f32 %v5492, %v4967
      %v5494 = vadd.f32 %v5493, %v4968
      %v5495 = vadd.f32 %v5494, %v4969
      %v5496 = vadd.f32 %v5495, %v4970
      %v5497 = vadd.f32 %v5496, %v4971
      %v5498 = vadd.f32 %v5497, %v4972
      %v5499 = vadd.f32 %v5498, %v4973
      %v5500 = vadd.f32 %v5499, %v4974
      %v5501 = vadd.f32 %v5500, %v4975
      %v5502 = vadd.f32 %v5501, %v4976
      %v5503 = vadd.f32 %v5502, %v4977
      %v5504 = vadd.f32 %v5503, %v4978
      %v5505 = vadd.f32 %v5504, %v4979
      %v5506 = vadd.f32 %v5505, %v4980
      %v5507 = vadd.f32 %v5506, %v4981
      %v5508 = vadd.f32 %v5507, %v4982
      %v5509 = vadd.f32 %v5508, %v4983
      %v5510 = vadd.f32 %v5509, %v4984
      %v5511 = vadd.f32 %v5510, %v4985
      %v5512 = vadd.f32 %v5511, %v4986
      %v5513 = vrot.slane %v5512, 4
      %v5514 = vadd.f32 %v5512, %v5513
      %v5515 = vrot.slane %v5514, 2
      %v5516 = vadd.f32 %v5514, %v5515
      %v5517 = vrot.slane %v5516, 1
      %v5518 = vadd.f32 %v5516, %v5517
      %v5519 = vadd.f32 %v4987, %v4988
      %v5520 = vadd.f32 %v5519, %v4989
      %v5521 = vadd.f32 %v5520, %v4990
      %v5522 = vadd.f32 %v5521, %v4991
      %v5523 = vadd.f32 %v5522, %v4992
      %v5524 = vadd.f32 %v5523, %v4993
      %v5525 = vadd.f32 %v5524, %v4994
      %v5526 = vadd.f32 %v5525, %v4995
      %v5527 = vadd.f32 %v5526, %v4996
      %v5528 = vadd.f32 %v5527, %v4997
      %v5529 = vadd.f32 %v5528, %v4998
      %v5530 = vadd.f32 %v5529, %v4999
      %v5531 = vadd.f32 %v5530, %v5000
      %v5532 = vadd.f32 %v5531, %v5001
      %v5533 = vadd.f32 %v5532, %v5002
      %v5534 = vadd.f32 %v5533, %v5003
      %v5535 = vadd.f32 %v5534, %v5004
      %v5536 = vadd.f32 %v5535, %v5005
      %v5537 = vadd.f32 %v5536, %v5006
      %v5538 = vadd.f32 %v5537, %v5007
      %v5539 = vadd.f32 %v5538, %v5008
      %v5540 = vadd.f32 %v5539, %v5009
      %v5541 = vadd.f32 %v5540, %v5010
      %v5542 = vadd.f32 %v5541, %v5011
      %v5543 = vadd.f32 %v5542, %v5012
      %v5544 = vadd.f32 %v5543, %v5013
      %v5545 = vadd.f32 %v5544, %v5014
      %v5546 = vadd.f32 %v5545, %v5015
      %v5547 = vadd.f32 %v5546, %v5016
      %v5548 = vadd.f32 %v5547, %v5017
      %v5549 = vadd.f32 %v5548, %v5018
      %v5550 = vrot.slane %v5549, 4
      %v5551 = vadd.f32 %v5549, %v5550
      %v5552 = vrot.slane %v5551, 2
      %v5553 = vadd.f32 %v5551, %v5552
      %v5554 = vrot.slane %v5553, 1
      %v5555 = vadd.f32 %v5553, %v5554
      %v5556 = vadd.f32 %v5019, %v5020
      %v5557 = vadd.f32 %v5556, %v5021
      %v5558 = vadd.f32 %v5557, %v5022
      %v5559 = vadd.f32 %v5558, %v5023
      %v5560 = vadd.f32 %v5559, %v5024
      %v5561 = vadd.f32 %v5560, %v5025
      %v5562 = vadd.f32 %v5561, %v5026
      %v5563 = vadd.f32 %v5562, %v5027
      %v5564 = vadd.f32 %v5563, %v5028
      %v5565 = vadd.f32 %v5564, %v5029
      %v5566 = vadd.f32 %v5565, %v5030
      %v5567 = vadd.f32 %v5566, %v5031
      %v5568 = vadd.f32 %v5567, %v5032
      %v5569 = vadd.f32 %v5568, %v5033
      %v5570 = vadd.f32 %v5569, %v5034
      %v5571 = vadd.f32 %v5570, %v5035
      %v5572 = vadd.f32 %v5571, %v5036
      %v5573 = vadd.f32 %v5572, %v5037
      %v5574 = vadd.f32 %v5573, %v5038
      %v5575 = vadd.f32 %v5574, %v5039
      %v5576 = vadd.f32 %v5575, %v5040
      %v5577 = vadd.f32 %v5576, %v5041
      %v5578 = vadd.f32 %v5577, %v5042
      %v5579 = vadd.f32 %v5578, %v5043
      %v5580 = vadd.f32 %v5579, %v5044
      %v5581 = vadd.f32 %v5580, %v5045
      %v5582 = vadd.f32 %v5581, %v5046
      %v5583 = vadd.f32 %v5582, %v5047
      %v5584 = vadd.f32 %v5583, %v5048
      %v5585 = vadd.f32 %v5584, %v5049
      %v5586 = vadd.f32 %v5585, %v5050
      %v5587 = vrot.slane %v5586, 4
      %v5588 = vadd.f32 %v5586, %v5587
      %v5589 = vrot.slane %v5588, 2
      %v5590 = vadd.f32 %v5588, %v5589
      %v5591 = vrot.slane %v5590, 1
      %v5592 = vadd.f32 %v5590, %v5591
      %v5593 = vadd.f32 %v5051, %v5052
      %v5594 = vadd.f32 %v5593, %v5053
      %v5595 = vadd.f32 %v5594, %v5054
      %v5596 = vadd.f32 %v5595, %v5055
      %v5597 = vadd.f32 %v5596, %v5056
      %v5598 = vadd.f32 %v5597, %v5057
      %v5599 = vadd.f32 %v5598, %v5058
      %v5600 = vadd.f32 %v5599, %v5059
      %v5601 = vadd.f32 %v5600, %v5060
      %v5602 = vadd.f32 %v5601, %v5061
      %v5603 = vadd.f32 %v5602, %v5062
      %v5604 = vadd.f32 %v5603, %v5063
      %v5605 = vadd.f32 %v5604, %v5064
      %v5606 = vadd.f32 %v5605, %v5065
      %v5607 = vadd.f32 %v5606, %v5066
      %v5608 = vadd.f32 %v5607, %v5067
      %v5609 = vadd.f32 %v5608, %v5068
      %v5610 = vadd.f32 %v5609, %v5069
      %v5611 = vadd.f32 %v5610, %v5070
      %v5612 = vadd.f32 %v5611, %v5071
      %v5613 = vadd.f32 %v5612, %v5072
      %v5614 = vadd.f32 %v5613, %v5073
      %v5615 = vadd.f32 %v5614, %v5074
      %v5616 = vadd.f32 %v5615, %v5075
      %v5617 = vadd.f32 %v5616, %v5076
      %v5618 = vadd.f32 %v5617, %v5077
      %v5619 = vadd.f32 %v5618, %v5078
      %v5620 = vadd.f32 %v5619, %v5079
      %v5621 = vadd.f32 %v5620, %v5080
      %v5622 = vadd.f32 %v5621, %v5081
      %v5623 = vadd.f32 %v5622, %v5082
      %v5624 = vrot.slane %v5623, 4
      %v5625 = vadd.f32 %v5623, %v5624
      %v5626 = vrot.slane %v5625, 2
      %v5627 = vadd.f32 %v5625, %v5626
      %v5628 = vrot.slane %v5627, 1
      %v5629 = vadd.f32 %v5627, %v5628
      %v5630 = vadd.f32 %v5083, %v5084
      %v5631 = vadd.f32 %v5630, %v5085
      %v5632 = vadd.f32 %v5631, %v5086
      %v5633 = vadd.f32 %v5632, %v5087
      %v5634 = vadd.f32 %v5633, %v5088
      %v5635 = vadd.f32 %v5634, %v5089
      %v5636 = vadd.f32 %v5635, %v5090
      %v5637 = vadd.f32 %v5636, %v5091
      %v5638 = vadd.f32 %v5637, %v5092
      %v5639 = vadd.f32 %v5638, %v5093
      %v5640 = vadd.f32 %v5639, %v5094
      %v5641 = vadd.f32 %v5640, %v5095
      %v5642 = vadd.f32 %v5641, %v5096
      %v5643 = vadd.f32 %v5642, %v5097
      %v5644 = vadd.f32 %v5643, %v5098
      %v5645 = vadd.f32 %v5644, %v5099
      %v5646 = vadd.f32 %v5645, %v5100
      %v5647 = vadd.f32 %v5646, %v5101
      %v5648 = vadd.f32 %v5647, %v5102
      %v5649 = vadd.f32 %v5648, %v5103
      %v5650 = vadd.f32 %v5649, %v5104
      %v5651 = vadd.f32 %v5650, %v5105
      %v5652 = vadd.f32 %v5651, %v5106
      %v5653 = vadd.f32 %v5652, %v5107
      %v5654 = vadd.f32 %v5653, %v5108
      %v5655 = vadd.f32 %v5654, %v5109
      %v5656 = vadd.f32 %v5655, %v5110
      %v5657 = vadd.f32 %v5656, %v5111
      %v5658 = vadd.f32 %v5657, %v5112
      %v5659 = vadd.f32 %v5658, %v5113
      %v5660 = vadd.f32 %v5659, %v5114
      %v5661 = vrot.slane %v5660, 4
      %v5662 = vadd.f32 %v5660, %v5661
      %v5663 = vrot.slane %v5662, 2
      %v5664 = vadd.f32 %v5662, %v5663
      %v5665 = vrot.slane %v5664, 1
      %v5666 = vadd.f32 %v5664, %v5665
      %v5667 = vadd.f32 %v5115, %v5116
      %v5668 = vadd.f32 %v5667, %v5117
      %v5669 = vadd.f32 %v5668, %v5118
      %v5670 = vadd.f32 %v5669, %v5119
      %v5671 = vadd.f32 %v5670, %v5120
      %v5672 = vadd.f32 %v5671, %v5121
      %v5673 = vadd.f32 %v5672, %v5122
      %v5674 = vadd.f32 %v5673, %v5123
      %v5675 = vadd.f32 %v5674, %v5124
      %v5676 = vadd.f32 %v5675, %v5125
      %v5677 = vadd.f32 %v5676, %v5126
      %v5678 = vadd.f32 %v5677, %v5127
      %v5679 = vadd.f32 %v5678, %v5128
      %v5680 = vadd.f32 %v5679, %v5129
      %v5681 = vadd.f32 %v5680, %v5130
      %v5682 = vadd.f32 %v5681, %v5131
      %v5683 = vadd.f32 %v5682, %v5132
      %v5684 = vadd.f32 %v5683, %v5133
      %v5685 = vadd.f32 %v5684, %v5134
      %v5686 = vadd.f32 %v5685, %v5135
      %v5687 = vadd.f32 %v5686, %v5136
      %v5688 = vadd.f32 %v5687, %v5137
      %v5689 = vadd.f32 %v5688, %v5138
      %v5690 = vadd.f32 %v5689, %v5139
      %v5691 = vadd.f32 %v5690, %v5140
      %v5692 = vadd.f32 %v5691, %v5141
      %v5693 = vadd.f32 %v5692, %v5142
      %v5694 = vadd.f32 %v5693, %v5143
      %v5695 = vadd.f32 %v5694, %v5144
      %v5696 = vadd.f32 %v5695, %v5145
      %v5697 = vadd.f32 %v5696, %v5146
      %v5698 = vrot.slane %v5697, 4
      %v5699 = vadd.f32 %v5697, %v5698
      %v5700 = vrot.slane %v5699, 2
      %v5701 = vadd.f32 %v5699, %v5700
      %v5702 = vrot.slane %v5701, 1
      %v5703 = vadd.f32 %v5701, %v5702
      %v5704 = vadd.f32 %v5147, %v5148
      %v5705 = vadd.f32 %v5704, %v5149
      %v5706 = vadd.f32 %v5705, %v5150
      %v5707 = vadd.f32 %v5706, %v5151
      %v5708 = vadd.f32 %v5707, %v5152
      %v5709 = vadd.f32 %v5708, %v5153
      %v5710 = vadd.f32 %v5709, %v5154
      %v5711 = vadd.f32 %v5710, %v5155
      %v5712 = vadd.f32 %v5711, %v5156
      %v5713 = vadd.f32 %v5712, %v5157
      %v5714 = vadd.f32 %v5713, %v5158
      %v5715 = vadd.f32 %v5714, %v5159
      %v5716 = vadd.f32 %v5715, %v5160
      %v5717 = vadd.f32 %v5716, %v5161
      %v5718 = vadd.f32 %v5717, %v5162
      %v5719 = vadd.f32 %v5718, %v5163
      %v5720 = vadd.f32 %v5719, %v5164
      %v5721 = vadd.f32 %v5720, %v5165
      %v5722 = vadd.f32 %v5721, %v5166
      %v5723 = vadd.f32 %v5722, %v5167
      %v5724 = vadd.f32 %v5723, %v5168
      %v5725 = vadd.f32 %v5724, %v5169
      %v5726 = vadd.f32 %v5725, %v5170
      %v5727 = vadd.f32 %v5726, %v5171
      %v5728 = vadd.f32 %v5727, %v5172
      %v5729 = vadd.f32 %v5728, %v5173
      %v5730 = vadd.f32 %v5729, %v5174
      %v5731 = vadd.f32 %v5730, %v5175
      %v5732 = vadd.f32 %v5731, %v5176
      %v5733 = vadd.f32 %v5732, %v5177
      %v5734 = vadd.f32 %v5733, %v5178
      %v5735 = vrot.slane %v5734, 4
      %v5736 = vadd.f32 %v5734, %v5735
      %v5737 = vrot.slane %v5736, 2
      %v5738 = vadd.f32 %v5736, %v5737
      %v5739 = vrot.slane %v5738, 1
      %v5740 = vadd.f32 %v5738, %v5739
      %v5741 = vadd.f32 %v5179, %v5180
      %v5742 = vadd.f32 %v5741, %v5181
      %v5743 = vadd.f32 %v5742, %v5182
      %v5744 = vadd.f32 %v5743, %v5183
      %v5745 = vadd.f32 %v5744, %v5184
      %v5746 = vadd.f32 %v5745, %v5185
      %v5747 = vadd.f32 %v5746, %v5186
      %v5748 = vadd.f32 %v5747, %v5187
      %v5749 = vadd.f32 %v5748, %v5188
      %v5750 = vadd.f32 %v5749, %v5189
      %v5751 = vadd.f32 %v5750, %v5190
      %v5752 = vadd.f32 %v5751, %v5191
      %v5753 = vadd.f32 %v5752, %v5192
      %v5754 = vadd.f32 %v5753, %v5193
      %v5755 = vadd.f32 %v5754, %v5194
      %v5756 = vadd.f32 %v5755, %v5195
      %v5757 = vadd.f32 %v5756, %v5196
      %v5758 = vadd.f32 %v5757, %v5197
      %v5759 = vadd.f32 %v5758, %v5198
      %v5760 = vadd.f32 %v5759, %v5199
      %v5761 = vadd.f32 %v5760, %v5200
      %v5762 = vadd.f32 %v5761, %v5201
      %v5763 = vadd.f32 %v5762, %v5202
      %v5764 = vadd.f32 %v5763, %v5203
      %v5765 = vadd.f32 %v5764, %v5204
      %v5766 = vadd.f32 %v5765, %v5205
      %v5767 = vadd.f32 %v5766, %v5206
      %v5768 = vadd.f32 %v5767, %v5207
      %v5769 = vadd.f32 %v5768, %v5208
      %v5770 = vadd.f32 %v5769, %v5209
      %v5771 = vadd.f32 %v5770, %v5210
      %v5772 = vrot.slane %v5771, 4
      %v5773 = vadd.f32 %v5771, %v5772
      %v5774 = vrot.slane %v5773, 2
      %v5775 = vadd.f32 %v5773, %v5774
      %v5776 = vrot.slane %v5775, 1
      %v5777 = vadd.f32 %v5775, %v5776
      %v5778 = vadd.f32 %v5211, %v5212
      %v5779 = vadd.f32 %v5778, %v5213
      %v5780 = vadd.f32 %v5779, %v5214
      %v5781 = vadd.f32 %v5780, %v5215
      %v5782 = vadd.f32 %v5781, %v5216
      %v5783 = vadd.f32 %v5782, %v5217
      %v5784 = vadd.f32 %v5783, %v5218
      %v5785 = vadd.f32 %v5784, %v5219
      %v5786 = vadd.f32 %v5785, %v5220
      %v5787 = vadd.f32 %v5786, %v5221
      %v5788 = vadd.f32 %v5787, %v5222
      %v5789 = vadd.f32 %v5788, %v5223
      %v5790 = vadd.f32 %v5789, %v5224
      %v5791 = vadd.f32 %v5790, %v5225
      %v5792 = vadd.f32 %v5791, %v5226
      %v5793 = vadd.f32 %v5792, %v5227
      %v5794 = vadd.f32 %v5793, %v5228
      %v5795 = vadd.f32 %v5794, %v5229
      %v5796 = vadd.f32 %v5795, %v5230
      %v5797 = vadd.f32 %v5796, %v5231
      %v5798 = vadd.f32 %v5797, %v5232
      %v5799 = vadd.f32 %v5798, %v5233
      %v5800 = vadd.f32 %v5799, %v5234
      %v5801 = vadd.f32 %v5800, %v5235
      %v5802 = vadd.f32 %v5801, %v5236
      %v5803 = vadd.f32 %v5802, %v5237
      %v5804 = vadd.f32 %v5803, %v5238
      %v5805 = vadd.f32 %v5804, %v5239
      %v5806 = vadd.f32 %v5805, %v5240
      %v5807 = vadd.f32 %v5806, %v5241
      %v5808 = vadd.f32 %v5807, %v5242
      %v5809 = vrot.slane %v5808, 4
      %v5810 = vadd.f32 %v5808, %v5809
      %v5811 = vrot.slane %v5810, 2
      %v5812 = vadd.f32 %v5810, %v5811
      %v5813 = vrot.slane %v5812, 1
      %v5814 = vadd.f32 %v5812, %v5813
      %v5815 = vadd.f32 %v5243, %v5244
      %v5816 = vadd.f32 %v5815, %v5245
      %v5817 = vadd.f32 %v5816, %v5246
      %v5818 = vadd.f32 %v5817, %v5247
      %v5819 = vadd.f32 %v5818, %v5248
      %v5820 = vadd.f32 %v5819, %v5249
      %v5821 = vadd.f32 %v5820, %v5250
      %v5822 = vadd.f32 %v5821, %v5251
      %v5823 = vadd.f32 %v5822, %v5252
      %v5824 = vadd.f32 %v5823, %v5253
      %v5825 = vadd.f32 %v5824, %v5254
      %v5826 = vadd.f32 %v5825, %v5255
      %v5827 = vadd.f32 %v5826, %v5256
      %v5828 = vadd.f32 %v5827, %v5257
      %v5829 = vadd.f32 %v5828, %v5258
      %v5830 = vadd.f32 %v5829, %v5259
      %v5831 = vadd.f32 %v5830, %v5260
      %v5832 = vadd.f32 %v5831, %v5261
      %v5833 = vadd.f32 %v5832, %v5262
      %v5834 = vadd.f32 %v5833, %v5263
      %v5835 = vadd.f32 %v5834, %v5264
      %v5836 = vadd.f32 %v5835, %v5265
      %v5837 = vadd.f32 %v5836, %v5266
      %v5838 = vadd.f32 %v5837, %v5267
      %v5839 = vadd.f32 %v5838, %v5268
      %v5840 = vadd.f32 %v5839, %v5269
      %v5841 = vadd.f32 %v5840, %v5270
      %v5842 = vadd.f32 %v5841, %v5271
      %v5843 = vadd.f32 %v5842, %v5272
      %v5844 = vadd.f32 %v5843, %v5273
      %v5845 = vadd.f32 %v5844, %v5274
      %v5846 = vrot.slane %v5845, 4
      %v5847 = vadd.f32 %v5845, %v5846
      %v5848 = vrot.slane %v5847, 2
      %v5849 = vadd.f32 %v5847, %v5848
      %v5850 = vrot.slane %v5849, 1
      %v5851 = vadd.f32 %v5849, %v5850
      %v5852 = vadd.f32 %v5275, %v5276
      %v5853 = vadd.f32 %v5852, %v5277
      %v5854 = vadd.f32 %v5853, %v5278
      %v5855 = vadd.f32 %v5854, %v5279
      %v5856 = vadd.f32 %v5855, %v5280
      %v5857 = vadd.f32 %v5856, %v5281
      %v5858 = vadd.f32 %v5857, %v5282
      %v5859 = vadd.f32 %v5858, %v5283
      %v5860 = vadd.f32 %v5859, %v5284
      %v5861 = vadd.f32 %v5860, %v5285
      %v5862 = vadd.f32 %v5861, %v5286
      %v5863 = vadd.f32 %v5862, %v5287
      %v5864 = vadd.f32 %v5863, %v5288
      %v5865 = vadd.f32 %v5864, %v5289
      %v5866 = vadd.f32 %v5865, %v5290
      %v5867 = vadd.f32 %v5866, %v5291
      %v5868 = vadd.f32 %v5867, %v5292
      %v5869 = vadd.f32 %v5868, %v5293
      %v5870 = vadd.f32 %v5869, %v5294
      %v5871 = vadd.f32 %v5870, %v5295
      %v5872 = vadd.f32 %v5871, %v5296
      %v5873 = vadd.f32 %v5872, %v5297
      %v5874 = vadd.f32 %v5873, %v5298
      %v5875 = vadd.f32 %v5874, %v5299
      %v5876 = vadd.f32 %v5875, %v5300
      %v5877 = vadd.f32 %v5876, %v5301
      %v5878 = vadd.f32 %v5877, %v5302
      %v5879 = vadd.f32 %v5878, %v5303
      %v5880 = vadd.f32 %v5879, %v5304
      %v5881 = vadd.f32 %v5880, %v5305
      %v5882 = vadd.f32 %v5881, %v5306
      %v5883 = vrot.slane %v5882, 4
      %v5884 = vadd.f32 %v5882, %v5883
      %v5885 = vrot.slane %v5884, 2
      %v5886 = vadd.f32 %v5884, %v5885
      %v5887 = vrot.slane %v5886, 1
      %v5888 = vadd.f32 %v5886, %v5887
      %v5889 = vadd.f32 %v5307, %v5308
      %v5890 = vadd.f32 %v5889, %v5309
      %v5891 = vadd.f32 %v5890, %v5310
      %v5892 = vadd.f32 %v5891, %v5311
      %v5893 = vadd.f32 %v5892, %v5312
      %v5894 = vadd.f32 %v5893, %v5313
      %v5895 = vadd.f32 %v5894, %v5314
      %v5896 = vadd.f32 %v5895, %v5315
      %v5897 = vadd.f32 %v5896, %v5316
      %v5898 = vadd.f32 %v5897, %v5317
      %v5899 = vadd.f32 %v5898, %v5318
      %v5900 = vadd.f32 %v5899, %v5319
      %v5901 = vadd.f32 %v5900, %v5320
      %v5902 = vadd.f32 %v5901, %v5321
      %v5903 = vadd.f32 %v5902, %v5322
      %v5904 = vadd.f32 %v5903, %v5323
      %v5905 = vadd.f32 %v5904, %v5324
      %v5906 = vadd.f32 %v5905, %v5325
      %v5907 = vadd.f32 %v5906, %v5326
      %v5908 = vadd.f32 %v5907, %v5327
      %v5909 = vadd.f32 %v5908, %v5328
      %v5910 = vadd.f32 %v5909, %v5329
      %v5911 = vadd.f32 %v5910, %v5330
      %v5912 = vadd.f32 %v5911, %v5331
      %v5913 = vadd.f32 %v5912, %v5332
      %v5914 = vadd.f32 %v5913, %v5333
      %v5915 = vadd.f32 %v5914, %v5334
      %v5916 = vadd.f32 %v5915, %v5335
      %v5917 = vadd.f32 %v5916, %v5336
      %v5918 = vadd.f32 %v5917, %v5337
      %v5919 = vadd.f32 %v5918, %v5338
      %v5920 = vrot.slane %v5919, 4
      %v5921 = vadd.f32 %v5919, %v5920
      %v5922 = vrot.slane %v5921, 2
      %v5923 = vadd.f32 %v5921, %v5922
      %v5924 = vrot.slane %v5923, 1
      %v5925 = vadd.f32 %v5923, %v5924
      %v5926 = vadd.f32 %v5339, %v5340
      %v5927 = vadd.f32 %v5926, %v5341
      %v5928 = vadd.f32 %v5927, %v5342
      %v5929 = vadd.f32 %v5928, %v5343
      %v5930 = vadd.f32 %v5929, %v5344
      %v5931 = vadd.f32 %v5930, %v5345
      %v5932 = vadd.f32 %v5931, %v5346
      %v5933 = vadd.f32 %v5932, %v5347
      %v5934 = vadd.f32 %v5933, %v5348
      %v5935 = vadd.f32 %v5934, %v5349
      %v5936 = vadd.f32 %v5935, %v5350
      %v5937 = vadd.f32 %v5936, %v5351
      %v5938 = vadd.f32 %v5937, %v5352
      %v5939 = vadd.f32 %v5938, %v5353
      %v5940 = vadd.f32 %v5939, %v5354
      %v5941 = vadd.f32 %v5940, %v5355
      %v5942 = vadd.f32 %v5941, %v5356
      %v5943 = vadd.f32 %v5942, %v5357
      %v5944 = vadd.f32 %v5943, %v5358
      %v5945 = vadd.f32 %v5944, %v5359
      %v5946 = vadd.f32 %v5945, %v5360
      %v5947 = vadd.f32 %v5946, %v5361
      %v5948 = vadd.f32 %v5947, %v5362
      %v5949 = vadd.f32 %v5948, %v5363
      %v5950 = vadd.f32 %v5949, %v5364
      %v5951 = vadd.f32 %v5950, %v5365
      %v5952 = vadd.f32 %v5951, %v5366
      %v5953 = vadd.f32 %v5952, %v5367
      %v5954 = vadd.f32 %v5953, %v5368
      %v5955 = vadd.f32 %v5954, %v5369
      %v5956 = vadd.f32 %v5955, %v5370
      %v5957 = vrot.slane %v5956, 4
      %v5958 = vadd.f32 %v5956, %v5957
      %v5959 = vrot.slane %v5958, 2
      %v5960 = vadd.f32 %v5958, %v5959
      %v5961 = vrot.slane %v5960, 1
      %v5962 = vadd.f32 %v5960, %v5961
      %v5963 = vrcp.pop 256.0
      %v5964 = vmul.f32 %v5407, %v5963
      %v5965 = vmul.f32 %v5444, %v5963
      %v5966 = vmul.f32 %v5481, %v5963
      %v5967 = vmul.f32 %v5518, %v5963
      %v5968 = vmul.f32 %v5555, %v5963
      %v5969 = vmul.f32 %v5592, %v5963
      %v5970 = vmul.f32 %v5629, %v5963
      %v5971 = vmul.f32 %v5666, %v5963
      %v5972 = vmul.f32 %v5703, %v5963
      %v5973 = vmul.f32 %v5740, %v5963
      %v5974 = vmul.f32 %v5777, %v5963
      %v5975 = vmul.f32 %v5814, %v5963
      %v5976 = vmul.f32 %v5851, %v5963
      %v5977 = vmul.f32 %v5888, %v5963
      %v5978 = vmul.f32 %v5925, %v5963
      %v5979 = vmul.f32 %v5962, %v5963
      %v5980 = vpack.c.bf16 %v5964, %v5964
      %v5981 = vpack.c.bf16 %v5965, %v5965
      %v5982 = vpack.c.bf16 %v5966, %v5966
      %v5983 = vpack.c.bf16 %v5967, %v5967
      %v5984 = vpack.c.bf16 %v5968, %v5968
      %v5985 = vpack.c.bf16 %v5969, %v5969
      %v5986 = vpack.c.bf16 %v5970, %v5970
      %v5987 = vpack.c.bf16 %v5971, %v5971
      %v5988 = vpack.c.bf16 %v5972, %v5972
      %v5989 = vpack.c.bf16 %v5973, %v5973
      %v5990 = vpack.c.bf16 %v5974, %v5974
      %v5991 = vpack.c.bf16 %v5975, %v5975
      %v5992 = vpack.c.bf16 %v5976, %v5976
      %v5993 = vpack.c.bf16 %v5977, %v5977
      %v5994 = vpack.c.bf16 %v5978, %v5978
      %v5995 = vpack.c.bf16 %v5979, %v5979
      %v5996 = vld [vmem:[%s629] sm:$0xf]
      %v5997 = vld [vmem:[%s629 + $0x4] sm:$0xf]
      %v5998 = vld [vmem:[%s629 + $0x8] sm:$0xf]
      %v5999 = vld [vmem:[%s629 + $0xc] sm:$0xf]
      %v6000 = vld [vmem:[%s629 + $0x10] sm:$0xf]
      %v6001 = vld [vmem:[%s629 + $0x14] sm:$0xf]
      %v6002 = vld [vmem:[%s629 + $0x18] sm:$0xf]
      %v6003 = vld [vmem:[%s629 + $0x1c] sm:$0xf]
      %v6004 = vld [vmem:[%s629 + $0x20] sm:$0xf]
      %v6005 = vld [vmem:[%s629 + $0x24] sm:$0xf]
      %v6006 = vld [vmem:[%s629 + $0x28] sm:$0xf]
      %v6007 = vld [vmem:[%s629 + $0x2c] sm:$0xf]
      %v6008 = vld [vmem:[%s629 + $0x30] sm:$0xf]
      %v6009 = vld [vmem:[%s629 + $0x34] sm:$0xf]
      %v6010 = vld [vmem:[%s629 + $0x38] sm:$0xf]
      %v6011 = vld [vmem:[%s629 + $0x3c] sm:$0xf]
      %v6028 = vunpack.c.l.b16 %v5980
      %v6029 = vunpack.c.l.b16 %v5981
      %v6030 = vunpack.c.l.b16 %v5982
      %v6031 = vunpack.c.l.b16 %v5983
      %v6032 = vunpack.c.l.b16 %v5984
      %v6033 = vunpack.c.l.b16 %v5985
      %v6034 = vunpack.c.l.b16 %v5986
      %v6035 = vunpack.c.l.b16 %v5987
      %v6036 = vunpack.c.l.b16 %v5988
      %v6037 = vunpack.c.l.b16 %v5989
      %v6038 = vunpack.c.l.b16 %v5990
      %v6039 = vunpack.c.l.b16 %v5991
      %v6040 = vunpack.c.l.b16 %v5992
      %v6041 = vunpack.c.l.b16 %v5993
      %v6042 = vunpack.c.l.b16 %v5994
      %v6043 = vunpack.c.l.b16 %v5995
      %vm6044 = vcmask 1041409
      %v6045 = vsel %vm6044, %v6029, %v6028
      %vm6046 = vcmask 1042434
      %v6047 = vsel %vm6046, %v6030, %v6045
      %vm6048 = vcmask 1043459
      %v6049 = vsel %vm6048, %v6031, %v6047
      %vm6050 = vcmask 1044484
      %v6051 = vsel %vm6050, %v6032, %v6049
      %vm6052 = vcmask 1045509
      %v6053 = vsel %vm6052, %v6033, %v6051
      %vm6054 = vcmask 1046534
      %v6055 = vsel %vm6054, %v6034, %v6053
      %vm6056 = vcmask 1047559
      %v6057 = vsel %vm6056, %v6035, %v6055
      %v6058 = vsel %vm6044, %v6037, %v6036
      %v6059 = vsel %vm6046, %v6038, %v6058
      %v6060 = vsel %vm6048, %v6039, %v6059
      %v6061 = vsel %vm6050, %v6040, %v6060
      %v6062 = vsel %vm6052, %v6041, %v6061
      %v6063 = vsel %vm6054, %v6042, %v6062
      %v6064 = vsel %vm6056, %v6043, %v6063
      %v6065 = vpack.c.b16 %v6064, %v6057
      %v6083 = vunpack.c.l.b16 %v5996
      %v6084 = vunpack.c.l.b16 %v5997
      %v6085 = vunpack.c.l.b16 %v5998
      %v6086 = vunpack.c.l.b16 %v5999
      %v6087 = vunpack.c.l.b16 %v6000
      %v6088 = vunpack.c.l.b16 %v6001
      %v6089 = vunpack.c.l.b16 %v6002
      %v6090 = vunpack.c.l.b16 %v6003
      %v6091 = vunpack.c.l.b16 %v6004
      %v6092 = vunpack.c.l.b16 %v6005
      %v6093 = vunpack.c.l.b16 %v6006
      %v6094 = vunpack.c.l.b16 %v6007
      %v6095 = vunpack.c.l.b16 %v6008
      %v6096 = vunpack.c.l.b16 %v6009
      %v6097 = vunpack.c.l.b16 %v6010
      %v6098 = vunpack.c.l.b16 %v6011
      %v6099 = vpack.c.b16 %v6084, %v6083
      %v6100 = vpack.c.b16 %v6086, %v6085
      %v6101 = vpack.c.b16 %v6088, %v6087
      %v6102 = vpack.c.b16 %v6090, %v6089
      %v6103 = vpack.c.b16 %v6092, %v6091
      %v6104 = vpack.c.b16 %v6094, %v6093
      %v6105 = vpack.c.b16 %v6096, %v6095
      %v6106 = vpack.c.b16 %v6098, %v6097
      %6115 = vmatprep.subr.bf16.mxu0 0
      %6116 = vmatpush1.bf16.msra.mxu0 %v6106
      %6117 = vmatprep.subr.bf16.mxu0 0
      %6118 = vmatpush1.bf16.msra.mxu0 %v6105
      %6119 = vmatprep.subr.bf16.mxu0 0
      %6120 = vmatpush1.bf16.msra.mxu0 %v6104
      %6121 = vmatprep.subr.bf16.mxu0 0
      %6122 = vmatpush1.bf16.msra.mxu0 %v6103
      %6123 = vmatprep.subr.bf16.mxu0 0
      %6124 = vmatpush1.bf16.msra.mxu0 %v6102
      %6125 = vmatprep.subr.bf16.mxu0 0
      %6126 = vmatpush1.bf16.msra.mxu0 %v6101
      %6127 = vmatprep.subr.bf16.mxu0 0
      %6128 = vmatpush1.bf16.msra.mxu0 %v6100
      %6129 = vmatprep.subr.bf16.mxu0 0
      %6130 = vmatpush1.bf16.msra.mxu0 %v6099
      %6131 = vmatprep.subr.bf16.mxu0 0
      %6132 = vmatpush2.bf16.msra.mxu0 0
      %6133 = vmatprep.subr.bf16.mxu0 0
      %6134 = vmatpush2.bf16.msra.mxu0 0
      %6135 = vmatprep.subr.bf16.mxu0 0
      %6136 = vmatpush2.bf16.msra.mxu0 0
      %6137 = vmatprep.subr.bf16.mxu0 0
      %6138 = vmatpush2.bf16.msra.mxu0 0
      %6139 = vmatprep.subr.bf16.mxu0 0
      %6140 = vmatpush2.bf16.msra.mxu0 0
      %6141 = vmatprep.subr.bf16.mxu0 0
      %6142 = vmatpush2.bf16.msra.mxu0 0
      %6143 = vmatprep.subr.bf16.mxu0 0
      %6144 = vmatpush2.bf16.msra.mxu0 0
      %6145 = vmatprep.subr.bf16.mxu0 0
      %6146 = vmatpush2.bf16.msra.mxu0 0
      %6147 = vmatprep.mubr.bf16.mxu0 0
      %6148 = vmatmul.mubr.bf16.gmra.mxu0 %v6065
      %v6149 = vpop.f32.mrf.mxu0
      %v6150 = vadd.f32 0.0, %v6149
      %v6151 = vpop.f32.mrf.mxu0
      %v6152 = vpop.f32.mrf.mxu0
      %v6153 = vadd.f32 0.0, %v6152
      %v6154 = vpop.f32.mrf.mxu0
      %6155 = vdwg.mxu0
      %v6156 = vld [vmem:[%s632] sm:$0x1]
      %v6157 = vld [vmem:[%s635] sm:$0x1]
      %v6158 = vrot.slane %v6150, 4
      %v6159 = vadd.f32 %v6150, %v6158
      %v6160 = vrot.slane %v6159, 2
      %v6161 = vadd.f32 %v6159, %v6160
      %v6162 = vrot.slane %v6161, 1
      %v6163 = vadd.f32 %v6161, %v6162
      %v6164 = vrcp.pop 8.0
      %v6165 = vmul.f32 %v6163, %v6164
      %v6166 = vsub.f32 %v6150, %v6165
      %v6167 = vmul.f32 %v6166, %v6166
      %v6168 = vrot.slane %v6167, 4
      %v6169 = vadd.f32 %v6167, %v6168
      %v6170 = vrot.slane %v6169, 2
      %v6171 = vadd.f32 %v6169, %v6170
      %v6172 = vrot.slane %v6171, 1
      %v6173 = vadd.f32 %v6171, %v6172
      %v6174 = vmul.f32 %v6173, %v6164
      %v6175 = vadd.f32 %v6174, 1e-05
      %v6176 = vrsqrt.pop %v6175
      %v6177 = vmul.f32 %v6166, %v6176
      %v6178 = vrot.slane %v6153, 4
      %v6179 = vadd.f32 %v6153, %v6178
      %v6180 = vrot.slane %v6179, 2
      %v6181 = vadd.f32 %v6179, %v6180
      %v6182 = vrot.slane %v6181, 1
      %v6183 = vadd.f32 %v6181, %v6182
      %v6184 = vmul.f32 %v6183, %v6164
      %v6185 = vsub.f32 %v6153, %v6184
      %v6186 = vmul.f32 %v6185, %v6185
      %v6187 = vrot.slane %v6186, 4
      %v6188 = vadd.f32 %v6186, %v6187
      %v6189 = vrot.slane %v6188, 2
      %v6190 = vadd.f32 %v6188, %v6189
      %v6191 = vrot.slane %v6190, 1
      %v6192 = vadd.f32 %v6190, %v6191
      %v6193 = vmul.f32 %v6192, %v6164
      %v6194 = vadd.f32 %v6193, 1e-05
      %v6195 = vrsqrt.pop %v6194
      %v6196 = vmul.f32 %v6185, %v6195
      %v6198 = vlaneseq
      %v6199 = vshrl.u32 %v6198, 7
      %v6200 = vsub.s32 0, %v6199
      %v6201 = vrot.slane %v6156, %v6200
      %v6203 = vmul.f32 %v6177, %v6201
      %v6204 = vmul.f32 %v6196, %v6201
      %v6206 = vlaneseq
      %v6207 = vshrl.u32 %v6206, 7
      %v6208 = vsub.s32 0, %v6207
      %v6209 = vrot.slane %v6157, %v6208
      %v6211 = vadd.f32 %v6203, %v6209
      %v6212 = vadd.f32 %v6204, %v6209
      %v6213 = vmax.f32 %v6211, 0.0
      %v6214 = vmax.f32 %v6212, 0.0
      %v6215 = vpack.c.bf16 %v6214, %v6213
      %v6216 = vld [vmem:[%s640] sm:$0xf]
      %v6217 = vld [vmem:[%s640 + $0x4] sm:$0xf]
      %v6218 = vld [vmem:[%s640 + $0x8] sm:$0xf]
      %v6219 = vld [vmem:[%s640 + $0xc] sm:$0xf]
      %v6220 = vld [vmem:[%s640 + $0x10] sm:$0xf]
      %v6221 = vld [vmem:[%s640 + $0x14] sm:$0xf]
      %v6222 = vld [vmem:[%s640 + $0x18] sm:$0xf]
      %v6223 = vld [vmem:[%s640 + $0x1c] sm:$0xf]
      %v6224 = vld [vmem:[%s640 + $0x20] sm:$0xf]
      %v6225 = vld [vmem:[%s640 + $0x24] sm:$0xf]
      %v6226 = vld [vmem:[%s640 + $0x28] sm:$0xf]
      %v6227 = vld [vmem:[%s640 + $0x2c] sm:$0xf]
      %v6228 = vld [vmem:[%s640 + $0x30] sm:$0xf]
      %v6229 = vld [vmem:[%s640 + $0x34] sm:$0xf]
      %v6230 = vld [vmem:[%s640 + $0x38] sm:$0xf]
      %v6231 = vld [vmem:[%s640 + $0x3c] sm:$0xf]
      %v6248 = vunpack.c.l.b16 %v6216
      %v6249 = vunpack.c.l.b16 %v6217
      %v6250 = vunpack.c.l.b16 %v6218
      %v6251 = vunpack.c.l.b16 %v6219
      %v6252 = vunpack.c.l.b16 %v6220
      %v6253 = vunpack.c.l.b16 %v6221
      %v6254 = vunpack.c.l.b16 %v6222
      %v6255 = vunpack.c.l.b16 %v6223
      %v6256 = vunpack.c.l.b16 %v6224
      %v6257 = vunpack.c.l.b16 %v6225
      %v6258 = vunpack.c.l.b16 %v6226
      %v6259 = vunpack.c.l.b16 %v6227
      %v6260 = vunpack.c.l.b16 %v6228
      %v6261 = vunpack.c.l.b16 %v6229
      %v6262 = vunpack.c.l.b16 %v6230
      %v6263 = vunpack.c.l.b16 %v6231
      %v6264 = vpack.c.b16 %v6249, %v6248
      %v6265 = vpack.c.b16 %v6251, %v6250
      %v6266 = vpack.c.b16 %v6253, %v6252
      %v6267 = vpack.c.b16 %v6255, %v6254
      %v6268 = vpack.c.b16 %v6257, %v6256
      %v6269 = vpack.c.b16 %v6259, %v6258
      %v6270 = vpack.c.b16 %v6261, %v6260
      %v6271 = vpack.c.b16 %v6263, %v6262
      %6280 = vmatprep.subr.bf16.mxu0 0
      %6281 = vmatpush1.bf16.msra.mxu0 %v6271
      %6282 = vmatprep.subr.bf16.mxu0 0
      %6283 = vmatpush1.bf16.msra.mxu0 %v6270
      %6284 = vmatprep.subr.bf16.mxu0 0
      %6285 = vmatpush1.bf16.msra.mxu0 %v6269
      %6286 = vmatprep.subr.bf16.mxu0 0
      %6287 = vmatpush1.bf16.msra.mxu0 %v6268
      %6288 = vmatprep.subr.bf16.mxu0 0
      %6289 = vmatpush1.bf16.msra.mxu0 %v6267
      %6290 = vmatprep.subr.bf16.mxu0 0
      %6291 = vmatpush1.bf16.msra.mxu0 %v6266
      %6292 = vmatprep.subr.bf16.mxu0 0
      %6293 = vmatpush1.bf16.msra.mxu0 %v6265
      %6294 = vmatprep.subr.bf16.mxu0 0
      %6295 = vmatpush1.bf16.msra.mxu0 %v6264
      %6296 = vmatprep.subr.bf16.mxu0 0
      %6297 = vmatpush2.bf16.msra.mxu0 0
      %6298 = vmatprep.subr.bf16.mxu0 0
      %6299 = vmatpush2.bf16.msra.mxu0 0
      %6300 = vmatprep.subr.bf16.mxu0 0
      %6301 = vmatpush2.bf16.msra.mxu0 0
      %6302 = vmatprep.subr.bf16.mxu0 0
      %6303 = vmatpush2.bf16.msra.mxu0 0
      %6304 = vmatprep.subr.bf16.mxu0 0
      %6305 = vmatpush2.bf16.msra.mxu0 0
      %6306 = vmatprep.subr.bf16.mxu0 0
      %6307 = vmatpush2.bf16.msra.mxu0 0
      %6308 = vmatprep.subr.bf16.mxu0 0
      %6309 = vmatpush2.bf16.msra.mxu0 0
      %6310 = vmatprep.subr.bf16.mxu0 0
      %6311 = vmatpush2.bf16.msra.mxu0 0
      %6312 = vmatprep.mubr.bf16.mxu0 0
      %6313 = vmatmul.mubr.bf16.gmra.mxu0 %v6215
      %v6314 = vpop.f32.mrf.mxu0
      %v6315 = vadd.f32 0.0, %v6314
      %v6316 = vpop.f32.mrf.mxu0
      %v6317 = vpop.f32.mrf.mxu0
      %v6318 = vadd.f32 0.0, %v6317
      %v6319 = vpop.f32.mrf.mxu0
      %6320 = vdwg.mxu0
      %v6321 = vld [vmem:[%s643] sm:$0x1]
      %v6322 = vld [vmem:[%s646] sm:$0x1]
      %v6323 = vrot.slane %v6315, 4
      %v6324 = vadd.f32 %v6315, %v6323
      %v6325 = vrot.slane %v6324, 2
      %v6326 = vadd.f32 %v6324, %v6325
      %v6327 = vrot.slane %v6326, 1
      %v6328 = vadd.f32 %v6326, %v6327
      %v6329 = vmul.f32 %v6328, %v6164
      %v6330 = vsub.f32 %v6315, %v6329
      %v6331 = vmul.f32 %v6330, %v6330
      %v6332 = vrot.slane %v6331, 4
      %v6333 = vadd.f32 %v6331, %v6332
      %v6334 = vrot.slane %v6333, 2
      %v6335 = vadd.f32 %v6333, %v6334
      %v6336 = vrot.slane %v6335, 1
      %v6337 = vadd.f32 %v6335, %v6336
      %v6338 = vmul.f32 %v6337, %v6164
      %v6339 = vadd.f32 %v6338, 1e-05
      %v6340 = vrsqrt.pop %v6339
      %v6341 = vmul.f32 %v6330, %v6340
      %v6342 = vrot.slane %v6318, 4
      %v6343 = vadd.f32 %v6318, %v6342
      %v6344 = vrot.slane %v6343, 2
      %v6345 = vadd.f32 %v6343, %v6344
      %v6346 = vrot.slane %v6345, 1
      %v6347 = vadd.f32 %v6345, %v6346
      %v6348 = vmul.f32 %v6347, %v6164
      %v6349 = vsub.f32 %v6318, %v6348
      %v6350 = vmul.f32 %v6349, %v6349
      %v6351 = vrot.slane %v6350, 4
      %v6352 = vadd.f32 %v6350, %v6351
      %v6353 = vrot.slane %v6352, 2
      %v6354 = vadd.f32 %v6352, %v6353
      %v6355 = vrot.slane %v6354, 1
      %v6356 = vadd.f32 %v6354, %v6355
      %v6357 = vmul.f32 %v6356, %v6164
      %v6358 = vadd.f32 %v6357, 1e-05
      %v6359 = vrsqrt.pop %v6358
      %v6360 = vmul.f32 %v6349, %v6359
      %v6362 = vlaneseq
      %v6363 = vshrl.u32 %v6362, 7
      %v6364 = vsub.s32 0, %v6363
      %v6365 = vrot.slane %v6321, %v6364
      %v6367 = vmul.f32 %v6341, %v6365
      %v6368 = vmul.f32 %v6360, %v6365
      %v6370 = vlaneseq
      %v6371 = vshrl.u32 %v6370, 7
      %v6372 = vsub.s32 0, %v6371
      %v6373 = vrot.slane %v6322, %v6372
      %v6375 = vadd.f32 %v6367, %v6373
      %v6376 = vadd.f32 %v6368, %v6373
      %v6377 = vmax.f32 %v6375, 0.0
      %v6378 = vmax.f32 %v6376, 0.0
      %v6379 = vpack.c.bf16 %v6378, %v6377
      %v6380 = vld [vmem:[%s651] sm:$0xf]
      %v6381 = vld [vmem:[%s651 + $0x4] sm:$0xf]
      %v6382 = vld [vmem:[%s651 + $0x8] sm:$0xf]
      %v6383 = vld [vmem:[%s651 + $0xc] sm:$0xf]
      %v6384 = vld [vmem:[%s651 + $0x10] sm:$0xf]
      %v6385 = vld [vmem:[%s651 + $0x14] sm:$0xf]
      %v6386 = vld [vmem:[%s651 + $0x18] sm:$0xf]
      %v6387 = vld [vmem:[%s651 + $0x1c] sm:$0xf]
      %v6388 = vld [vmem:[%s651 + $0x20] sm:$0xf]
      %v6389 = vld [vmem:[%s651 + $0x24] sm:$0xf]
      %v6390 = vld [vmem:[%s651 + $0x28] sm:$0xf]
      %v6391 = vld [vmem:[%s651 + $0x2c] sm:$0xf]
      %v6392 = vld [vmem:[%s651 + $0x30] sm:$0xf]
      %v6393 = vld [vmem:[%s651 + $0x34] sm:$0xf]
      %v6394 = vld [vmem:[%s651 + $0x38] sm:$0xf]
      %v6395 = vld [vmem:[%s651 + $0x3c] sm:$0xf]
      %v6396 = vld [vmem:[%s654] sm:$0x1]
      %v6398 = vlaneseq
      %v6399 = vshrl.u32 %v6398, 7
      %v6400 = vsub.s32 0, %v6399
      %v6401 = vrot.slane %v6396, %v6400
      %v6419 = vunpack.c.l.b16 %v6380
      %v6420 = vunpack.c.l.b16 %v6381
      %v6421 = vunpack.c.l.b16 %v6382
      %v6422 = vunpack.c.l.b16 %v6383
      %v6423 = vunpack.c.l.b16 %v6384
      %v6424 = vunpack.c.l.b16 %v6385
      %v6425 = vunpack.c.l.b16 %v6386
      %v6426 = vunpack.c.l.b16 %v6387
      %v6427 = vunpack.c.l.b16 %v6388
      %v6428 = vunpack.c.l.b16 %v6389
      %v6429 = vunpack.c.l.b16 %v6390
      %v6430 = vunpack.c.l.b16 %v6391
      %v6431 = vunpack.c.l.b16 %v6392
      %v6432 = vunpack.c.l.b16 %v6393
      %v6433 = vunpack.c.l.b16 %v6394
      %v6434 = vunpack.c.l.b16 %v6395
      %v6435 = vpack.c.b16 %v6420, %v6419
      %v6436 = vpack.c.b16 %v6422, %v6421
      %v6437 = vpack.c.b16 %v6424, %v6423
      %v6438 = vpack.c.b16 %v6426, %v6425
      %v6439 = vpack.c.b16 %v6428, %v6427
      %v6440 = vpack.c.b16 %v6430, %v6429
      %v6441 = vpack.c.b16 %v6432, %v6431
      %v6442 = vpack.c.b16 %v6434, %v6433
      %6451 = vmatprep.subr.bf16.mxu0 0
      %6452 = vmatpush1.bf16.msra.mxu0 %v6442
      %6453 = vmatprep.subr.bf16.mxu0 0
      %6454 = vmatpush1.bf16.msra.mxu0 %v6441
      %6455 = vmatprep.subr.bf16.mxu0 0
      %6456 = vmatpush1.bf16.msra.mxu0 %v6440
      %6457 = vmatprep.subr.bf16.mxu0 0
      %6458 = vmatpush1.bf16.msra.mxu0 %v6439
      %6459 = vmatprep.subr.bf16.mxu0 0
      %6460 = vmatpush1.bf16.msra.mxu0 %v6438
      %6461 = vmatprep.subr.bf16.mxu0 0
      %6462 = vmatpush1.bf16.msra.mxu0 %v6437
      %6463 = vmatprep.subr.bf16.mxu0 0
      %6464 = vmatpush1.bf16.msra.mxu0 %v6436
      %6465 = vmatprep.subr.bf16.mxu0 0
      %6466 = vmatpush1.bf16.msra.mxu0 %v6435
      %6467 = vmatprep.subr.bf16.mxu0 0
      %6468 = vmatpush2.bf16.msra.mxu0 0
      %6469 = vmatprep.subr.bf16.mxu0 0
      %6470 = vmatpush2.bf16.msra.mxu0 0
      %6471 = vmatprep.subr.bf16.mxu0 0
      %6472 = vmatpush2.bf16.msra.mxu0 0
      %6473 = vmatprep.subr.bf16.mxu0 0
      %6474 = vmatpush2.bf16.msra.mxu0 0
      %6475 = vmatprep.subr.bf16.mxu0 0
      %6476 = vmatpush2.bf16.msra.mxu0 0
      %6477 = vmatprep.subr.bf16.mxu0 0
      %6478 = vmatpush2.bf16.msra.mxu0 0
      %6479 = vmatprep.subr.bf16.mxu0 0
      %6480 = vmatpush2.bf16.msra.mxu0 0
      %6481 = vmatprep.subr.bf16.mxu0 0
      %6482 = vmatpush2.bf16.msra.mxu0 0
      %6483 = vmatprep.mubr.bf16.mxu0 0
      %6484 = vmatmul.mubr.bf16.gmra.mxu0 %v6379
      %v6485 = vpop.f32.mrf.mxu0
      %v6486 = vadd.f32 %v6401, %v6485
      %v6487 = vpop.f32.mrf.mxu0
      %v6488 = vpop.f32.mrf.mxu0
      %v6489 = vadd.f32 %v6401, %v6488
      %v6490 = vpop.f32.mrf.mxu0
      %6491 = vdwg.mxu0
      %v6492 = vrot.slane %v6486, 4
      %v6493 = vadd.f32 %v6486, %v6492
      %v6494 = vrot.slane %v6493, 2
      %v6495 = vadd.f32 %v6493, %v6494
      %v6496 = vrot.slane %v6495, 1
      %v6497 = vadd.f32 %v6495, %v6496
      %v6498 = vmul.f32 %v6497, %v6164
      %v6499 = vsub.f32 %v6486, %v6498
      %v6500 = vmul.f32 %v6499, %v6499
      %v6501 = vrot.slane %v6500, 4
      %v6502 = vadd.f32 %v6500, %v6501
      %v6503 = vrot.slane %v6502, 2
      %v6504 = vadd.f32 %v6502, %v6503
      %v6505 = vrot.slane %v6504, 1
      %v6506 = vadd.f32 %v6504, %v6505
      %v6507 = vmul.f32 %v6506, %v6164
      %v6508 = vadd.f32 %v6507, 1e-05
      %v6509 = vrsqrt.pop %v6508
      %v6510 = vmul.f32 %v6499, %v6509
      %v6511 = vrot.slane %v6489, 4
      %v6512 = vadd.f32 %v6489, %v6511
      %v6513 = vrot.slane %v6512, 2
      %v6514 = vadd.f32 %v6512, %v6513
      %v6515 = vrot.slane %v6514, 1
      %v6516 = vadd.f32 %v6514, %v6515
      %v6517 = vmul.f32 %v6516, %v6164
      %v6518 = vsub.f32 %v6489, %v6517
      %v6519 = vmul.f32 %v6518, %v6518
      %v6520 = vrot.slane %v6519, 4
      %v6521 = vadd.f32 %v6519, %v6520
      %v6522 = vrot.slane %v6521, 2
      %v6523 = vadd.f32 %v6521, %v6522
      %v6524 = vrot.slane %v6523, 1
      %v6525 = vadd.f32 %v6523, %v6524
      %v6526 = vmul.f32 %v6525, %v6164
      %v6527 = vadd.f32 %v6526, 1e-05
      %v6528 = vrsqrt.pop %v6527
      %v6529 = vmul.f32 %v6518, %v6528
      %6530 = vst [vmem:[%s659] sm:$0xff] %v6510
      %6531 = vst [vmem:[%s659 + $0x8] sm:$0xff] %v6529
      %p6532 = scmp.eq.s32.totalorder %s28, 0
      // Predicated region
      $region81: #{byol_forward.1} parent=79 // pred_check
        %p6533 = pneg %p6532
      $region82: #{byol_forward.1} parent=79 // pred_check_branch
        %6535 = sbr.rel (%p6533) target = $region84
      $region83: #{byol_forward.1} parent=79 // pred_region
        %v6536 = vpack.c.bf16 %v6529, %v6510
        %v6537 = vld [vmem:[%s10] sm:$0xf]
        %v6538 = vld [vmem:[%s10 + $0x4] sm:$0xf]
        %v6539 = vld [vmem:[%s10 + $0x8] sm:$0xf]
        %v6540 = vld [vmem:[%s10 + $0xc] sm:$0xf]
        %v6541 = vld [vmem:[%s10 + $0x10] sm:$0xf]
        %v6542 = vld [vmem:[%s10 + $0x14] sm:$0xf]
        %v6543 = vld [vmem:[%s10 + $0x18] sm:$0xf]
        %v6544 = vld [vmem:[%s10 + $0x1c] sm:$0xf]
        %v6545 = vld [vmem:[%s10 + $0x20] sm:$0xf]
        %v6546 = vld [vmem:[%s10 + $0x24] sm:$0xf]
        %v6547 = vld [vmem:[%s10 + $0x28] sm:$0xf]
        %v6548 = vld [vmem:[%s10 + $0x2c] sm:$0xf]
        %v6549 = vld [vmem:[%s10 + $0x30] sm:$0xf]
        %v6550 = vld [vmem:[%s10 + $0x34] sm:$0xf]
        %v6551 = vld [vmem:[%s10 + $0x38] sm:$0xf]
        %v6552 = vld [vmem:[%s10 + $0x3c] sm:$0xf]
        %v6569 = vunpack.c.l.b16 %v6537
        %v6570 = vunpack.c.l.b16 %v6538
        %v6571 = vunpack.c.l.b16 %v6539
        %v6572 = vunpack.c.l.b16 %v6540
        %v6573 = vunpack.c.l.b16 %v6541
        %v6574 = vunpack.c.l.b16 %v6542
        %v6575 = vunpack.c.l.b16 %v6543
        %v6576 = vunpack.c.l.b16 %v6544
        %v6577 = vunpack.c.l.b16 %v6545
        %v6578 = vunpack.c.l.b16 %v6546
        %v6579 = vunpack.c.l.b16 %v6547
        %v6580 = vunpack.c.l.b16 %v6548
        %v6581 = vunpack.c.l.b16 %v6549
        %v6582 = vunpack.c.l.b16 %v6550
        %v6583 = vunpack.c.l.b16 %v6551
        %v6584 = vunpack.c.l.b16 %v6552
        %v6585 = vpack.c.b16 %v6570, %v6569
        %v6586 = vpack.c.b16 %v6572, %v6571
        %v6587 = vpack.c.b16 %v6574, %v6573
        %v6588 = vpack.c.b16 %v6576, %v6575
        %v6589 = vpack.c.b16 %v6578, %v6577
        %v6590 = vpack.c.b16 %v6580, %v6579
        %v6591 = vpack.c.b16 %v6582, %v6581
        %v6592 = vpack.c.b16 %v6584, %v6583
        %6601 = vmatprep.subr.bf16.mxu0 0
        %6602 = vmatpush1.bf16.msra.mxu0 %v6592
        %6603 = vmatprep.subr.bf16.mxu0 0
        %6604 = vmatpush1.bf16.msra.mxu0 %v6591
        %6605 = vmatprep.subr.bf16.mxu0 0
        %6606 = vmatpush1.bf16.msra.mxu0 %v6590
        %6607 = vmatprep.subr.bf16.mxu0 0
        %6608 = vmatpush1.bf16.msra.mxu0 %v6589
        %6609 = vmatprep.subr.bf16.mxu0 0
        %6610 = vmatpush1.bf16.msra.mxu0 %v6588
        %6611 = vmatprep.subr.bf16.mxu0 0
        %6612 = vmatpush1.bf16.msra.mxu0 %v6587
        %6613 = vmatprep.subr.bf16.mxu0 0
        %6614 = vmatpush1.bf16.msra.mxu0 %v6586
        %6615 = vmatprep.subr.bf16.mxu0 0
        %6616 = vmatpush1.bf16.msra.mxu0 %v6585
        %6617 = vmatprep.subr.bf16.mxu0 0
        %6618 = vmatpush2.bf16.msra.mxu0 0
        %6619 = vmatprep.subr.bf16.mxu0 0
        %6620 = vmatpush2.bf16.msra.mxu0 0
        %6621 = vmatprep.subr.bf16.mxu0 0
        %6622 = vmatpush2.bf16.msra.mxu0 0
        %6623 = vmatprep.subr.bf16.mxu0 0
        %6624 = vmatpush2.bf16.msra.mxu0 0
        %6625 = vmatprep.subr.bf16.mxu0 0
        %6626 = vmatpush2.bf16.msra.mxu0 0
        %6627 = vmatprep.subr.bf16.mxu0 0
        %6628 = vmatpush2.bf16.msra.mxu0 0
        %6629 = vmatprep.subr.bf16.mxu0 0
        %6630 = vmatpush2.bf16.msra.mxu0 0
        %6631 = vmatprep.subr.bf16.mxu0 0
        %6632 = vmatpush2.bf16.msra.mxu0 0
        %6633 = vmatprep.mubr.bf16.mxu0 0
        %6634 = vmatmul.mubr.bf16.gmra.mxu0 %v6536
        %v6635 = vpop.f32.mrf.mxu0
        %v6636 = vadd.f32 0.0, %v6635
        %v6637 = vpop.f32.mrf.mxu0
        %v6638 = vpop.f32.mrf.mxu0
        %v6639 = vadd.f32 0.0, %v6638
        %v6640 = vpop.f32.mrf.mxu0
        %6641 = vdwg.mxu0
        %v6642 = vld [vmem:[%s11] sm:$0x1]
        %v6643 = vld [vmem:[%s12] sm:$0x1]
        %v6644 = vrot.slane %v6636, 4
        %v6645 = vadd.f32 %v6636, %v6644
        %v6646 = vrot.slane %v6645, 2
        %v6647 = vadd.f32 %v6645, %v6646
        %v6648 = vrot.slane %v6647, 1
        %v6649 = vadd.f32 %v6647, %v6648
        %v6650 = vmul.f32 %v6649, %v6164
        %v6651 = vsub.f32 %v6636, %v6650
        %v6652 = vmul.f32 %v6651, %v6651
        %v6653 = vrot.slane %v6652, 4
        %v6654 = vadd.f32 %v6652, %v6653
        %v6655 = vrot.slane %v6654, 2
        %v6656 = vadd.f32 %v6654, %v6655
        %v6657 = vrot.slane %v6656, 1
        %v6658 = vadd.f32 %v6656, %v6657
        %v6659 = vmul.f32 %v6658, %v6164
        %v6660 = vadd.f32 %v6659, 1e-05
        %v6661 = vrsqrt.pop %v6660
        %v6662 = vmul.f32 %v6651, %v6661
        %v6663 = vrot.slane %v6639, 4
        %v6664 = vadd.f32 %v6639, %v6663
        %v6665 = vrot.slane %v6664, 2
        %v6666 = vadd.f32 %v6664, %v6665
        %v6667 = vrot.slane %v6666, 1
        %v6668 = vadd.f32 %v6666, %v6667
        %v6669 = vmul.f32 %v6668, %v6164
        %v6670 = vsub.f32 %v6639, %v6669
        %v6671 = vmul.f32 %v6670, %v6670
        %v6672 = vrot.slane %v6671, 4
        %v6673 = vadd.f32 %v6671, %v6672
        %v6674 = vrot.slane %v6673, 2
        %v6675 = vadd.f32 %v6673, %v6674
        %v6676 = vrot.slane %v6675, 1
        %v6677 = vadd.f32 %v6675, %v6676
        %v6678 = vmul.f32 %v6677, %v6164
        %v6679 = vadd.f32 %v6678, 1e-05
        %v6680 = vrsqrt.pop %v6679
        %v6681 = vmul.f32 %v6670, %v6680
        %v6683 = vlaneseq
        %v6684 = vshrl.u32 %v6683, 7
        %v6685 = vsub.s32 0, %v6684
        %v6686 = vrot.slane %v6642, %v6685
        %v6688 = vmul.f32 %v6662, %v6686
        %v6689 = vmul.f32 %v6681, %v6686
        %v6691 = vlaneseq
        %v6692 = vshrl.u32 %v6691, 7
        %v6693 = vsub.s32 0, %v6692
        %v6694 = vrot.slane %v6643, %v6693
        %v6696 = vadd.f32 %v6688, %v6694
        %v6697 = vadd.f32 %v6689, %v6694
        %v6698 = vmax.f32 %v6696, 0.0
        %v6699 = vmax.f32 %v6697, 0.0
        %v6700 = vpack.c.bf16 %v6699, %v6698
        %v6701 = vld [vmem:[%s13] sm:$0xf]
        %v6702 = vld [vmem:[%s13 + $0x4] sm:$0xf]
        %v6703 = vld [vmem:[%s13 + $0x8] sm:$0xf]
        %v6704 = vld [vmem:[%s13 + $0xc] sm:$0xf]
        %v6705 = vld [vmem:[%s13 + $0x10] sm:$0xf]
        %v6706 = vld [vmem:[%s13 + $0x14] sm:$0xf]
        %v6707 = vld [vmem:[%s13 + $0x18] sm:$0xf]
        %v6708 = vld [vmem:[%s13 + $0x1c] sm:$0xf]
        %v6709 = vld [vmem:[%s13 + $0x20] sm:$0xf]
        %v6710 = vld [vmem:[%s13 + $0x24] sm:$0xf]
        %v6711 = vld [vmem:[%s13 + $0x28] sm:$0xf]
        %v6712 = vld [vmem:[%s13 + $0x2c] sm:$0xf]
        %v6713 = vld [vmem:[%s13 + $0x30] sm:$0xf]
        %v6714 = vld [vmem:[%s13 + $0x34] sm:$0xf]
        %v6715 = vld [vmem:[%s13 + $0x38] sm:$0xf]
        %v6716 = vld [vmem:[%s13 + $0x3c] sm:$0xf]
        %v6717 = vld [vmem:[%s14] sm:$0x1]
        %v6719 = vlaneseq
        %v6720 = vshrl.u32 %v6719, 7
        %v6721 = vsub.s32 0, %v6720
        %v6722 = vrot.slane %v6717, %v6721
        %v6740 = vunpack.c.l.b16 %v6701
        %v6741 = vunpack.c.l.b16 %v6702
        %v6742 = vunpack.c.l.b16 %v6703
        %v6743 = vunpack.c.l.b16 %v6704
        %v6744 = vunpack.c.l.b16 %v6705
        %v6745 = vunpack.c.l.b16 %v6706
        %v6746 = vunpack.c.l.b16 %v6707
        %v6747 = vunpack.c.l.b16 %v6708
        %v6748 = vunpack.c.l.b16 %v6709
        %v6749 = vunpack.c.l.b16 %v6710
        %v6750 = vunpack.c.l.b16 %v6711
        %v6751 = vunpack.c.l.b16 %v6712
        %v6752 = vunpack.c.l.b16 %v6713
        %v6753 = vunpack.c.l.b16 %v6714
        %v6754 = vunpack.c.l.b16 %v6715
        %v6755 = vunpack.c.l.b16 %v6716
        %v6756 = vpack.c.b16 %v6741, %v6740
        %v6757 = vpack.c.b16 %v6743, %v6742
        %v6758 = vpack.c.b16 %v6745, %v6744
        %v6759 = vpack.c.b16 %v6747, %v6746
        %v6760 = vpack.c.b16 %v6749, %v6748
        %v6761 = vpack.c.b16 %v6751, %v6750
        %v6762 = vpack.c.b16 %v6753, %v6752
        %v6763 = vpack.c.b16 %v6755, %v6754
        %6772 = vmatprep.subr.bf16.mxu0 0
        %6773 = vmatpush1.bf16.msra.mxu0 %v6763
        %6774 = vmatprep.subr.bf16.mxu0 0
        %6775 = vmatpush1.bf16.msra.mxu0 %v6762
        %6776 = vmatprep.subr.bf16.mxu0 0
        %6777 = vmatpush1.bf16.msra.mxu0 %v6761
        %6778 = vmatprep.subr.bf16.mxu0 0
        %6779 = vmatpush1.bf16.msra.mxu0 %v6760
        %6780 = vmatprep.subr.bf16.mxu0 0
        %6781 = vmatpush1.bf16.msra.mxu0 %v6759
        %6782 = vmatprep.subr.bf16.mxu0 0
        %6783 = vmatpush1.bf16.msra.mxu0 %v6758
        %6784 = vmatprep.subr.bf16.mxu0 0
        %6785 = vmatpush1.bf16.msra.mxu0 %v6757
        %6786 = vmatprep.subr.bf16.mxu0 0
        %6787 = vmatpush1.bf16.msra.mxu0 %v6756
        %6788 = vmatprep.subr.bf16.mxu0 0
        %6789 = vmatpush2.bf16.msra.mxu0 0
        %6790 = vmatprep.subr.bf16.mxu0 0
        %6791 = vmatpush2.bf16.msra.mxu0 0
        %6792 = vmatprep.subr.bf16.mxu0 0
        %6793 = vmatpush2.bf16.msra.mxu0 0
        %6794 = vmatprep.subr.bf16.mxu0 0
        %6795 = vmatpush2.bf16.msra.mxu0 0
        %6796 = vmatprep.subr.bf16.mxu0 0
        %6797 = vmatpush2.bf16.msra.mxu0 0
        %6798 = vmatprep.subr.bf16.mxu0 0
        %6799 = vmatpush2.bf16.msra.mxu0 0
        %6800 = vmatprep.subr.bf16.mxu0 0
        %6801 = vmatpush2.bf16.msra.mxu0 0
        %6802 = vmatprep.subr.bf16.mxu0 0
        %6803 = vmatpush2.bf16.msra.mxu0 0
        %6804 = vmatprep.mubr.bf16.mxu0 0
        %6805 = vmatmul.mubr.bf16.gmra.mxu0 %v6700
        %v6806 = vpop.f32.mrf.mxu0
        %v6807 = vadd.f32 %v6722, %v6806
        %v6808 = vpop.f32.mrf.mxu0
        %v6809 = vpop.f32.mrf.mxu0
        %v6810 = vadd.f32 %v6722, %v6809
        %v6811 = vpop.f32.mrf.mxu0
        %6812 = vdwg.mxu0
        %6813 = vst [vmem:[%s664] sm:$0xff] %v6807
        %6814 = vst [vmem:[%s664 + $0x8] sm:$0xff] %v6810
      $region84: #{byol_forward.1} parent=79 // pred_fallthru
        _
      %p6815 = scmp.ne.s32.totalorder %s28, 0
      // Predicated region
      $region85: #{byol_forward.1} parent=79 // pred_check
        %p6816 = pneg %p6815
      $region86: #{byol_forward.1} parent=79 // pred_check_branch
        %6818 = sbr.rel (%p6816) target = $region88
      $region87: #{byol_forward.1} parent=79 // pred_region
        %6819 = vst [vmem:[%s664] sm:$0xff] 0.0
        %6820 = vst [vmem:[%s664 + $0x8] sm:$0xff] 0.0
      $region88: #{byol_forward.1} parent=79 // pred_fallthru
        _
      %p6821 = scmp.lt.s32.totalorder %s28, 1
      %s6822 = scalar_select %p6821, %s28, 1
      %s6823 = smul.addr %s6822, 2
      %s6824 = smul.addr %s6823, 8
      %s6825 = scalar_lea.vmem %s15, %s6824
      %p6826 = scmp.lt.s32.totalorder %s28, 1
      %s6827 = scalar_select %p6826, %s28, 1
      %s6828 = smul.addr %s6827, 2
      %s6829 = smul.addr %s6828, 8
      %s6830 = scalar_lea.vmem %s16, %s6829
      // Predicated region
      $region89: #{byol_forward.1} parent=79 // pred_check
        %p6831 = pneg %p406
      $region90: #{byol_forward.1} parent=79 // pred_check_branch
        %6833 = sbr.rel (%p6831) target = $region92
      $region91: #{byol_forward.1} parent=79 // pred_region
        _
      $region92: #{byol_forward.1} parent=79 // pred_fallthru
        _
      // Predicated region
      $region93: #{byol_forward.1} parent=79 // pred_check
        %p6834 = pneg %p432
      $region94: #{byol_forward.1} parent=79 // pred_check_branch
        %6836 = sbr.rel (%p6834) target = $region96
      $region95: #{byol_forward.1} parent=79 // pred_region
        _
      $region96: #{byol_forward.1} parent=79 // pred_fallthru
        _
    $region80: #{byol_forward.1} parent=5 // pred_fallthru
      _
    %p6837 = scmp.le.s32.totalorder 2, %s23
    // Predicated region
    $region97: #{byol_forward.1} parent=5 // pred_check
      %p6838 = pneg %p6837
    $region98: #{byol_forward.1} parent=5 // pred_check_branch
      %6840 = sbr.rel (%p6838) target = $region100
    $region99: #{byol_forward.1} parent=5 // pred_region
      %s6841 = ssub.s32 %s23, 2
      // Predicated region
      $region101: #{byol_forward.1} parent=99 // pred_check
        %p6842 = pneg %p412
      $region102: #{byol_forward.1} parent=99 // pred_check_branch
        %6844 = sbr.rel (%p6842) target = $region104
      $region103: #{byol_forward.1} parent=99 // pred_region
        %p6845 = scmp.lt.s32.totalorder %s29, 1
        %s6846 = scalar_select %p6845, %s29, 1
        %s6847 = smul.addr %s6846, 2
        %s6848 = smul.addr %s6847, 8
        %s6849 = scalar_lea.vmem %s15, %s6848
      $region104: #{byol_forward.1} parent=99 // pred_fallthru
        _
      // Predicated region
      $region105: #{byol_forward.1} parent=99 // pred_check
        %p6850 = pneg %p438
      $region106: #{byol_forward.1} parent=99 // pred_check_branch
        %6852 = sbr.rel (%p6850) target = $region108
      $region107: #{byol_forward.1} parent=99 // pred_region
        %p6853 = scmp.lt.s32.totalorder %s29, 1
        %s6854 = scalar_select %p6853, %s29, 1
        %s6855 = smul.addr %s6854, 2
        %s6856 = smul.addr %s6855, 8
        %s6857 = scalar_lea.vmem %s16, %s6856
      $region108: #{byol_forward.1} parent=99 // pred_fallthru
        _
    $region100: #{byol_forward.1} parent=5 // pred_fallthru
      _
  $region6: #{byol_forward.1} parent=0 // loop_footer
    %s27 = sadd.s32 1, %s23
  $region7: #{byol_forward.1} parent=0 // loop_footer_branch
    %22 = sbr.rel target = $region3
  $region8: #{byol_forward.1} parent=0 // loop_exit
    _

</llo_original>
